<compile_context>
chip_gen: v6e
topology: v6e:2x2x1
jax: 0.10.0
libtpu: 0.0.40
codegen_flags: <defaults>
</compile_context>

<pallas_src>
import numpy as np

import jax
import jax.numpy as jnp
from jax.experimental import pallas as pl
from jax.experimental.pallas import tpu as pltpu


MEAN = np.array([0.4914, 0.4822, 0.4465], np.float32)
STD = np.array([0.2470, 0.2435, 0.2616], np.float32)


# ----------------------------------------------------------------------------
# Fused forward kernel (everything VMEM-resident)
# ----------------------------------------------------------------------------
def _carso_kernel(
    x_ref, eps_ref,
    wm1_r, wm1_w, wm1_b, wm2_r, wm2_w, wm2_b,
    ic1_r, ic1_w, ic1_b, ic2_r, ic2_w, ic2_b,
    rc1_r, rc1_w, rc1_b, rc2_r, rc2_w, rc2_b,
    nscale, nshift,
    fx_v, fx_m, fx_sr, fx_sc,
    f1_v, f1_m, f1_sr, f1_sc,
    f2_v, f2_m, f2_sr, f2_sc,
    rfc_b, jfc_wc, jfc_b, mulv_w, mulv_b,
    dec_wz, dec_wc, dec_b,
    xrec_ref, mulv_ref,
):
    f32, bf16 = jnp.float32, jnp.bfloat16

    def conv(x16, r_ref, w_ref, b_ref):
        # relu( sum_di R_di @ X @ W_di + bias_row )  -- all 2-D MXU matmuls.
        k = r_ref.shape[0]
        out = None
        for di in range(k):
            t = jnp.dot(r_ref[di], x16, preferred_element_type=f32).astype(bf16)
            y = jnp.dot(t, w_ref[di], preferred_element_type=f32)
            out = y if out is None else out + y
        return jnp.maximum(out + b_ref[...], 0.0)          # f32 (B*Ho, Co*Wo)

    def flatcat(o_f32, v_ref, m_ref, sr_ref, sc_ref):
        # Folds "NCHW flatten -> Linear slice" into matmuls with constant mats:
        #   Z(B,L) = Sr @ ((O @ V) * M) @ Sc
        p = jnp.dot(o_f32.astype(bf16), v_ref[...], preferred_element_type=f32)
        p = (p * m_ref[...]).astype(bf16)
        q = jnp.dot(p, sc_ref[...], preferred_element_type=f32)
        return jnp.dot(sr_ref[...], q.astype(bf16), preferred_element_type=f32)

    x_raw = x_ref[...]                                      # (B*H, C*W) f32
    x16 = x_raw.astype(bf16)

    # ---- gather_model_repr: frozen wrapped model on RAW input -------------
    r1 = conv(x16, wm1_r, wm1_w, wm1_b)                     # (B*32, 8*32)
    r1_16 = r1.astype(bf16)
    r2 = conv(r1_16, wm2_r, wm2_w, wm2_b)                   # (B*16, 16*16)

    # ---- input_preproc (per-channel normalization) + input_compressor -----
    xp = (x_raw * nscale[...] + nshift[...]).astype(bf16)
    c1 = conv(xp, ic1_r, ic1_w, ic1_b)                      # (B*16, 12*16)
    c2 = conv(c1.astype(bf16), ic2_r, ic2_w, ic2_b)         # (B*8,  12*8)

    # ---- layer-wise repr compressors (7x7, no pad) -------------------------
    p1 = conv(r1_16, rc1_r, rc1_w, rc1_b)                   # (B*26, 1*26)
    p2 = conv(r2.astype(bf16), rc2_r, rc2_w, rc2_b)         # (B*10, 2*10)

    # ---- repr_fcn_compressor: latent_c = relu(repr_flat @ Wr + br) ---------
    lc = flatcat(p1, f1_v, f1_m, f1_sr, f1_sc) + flatcat(p2, f2_v, f2_m, f2_sr, f2_sc)
    lc = jnp.maximum(lc + rfc_b[...], 0.0)                  # (B, ccd)
    lc16 = lc.astype(bf16)

    # ---- joint_fcn_compressor: latent_z = relu([xc|latent_c] @ Wj + bj) ----
    lz = flatcat(c2, fx_v, fx_m, fx_sr, fx_sc)
    lz = lz + jnp.dot(lc16, jfc_wc[...], preferred_element_type=f32) + jfc_b[...]
    lz = jnp.maximum(lz, 0.0)                               # (B, jld)

    # ---- DuplexLinearNeck: mu | logvar as one merged matmul ----------------
    mulv = jnp.dot(lz.astype(bf16), mulv_w[...], preferred_element_type=f32) + mulv_b[...]
    mulv_ref[...] = mulv
    jld = mulv.shape[1] // 2
    mu = mulv[:, :jld]
    logvar = mulv[:, jld:]

    # ---- GaussianReparameterizerSampler (f32) ------------------------------
    zs = mu + jnp.exp(0.5 * logvar) * eps_ref[...]

    # ---- decoder: sigmoid([zsample | latent_c] @ Wd + bd) ------------------
    xr = jnp.dot(zs.astype(bf16), dec_wz[...], preferred_element_type=f32)
    xr = xr + jnp.dot(lc16, dec_wc[...], preferred_element_type=f32) + dec_b[...]
    xrec_ref[...] = jax.nn.sigmoid(xr)


def carso_forward(x, eps, ops):
    """x: (B, C, H, W), eps: (B, jld), ops: ordered list of kernel constants."""
    B, C, H, W = x.shape
    two_jld = ops[-4].shape[1]                              # mulv_b is (1, 2*jld)
    # one tiny layout op: NCHW -> X[b*H+i, c*W+j]
    x2d = jnp.transpose(x, (0, 2, 1, 3)).reshape(B * H, C * W).astype(jnp.float32)
    vmem = lambda: pl.BlockSpec(memory_space=pltpu.MemorySpace.VMEM)
    xrec_flat, mulv = pl.pallas_call(
        _carso_kernel,
        out_shape=(jax.ShapeDtypeStruct((B, C * H * W), jnp.float32),
                   jax.ShapeDtypeStruct((B, two_jld), jnp.float32)),
        in_specs=[vmem() for _ in range(2 + len(ops))],
        out_specs=(vmem(), vmem()),
    )(x2d, eps.astype(jnp.float32), *ops)
    jld = two_jld // 2
    return xrec_flat.reshape(B, C, H, W), mulv[:, :jld], mulv[:, jld:]


# ----------------------------------------------------------------------------
# Host-side constant builders (run once at parameter construction time)
# ----------------------------------------------------------------------------
def _init_conv(key, cout, cin, k):
    kw, kb = jax.random.split(key)
    s = 1.0 / np.sqrt(cin * k * k)
    w = jax.random.uniform(kw, (cout, cin, k, k), jnp.float32, -s, s)
    b = jax.random.uniform(kb, (cout,), jnp.float32, -s, s)
    return np.asarray(w), np.asarray(b)


def _init_linear(key, dout, din):
    kw, kb = jax.random.split(key)
    s = 1.0 / np.sqrt(din)
    w = jax.random.uniform(kw, (dout, din), jnp.float32, -s, s)
    b = jax.random.uniform(kb, (dout,), jnp.float32, -s, s)
    return np.asarray(w), np.asarray(b)


def _conv_mats(w, b, Hi, Wi, stride, pad, B):
    """Lower a Conv2d to k (R_di, W_di) constant matrices + bias row."""
    Co, Ci, k, _ = w.shape
    Ho = (Hi + 2 * pad - k) // stride + 1
    Wo = (Wi + 2 * pad - k) // stride + 1
    R = np.zeros((k, B * Ho, B * Hi), np.float32)
    for di in range(k):
        for bb in range(B):
            for i in range(Ho):
                r = i * stride + di - pad
                if 0 <= r < Hi:
                    R[di, bb * Ho + i, bb * Hi + r] = 1.0
    Wst = np.zeros((k, Ci * Wi, Co * Wo), np.float32)
    ci_idx = np.arange(Ci)
    co_idx = np.arange(Co)
    for di in range(k):
        for dj in range(k):
            for jo in range(Wo):
                c = jo * stride + dj - pad
                if 0 <= c < Wi:
                    Wst[di, (ci_idx * Wi + c)[:, None],
                        (co_idx * Wo + jo)[None, :]] = w[:, :, di, dj].T
    brow = np.repeat(b, Wo)[None, :].astype(np.float32)
    return (jnp.asarray(R, jnp.bfloat16), jnp.asarray(Wst, jnp.bfloat16),
            jnp.asarray(brow, jnp.float32), Ho, Wo)


def _flat_mats(wx, Hx, Co, Wo, L, B, f_of):
    """Fold 'NCHW flatten -> Linear rows' into (V, M, Sr, Sc) constants."""
    Cx = Co * Wo
    V = np.zeros((Cx, Hx * L), np.float32)
    for i in range(Hx):
        for co in range(Co):
            for jo in range(Wo):
                V[co * Wo + jo, i * L:(i + 1) * L] = wx[f_of(co, i, jo)]
    M = np.zeros((B * Hx, Hx * L), np.float32)
    for bb in range(B):
        for i in range(Hx):
            M[bb * Hx + i, i * L:(i + 1) * L] = 1.0
    Sr = np.zeros((B, B * Hx), np.float32)
    for bb in range(B):
        Sr[bb, bb * Hx:(bb + 1) * Hx] = 1.0
    Sc = np.tile(np.eye(L, dtype=np.float32), (Hx, 1))
    return [jnp.asarray(V, jnp.bfloat16), jnp.asarray(M, jnp.float32),
            jnp.asarray(Sr, jnp.bfloat16), jnp.asarray(Sc, jnp.bfloat16)]


def make_params(key, input_shape, compr_cond_dim, joint_latent_dim, batch):
    """Synthetic sub-modules (shapes follow CARSOWrap.__init__, datatiny=False)."""
    Cin, H, W = input_shape
    keys = jax.random.split(key, 11)
    raw = {}
    # wrapped_model (frozen feature extractor): two conv blocks -> repr layers
    raw["wm1"] = _init_conv(keys[0], 8, Cin, 3)     # (8,  32, 32)
    raw["wm2"] = _init_conv(keys[1], 16, 8, 3)      # (16, 16, 16) stride 2
    # input_compressor: Cin -> 4*Cin, spatial /4
    raw["ic1"] = _init_conv(keys[2], 4 * Cin, Cin, 3)
    raw["ic2"] = _init_conv(keys[3], 4 * Cin, 4 * Cin, 3)
    # repr_compressors: c -> ceil(c/8), 7x7 no pad
    raw["rc1"] = _init_conv(keys[4], 1, 8, 7)
    raw["rc2"] = _init_conv(keys[5], 2, 16, 7)

    pre_fcn_repr_size = 1 * (H - 6) * (W - 6) + 2 * (H // 2 - 6) * (W // 2 - 6)
    compr_input_size = 4 * Cin * (H // 4) * (W // 4)
    raw["rfc"] = _init_linear(keys[6], compr_cond_dim, pre_fcn_repr_size)
    raw["jfc"] = _init_linear(keys[7], joint_latent_dim,
                              compr_input_size + compr_cond_dim)
    raw["mu"] = _init_linear(keys[8], joint_latent_dim, joint_latent_dim)
    raw["lv"] = _init_linear(keys[9], joint_latent_dim, joint_latent_dim)
    # TODO(synk): the real make_decoder_cifar is a ConvTranspose stack; modeled
    # here as a single Linear(jld+ccd -> C*H*W) + sigmoid.
    raw["dec"] = _init_linear(keys[10], Cin * H * W,
                              joint_latent_dim + compr_cond_dim)
    raw["sizes"] = (pre_fcn_repr_size, compr_input_size)

    B, jld, ccd = batch, joint_latent_dim, compr_cond_dim
    ops = []
    wm1 = _conv_mats(*raw["wm1"], H, W, 1, 1, B)
    wm2 = _conv_mats(*raw["wm2"], H, W, 2, 1, B)
    ic1 = _conv_mats(*raw["ic1"], H, W, 2, 1, B)
    ic2 = _conv_mats(*raw["ic2"], H // 2, W // 2, 2, 1, B)
    rc1 = _conv_mats(*raw["rc1"], H, W, 1, 0, B)
    rc2 = _conv_mats(*raw["rc2"], H // 2, W // 2, 1, 0, B)
    for m in (wm1, wm2, ic1, ic2, rc1, rc2):
        ops.extend(m[:3])
    # input normalization rows (applied only on the compressor branch)
    ops.append(jnp.asarray(np.repeat(1.0 / STD, W)[None, :], jnp.float32))
    ops.append(jnp.asarray(np.repeat(-MEAN / STD, W)[None, :], jnp.float32))
    # flatten->FC folding constants (feature order = PyTorch NCHW flatten)
    jfc_wT = raw["jfc"][0].T                                # (768+ccd, jld)
    rfc_wT = raw["rfc"][0].T                                # (876, ccd)
    hx, wx = ic2[3], ic2[4]
    ops.extend(_flat_mats(jfc_wT, hx, 4 * Cin, wx, jld, B,
                          lambda co, i, jo, hw=hx * wx, ww=wx: co * hw + i * ww + jo))
    h1, w1 = rc1[3], rc1[4]
    ops.extend(_flat_mats(rfc_wT, h1, 1, w1, ccd, B,
                          lambda co, i, jo, hw=h1 * w1, ww=w1: co * hw + i * ww + jo))
    h2, w2 = rc2[3], rc2[4]
    off2 = 1 * h1 * w1
    ops.extend(_flat_mats(rfc_wT, h2, 2, w2, ccd, B,
                          lambda co, i, jo, hw=h2 * w2, ww=w2: off2 + co * hw + i * ww + jo))
    # remaining FC-tail weights (x @ W layout, concat inputs pre-split)
    cis = compr_input_size
    ops.append(jnp.asarray(raw["rfc"][1][None, :], jnp.float32))      # rfc_b
    ops.append(jnp.asarray(jfc_wT[cis:], jnp.bfloat16))               # jfc_wc
    ops.append(jnp.asarray(raw["jfc"][1][None, :], jnp.float32))      # jfc_b
    ops.append(jnp.asarray(np.concatenate([raw["mu"][0].T, raw["lv"][0].T], 1),
                           jnp.bfloat16))                             # mulv_w
    ops.append(jnp.asarray(np.concatenate([raw["mu"][1], raw["lv"][1]])[None, :],
                           jnp.float32))                              # mulv_b
    dec_wT = raw["dec"][0].T                                          # (jld+ccd, CHW)
    ops.append(jnp.asarray(dec_wT[:jld], jnp.bfloat16))               # dec_wz
    ops.append(jnp.asarray(dec_wT[jld:], jnp.bfloat16))               # dec_wc
    ops.append(jnp.asarray(raw["dec"][1][None, :], jnp.float32))      # dec_b
    return ops, raw


# ----------------------------------------------------------------------------
# Pure-JAX f32 reference of the same forward (for parity checking)
# ----------------------------------------------------------------------------
def reference_forward(x, raw, eps):
    def conv(h, wb, s, p):
        w, b = wb
        y = jax.lax.conv_general_dilated(
            h, jnp.asarray(w), (s, s), [(p, p), (p, p)],
            dimension_numbers=("NCHW", "OIHW", "NCHW"))
        return jax.nn.relu(y + jnp.asarray(b).reshape(1, -1, 1, 1))

    B = x.shape[0]
    r1 = conv(x, raw["wm1"], 1, 1)
    r2 = conv(r1, raw["wm2"], 2, 1)
    xp = (x - MEAN.reshape(1, 3, 1, 1)) / STD.reshape(1, 3, 1, 1)
    c1 = conv(xp, raw["ic1"], 2, 1)
    c2 = conv(c1, raw["ic2"], 2, 1)
    p1 = conv(r1, raw["rc1"], 1, 0)
    p2 = conv(r2, raw["rc2"], 1, 0)
    xc_flat = c2.reshape(B, -1)
    repr_flat = jnp.concatenate([p1.reshape(B, -1), p2.reshape(B, -1)], axis=1)
    lc = jax.nn.relu(repr_flat @ raw["rfc"][0].T + raw["rfc"][1])
    lz = jax.nn.relu(jnp.concatenate([xc_flat, lc], 1) @ raw["jfc"][0].T + raw["jfc"][1])
    mu = lz @ raw["mu"][0].T + raw["mu"][1]
    lv = lz @ raw["lv"][0].T + raw["lv"][1]
    zs = mu + jnp.exp(0.5 * lv) * eps
    xr = jax.nn.sigmoid(jnp.concatenate([zs, lc], 1) @ raw["dec"][0].T + raw["dec"][1])
    return xr.reshape(x.shape), mu, lv


if __name__ == "__main__":
    key = jax.random.PRNGKey(0)
    k_param, k_x, k_eps = jax.random.split(key, 3)

    B = 2
    input_shape = (3, 32, 32)          # CARSOWrap requires 3x32x32 (or 3x64x64)
    compr_cond_dim = 16
    joint_latent_dim = 32

    ops, raw = make_params(k_param, input_shape, compr_cond_dim,
                           joint_latent_dim, B)
    pre_fcn_repr_size, compr_input_size = raw["sizes"]
    assert pre_fcn_repr_size == 1 * 26 * 26 + 2 * 10 * 10          # 876
    assert compr_input_size == 4 * 3 * 8 * 8                       # 768

    x = jax.random.uniform(k_x, (B, *input_shape), jnp.float32)
    eps = jax.random.normal(k_eps, (B, joint_latent_dim), jnp.float32)

    fwd = jax.jit(carso_forward)
    xrec, mu, logvar = fwd(x, eps, ops)
    jax.block_until_ready((xrec, mu, logvar))

    assert xrec.shape == (B, *input_shape)
    assert mu.shape == (B, joint_latent_dim)
    assert logvar.shape == (B, joint_latent_dim)

    # parity vs. pure-JAX f32 reference (loose tolerance: bf16 MXU operands)
    xrec_r, mu_r, lv_r = reference_forward(x, raw, eps)
    assert float(jnp.max(jnp.abs(xrec - xrec_r))) < 3e-2
    assert float(jnp.max(jnp.abs(mu - mu_r))) < 3e-2
    assert float(jnp.max(jnp.abs(logvar - lv_r))) < 3e-2

    print("KERNEL_OK")
</pallas_src>

<mosaic_0001>
module attributes {stable_mosaic.version = 11 : i64} {
  func.func @_carso_kernel(%arg0: memref<64x96xf32, #tpu.memory_space<vmem>>, %arg1: memref<2x32xf32, #tpu.memory_space<vmem>>, %arg2: memref<3x64x64xbf16, #tpu.memory_space<vmem>>, %arg3: memref<3x96x256xbf16, #tpu.memory_space<vmem>>, %arg4: memref<1x256xf32, #tpu.memory_space<vmem>>, %arg5: memref<3x32x64xbf16, #tpu.memory_space<vmem>>, %arg6: memref<3x256x256xbf16, #tpu.memory_space<vmem>>, %arg7: memref<1x256xf32, #tpu.memory_space<vmem>>, %arg8: memref<3x32x64xbf16, #tpu.memory_space<vmem>>, %arg9: memref<3x96x192xbf16, #tpu.memory_space<vmem>>, %arg10: memref<1x192xf32, #tpu.memory_space<vmem>>, %arg11: memref<3x16x32xbf16, #tpu.memory_space<vmem>>, %arg12: memref<3x192x96xbf16, #tpu.memory_space<vmem>>, %arg13: memref<1x96xf32, #tpu.memory_space<vmem>>, %arg14: memref<7x52x64xbf16, #tpu.memory_space<vmem>>, %arg15: memref<7x256x26xbf16, #tpu.memory_space<vmem>>, %arg16: memref<1x26xf32, #tpu.memory_space<vmem>>, %arg17: memref<7x20x32xbf16, #tpu.memory_space<vmem>>, %arg18: memref<7x256x20xbf16, #tpu.memory_space<vmem>>, %arg19: memref<1x20xf32, #tpu.memory_space<vmem>>, %arg20: memref<1x96xf32, #tpu.memory_space<vmem>>, %arg21: memref<1x96xf32, #tpu.memory_space<vmem>>, %arg22: memref<96x256xbf16, #tpu.memory_space<vmem>>, %arg23: memref<16x256xf32, #tpu.memory_space<vmem>>, %arg24: memref<2x16xbf16, #tpu.memory_space<vmem>>, %arg25: memref<256x32xbf16, #tpu.memory_space<vmem>>, %arg26: memref<26x416xbf16, #tpu.memory_space<vmem>>, %arg27: memref<52x416xf32, #tpu.memory_space<vmem>>, %arg28: memref<2x52xbf16, #tpu.memory_space<vmem>>, %arg29: memref<416x16xbf16, #tpu.memory_space<vmem>>, %arg30: memref<20x160xbf16, #tpu.memory_space<vmem>>, %arg31: memref<20x160xf32, #tpu.memory_space<vmem>>, %arg32: memref<2x20xbf16, #tpu.memory_space<vmem>>, %arg33: memref<160x16xbf16, #tpu.memory_space<vmem>>, %arg34: memref<1x16xf32, #tpu.memory_space<vmem>>, %arg35: memref<16x32xbf16, #tpu.memory_space<vmem>>, %arg36: memref<1x32xf32, #tpu.memory_space<vmem>>, %arg37: memref<32x64xbf16, #tpu.memory_space<vmem>>, %arg38: memref<1x64xf32, #tpu.memory_space<vmem>>, %arg39: memref<32x3072xbf16, #tpu.memory_space<vmem>>, %arg40: memref<16x3072xbf16, #tpu.memory_space<vmem>>, %arg41: memref<1x3072xf32, #tpu.memory_space<vmem>>, %arg42: memref<2x3072xf32, #tpu.memory_space<vmem>>, %arg43: memref<2x64xf32, #tpu.memory_space<vmem>>) attributes {dimension_semantics = [], scalar_prefetch = 0 : i64, scratch_operands = 0 : i64, tpu.core_type = #tpu.core_type<tc>} {
    %c0 = arith.constant 0 : index
    %c0_0 = arith.constant 0 : index
    %0 = vector.load %arg0[%c0, %c0_0] : memref<64x96xf32, #tpu.memory_space<vmem>>, vector<64x96xf32>
    %1 = arith.truncf %0 : vector<64x96xf32> to vector<64x96xbf16>
    %c0_1 = arith.constant 0 : index
    %c0_2 = arith.constant 0 : index
    %c0_3 = arith.constant 0 : index
    %2 = vector.load %arg2[%c0_1, %c0_2, %c0_3] : memref<3x64x64xbf16, #tpu.memory_space<vmem>>, vector<1x64x64xbf16>
    %3 = vector.shape_cast %2 : vector<1x64x64xbf16> to vector<64x64xbf16>
    %cst = arith.constant dense<0.000000e+00> : vector<64x96xf32>
    %4 = tpu.matmul %3, %1, %cst {dimension_numbers = #tpu.dot_dimension_numbers<[1], [0], [0], [1], [0, 0, 1, 1], [], []>} : vector<64x64xbf16>, vector<64x96xbf16>, vector<64x96xf32> -> vector<64x96xf32>
    %5 = arith.truncf %4 : vector<64x96xf32> to vector<64x96xbf16>
    %c0_4 = arith.constant 0 : index
    %c0_5 = arith.constant 0 : index
    %c0_6 = arith.constant 0 : index
    %6 = vector.load %arg3[%c0_4, %c0_5, %c0_6] : memref<3x96x256xbf16, #tpu.memory_space<vmem>>, vector<1x96x256xbf16>
    %7 = vector.shape_cast %6 : vector<1x96x256xbf16> to vector<96x256xbf16>
    %cst_7 = arith.constant dense<0.000000e+00> : vector<64x256xf32>
    %8 = tpu.matmul %5, %7, %cst_7 {dimension_numbers = #tpu.dot_dimension_numbers<[1], [0], [0], [1], [0, 0, 1, 1], [], []>} : vector<64x96xbf16>, vector<96x256xbf16>, vector<64x256xf32> -> vector<64x256xf32>
    %c1 = arith.constant 1 : index
    %c0_8 = arith.constant 0 : index
    %c0_9 = arith.constant 0 : index
    %9 = vector.load %arg2[%c1, %c0_8, %c0_9] : memref<3x64x64xbf16, #tpu.memory_space<vmem>>, vector<1x64x64xbf16>
    %10 = vector.shape_cast %9 : vector<1x64x64xbf16> to vector<64x64xbf16>
    %cst_10 = arith.constant dense<0.000000e+00> : vector<64x96xf32>
    %11 = tpu.matmul %10, %1, %cst_10 {dimension_numbers = #tpu.dot_dimension_numbers<[1], [0], [0], [1], [0, 0, 1, 1], [], []>} : vector<64x64xbf16>, vector<64x96xbf16>, vector<64x96xf32> -> vector<64x96xf32>
    %12 = arith.truncf %11 : vector<64x96xf32> to vector<64x96xbf16>
    %c1_11 = arith.constant 1 : index
    %c0_12 = arith.constant 0 : index
    %c0_13 = arith.constant 0 : index
    %13 = vector.load %arg3[%c1_11, %c0_12, %c0_13] : memref<3x96x256xbf16, #tpu.memory_space<vmem>>, vector<1x96x256xbf16>
    %14 = vector.shape_cast %13 : vector<1x96x256xbf16> to vector<96x256xbf16>
    %cst_14 = arith.constant dense<0.000000e+00> : vector<64x256xf32>
    %15 = tpu.matmul %12, %14, %cst_14 {dimension_numbers = #tpu.dot_dimension_numbers<[1], [0], [0], [1], [0, 0, 1, 1], [], []>} : vector<64x96xbf16>, vector<96x256xbf16>, vector<64x256xf32> -> vector<64x256xf32>
    %16 = arith.addf %8, %15 : vector<64x256xf32>
    %c2 = arith.constant 2 : index
    %c0_15 = arith.constant 0 : index
    %c0_16 = arith.constant 0 : index
    %17 = vector.load %arg2[%c2, %c0_15, %c0_16] : memref<3x64x64xbf16, #tpu.memory_space<vmem>>, vector<1x64x64xbf16>
    %18 = vector.shape_cast %17 : vector<1x64x64xbf16> to vector<64x64xbf16>
    %cst_17 = arith.constant dense<0.000000e+00> : vector<64x96xf32>
    %19 = tpu.matmul %18, %1, %cst_17 {dimension_numbers = #tpu.dot_dimension_numbers<[1], [0], [0], [1], [0, 0, 1, 1], [], []>} : vector<64x64xbf16>, vector<64x96xbf16>, vector<64x96xf32> -> vector<64x96xf32>
    %20 = arith.truncf %19 : vector<64x96xf32> to vector<64x96xbf16>
    %c2_18 = arith.constant 2 : index
    %c0_19 = arith.constant 0 : index
    %c0_20 = arith.constant 0 : index
    %21 = vector.load %arg3[%c2_18, %c0_19, %c0_20] : memref<3x96x256xbf16, #tpu.memory_space<vmem>>, vector<1x96x256xbf16>
    %22 = vector.shape_cast %21 : vector<1x96x256xbf16> to vector<96x256xbf16>
    %cst_21 = arith.constant dense<0.000000e+00> : vector<64x256xf32>
    %23 = tpu.matmul %20, %22, %cst_21 {dimension_numbers = #tpu.dot_dimension_numbers<[1], [0], [0], [1], [0, 0, 1, 1], [], []>} : vector<64x96xbf16>, vector<96x256xbf16>, vector<64x256xf32> -> vector<64x256xf32>
    %24 = arith.addf %16, %23 : vector<64x256xf32>
    %c0_22 = arith.constant 0 : index
    %c0_23 = arith.constant 0 : index
    %25 = vector.load %arg4[%c0_22, %c0_23] : memref<1x256xf32, #tpu.memory_space<vmem>>, vector<1x256xf32>
    %26 = vector.broadcast %25 : vector<1x256xf32> to vector<64x256xf32>
    %27 = arith.addf %24, %26 : vector<64x256xf32>
    %cst_24 = arith.constant 0.000000e+00 : f32
    %28 = vector.broadcast %cst_24 : f32 to vector<64x256xf32>
    %29 = arith.maximumf %27, %28 : vector<64x256xf32>
    %30 = arith.truncf %29 : vector<64x256xf32> to vector<64x256xbf16>
    %c0_25 = arith.constant 0 : index
    %c0_26 = arith.constant 0 : index
    %c0_27 = arith.constant 0 : index
    %31 = vector.load %arg5[%c0_25, %c0_26, %c0_27] : memref<3x32x64xbf16, #tpu.memory_space<vmem>>, vector<1x32x64xbf16>
    %32 = vector.shape_cast %31 : vector<1x32x64xbf16> to vector<32x64xbf16>
    %cst_28 = arith.constant dense<0.000000e+00> : vector<32x256xf32>
    %33 = tpu.matmul %32, %30, %cst_28 {dimension_numbers = #tpu.dot_dimension_numbers<[1], [0], [0], [1], [0, 0, 1, 1], [], []>} : vector<32x64xbf16>, vector<64x256xbf16>, vector<32x256xf32> -> vector<32x256xf32>
    %34 = arith.truncf %33 : vector<32x256xf32> to vector<32x256xbf16>
    %c0_29 = arith.constant 0 : index
    %c0_30 = arith.constant 0 : index
    %c0_31 = arith.constant 0 : index
    %35 = vector.load %arg6[%c0_29, %c0_30, %c0_31] : memref<3x256x256xbf16, #tpu.memory_space<vmem>>, vector<1x256x256xbf16>
    %36 = vector.shape_cast %35 : vector<1x256x256xbf16> to vector<256x256xbf16>
    %cst_32 = arith.constant dense<0.000000e+00> : vector<32x256xf32>
    %37 = tpu.matmul %34, %36, %cst_32 {dimension_numbers = #tpu.dot_dimension_numbers<[1], [0], [0], [1], [0, 0, 1, 1], [], []>} : vector<32x256xbf16>, vector<256x256xbf16>, vector<32x256xf32> -> vector<32x256xf32>
    %c1_33 = arith.constant 1 : index
    %c0_34 = arith.constant 0 : index
    %c0_35 = arith.constant 0 : index
    %38 = vector.load %arg5[%c1_33, %c0_34, %c0_35] : memref<3x32x64xbf16, #tpu.memory_space<vmem>>, vector<1x32x64xbf16>
    %39 = vector.shape_cast %38 : vector<1x32x64xbf16> to vector<32x64xbf16>
    %cst_36 = arith.constant dense<0.000000e+00> : vector<32x256xf32>
    %40 = tpu.matmul %39, %30, %cst_36 {dimension_numbers = #tpu.dot_dimension_numbers<[1], [0], [0], [1], [0, 0, 1, 1], [], []>} : vector<32x64xbf16>, vector<64x256xbf16>, vector<32x256xf32> -> vector<32x256xf32>
    %41 = arith.truncf %40 : vector<32x256xf32> to vector<32x256xbf16>
    %c1_37 = arith.constant 1 : index
    %c0_38 = arith.constant 0 : index
    %c0_39 = arith.constant 0 : index
    %42 = vector.load %arg6[%c1_37, %c0_38, %c0_39] : memref<3x256x256xbf16, #tpu.memory_space<vmem>>, vector<1x256x256xbf16>
    %43 = vector.shape_cast %42 : vector<1x256x256xbf16> to vector<256x256xbf16>
    %cst_40 = arith.constant dense<0.000000e+00> : vector<32x256xf32>
    %44 = tpu.matmul %41, %43, %cst_40 {dimension_numbers = #tpu.dot_dimension_numbers<[1], [0], [0], [1], [0, 0, 1, 1], [], []>} : vector<32x256xbf16>, vector<256x256xbf16>, vector<32x256xf32> -> vector<32x256xf32>
    %45 = arith.addf %37, %44 : vector<32x256xf32>
    %c2_41 = arith.constant 2 : index
    %c0_42 = arith.constant 0 : index
    %c0_43 = arith.constant 0 : index
    %46 = vector.load %arg5[%c2_41, %c0_42, %c0_43] : memref<3x32x64xbf16, #tpu.memory_space<vmem>>, vector<1x32x64xbf16>
    %47 = vector.shape_cast %46 : vector<1x32x64xbf16> to vector<32x64xbf16>
    %cst_44 = arith.constant dense<0.000000e+00> : vector<32x256xf32>
    %48 = tpu.matmul %47, %30, %cst_44 {dimension_numbers = #tpu.dot_dimension_numbers<[1], [0], [0], [1], [0, 0, 1, 1], [], []>} : vector<32x64xbf16>, vector<64x256xbf16>, vector<32x256xf32> -> vector<32x256xf32>
    %49 = arith.truncf %48 : vector<32x256xf32> to vector<32x256xbf16>
    %c2_45 = arith.constant 2 : index
    %c0_46 = arith.constant 0 : index
    %c0_47 = arith.constant 0 : index
    %50 = vector.load %arg6[%c2_45, %c0_46, %c0_47] : memref<3x256x256xbf16, #tpu.memory_space<vmem>>, vector<1x256x256xbf16>
    %51 = vector.shape_cast %50 : vector<1x256x256xbf16> to vector<256x256xbf16>
    %cst_48 = arith.constant dense<0.000000e+00> : vector<32x256xf32>
    %52 = tpu.matmul %49, %51, %cst_48 {dimension_numbers = #tpu.dot_dimension_numbers<[1], [0], [0], [1], [0, 0, 1, 1], [], []>} : vector<32x256xbf16>, vector<256x256xbf16>, vector<32x256xf32> -> vector<32x256xf32>
    %53 = arith.addf %45, %52 : vector<32x256xf32>
    %c0_49 = arith.constant 0 : index
    %c0_50 = arith.constant 0 : index
    %54 = vector.load %arg7[%c0_49, %c0_50] : memref<1x256xf32, #tpu.memory_space<vmem>>, vector<1x256xf32>
    %55 = vector.broadcast %54 : vector<1x256xf32> to vector<32x256xf32>
    %56 = arith.addf %53, %55 : vector<32x256xf32>
    %cst_51 = arith.constant 0.000000e+00 : f32
    %57 = vector.broadcast %cst_51 : f32 to vector<32x256xf32>
    %58 = arith.maximumf %56, %57 : vector<32x256xf32>
    %c0_52 = arith.constant 0 : index
    %c0_53 = arith.constant 0 : index
    %59 = vector.load %arg20[%c0_52, %c0_53] : memref<1x96xf32, #tpu.memory_space<vmem>>, vector<1x96xf32>
    %60 = vector.broadcast %59 : vector<1x96xf32> to vector<64x96xf32>
    %61 = arith.mulf %0, %60 : vector<64x96xf32>
    %c0_54 = arith.constant 0 : index
    %c0_55 = arith.constant 0 : index
    %62 = vector.load %arg21[%c0_54, %c0_55] : memref<1x96xf32, #tpu.memory_space<vmem>>, vector<1x96xf32>
    %63 = vector.broadcast %62 : vector<1x96xf32> to vector<64x96xf32>
    %64 = arith.addf %61, %63 : vector<64x96xf32>
    %65 = arith.truncf %64 : vector<64x96xf32> to vector<64x96xbf16>
    %c0_56 = arith.constant 0 : index
    %c0_57 = arith.constant 0 : index
    %c0_58 = arith.constant 0 : index
    %66 = vector.load %arg8[%c0_56, %c0_57, %c0_58] : memref<3x32x64xbf16, #tpu.memory_space<vmem>>, vector<1x32x64xbf16>
    %67 = vector.shape_cast %66 : vector<1x32x64xbf16> to vector<32x64xbf16>
    %cst_59 = arith.constant dense<0.000000e+00> : vector<32x96xf32>
    %68 = tpu.matmul %67, %65, %cst_59 {dimension_numbers = #tpu.dot_dimension_numbers<[1], [0], [0], [1], [0, 0, 1, 1], [], []>} : vector<32x64xbf16>, vector<64x96xbf16>, vector<32x96xf32> -> vector<32x96xf32>
    %69 = arith.truncf %68 : vector<32x96xf32> to vector<32x96xbf16>
    %c0_60 = arith.constant 0 : index
    %c0_61 = arith.constant 0 : index
    %c0_62 = arith.constant 0 : index
    %70 = vector.load %arg9[%c0_60, %c0_61, %c0_62] : memref<3x96x192xbf16, #tpu.memory_space<vmem>>, vector<1x96x192xbf16>
    %71 = vector.shape_cast %70 : vector<1x96x192xbf16> to vector<96x192xbf16>
    %cst_63 = arith.constant dense<0.000000e+00> : vector<32x192xf32>
    %72 = tpu.matmul %69, %71, %cst_63 {dimension_numbers = #tpu.dot_dimension_numbers<[1], [0], [0], [1], [0, 0, 1, 1], [], []>} : vector<32x96xbf16>, vector<96x192xbf16>, vector<32x192xf32> -> vector<32x192xf32>
    %c1_64 = arith.constant 1 : index
    %c0_65 = arith.constant 0 : index
    %c0_66 = arith.constant 0 : index
    %73 = vector.load %arg8[%c1_64, %c0_65, %c0_66] : memref<3x32x64xbf16, #tpu.memory_space<vmem>>, vector<1x32x64xbf16>
    %74 = vector.shape_cast %73 : vector<1x32x64xbf16> to vector<32x64xbf16>
    %cst_67 = arith.constant dense<0.000000e+00> : vector<32x96xf32>
    %75 = tpu.matmul %74, %65, %cst_67 {dimension_numbers = #tpu.dot_dimension_numbers<[1], [0], [0], [1], [0, 0, 1, 1], [], []>} : vector<32x64xbf16>, vector<64x96xbf16>, vector<32x96xf32> -> vector<32x96xf32>
    %76 = arith.truncf %75 : vector<32x96xf32> to vector<32x96xbf16>
    %c1_68 = arith.constant 1 : index
    %c0_69 = arith.constant 0 : index
    %c0_70 = arith.constant 0 : index
    %77 = vector.load %arg9[%c1_68, %c0_69, %c0_70] : memref<3x96x192xbf16, #tpu.memory_space<vmem>>, vector<1x96x192xbf16>
    %78 = vector.shape_cast %77 : vector<1x96x192xbf16> to vector<96x192xbf16>
    %cst_71 = arith.constant dense<0.000000e+00> : vector<32x192xf32>
    %79 = tpu.matmul %76, %78, %cst_71 {dimension_numbers = #tpu.dot_dimension_numbers<[1], [0], [0], [1], [0, 0, 1, 1], [], []>} : vector<32x96xbf16>, vector<96x192xbf16>, vector<32x192xf32> -> vector<32x192xf32>
    %80 = arith.addf %72, %79 : vector<32x192xf32>
    %c2_72 = arith.constant 2 : index
    %c0_73 = arith.constant 0 : index
    %c0_74 = arith.constant 0 : index
    %81 = vector.load %arg8[%c2_72, %c0_73, %c0_74] : memref<3x32x64xbf16, #tpu.memory_space<vmem>>, vector<1x32x64xbf16>
    %82 = vector.shape_cast %81 : vector<1x32x64xbf16> to vector<32x64xbf16>
    %cst_75 = arith.constant dense<0.000000e+00> : vector<32x96xf32>
    %83 = tpu.matmul %82, %65, %cst_75 {dimension_numbers = #tpu.dot_dimension_numbers<[1], [0], [0], [1], [0, 0, 1, 1], [], []>} : vector<32x64xbf16>, vector<64x96xbf16>, vector<32x96xf32> -> vector<32x96xf32>
    %84 = arith.truncf %83 : vector<32x96xf32> to vector<32x96xbf16>
    %c2_76 = arith.constant 2 : index
    %c0_77 = arith.constant 0 : index
    %c0_78 = arith.constant 0 : index
    %85 = vector.load %arg9[%c2_76, %c0_77, %c0_78] : memref<3x96x192xbf16, #tpu.memory_space<vmem>>, vector<1x96x192xbf16>
    %86 = vector.shape_cast %85 : vector<1x96x192xbf16> to vector<96x192xbf16>
    %cst_79 = arith.constant dense<0.000000e+00> : vector<32x192xf32>
    %87 = tpu.matmul %84, %86, %cst_79 {dimension_numbers = #tpu.dot_dimension_numbers<[1], [0], [0], [1], [0, 0, 1, 1], [], []>} : vector<32x96xbf16>, vector<96x192xbf16>, vector<32x192xf32> -> vector<32x192xf32>
    %88 = arith.addf %80, %87 : vector<32x192xf32>
    %c0_80 = arith.constant 0 : index
    %c0_81 = arith.constant 0 : index
    %89 = vector.load %arg10[%c0_80, %c0_81] : memref<1x192xf32, #tpu.memory_space<vmem>>, vector<1x192xf32>
    %90 = vector.broadcast %89 : vector<1x192xf32> to vector<32x192xf32>
    %91 = arith.addf %88, %90 : vector<32x192xf32>
    %cst_82 = arith.constant 0.000000e+00 : f32
    %92 = vector.broadcast %cst_82 : f32 to vector<32x192xf32>
    %93 = arith.maximumf %91, %92 : vector<32x192xf32>
    %94 = arith.truncf %93 : vector<32x192xf32> to vector<32x192xbf16>
    %c0_83 = arith.constant 0 : index
    %c0_84 = arith.constant 0 : index
    %c0_85 = arith.constant 0 : index
    %95 = vector.load %arg11[%c0_83, %c0_84, %c0_85] : memref<3x16x32xbf16, #tpu.memory_space<vmem>>, vector<1x16x32xbf16>
    %96 = vector.shape_cast %95 : vector<1x16x32xbf16> to vector<16x32xbf16>
    %cst_86 = arith.constant dense<0.000000e+00> : vector<16x192xf32>
    %97 = tpu.matmul %96, %94, %cst_86 {dimension_numbers = #tpu.dot_dimension_numbers<[1], [0], [0], [1], [0, 0, 1, 1], [], []>} : vector<16x32xbf16>, vector<32x192xbf16>, vector<16x192xf32> -> vector<16x192xf32>
    %98 = arith.truncf %97 : vector<16x192xf32> to vector<16x192xbf16>
    %c0_87 = arith.constant 0 : index
    %c0_88 = arith.constant 0 : index
    %c0_89 = arith.constant 0 : index
    %99 = vector.load %arg12[%c0_87, %c0_88, %c0_89] : memref<3x192x96xbf16, #tpu.memory_space<vmem>>, vector<1x192x96xbf16>
    %100 = vector.shape_cast %99 : vector<1x192x96xbf16> to vector<192x96xbf16>
    %cst_90 = arith.constant dense<0.000000e+00> : vector<16x96xf32>
    %101 = tpu.matmul %98, %100, %cst_90 {dimension_numbers = #tpu.dot_dimension_numbers<[1], [0], [0], [1], [0, 0, 1, 1], [], []>} : vector<16x192xbf16>, vector<192x96xbf16>, vector<16x96xf32> -> vector<16x96xf32>
    %c1_91 = arith.constant 1 : index
    %c0_92 = arith.constant 0 : index
    %c0_93 = arith.constant 0 : index
    %102 = vector.load %arg11[%c1_91, %c0_92, %c0_93] : memref<3x16x32xbf16, #tpu.memory_space<vmem>>, vector<1x16x32xbf16>
    %103 = vector.shape_cast %102 : vector<1x16x32xbf16> to vector<16x32xbf16>
    %cst_94 = arith.constant dense<0.000000e+00> : vector<16x192xf32>
    %104 = tpu.matmul %103, %94, %cst_94 {dimension_numbers = #tpu.dot_dimension_numbers<[1], [0], [0], [1], [0, 0, 1, 1], [], []>} : vector<16x32xbf16>, vector<32x192xbf16>, vector<16x192xf32> -> vector<16x192xf32>
    %105 = arith.truncf %104 : vector<16x192xf32> to vector<16x192xbf16>
    %c1_95 = arith.constant 1 : index
    %c0_96 = arith.constant 0 : index
    %c0_97 = arith.constant 0 : index
    %106 = vector.load %arg12[%c1_95, %c0_96, %c0_97] : memref<3x192x96xbf16, #tpu.memory_space<vmem>>, vector<1x192x96xbf16>
    %107 = vector.shape_cast %106 : vector<1x192x96xbf16> to vector<192x96xbf16>
    %cst_98 = arith.constant dense<0.000000e+00> : vector<16x96xf32>
    %108 = tpu.matmul %105, %107, %cst_98 {dimension_numbers = #tpu.dot_dimension_numbers<[1], [0], [0], [1], [0, 0, 1, 1], [], []>} : vector<16x192xbf16>, vector<192x96xbf16>, vector<16x96xf32> -> vector<16x96xf32>
    %109 = arith.addf %101, %108 : vector<16x96xf32>
    %c2_99 = arith.constant 2 : index
    %c0_100 = arith.constant 0 : index
    %c0_101 = arith.constant 0 : index
    %110 = vector.load %arg11[%c2_99, %c0_100, %c0_101] : memref<3x16x32xbf16, #tpu.memory_space<vmem>>, vector<1x16x32xbf16>
    %111 = vector.shape_cast %110 : vector<1x16x32xbf16> to vector<16x32xbf16>
    %cst_102 = arith.constant dense<0.000000e+00> : vector<16x192xf32>
    %112 = tpu.matmul %111, %94, %cst_102 {dimension_numbers = #tpu.dot_dimension_numbers<[1], [0], [0], [1], [0, 0, 1, 1], [], []>} : vector<16x32xbf16>, vector<32x192xbf16>, vector<16x192xf32> -> vector<16x192xf32>
    %113 = arith.truncf %112 : vector<16x192xf32> to vector<16x192xbf16>
    %c2_103 = arith.constant 2 : index
    %c0_104 = arith.constant 0 : index
    %c0_105 = arith.constant 0 : index
    %114 = vector.load %arg12[%c2_103, %c0_104, %c0_105] : memref<3x192x96xbf16, #tpu.memory_space<vmem>>, vector<1x192x96xbf16>
    %115 = vector.shape_cast %114 : vector<1x192x96xbf16> to vector<192x96xbf16>
    %cst_106 = arith.constant dense<0.000000e+00> : vector<16x96xf32>
    %116 = tpu.matmul %113, %115, %cst_106 {dimension_numbers = #tpu.dot_dimension_numbers<[1], [0], [0], [1], [0, 0, 1, 1], [], []>} : vector<16x192xbf16>, vector<192x96xbf16>, vector<16x96xf32> -> vector<16x96xf32>
    %117 = arith.addf %109, %116 : vector<16x96xf32>
    %c0_107 = arith.constant 0 : index
    %c0_108 = arith.constant 0 : index
    %118 = vector.load %arg13[%c0_107, %c0_108] : memref<1x96xf32, #tpu.memory_space<vmem>>, vector<1x96xf32>
    %119 = vector.broadcast %118 : vector<1x96xf32> to vector<16x96xf32>
    %120 = arith.addf %117, %119 : vector<16x96xf32>
    %cst_109 = arith.constant 0.000000e+00 : f32
    %121 = vector.broadcast %cst_109 : f32 to vector<16x96xf32>
    %122 = arith.maximumf %120, %121 : vector<16x96xf32>
    %c0_110 = arith.constant 0 : index
    %c0_111 = arith.constant 0 : index
    %c0_112 = arith.constant 0 : index
    %123 = vector.load %arg14[%c0_110, %c0_111, %c0_112] : memref<7x52x64xbf16, #tpu.memory_space<vmem>>, vector<1x52x64xbf16>
    %124 = vector.shape_cast %123 : vector<1x52x64xbf16> to vector<52x64xbf16>
    %cst_113 = arith.constant dense<0.000000e+00> : vector<52x256xf32>
    %125 = tpu.matmul %124, %30, %cst_113 {dimension_numbers = #tpu.dot_dimension_numbers<[1], [0], [0], [1], [0, 0, 1, 1], [], []>} : vector<52x64xbf16>, vector<64x256xbf16>, vector<52x256xf32> -> vector<52x256xf32>
    %126 = arith.truncf %125 : vector<52x256xf32> to vector<52x256xbf16>
    %c0_114 = arith.constant 0 : index
    %c0_115 = arith.constant 0 : index
    %c0_116 = arith.constant 0 : index
    %127 = vector.load %arg15[%c0_114, %c0_115, %c0_116] : memref<7x256x26xbf16, #tpu.memory_space<vmem>>, vector<1x256x26xbf16>
    %128 = vector.shape_cast %127 : vector<1x256x26xbf16> to vector<256x26xbf16>
    %cst_117 = arith.constant dense<0.000000e+00> : vector<52x26xf32>
    %129 = tpu.matmul %126, %128, %cst_117 {dimension_numbers = #tpu.dot_dimension_numbers<[1], [0], [0], [1], [0, 0, 1, 1], [], []>} : vector<52x256xbf16>, vector<256x26xbf16>, vector<52x26xf32> -> vector<52x26xf32>
    %c1_118 = arith.constant 1 : index
    %c0_119 = arith.constant 0 : index
    %c0_120 = arith.constant 0 : index
    %130 = vector.load %arg14[%c1_118, %c0_119, %c0_120] : memref<7x52x64xbf16, #tpu.memory_space<vmem>>, vector<1x52x64xbf16>
    %131 = vector.shape_cast %130 : vector<1x52x64xbf16> to vector<52x64xbf16>
    %cst_121 = arith.constant dense<0.000000e+00> : vector<52x256xf32>
    %132 = tpu.matmul %131, %30, %cst_121 {dimension_numbers = #tpu.dot_dimension_numbers<[1], [0], [0], [1], [0, 0, 1, 1], [], []>} : vector<52x64xbf16>, vector<64x256xbf16>, vector<52x256xf32> -> vector<52x256xf32>
    %133 = arith.truncf %132 : vector<52x256xf32> to vector<52x256xbf16>
    %c1_122 = arith.constant 1 : index
    %c0_123 = arith.constant 0 : index
    %c0_124 = arith.constant 0 : index
    %134 = vector.load %arg15[%c1_122, %c0_123, %c0_124] : memref<7x256x26xbf16, #tpu.memory_space<vmem>>, vector<1x256x26xbf16>
    %135 = vector.shape_cast %134 : vector<1x256x26xbf16> to vector<256x26xbf16>
    %cst_125 = arith.constant dense<0.000000e+00> : vector<52x26xf32>
    %136 = tpu.matmul %133, %135, %cst_125 {dimension_numbers = #tpu.dot_dimension_numbers<[1], [0], [0], [1], [0, 0, 1, 1], [], []>} : vector<52x256xbf16>, vector<256x26xbf16>, vector<52x26xf32> -> vector<52x26xf32>
    %137 = arith.addf %129, %136 : vector<52x26xf32>
    %c2_126 = arith.constant 2 : index
    %c0_127 = arith.constant 0 : index
    %c0_128 = arith.constant 0 : index
    %138 = vector.load %arg14[%c2_126, %c0_127, %c0_128] : memref<7x52x64xbf16, #tpu.memory_space<vmem>>, vector<1x52x64xbf16>
    %139 = vector.shape_cast %138 : vector<1x52x64xbf16> to vector<52x64xbf16>
    %cst_129 = arith.constant dense<0.000000e+00> : vector<52x256xf32>
    %140 = tpu.matmul %139, %30, %cst_129 {dimension_numbers = #tpu.dot_dimension_numbers<[1], [0], [0], [1], [0, 0, 1, 1], [], []>} : vector<52x64xbf16>, vector<64x256xbf16>, vector<52x256xf32> -> vector<52x256xf32>
    %141 = arith.truncf %140 : vector<52x256xf32> to vector<52x256xbf16>
    %c2_130 = arith.constant 2 : index
    %c0_131 = arith.constant 0 : index
    %c0_132 = arith.constant 0 : index
    %142 = vector.load %arg15[%c2_130, %c0_131, %c0_132] : memref<7x256x26xbf16, #tpu.memory_space<vmem>>, vector<1x256x26xbf16>
    %143 = vector.shape_cast %142 : vector<1x256x26xbf16> to vector<256x26xbf16>
    %cst_133 = arith.constant dense<0.000000e+00> : vector<52x26xf32>
    %144 = tpu.matmul %141, %143, %cst_133 {dimension_numbers = #tpu.dot_dimension_numbers<[1], [0], [0], [1], [0, 0, 1, 1], [], []>} : vector<52x256xbf16>, vector<256x26xbf16>, vector<52x26xf32> -> vector<52x26xf32>
    %145 = arith.addf %137, %144 : vector<52x26xf32>
    %c3 = arith.constant 3 : index
    %c0_134 = arith.constant 0 : index
    %c0_135 = arith.constant 0 : index
    %146 = vector.load %arg14[%c3, %c0_134, %c0_135] : memref<7x52x64xbf16, #tpu.memory_space<vmem>>, vector<1x52x64xbf16>
    %147 = vector.shape_cast %146 : vector<1x52x64xbf16> to vector<52x64xbf16>
    %cst_136 = arith.constant dense<0.000000e+00> : vector<52x256xf32>
    %148 = tpu.matmul %147, %30, %cst_136 {dimension_numbers = #tpu.dot_dimension_numbers<[1], [0], [0], [1], [0, 0, 1, 1], [], []>} : vector<52x64xbf16>, vector<64x256xbf16>, vector<52x256xf32> -> vector<52x256xf32>
    %149 = arith.truncf %148 : vector<52x256xf32> to vector<52x256xbf16>
    %c3_137 = arith.constant 3 : index
    %c0_138 = arith.constant 0 : index
    %c0_139 = arith.constant 0 : index
    %150 = vector.load %arg15[%c3_137, %c0_138, %c0_139] : memref<7x256x26xbf16, #tpu.memory_space<vmem>>, vector<1x256x26xbf16>
    %151 = vector.shape_cast %150 : vector<1x256x26xbf16> to vector<256x26xbf16>
    %cst_140 = arith.constant dense<0.000000e+00> : vector<52x26xf32>
    %152 = tpu.matmul %149, %151, %cst_140 {dimension_numbers = #tpu.dot_dimension_numbers<[1], [0], [0], [1], [0, 0, 1, 1], [], []>} : vector<52x256xbf16>, vector<256x26xbf16>, vector<52x26xf32> -> vector<52x26xf32>
    %153 = arith.addf %145, %152 : vector<52x26xf32>
    %c4 = arith.constant 4 : index
    %c0_141 = arith.constant 0 : index
    %c0_142 = arith.constant 0 : index
    %154 = vector.load %arg14[%c4, %c0_141, %c0_142] : memref<7x52x64xbf16, #tpu.memory_space<vmem>>, vector<1x52x64xbf16>
    %155 = vector.shape_cast %154 : vector<1x52x64xbf16> to vector<52x64xbf16>
    %cst_143 = arith.constant dense<0.000000e+00> : vector<52x256xf32>
    %156 = tpu.matmul %155, %30, %cst_143 {dimension_numbers = #tpu.dot_dimension_numbers<[1], [0], [0], [1], [0, 0, 1, 1], [], []>} : vector<52x64xbf16>, vector<64x256xbf16>, vector<52x256xf32> -> vector<52x256xf32>
    %157 = arith.truncf %156 : vector<52x256xf32> to vector<52x256xbf16>
    %c4_144 = arith.constant 4 : index
    %c0_145 = arith.constant 0 : index
    %c0_146 = arith.constant 0 : index
    %158 = vector.load %arg15[%c4_144, %c0_145, %c0_146] : memref<7x256x26xbf16, #tpu.memory_space<vmem>>, vector<1x256x26xbf16>
    %159 = vector.shape_cast %158 : vector<1x256x26xbf16> to vector<256x26xbf16>
    %cst_147 = arith.constant dense<0.000000e+00> : vector<52x26xf32>
    %160 = tpu.matmul %157, %159, %cst_147 {dimension_numbers = #tpu.dot_dimension_numbers<[1], [0], [0], [1], [0, 0, 1, 1], [], []>} : vector<52x256xbf16>, vector<256x26xbf16>, vector<52x26xf32> -> vector<52x26xf32>
    %161 = arith.addf %153, %160 : vector<52x26xf32>
    %c5 = arith.constant 5 : index
    %c0_148 = arith.constant 0 : index
    %c0_149 = arith.constant 0 : index
    %162 = vector.load %arg14[%c5, %c0_148, %c0_149] : memref<7x52x64xbf16, #tpu.memory_space<vmem>>, vector<1x52x64xbf16>
    %163 = vector.shape_cast %162 : vector<1x52x64xbf16> to vector<52x64xbf16>
    %cst_150 = arith.constant dense<0.000000e+00> : vector<52x256xf32>
    %164 = tpu.matmul %163, %30, %cst_150 {dimension_numbers = #tpu.dot_dimension_numbers<[1], [0], [0], [1], [0, 0, 1, 1], [], []>} : vector<52x64xbf16>, vector<64x256xbf16>, vector<52x256xf32> -> vector<52x256xf32>
    %165 = arith.truncf %164 : vector<52x256xf32> to vector<52x256xbf16>
    %c5_151 = arith.constant 5 : index
    %c0_152 = arith.constant 0 : index
    %c0_153 = arith.constant 0 : index
    %166 = vector.load %arg15[%c5_151, %c0_152, %c0_153] : memref<7x256x26xbf16, #tpu.memory_space<vmem>>, vector<1x256x26xbf16>
    %167 = vector.shape_cast %166 : vector<1x256x26xbf16> to vector<256x26xbf16>
    %cst_154 = arith.constant dense<0.000000e+00> : vector<52x26xf32>
    %168 = tpu.matmul %165, %167, %cst_154 {dimension_numbers = #tpu.dot_dimension_numbers<[1], [0], [0], [1], [0, 0, 1, 1], [], []>} : vector<52x256xbf16>, vector<256x26xbf16>, vector<52x26xf32> -> vector<52x26xf32>
    %169 = arith.addf %161, %168 : vector<52x26xf32>
    %c6 = arith.constant 6 : index
    %c0_155 = arith.constant 0 : index
    %c0_156 = arith.constant 0 : index
    %170 = vector.load %arg14[%c6, %c0_155, %c0_156] : memref<7x52x64xbf16, #tpu.memory_space<vmem>>, vector<1x52x64xbf16>
    %171 = vector.shape_cast %170 : vector<1x52x64xbf16> to vector<52x64xbf16>
    %cst_157 = arith.constant dense<0.000000e+00> : vector<52x256xf32>
    %172 = tpu.matmul %171, %30, %cst_157 {dimension_numbers = #tpu.dot_dimension_numbers<[1], [0], [0], [1], [0, 0, 1, 1], [], []>} : vector<52x64xbf16>, vector<64x256xbf16>, vector<52x256xf32> -> vector<52x256xf32>
    %173 = arith.truncf %172 : vector<52x256xf32> to vector<52x256xbf16>
    %c6_158 = arith.constant 6 : index
    %c0_159 = arith.constant 0 : index
    %c0_160 = arith.constant 0 : index
    %174 = vector.load %arg15[%c6_158, %c0_159, %c0_160] : memref<7x256x26xbf16, #tpu.memory_space<vmem>>, vector<1x256x26xbf16>
    %175 = vector.shape_cast %174 : vector<1x256x26xbf16> to vector<256x26xbf16>
    %cst_161 = arith.constant dense<0.000000e+00> : vector<52x26xf32>
    %176 = tpu.matmul %173, %175, %cst_161 {dimension_numbers = #tpu.dot_dimension_numbers<[1], [0], [0], [1], [0, 0, 1, 1], [], []>} : vector<52x256xbf16>, vector<256x26xbf16>, vector<52x26xf32> -> vector<52x26xf32>
    %177 = arith.addf %169, %176 : vector<52x26xf32>
    %c0_162 = arith.constant 0 : index
    %c0_163 = arith.constant 0 : index
    %178 = vector.load %arg16[%c0_162, %c0_163] : memref<1x26xf32, #tpu.memory_space<vmem>>, vector<1x26xf32>
    %179 = vector.broadcast %178 : vector<1x26xf32> to vector<52x26xf32>
    %180 = arith.addf %177, %179 : vector<52x26xf32>
    %cst_164 = arith.constant 0.000000e+00 : f32
    %181 = vector.broadcast %cst_164 : f32 to vector<52x26xf32>
    %182 = arith.maximumf %180, %181 : vector<52x26xf32>
    %183 = arith.truncf %58 : vector<32x256xf32> to vector<32x256xbf16>
    %c0_165 = arith.constant 0 : index
    %c0_166 = arith.constant 0 : index
    %c0_167 = arith.constant 0 : index
    %184 = vector.load %arg17[%c0_165, %c0_166, %c0_167] : memref<7x20x32xbf16, #tpu.memory_space<vmem>>, vector<1x20x32xbf16>
    %185 = vector.shape_cast %184 : vector<1x20x32xbf16> to vector<20x32xbf16>
    %cst_168 = arith.constant dense<0.000000e+00> : vector<20x256xf32>
    %186 = tpu.matmul %185, %183, %cst_168 {dimension_numbers = #tpu.dot_dimension_numbers<[1], [0], [0], [1], [0, 0, 1, 1], [], []>} : vector<20x32xbf16>, vector<32x256xbf16>, vector<20x256xf32> -> vector<20x256xf32>
    %187 = arith.truncf %186 : vector<20x256xf32> to vector<20x256xbf16>
    %c0_169 = arith.constant 0 : index
    %c0_170 = arith.constant 0 : index
    %c0_171 = arith.constant 0 : index
    %188 = vector.load %arg18[%c0_169, %c0_170, %c0_171] : memref<7x256x20xbf16, #tpu.memory_space<vmem>>, vector<1x256x20xbf16>
    %189 = vector.shape_cast %188 : vector<1x256x20xbf16> to vector<256x20xbf16>
    %cst_172 = arith.constant dense<0.000000e+00> : vector<20x20xf32>
    %190 = tpu.matmul %187, %189, %cst_172 {dimension_numbers = #tpu.dot_dimension_numbers<[1], [0], [0], [1], [0, 0, 1, 1], [], []>} : vector<20x256xbf16>, vector<256x20xbf16>, vector<20x20xf32> -> vector<20x20xf32>
    %c1_173 = arith.constant 1 : index
    %c0_174 = arith.constant 0 : index
    %c0_175 = arith.constant 0 : index
    %191 = vector.load %arg17[%c1_173, %c0_174, %c0_175] : memref<7x20x32xbf16, #tpu.memory_space<vmem>>, vector<1x20x32xbf16>
    %192 = vector.shape_cast %191 : vector<1x20x32xbf16> to vector<20x32xbf16>
    %cst_176 = arith.constant dense<0.000000e+00> : vector<20x256xf32>
    %193 = tpu.matmul %192, %183, %cst_176 {dimension_numbers = #tpu.dot_dimension_numbers<[1], [0], [0], [1], [0, 0, 1, 1], [], []>} : vector<20x32xbf16>, vector<32x256xbf16>, vector<20x256xf32> -> vector<20x256xf32>
    %194 = arith.truncf %193 : vector<20x256xf32> to vector<20x256xbf16>
    %c1_177 = arith.constant 1 : index
    %c0_178 = arith.constant 0 : index
    %c0_179 = arith.constant 0 : index
    %195 = vector.load %arg18[%c1_177, %c0_178, %c0_179] : memref<7x256x20xbf16, #tpu.memory_space<vmem>>, vector<1x256x20xbf16>
    %196 = vector.shape_cast %195 : vector<1x256x20xbf16> to vector<256x20xbf16>
    %cst_180 = arith.constant dense<0.000000e+00> : vector<20x20xf32>
    %197 = tpu.matmul %194, %196, %cst_180 {dimension_numbers = #tpu.dot_dimension_numbers<[1], [0], [0], [1], [0, 0, 1, 1], [], []>} : vector<20x256xbf16>, vector<256x20xbf16>, vector<20x20xf32> -> vector<20x20xf32>
    %198 = arith.addf %190, %197 : vector<20x20xf32>
    %c2_181 = arith.constant 2 : index
    %c0_182 = arith.constant 0 : index
    %c0_183 = arith.constant 0 : index
    %199 = vector.load %arg17[%c2_181, %c0_182, %c0_183] : memref<7x20x32xbf16, #tpu.memory_space<vmem>>, vector<1x20x32xbf16>
    %200 = vector.shape_cast %199 : vector<1x20x32xbf16> to vector<20x32xbf16>
    %cst_184 = arith.constant dense<0.000000e+00> : vector<20x256xf32>
    %201 = tpu.matmul %200, %183, %cst_184 {dimension_numbers = #tpu.dot_dimension_numbers<[1], [0], [0], [1], [0, 0, 1, 1], [], []>} : vector<20x32xbf16>, vector<32x256xbf16>, vector<20x256xf32> -> vector<20x256xf32>
    %202 = arith.truncf %201 : vector<20x256xf32> to vector<20x256xbf16>
    %c2_185 = arith.constant 2 : index
    %c0_186 = arith.constant 0 : index
    %c0_187 = arith.constant 0 : index
    %203 = vector.load %arg18[%c2_185, %c0_186, %c0_187] : memref<7x256x20xbf16, #tpu.memory_space<vmem>>, vector<1x256x20xbf16>
    %204 = vector.shape_cast %203 : vector<1x256x20xbf16> to vector<256x20xbf16>
    %cst_188 = arith.constant dense<0.000000e+00> : vector<20x20xf32>
    %205 = tpu.matmul %202, %204, %cst_188 {dimension_numbers = #tpu.dot_dimension_numbers<[1], [0], [0], [1], [0, 0, 1, 1], [], []>} : vector<20x256xbf16>, vector<256x20xbf16>, vector<20x20xf32> -> vector<20x20xf32>
    %206 = arith.addf %198, %205 : vector<20x20xf32>
    %c3_189 = arith.constant 3 : index
    %c0_190 = arith.constant 0 : index
    %c0_191 = arith.constant 0 : index
    %207 = vector.load %arg17[%c3_189, %c0_190, %c0_191] : memref<7x20x32xbf16, #tpu.memory_space<vmem>>, vector<1x20x32xbf16>
    %208 = vector.shape_cast %207 : vector<1x20x32xbf16> to vector<20x32xbf16>
    %cst_192 = arith.constant dense<0.000000e+00> : vector<20x256xf32>
    %209 = tpu.matmul %208, %183, %cst_192 {dimension_numbers = #tpu.dot_dimension_numbers<[1], [0], [0], [1], [0, 0, 1, 1], [], []>} : vector<20x32xbf16>, vector<32x256xbf16>, vector<20x256xf32> -> vector<20x256xf32>
    %210 = arith.truncf %209 : vector<20x256xf32> to vector<20x256xbf16>
    %c3_193 = arith.constant 3 : index
    %c0_194 = arith.constant 0 : index
    %c0_195 = arith.constant 0 : index
    %211 = vector.load %arg18[%c3_193, %c0_194, %c0_195] : memref<7x256x20xbf16, #tpu.memory_space<vmem>>, vector<1x256x20xbf16>
    %212 = vector.shape_cast %211 : vector<1x256x20xbf16> to vector<256x20xbf16>
    %cst_196 = arith.constant dense<0.000000e+00> : vector<20x20xf32>
    %213 = tpu.matmul %210, %212, %cst_196 {dimension_numbers = #tpu.dot_dimension_numbers<[1], [0], [0], [1], [0, 0, 1, 1], [], []>} : vector<20x256xbf16>, vector<256x20xbf16>, vector<20x20xf32> -> vector<20x20xf32>
    %214 = arith.addf %206, %213 : vector<20x20xf32>
    %c4_197 = arith.constant 4 : index
    %c0_198 = arith.constant 0 : index
    %c0_199 = arith.constant 0 : index
    %215 = vector.load %arg17[%c4_197, %c0_198, %c0_199] : memref<7x20x32xbf16, #tpu.memory_space<vmem>>, vector<1x20x32xbf16>
    %216 = vector.shape_cast %215 : vector<1x20x32xbf16> to vector<20x32xbf16>
    %cst_200 = arith.constant dense<0.000000e+00> : vector<20x256xf32>
    %217 = tpu.matmul %216, %183, %cst_200 {dimension_numbers = #tpu.dot_dimension_numbers<[1], [0], [0], [1], [0, 0, 1, 1], [], []>} : vector<20x32xbf16>, vector<32x256xbf16>, vector<20x256xf32> -> vector<20x256xf32>
    %218 = arith.truncf %217 : vector<20x256xf32> to vector<20x256xbf16>
    %c4_201 = arith.constant 4 : index
    %c0_202 = arith.constant 0 : index
    %c0_203 = arith.constant 0 : index
    %219 = vector.load %arg18[%c4_201, %c0_202, %c0_203] : memref<7x256x20xbf16, #tpu.memory_space<vmem>>, vector<1x256x20xbf16>
    %220 = vector.shape_cast %219 : vector<1x256x20xbf16> to vector<256x20xbf16>
    %cst_204 = arith.constant dense<0.000000e+00> : vector<20x20xf32>
    %221 = tpu.matmul %218, %220, %cst_204 {dimension_numbers = #tpu.dot_dimension_numbers<[1], [0], [0], [1], [0, 0, 1, 1], [], []>} : vector<20x256xbf16>, vector<256x20xbf16>, vector<20x20xf32> -> vector<20x20xf32>
    %222 = arith.addf %214, %221 : vector<20x20xf32>
    %c5_205 = arith.constant 5 : index
    %c0_206 = arith.constant 0 : index
    %c0_207 = arith.constant 0 : index
    %223 = vector.load %arg17[%c5_205, %c0_206, %c0_207] : memref<7x20x32xbf16, #tpu.memory_space<vmem>>, vector<1x20x32xbf16>
    %224 = vector.shape_cast %223 : vector<1x20x32xbf16> to vector<20x32xbf16>
    %cst_208 = arith.constant dense<0.000000e+00> : vector<20x256xf32>
    %225 = tpu.matmul %224, %183, %cst_208 {dimension_numbers = #tpu.dot_dimension_numbers<[1], [0], [0], [1], [0, 0, 1, 1], [], []>} : vector<20x32xbf16>, vector<32x256xbf16>, vector<20x256xf32> -> vector<20x256xf32>
    %226 = arith.truncf %225 : vector<20x256xf32> to vector<20x256xbf16>
    %c5_209 = arith.constant 5 : index
    %c0_210 = arith.constant 0 : index
    %c0_211 = arith.constant 0 : index
    %227 = vector.load %arg18[%c5_209, %c0_210, %c0_211] : memref<7x256x20xbf16, #tpu.memory_space<vmem>>, vector<1x256x20xbf16>
    %228 = vector.shape_cast %227 : vector<1x256x20xbf16> to vector<256x20xbf16>
    %cst_212 = arith.constant dense<0.000000e+00> : vector<20x20xf32>
    %229 = tpu.matmul %226, %228, %cst_212 {dimension_numbers = #tpu.dot_dimension_numbers<[1], [0], [0], [1], [0, 0, 1, 1], [], []>} : vector<20x256xbf16>, vector<256x20xbf16>, vector<20x20xf32> -> vector<20x20xf32>
    %230 = arith.addf %222, %229 : vector<20x20xf32>
    %c6_213 = arith.constant 6 : index
    %c0_214 = arith.constant 0 : index
    %c0_215 = arith.constant 0 : index
    %231 = vector.load %arg17[%c6_213, %c0_214, %c0_215] : memref<7x20x32xbf16, #tpu.memory_space<vmem>>, vector<1x20x32xbf16>
    %232 = vector.shape_cast %231 : vector<1x20x32xbf16> to vector<20x32xbf16>
    %cst_216 = arith.constant dense<0.000000e+00> : vector<20x256xf32>
    %233 = tpu.matmul %232, %183, %cst_216 {dimension_numbers = #tpu.dot_dimension_numbers<[1], [0], [0], [1], [0, 0, 1, 1], [], []>} : vector<20x32xbf16>, vector<32x256xbf16>, vector<20x256xf32> -> vector<20x256xf32>
    %234 = arith.truncf %233 : vector<20x256xf32> to vector<20x256xbf16>
    %c6_217 = arith.constant 6 : index
    %c0_218 = arith.constant 0 : index
    %c0_219 = arith.constant 0 : index
    %235 = vector.load %arg18[%c6_217, %c0_218, %c0_219] : memref<7x256x20xbf16, #tpu.memory_space<vmem>>, vector<1x256x20xbf16>
    %236 = vector.shape_cast %235 : vector<1x256x20xbf16> to vector<256x20xbf16>
    %cst_220 = arith.constant dense<0.000000e+00> : vector<20x20xf32>
    %237 = tpu.matmul %234, %236, %cst_220 {dimension_numbers = #tpu.dot_dimension_numbers<[1], [0], [0], [1], [0, 0, 1, 1], [], []>} : vector<20x256xbf16>, vector<256x20xbf16>, vector<20x20xf32> -> vector<20x20xf32>
    %238 = arith.addf %230, %237 : vector<20x20xf32>
    %c0_221 = arith.constant 0 : index
    %c0_222 = arith.constant 0 : index
    %239 = vector.load %arg19[%c0_221, %c0_222] : memref<1x20xf32, #tpu.memory_space<vmem>>, vector<1x20xf32>
    %240 = vector.broadcast %239 : vector<1x20xf32> to vector<20x20xf32>
    %241 = arith.addf %238, %240 : vector<20x20xf32>
    %cst_223 = arith.constant 0.000000e+00 : f32
    %242 = vector.broadcast %cst_223 : f32 to vector<20x20xf32>
    %243 = arith.maximumf %241, %242 : vector<20x20xf32>
    %244 = arith.truncf %182 : vector<52x26xf32> to vector<52x26xbf16>
    %c0_224 = arith.constant 0 : index
    %c0_225 = arith.constant 0 : index
    %245 = vector.load %arg26[%c0_224, %c0_225] : memref<26x416xbf16, #tpu.memory_space<vmem>>, vector<26x416xbf16>
    %cst_226 = arith.constant dense<0.000000e+00> : vector<52x416xf32>
    %246 = tpu.matmul %244, %245, %cst_226 {dimension_numbers = #tpu.dot_dimension_numbers<[1], [0], [0], [1], [0, 0, 1, 1], [], []>} : vector<52x26xbf16>, vector<26x416xbf16>, vector<52x416xf32> -> vector<52x416xf32>
    %c0_227 = arith.constant 0 : index
    %c0_228 = arith.constant 0 : index
    %247 = vector.load %arg27[%c0_227, %c0_228] : memref<52x416xf32, #tpu.memory_space<vmem>>, vector<52x416xf32>
    %248 = arith.mulf %246, %247 : vector<52x416xf32>
    %249 = arith.truncf %248 : vector<52x416xf32> to vector<52x416xbf16>
    %c0_229 = arith.constant 0 : index
    %c0_230 = arith.constant 0 : index
    %250 = vector.load %arg29[%c0_229, %c0_230] : memref<416x16xbf16, #tpu.memory_space<vmem>>, vector<416x16xbf16>
    %cst_231 = arith.constant dense<0.000000e+00> : vector<52x16xf32>
    %251 = tpu.matmul %249, %250, %cst_231 {dimension_numbers = #tpu.dot_dimension_numbers<[1], [0], [0], [1], [0, 0, 1, 1], [], []>} : vector<52x416xbf16>, vector<416x16xbf16>, vector<52x16xf32> -> vector<52x16xf32>
    %c0_232 = arith.constant 0 : index
    %c0_233 = arith.constant 0 : index
    %252 = vector.load %arg28[%c0_232, %c0_233] : memref<2x52xbf16, #tpu.memory_space<vmem>>, vector<2x52xbf16>
    %253 = arith.truncf %251 : vector<52x16xf32> to vector<52x16xbf16>
    %cst_234 = arith.constant dense<0.000000e+00> : vector<2x16xf32>
    %254 = tpu.matmul %252, %253, %cst_234 {dimension_numbers = #tpu.dot_dimension_numbers<[1], [0], [0], [1], [0, 0, 1, 1], [], []>} : vector<2x52xbf16>, vector<52x16xbf16>, vector<2x16xf32> -> vector<2x16xf32>
    %255 = arith.truncf %243 : vector<20x20xf32> to vector<20x20xbf16>
    %c0_235 = arith.constant 0 : index
    %c0_236 = arith.constant 0 : index
    %256 = vector.load %arg30[%c0_235, %c0_236] : memref<20x160xbf16, #tpu.memory_space<vmem>>, vector<20x160xbf16>
    %cst_237 = arith.constant dense<0.000000e+00> : vector<20x160xf32>
    %257 = tpu.matmul %255, %256, %cst_237 {dimension_numbers = #tpu.dot_dimension_numbers<[1], [0], [0], [1], [0, 0, 1, 1], [], []>} : vector<20x20xbf16>, vector<20x160xbf16>, vector<20x160xf32> -> vector<20x160xf32>
    %c0_238 = arith.constant 0 : index
    %c0_239 = arith.constant 0 : index
    %258 = vector.load %arg31[%c0_238, %c0_239] : memref<20x160xf32, #tpu.memory_space<vmem>>, vector<20x160xf32>
    %259 = arith.mulf %257, %258 : vector<20x160xf32>
    %260 = arith.truncf %259 : vector<20x160xf32> to vector<20x160xbf16>
    %c0_240 = arith.constant 0 : index
    %c0_241 = arith.constant 0 : index
    %261 = vector.load %arg33[%c0_240, %c0_241] : memref<160x16xbf16, #tpu.memory_space<vmem>>, vector<160x16xbf16>
    %cst_242 = arith.constant dense<0.000000e+00> : vector<20x16xf32>
    %262 = tpu.matmul %260, %261, %cst_242 {dimension_numbers = #tpu.dot_dimension_numbers<[1], [0], [0], [1], [0, 0, 1, 1], [], []>} : vector<20x160xbf16>, vector<160x16xbf16>, vector<20x16xf32> -> vector<20x16xf32>
    %c0_243 = arith.constant 0 : index
    %c0_244 = arith.constant 0 : index
    %263 = vector.load %arg32[%c0_243, %c0_244] : memref<2x20xbf16, #tpu.memory_space<vmem>>, vector<2x20xbf16>
    %264 = arith.truncf %262 : vector<20x16xf32> to vector<20x16xbf16>
    %cst_245 = arith.constant dense<0.000000e+00> : vector<2x16xf32>
    %265 = tpu.matmul %263, %264, %cst_245 {dimension_numbers = #tpu.dot_dimension_numbers<[1], [0], [0], [1], [0, 0, 1, 1], [], []>} : vector<2x20xbf16>, vector<20x16xbf16>, vector<2x16xf32> -> vector<2x16xf32>
    %266 = arith.addf %254, %265 : vector<2x16xf32>
    %c0_246 = arith.constant 0 : index
    %c0_247 = arith.constant 0 : index
    %267 = vector.load %arg34[%c0_246, %c0_247] : memref<1x16xf32, #tpu.memory_space<vmem>>, vector<1x16xf32>
    %268 = vector.broadcast %267 : vector<1x16xf32> to vector<2x16xf32>
    %269 = arith.addf %266, %268 : vector<2x16xf32>
    %cst_248 = arith.constant 0.000000e+00 : f32
    %270 = vector.broadcast %cst_248 : f32 to vector<2x16xf32>
    %271 = arith.maximumf %269, %270 : vector<2x16xf32>
    %272 = arith.truncf %271 : vector<2x16xf32> to vector<2x16xbf16>
    %273 = arith.truncf %122 : vector<16x96xf32> to vector<16x96xbf16>
    %c0_249 = arith.constant 0 : index
    %c0_250 = arith.constant 0 : index
    %274 = vector.load %arg22[%c0_249, %c0_250] : memref<96x256xbf16, #tpu.memory_space<vmem>>, vector<96x256xbf16>
    %cst_251 = arith.constant dense<0.000000e+00> : vector<16x256xf32>
    %275 = tpu.matmul %273, %274, %cst_251 {dimension_numbers = #tpu.dot_dimension_numbers<[1], [0], [0], [1], [0, 0, 1, 1], [], []>} : vector<16x96xbf16>, vector<96x256xbf16>, vector<16x256xf32> -> vector<16x256xf32>
    %c0_252 = arith.constant 0 : index
    %c0_253 = arith.constant 0 : index
    %276 = vector.load %arg23[%c0_252, %c0_253] : memref<16x256xf32, #tpu.memory_space<vmem>>, vector<16x256xf32>
    %277 = arith.mulf %275, %276 : vector<16x256xf32>
    %278 = arith.truncf %277 : vector<16x256xf32> to vector<16x256xbf16>
    %c0_254 = arith.constant 0 : index
    %c0_255 = arith.constant 0 : index
    %279 = vector.load %arg25[%c0_254, %c0_255] : memref<256x32xbf16, #tpu.memory_space<vmem>>, vector<256x32xbf16>
    %cst_256 = arith.constant dense<0.000000e+00> : vector<16x32xf32>
    %280 = tpu.matmul %278, %279, %cst_256 {dimension_numbers = #tpu.dot_dimension_numbers<[1], [0], [0], [1], [0, 0, 1, 1], [], []>} : vector<16x256xbf16>, vector<256x32xbf16>, vector<16x32xf32> -> vector<16x32xf32>
    %c0_257 = arith.constant 0 : index
    %c0_258 = arith.constant 0 : index
    %281 = vector.load %arg24[%c0_257, %c0_258] : memref<2x16xbf16, #tpu.memory_space<vmem>>, vector<2x16xbf16>
    %282 = arith.truncf %280 : vector<16x32xf32> to vector<16x32xbf16>
    %cst_259 = arith.constant dense<0.000000e+00> : vector<2x32xf32>
    %283 = tpu.matmul %281, %282, %cst_259 {dimension_numbers = #tpu.dot_dimension_numbers<[1], [0], [0], [1], [0, 0, 1, 1], [], []>} : vector<2x16xbf16>, vector<16x32xbf16>, vector<2x32xf32> -> vector<2x32xf32>
    %c0_260 = arith.constant 0 : index
    %c0_261 = arith.constant 0 : index
    %284 = vector.load %arg35[%c0_260, %c0_261] : memref<16x32xbf16, #tpu.memory_space<vmem>>, vector<16x32xbf16>
    %cst_262 = arith.constant dense<0.000000e+00> : vector<2x32xf32>
    %285 = tpu.matmul %272, %284, %cst_262 {dimension_numbers = #tpu.dot_dimension_numbers<[1], [0], [0], [1], [0, 0, 1, 1], [], []>} : vector<2x16xbf16>, vector<16x32xbf16>, vector<2x32xf32> -> vector<2x32xf32>
    %286 = arith.addf %283, %285 : vector<2x32xf32>
    %c0_263 = arith.constant 0 : index
    %c0_264 = arith.constant 0 : index
    %287 = vector.load %arg36[%c0_263, %c0_264] : memref<1x32xf32, #tpu.memory_space<vmem>>, vector<1x32xf32>
    %288 = vector.broadcast %287 : vector<1x32xf32> to vector<2x32xf32>
    %289 = arith.addf %286, %288 : vector<2x32xf32>
    %cst_265 = arith.constant 0.000000e+00 : f32
    %290 = vector.broadcast %cst_265 : f32 to vector<2x32xf32>
    %291 = arith.maximumf %289, %290 : vector<2x32xf32>
    %292 = arith.truncf %291 : vector<2x32xf32> to vector<2x32xbf16>
    %c0_266 = arith.constant 0 : index
    %c0_267 = arith.constant 0 : index
    %293 = vector.load %arg37[%c0_266, %c0_267] : memref<32x64xbf16, #tpu.memory_space<vmem>>, vector<32x64xbf16>
    %cst_268 = arith.constant dense<0.000000e+00> : vector<2x64xf32>
    %294 = tpu.matmul %292, %293, %cst_268 {dimension_numbers = #tpu.dot_dimension_numbers<[1], [0], [0], [1], [0, 0, 1, 1], [], []>} : vector<2x32xbf16>, vector<32x64xbf16>, vector<2x64xf32> -> vector<2x64xf32>
    %c0_269 = arith.constant 0 : index
    %c0_270 = arith.constant 0 : index
    %295 = vector.load %arg38[%c0_269, %c0_270] : memref<1x64xf32, #tpu.memory_space<vmem>>, vector<1x64xf32>
    %296 = vector.broadcast %295 : vector<1x64xf32> to vector<2x64xf32>
    %297 = arith.addf %294, %296 : vector<2x64xf32>
    %c0_271 = arith.constant 0 : index
    %c0_272 = arith.constant 0 : index
    %298 = vector.load %arg43[%c0_271, %c0_272] : memref<2x64xf32, #tpu.memory_space<vmem>>, vector<2x64xf32>
    tpu.vector_store %arg43[%c0_271, %c0_272], %297 {strides = array<i32>} : memref<2x64xf32, #tpu.memory_space<vmem>>, vector<2x64xf32>,
    %299 = vector.extract_strided_slice %297 {offsets = [0, 0], sizes = [2, 32], strides = [1, 1]} : vector<2x64xf32> to vector<2x32xf32>
    %300 = vector.extract_strided_slice %297 {offsets = [0, 32], sizes = [2, 32], strides = [1, 1]} : vector<2x64xf32> to vector<2x32xf32>
    %cst_273 = arith.constant 5.000000e-01 : f32
    %301 = vector.broadcast %cst_273 : f32 to vector<2x32xf32>
    %302 = arith.mulf %301, %300 : vector<2x32xf32>
    %303 = math.exp %302 : vector<2x32xf32>
    %c0_274 = arith.constant 0 : index
    %c0_275 = arith.constant 0 : index
    %304 = vector.load %arg1[%c0_274, %c0_275] : memref<2x32xf32, #tpu.memory_space<vmem>>, vector<2x32xf32>
    %305 = arith.mulf %303, %304 : vector<2x32xf32>
    %306 = arith.addf %299, %305 : vector<2x32xf32>
    %307 = arith.truncf %306 : vector<2x32xf32> to vector<2x32xbf16>
    %c0_276 = arith.constant 0 : index
    %c0_277 = arith.constant 0 : index
    %308 = vector.load %arg39[%c0_276, %c0_277] : memref<32x3072xbf16, #tpu.memory_space<vmem>>, vector<32x3072xbf16>
    %cst_278 = arith.constant dense<0.000000e+00> : vector<2x3072xf32>
    %309 = tpu.matmul %307, %308, %cst_278 {dimension_numbers = #tpu.dot_dimension_numbers<[1], [0], [0], [1], [0, 0, 1, 1], [], []>} : vector<2x32xbf16>, vector<32x3072xbf16>, vector<2x3072xf32> -> vector<2x3072xf32>
    %c0_279 = arith.constant 0 : index
    %c0_280 = arith.constant 0 : index
    %310 = vector.load %arg40[%c0_279, %c0_280] : memref<16x3072xbf16, #tpu.memory_space<vmem>>, vector<16x3072xbf16>
    %cst_281 = arith.constant dense<0.000000e+00> : vector<2x3072xf32>
    %311 = tpu.matmul %272, %310, %cst_281 {dimension_numbers = #tpu.dot_dimension_numbers<[1], [0], [0], [1], [0, 0, 1, 1], [], []>} : vector<2x16xbf16>, vector<16x3072xbf16>, vector<2x3072xf32> -> vector<2x3072xf32>
    %312 = arith.addf %309, %311 : vector<2x3072xf32>
    %c0_282 = arith.constant 0 : index
    %c0_283 = arith.constant 0 : index
    %313 = vector.load %arg41[%c0_282, %c0_283] : memref<1x3072xf32, #tpu.memory_space<vmem>>, vector<1x3072xf32>
    %314 = vector.broadcast %313 : vector<1x3072xf32> to vector<2x3072xf32>
    %315 = arith.addf %312, %314 : vector<2x3072xf32>
    %316 = arith.negf %315 : vector<2x3072xf32>
    %317 = math.exp %316 : vector<2x3072xf32>
    %cst_284 = arith.constant 1.000000e+00 : f32
    %318 = vector.broadcast %cst_284 : f32 to vector<2x3072xf32>
    %319 = arith.addf %318, %317 : vector<2x3072xf32>
    %320 = arith.divf %318, %319 : vector<2x3072xf32>
    %c0_285 = arith.constant 0 : index
    %c0_286 = arith.constant 0 : index
    %321 = vector.load %arg42[%c0_285, %c0_286] : memref<2x3072xf32, #tpu.memory_space<vmem>>, vector<2x3072xf32>
    tpu.vector_store %arg42[%c0_285, %c0_286], %320 {strides = array<i32>} : memref<2x3072xf32, #tpu.memory_space<vmem>>, vector<2x3072xf32>,
    return
  }
}

</mosaic_0001>

<llo_original>
// kernel: carso_forward.1
$region0: #{carso_forward.1}
  #allocation0 [shape = 'u32[]', space=smem, size = 0x4, offset = 0x4, fixed_abs, tag = 'smem constant byte address 0x4 - core index']
  #allocation1 [shape = 'u32[144,128]{1,0:T(1,128)}', space=vmem, size = 0x12000, scoped, tag = 'internal scratch']
  %s0 = inlined_call_operand.smem [shape: u32[44], index: -1, kind: input, shape index: {}]
  %s1 = sld [smem:[%s0]]
  %s2 = scalar_lea.smem %s0, 1
  %s3 = sld [smem:[%s2]]
  %s4 = scalar_lea.smem %s0, 2
  %s5 = sld [smem:[%s4]]
  %s6 = scalar_lea.smem %s0, 3
  %s7 = sld [smem:[%s6]]
  %s8 = scalar_lea.smem %s0, 4
  %s9 = sld [smem:[%s8]]
  %s10 = scalar_lea.smem %s0, 5
  %s11 = sld [smem:[%s10]]
  %s12 = scalar_lea.smem %s0, 6
  %s13 = sld [smem:[%s12]]
  %s14 = scalar_lea.smem %s0, 7
  %s15 = sld [smem:[%s14]]
  %s16 = scalar_lea.smem %s0, 8
  %s17 = sld [smem:[%s16]]
  %s18 = scalar_lea.smem %s0, 9
  %s19 = sld [smem:[%s18]]
  %s20 = scalar_lea.smem %s0, 10
  %s21 = sld [smem:[%s20]]
  %s22 = scalar_lea.smem %s0, 11
  %s23 = sld [smem:[%s22]]
  %s24 = scalar_lea.smem %s0, 12
  %s25 = sld [smem:[%s24]]
  %s26 = scalar_lea.smem %s0, 13
  %s27 = sld [smem:[%s26]]
  %s28 = scalar_lea.smem %s0, 14
  %s29 = sld [smem:[%s28]]
  %s30 = scalar_lea.smem %s0, 15
  %s31 = sld [smem:[%s30]]
  %s32 = scalar_lea.smem %s0, 16
  %s33 = sld [smem:[%s32]]
  %s34 = scalar_lea.smem %s0, 17
  %s35 = sld [smem:[%s34]]
  %s36 = scalar_lea.smem %s0, 18
  %s37 = sld [smem:[%s36]]
  %s38 = scalar_lea.smem %s0, 19
  %s39 = sld [smem:[%s38]]
  %s40 = scalar_lea.smem %s0, 20
  %s41 = sld [smem:[%s40]]
  %s42 = scalar_lea.smem %s0, 21
  %s43 = sld [smem:[%s42]]
  %s44 = scalar_lea.smem %s0, 22
  %s45 = sld [smem:[%s44]]
  %s46 = scalar_lea.smem %s0, 23
  %s47 = sld [smem:[%s46]]
  %s48 = scalar_lea.smem %s0, 24
  %s49 = sld [smem:[%s48]]
  %s50 = scalar_lea.smem %s0, 25
  %s51 = sld [smem:[%s50]]
  %s52 = scalar_lea.smem %s0, 26
  %s53 = sld [smem:[%s52]]
  %s54 = scalar_lea.smem %s0, 27
  %s55 = sld [smem:[%s54]]
  %s56 = scalar_lea.smem %s0, 28
  %s57 = sld [smem:[%s56]]
  %s58 = scalar_lea.smem %s0, 29
  %s59 = sld [smem:[%s58]]
  %s60 = scalar_lea.smem %s0, 30
  %s61 = sld [smem:[%s60]]
  %s62 = scalar_lea.smem %s0, 31
  %s63 = sld [smem:[%s62]]
  %s64 = scalar_lea.smem %s0, 32
  %s65 = sld [smem:[%s64]]
  %s66 = scalar_lea.smem %s0, 33
  %s67 = sld [smem:[%s66]]
  %s68 = scalar_lea.smem %s0, 34
  %s69 = sld [smem:[%s68]]
  %s70 = scalar_lea.smem %s0, 35
  %s71 = sld [smem:[%s70]]
  %s72 = scalar_lea.smem %s0, 36
  %s73 = sld [smem:[%s72]]
  %s74 = scalar_lea.smem %s0, 37
  %s75 = sld [smem:[%s74]]
  %s76 = scalar_lea.smem %s0, 38
  %s77 = sld [smem:[%s76]]
  %s78 = scalar_lea.smem %s0, 39
  %s79 = sld [smem:[%s78]]
  %s80 = scalar_lea.smem %s0, 40
  %s81 = sld [smem:[%s80]]
  %s82 = scalar_lea.smem %s0, 41
  %s83 = sld [smem:[%s82]]
  %s84 = scalar_lea.smem %s0, 42
  %s85 = sld [smem:[%s84]]
  %s86 = scalar_lea.smem %s0, 43
  %s87 = sld [smem:[%s86]]
  %88 = xla_tuple %s85, %s87
  %s89 = sld [smem:[#allocation0]]
  $region266: #{carso_forward.1} parent=0
    _
  %s91 = ssub.s32 1, %s89
  %s92 = scalar_select 0, %s91, %s89
  $region1: #{carso_forward.1} parent=0
    #allocation2 [shape = 'u8[1024]{0}', space=vmem, size = 0x400, scoped, tag = 'input window, operand 1, single buffered']
    #allocation3 [shape = 's32[1]{0}', space=sflag, size = 0x4, scoped, tag = 'scoped memory for carso_forward.1']
    #allocation4 [shape = 'u8[1024]{0}', space=vmem, size = 0x400, scoped, tag = 'input window, operand 4, single buffered']
    #allocation5 [shape = 's32[1]{0}', space=sflag, size = 0x4, scoped, tag = 'scoped memory for carso_forward.1']
    #allocation6 [shape = 'u8[1024]{0}', space=vmem, size = 0x400, scoped, tag = 'input window, operand 7, single buffered']
    #allocation7 [shape = 'u8[1024]{0}', space=vmem, size = 0x400, scoped, tag = 'input window, operand 10, single buffered']
    #allocation8 [shape = 's32[1]{0}', space=sflag, size = 0x4, scoped, tag = 'scoped memory for carso_forward.1']
    #allocation9 [shape = 'u8[12288]{0}', space=vmem, size = 0x3000, scoped, tag = 'input window, operand 11, single buffered']
    #allocation10 [shape = 'u8[512]{0}', space=vmem, size = 0x400, scoped, tag = 'input window, operand 13, single buffered']
    #allocation11 [shape = 's32[1]{0}', space=sflag, size = 0x4, scoped, tag = 'scoped memory for carso_forward.1']
    #allocation12 [shape = 'u8[512]{0}', space=vmem, size = 0x400, scoped, tag = 'input window, operand 16, single buffered']
    #allocation13 [shape = 'u8[512]{0}', space=vmem, size = 0x400, scoped, tag = 'input window, operand 20, single buffered']
    #allocation14 [shape = 's32[1]{0}', space=sflag, size = 0x4, scoped, tag = 'scoped memory for carso_forward.1']
    #allocation15 [shape = 'u8[512]{0}', space=vmem, size = 0x400, scoped, tag = 'input window, operand 21, single buffered']
    #allocation16 [shape = 'u8[16384]{0}', space=vmem, size = 0x4000, scoped, tag = 'input window, operand 23, single buffered']
    #allocation17 [shape = 's32[1]{0}', space=sflag, size = 0x4, scoped, tag = 'scoped memory for carso_forward.1']
    #allocation18 [shape = 'u8[512]{0}', space=vmem, size = 0x400, scoped, tag = 'input window, operand 24, single buffered']
    #allocation19 [shape = 'u8[512]{0}', space=vmem, size = 0x400, scoped, tag = 'input window, operand 28, single buffered']
    #allocation20 [shape = 's32[1]{0}', space=sflag, size = 0x4, scoped, tag = 'scoped memory for carso_forward.1']
    #allocation21 [shape = 'u8[12288]{0}', space=vmem, size = 0x3000, scoped, tag = 'input window, operand 30, single buffered']
    #allocation22 [shape = 'u8[24576]{0}', space=vmem, size = 0x6000, scoped, tag = 'input window, operand 31, single buffered']
    #allocation23 [shape = 's32[1]{0}', space=sflag, size = 0x4, scoped, tag = 'scoped memory for carso_forward.1']
    #allocation24 [shape = 'u8[512]{0}', space=vmem, size = 0x400, scoped, tag = 'input window, operand 32, single buffered']
    #allocation25 [shape = 'u8[512]{0}', space=vmem, size = 0x400, scoped, tag = 'input window, operand 34, single buffered']
    #allocation26 [shape = 's32[1]{0}', space=sflag, size = 0x4, scoped, tag = 'scoped memory for carso_forward.1']
    #allocation27 [shape = 'u8[4096]{0}', space=vmem, size = 0x1000, scoped, tag = 'input window, operand 35, single buffered']
    #allocation28 [shape = 'u8[512]{0}', space=vmem, size = 0x400, scoped, tag = 'input window, operand 36, single buffered']
    #allocation29 [shape = 's32[1]{0}', space=sflag, size = 0x4, scoped, tag = 'scoped memory for carso_forward.1']
    #allocation30 [shape = 'u8[8192]{0}', space=vmem, size = 0x2000, scoped, tag = 'input window, operand 37, single buffered']
    #allocation31 [shape = 'u8[512]{0}', space=vmem, size = 0x400, scoped, tag = 'input window, operand 38, single buffered']
    #allocation32 [shape = 's32[1]{0}', space=sflag, size = 0x4, scoped, tag = 'scoped memory for carso_forward.1']
    %93 = vsyncpa [#allocation3], 0
    %94 = vsyncpa [#allocation5], 0
    %95 = vsyncpa [#allocation8], 0
    %96 = vsyncpa [#allocation11], 0
    %97 = vsyncpa [#allocation14], 0
    %98 = vsyncpa [#allocation17], 0
    %99 = vsyncpa [#allocation20], 0
    %100 = vsyncpa [#allocation23], 0
    %101 = vsyncpa [#allocation26], 0
    %102 = vsyncpa [#allocation29], 0
    %103 = vsyncpa [#allocation32], 0
    // Predicated region
    $region2: #{carso_forward.1} parent=1 // pred_check
      _
    $region3: #{carso_forward.1} parent=1 // pred_check_branch
      %105 = sbr.rel (0) target = $region5
    $region4: #{carso_forward.1} parent=1 // pred_region
      _
    $region5: #{carso_forward.1} parent=1 // pred_fallthru
      _
    // Predicated region
    $region6: #{carso_forward.1} parent=1 // pred_check
      _
    $region7: #{carso_forward.1} parent=1 // pred_check_branch
      %107 = sbr.rel (0) target = $region9
    $region8: #{carso_forward.1} parent=1 // pred_region
      %s109 = ssub.s32 32, 32
      %110 = vsyncadd [#allocation3], %s109
      %s112 = sshll.u32 [#allocation2], 4
      %s113 = int_to_ptr.vmem [resolvable:$true] %s112
      %115 = dma.hbm_to_vmem [thread:$0]  %s3, 32, %s113, [#allocation3]
    $region9: #{carso_forward.1} parent=1 // pred_fallthru
      _
    // Predicated region
    $region10: #{carso_forward.1} parent=1 // pred_check
      _
    $region11: #{carso_forward.1} parent=1 // pred_check_branch
      %117 = sbr.rel (0) target = $region13
    $region12: #{carso_forward.1} parent=1 // pred_region
      _
    $region13: #{carso_forward.1} parent=1 // pred_fallthru
      _
    // Predicated region
    $region14: #{carso_forward.1} parent=1 // pred_check
      _
    $region15: #{carso_forward.1} parent=1 // pred_check_branch
      %119 = sbr.rel (0) target = $region17
    $region16: #{carso_forward.1} parent=1 // pred_region
      _
    $region17: #{carso_forward.1} parent=1 // pred_fallthru
      _
    // Predicated region
    $region18: #{carso_forward.1} parent=1 // pred_check
      _
    $region19: #{carso_forward.1} parent=1 // pred_check_branch
      %121 = sbr.rel (0) target = $region21
    $region20: #{carso_forward.1} parent=1 // pred_region
      %s123 = ssub.s32 32, 32
      %124 = vsyncadd [#allocation5], %s123
      %s126 = sshll.u32 [#allocation4], 4
      %s127 = int_to_ptr.vmem [resolvable:$true] %s126
      %129 = dma.hbm_to_vmem [thread:$0]  %s9, 32, %s127, [#allocation5]
    $region21: #{carso_forward.1} parent=1 // pred_fallthru
      _
    // Predicated region
    $region22: #{carso_forward.1} parent=1 // pred_check
      _
    $region23: #{carso_forward.1} parent=1 // pred_check_branch
      %131 = sbr.rel (0) target = $region25
    $region24: #{carso_forward.1} parent=1 // pred_region
      _
    $region25: #{carso_forward.1} parent=1 // pred_fallthru
      _
    // Predicated region
    $region26: #{carso_forward.1} parent=1 // pred_check
      _
    $region27: #{carso_forward.1} parent=1 // pred_check_branch
      %133 = sbr.rel (0) target = $region29
    $region28: #{carso_forward.1} parent=1 // pred_region
      _
    $region29: #{carso_forward.1} parent=1 // pred_fallthru
      _
    // Predicated region
    $region30: #{carso_forward.1} parent=1 // pred_check
      _
    $region31: #{carso_forward.1} parent=1 // pred_check_branch
      %135 = sbr.rel (0) target = $region33
    $region32: #{carso_forward.1} parent=1 // pred_region
      %s137 = ssub.s32 32, 32
      %138 = vsyncadd [#allocation5], %s137
      %s140 = sshll.u32 [#allocation6], 4
      %s141 = int_to_ptr.vmem [resolvable:$true] %s140
      %143 = dma.hbm_to_vmem [thread:$0]  %s15, 32, %s141, [#allocation5]
    $region33: #{carso_forward.1} parent=1 // pred_fallthru
      _
    // Predicated region
    $region34: #{carso_forward.1} parent=1 // pred_check
      _
    $region35: #{carso_forward.1} parent=1 // pred_check_branch
      %145 = sbr.rel (0) target = $region37
    $region36: #{carso_forward.1} parent=1 // pred_region
      _
    $region37: #{carso_forward.1} parent=1 // pred_fallthru
      _
    // Predicated region
    $region38: #{carso_forward.1} parent=1 // pred_check
      _
    $region39: #{carso_forward.1} parent=1 // pred_check_branch
      %147 = sbr.rel (0) target = $region41
    $region40: #{carso_forward.1} parent=1 // pred_region
      _
    $region41: #{carso_forward.1} parent=1 // pred_fallthru
      _
    // Predicated region
    $region42: #{carso_forward.1} parent=1 // pred_check
      _
    $region43: #{carso_forward.1} parent=1 // pred_check_branch
      %149 = sbr.rel (0) target = $region45
    $region44: #{carso_forward.1} parent=1 // pred_region
      %s151 = ssub.s32 32, 32
      %152 = vsyncadd [#allocation8], %s151
      %s154 = sshll.u32 [#allocation7], 4
      %s155 = int_to_ptr.vmem [resolvable:$true] %s154
      %157 = dma.hbm_to_vmem [thread:$0]  %s21, 32, %s155, [#allocation8]
    $region45: #{carso_forward.1} parent=1 // pred_fallthru
      _
    // Predicated region
    $region46: #{carso_forward.1} parent=1 // pred_check
      _
    $region47: #{carso_forward.1} parent=1 // pred_check_branch
      %159 = sbr.rel (0) target = $region49
    $region48: #{carso_forward.1} parent=1 // pred_region
      %s161 = ssub.s32 384, 384
      %162 = vsyncadd [#allocation8], %s161
      %s163 = sshll.u32 [#allocation9], 4
      %s164 = int_to_ptr.vmem [resolvable:$true] %s163
      %169 = dma.hbm_to_vmem [thread:$0]  %s23, 384, %s164, [#allocation8], 64, 64, 4
    $region49: #{carso_forward.1} parent=1 // pred_fallthru
      _
    // Predicated region
    $region50: #{carso_forward.1} parent=1 // pred_check
      _
    $region51: #{carso_forward.1} parent=1 // pred_check_branch
      %171 = sbr.rel (0) target = $region53
    $region52: #{carso_forward.1} parent=1 // pred_region
      _
    $region53: #{carso_forward.1} parent=1 // pred_fallthru
      _
    // Predicated region
    $region54: #{carso_forward.1} parent=1 // pred_check
      _
    $region55: #{carso_forward.1} parent=1 // pred_check_branch
      %173 = sbr.rel (0) target = $region57
    $region56: #{carso_forward.1} parent=1 // pred_region
      %s175 = ssub.s32 16, 16
      %176 = vsyncadd [#allocation11], %s175
      %s178 = sshll.u32 [#allocation10], 4
      %s179 = int_to_ptr.vmem [resolvable:$true] %s178
      %181 = dma.hbm_to_vmem [thread:$0]  %s27, 16, %s179, [#allocation11]
    $region57: #{carso_forward.1} parent=1 // pred_fallthru
      _
    // Predicated region
    $region58: #{carso_forward.1} parent=1 // pred_check
      _
    $region59: #{carso_forward.1} parent=1 // pred_check_branch
      %183 = sbr.rel (0) target = $region61
    $region60: #{carso_forward.1} parent=1 // pred_region
      _
    $region61: #{carso_forward.1} parent=1 // pred_fallthru
      _
    // Predicated region
    $region62: #{carso_forward.1} parent=1 // pred_check
      _
    $region63: #{carso_forward.1} parent=1 // pred_check_branch
      %185 = sbr.rel (0) target = $region65
    $region64: #{carso_forward.1} parent=1 // pred_region
      _
    $region65: #{carso_forward.1} parent=1 // pred_fallthru
      _
    // Predicated region
    $region66: #{carso_forward.1} parent=1 // pred_check
      _
    $region67: #{carso_forward.1} parent=1 // pred_check_branch
      %187 = sbr.rel (0) target = $region69
    $region68: #{carso_forward.1} parent=1 // pred_region
      %s189 = ssub.s32 16, 16
      %190 = vsyncadd [#allocation11], %s189
      %s192 = sshll.u32 [#allocation12], 4
      %s193 = int_to_ptr.vmem [resolvable:$true] %s192
      %195 = dma.hbm_to_vmem [thread:$0]  %s33, 16, %s193, [#allocation11]
    $region69: #{carso_forward.1} parent=1 // pred_fallthru
      _
    // Predicated region
    $region70: #{carso_forward.1} parent=1 // pred_check
      _
    $region71: #{carso_forward.1} parent=1 // pred_check_branch
      %197 = sbr.rel (0) target = $region73
    $region72: #{carso_forward.1} parent=1 // pred_region
      _
    $region73: #{carso_forward.1} parent=1 // pred_fallthru
      _
    // Predicated region
    $region74: #{carso_forward.1} parent=1 // pred_check
      _
    $region75: #{carso_forward.1} parent=1 // pred_check_branch
      %199 = sbr.rel (0) target = $region77
    $region76: #{carso_forward.1} parent=1 // pred_region
      _
    $region77: #{carso_forward.1} parent=1 // pred_fallthru
      _
    // Predicated region
    $region78: #{carso_forward.1} parent=1 // pred_check
      _
    $region79: #{carso_forward.1} parent=1 // pred_check_branch
      %201 = sbr.rel (0) target = $region81
    $region80: #{carso_forward.1} parent=1 // pred_region
      _
    $region81: #{carso_forward.1} parent=1 // pred_fallthru
      _
    // Predicated region
    $region82: #{carso_forward.1} parent=1 // pred_check
      _
    $region83: #{carso_forward.1} parent=1 // pred_check_branch
      %203 = sbr.rel (0) target = $region85
    $region84: #{carso_forward.1} parent=1 // pred_region
      %s205 = ssub.s32 16, 16
      %206 = vsyncadd [#allocation14], %s205
      %s208 = sshll.u32 [#allocation13], 4
      %s209 = int_to_ptr.vmem [resolvable:$true] %s208
      %211 = dma.hbm_to_vmem [thread:$0]  %s41, 16, %s209, [#allocation14]
    $region85: #{carso_forward.1} parent=1 // pred_fallthru
      _
    // Predicated region
    $region86: #{carso_forward.1} parent=1 // pred_check
      _
    $region87: #{carso_forward.1} parent=1 // pred_check_branch
      %213 = sbr.rel (0) target = $region89
    $region88: #{carso_forward.1} parent=1 // pred_region
      %s215 = ssub.s32 16, 16
      %216 = vsyncadd [#allocation14], %s215
      %s218 = sshll.u32 [#allocation15], 4
      %s219 = int_to_ptr.vmem [resolvable:$true] %s218
      %221 = dma.hbm_to_vmem [thread:$0]  %s43, 16, %s219, [#allocation14]
    $region89: #{carso_forward.1} parent=1 // pred_fallthru
      _
    // Predicated region
    $region90: #{carso_forward.1} parent=1 // pred_check
      _
    $region91: #{carso_forward.1} parent=1 // pred_check_branch
      %223 = sbr.rel (0) target = $region93
    $region92: #{carso_forward.1} parent=1 // pred_region
      _
    $region93: #{carso_forward.1} parent=1 // pred_fallthru
      _
    // Predicated region
    $region94: #{carso_forward.1} parent=1 // pred_check
      _
    $region95: #{carso_forward.1} parent=1 // pred_check_branch
      %225 = sbr.rel (0) target = $region97
    $region96: #{carso_forward.1} parent=1 // pred_region
      %s227 = ssub.s32 512, 512
      %228 = vsyncadd [#allocation17], %s227
      %s229 = sshll.u32 [#allocation16], 4
      %s230 = int_to_ptr.vmem [resolvable:$true] %s229
      %235 = dma.hbm_to_vmem [thread:$0]  %s47, 512, %s230, [#allocation17], 256, 256, 16
    $region97: #{carso_forward.1} parent=1 // pred_fallthru
      _
    // Predicated region
    $region98: #{carso_forward.1} parent=1 // pred_check
      _
    $region99: #{carso_forward.1} parent=1 // pred_check_branch
      %237 = sbr.rel (0) target = $region101
    $region100: #{carso_forward.1} parent=1 // pred_region
      %s239 = ssub.s32 16, 16
      %240 = vsyncadd [#allocation17], %s239
      %s242 = sshll.u32 [#allocation18], 4
      %s243 = int_to_ptr.vmem [resolvable:$true] %s242
      %245 = dma.hbm_to_vmem [thread:$0]  %s49, 16, %s243, [#allocation17]
    $region101: #{carso_forward.1} parent=1 // pred_fallthru
      _
    // Predicated region
    $region102: #{carso_forward.1} parent=1 // pred_check
      _
    $region103: #{carso_forward.1} parent=1 // pred_check_branch
      %247 = sbr.rel (0) target = $region105
    $region104: #{carso_forward.1} parent=1 // pred_region
      _
    $region105: #{carso_forward.1} parent=1 // pred_fallthru
      _
    // Predicated region
    $region106: #{carso_forward.1} parent=1 // pred_check
      _
    $region107: #{carso_forward.1} parent=1 // pred_check_branch
      %249 = sbr.rel (0) target = $region109
    $region108: #{carso_forward.1} parent=1 // pred_region
      _
    $region109: #{carso_forward.1} parent=1 // pred_fallthru
      _
    // Predicated region
    $region110: #{carso_forward.1} parent=1 // pred_check
      _
    $region111: #{carso_forward.1} parent=1 // pred_check_branch
      %251 = sbr.rel (0) target = $region113
    $region112: #{carso_forward.1} parent=1 // pred_region
      _
    $region113: #{carso_forward.1} parent=1 // pred_fallthru
      _
    // Predicated region
    $region114: #{carso_forward.1} parent=1 // pred_check
      _
    $region115: #{carso_forward.1} parent=1 // pred_check_branch
      %253 = sbr.rel (0) target = $region117
    $region116: #{carso_forward.1} parent=1 // pred_region
      %s255 = ssub.s32 16, 16
      %256 = vsyncadd [#allocation20], %s255
      %s258 = sshll.u32 [#allocation19], 4
      %s259 = int_to_ptr.vmem [resolvable:$true] %s258
      %261 = dma.hbm_to_vmem [thread:$0]  %s57, 16, %s259, [#allocation20]
    $region117: #{carso_forward.1} parent=1 // pred_fallthru
      _
    // Predicated region
    $region118: #{carso_forward.1} parent=1 // pred_check
      _
    $region119: #{carso_forward.1} parent=1 // pred_check_branch
      %263 = sbr.rel (0) target = $region121
    $region120: #{carso_forward.1} parent=1 // pred_region
      _
    $region121: #{carso_forward.1} parent=1 // pred_fallthru
      _
    // Predicated region
    $region122: #{carso_forward.1} parent=1 // pred_check
      _
    $region123: #{carso_forward.1} parent=1 // pred_check_branch
      %265 = sbr.rel (0) target = $region125
    $region124: #{carso_forward.1} parent=1 // pred_region
      %s267 = ssub.s32 384, 384
      %268 = vsyncadd [#allocation20], %s267
      %s269 = sshll.u32 [#allocation21], 4
      %s270 = int_to_ptr.vmem [resolvable:$true] %s269
      %275 = dma.hbm_to_vmem [thread:$0]  %s61, 384, %s270, [#allocation20], 128, 128, 8
    $region125: #{carso_forward.1} parent=1 // pred_fallthru
      _
    // Predicated region
    $region126: #{carso_forward.1} parent=1 // pred_check
      _
    $region127: #{carso_forward.1} parent=1 // pred_check_branch
      %277 = sbr.rel (0) target = $region129
    $region128: #{carso_forward.1} parent=1 // pred_region
      %s279 = ssub.s32 768, 768
      %280 = vsyncadd [#allocation23], %s279
      %s281 = sshll.u32 [#allocation22], 4
      %s282 = int_to_ptr.vmem [resolvable:$true] %s281
      %287 = dma.hbm_to_vmem [thread:$0]  %s63, 768, %s282, [#allocation23], 256, 256, 16
    $region129: #{carso_forward.1} parent=1 // pred_fallthru
      _
    // Predicated region
    $region130: #{carso_forward.1} parent=1 // pred_check
      _
    $region131: #{carso_forward.1} parent=1 // pred_check_branch
      %289 = sbr.rel (0) target = $region133
    $region132: #{carso_forward.1} parent=1 // pred_region
      %s291 = ssub.s32 16, 16
      %292 = vsyncadd [#allocation23], %s291
      %s294 = sshll.u32 [#allocation24], 4
      %s295 = int_to_ptr.vmem [resolvable:$true] %s294
      %297 = dma.hbm_to_vmem [thread:$0]  %s65, 16, %s295, [#allocation23]
    $region133: #{carso_forward.1} parent=1 // pred_fallthru
      _
    // Predicated region
    $region134: #{carso_forward.1} parent=1 // pred_check
      _
    $region135: #{carso_forward.1} parent=1 // pred_check_branch
      %299 = sbr.rel (0) target = $region137
    $region136: #{carso_forward.1} parent=1 // pred_region
      _
    $region137: #{carso_forward.1} parent=1 // pred_fallthru
      _
    // Predicated region
    $region138: #{carso_forward.1} parent=1 // pred_check
      _
    $region139: #{carso_forward.1} parent=1 // pred_check_branch
      %301 = sbr.rel (0) target = $region141
    $region140: #{carso_forward.1} parent=1 // pred_region
      %s303 = ssub.s32 16, 16
      %304 = vsyncadd [#allocation26], %s303
      %s306 = sshll.u32 [#allocation25], 4
      %s307 = int_to_ptr.vmem [resolvable:$true] %s306
      %309 = dma.hbm_to_vmem [thread:$0]  %s69, 16, %s307, [#allocation26]
    $region141: #{carso_forward.1} parent=1 // pred_fallthru
      _
    // Predicated region
    $region142: #{carso_forward.1} parent=1 // pred_check
      _
    $region143: #{carso_forward.1} parent=1 // pred_check_branch
      %311 = sbr.rel (0) target = $region145
    $region144: #{carso_forward.1} parent=1 // pred_region
      %s313 = ssub.s32 128, 128
      %314 = vsyncadd [#allocation26], %s313
      %s315 = sshll.u32 [#allocation27], 4
      %s316 = int_to_ptr.vmem [resolvable:$true] %s315
      %321 = dma.hbm_to_vmem [thread:$0]  %s71, 128, %s316, [#allocation26], 64, 64, 4
    $region145: #{carso_forward.1} parent=1 // pred_fallthru
      _
    // Predicated region
    $region146: #{carso_forward.1} parent=1 // pred_check
      _
    $region147: #{carso_forward.1} parent=1 // pred_check_branch
      %323 = sbr.rel (0) target = $region149
    $region148: #{carso_forward.1} parent=1 // pred_region
      %s325 = ssub.s32 16, 16
      %326 = vsyncadd [#allocation29], %s325
      %s328 = sshll.u32 [#allocation28], 4
      %s329 = int_to_ptr.vmem [resolvable:$true] %s328
      %331 = dma.hbm_to_vmem [thread:$0]  %s73, 16, %s329, [#allocation29]
    $region149: #{carso_forward.1} parent=1 // pred_fallthru
      _
    // Predicated region
    $region150: #{carso_forward.1} parent=1 // pred_check
      _
    $region151: #{carso_forward.1} parent=1 // pred_check_branch
      %333 = sbr.rel (0) target = $region153
    $region152: #{carso_forward.1} parent=1 // pred_region
      %s335 = ssub.s32 256, 256
      %336 = vsyncadd [#allocation29], %s335
      %s337 = sshll.u32 [#allocation30], 4
      %s338 = int_to_ptr.vmem [resolvable:$true] %s337
      %343 = dma.hbm_to_vmem [thread:$0]  %s75, 256, %s338, [#allocation29], 64, 64, 4
    $region153: #{carso_forward.1} parent=1 // pred_fallthru
      _
    // Predicated region
    $region154: #{carso_forward.1} parent=1 // pred_check
      _
    $region155: #{carso_forward.1} parent=1 // pred_check_branch
      %345 = sbr.rel (0) target = $region157
    $region156: #{carso_forward.1} parent=1 // pred_region
      %s347 = ssub.s32 16, 16
      %348 = vsyncadd [#allocation32], %s347
      %s350 = sshll.u32 [#allocation31], 4
      %s351 = int_to_ptr.vmem [resolvable:$true] %s350
      %353 = dma.hbm_to_vmem [thread:$0]  %s77, 16, %s351, [#allocation32]
    $region157: #{carso_forward.1} parent=1 // pred_fallthru
      _
    // Predicated region
    $region158: #{carso_forward.1} parent=1 // pred_check
      _
    $region159: #{carso_forward.1} parent=1 // pred_check_branch
      %355 = sbr.rel (0) target = $region161
    $region160: #{carso_forward.1} parent=1 // pred_region
      _
    $region161: #{carso_forward.1} parent=1 // pred_fallthru
      _
    // Predicated region
    $region162: #{carso_forward.1} parent=1 // pred_check
      _
    $region163: #{carso_forward.1} parent=1 // pred_check_branch
      %357 = sbr.rel (0) target = $region165
    $region164: #{carso_forward.1} parent=1 // pred_region
      _
    $region165: #{carso_forward.1} parent=1 // pred_fallthru
      _
    // Predicated region
    $region166: #{carso_forward.1} parent=1 // pred_check
      _
    $region167: #{carso_forward.1} parent=1 // pred_check_branch
      %359 = sbr.rel (0) target = $region169
    $region168: #{carso_forward.1} parent=1 // pred_region
      _
    $region169: #{carso_forward.1} parent=1 // pred_fallthru
      _
    // Predicated region
    $region170: #{carso_forward.1} parent=1 // pred_check
      _
    $region171: #{carso_forward.1} parent=1 // pred_check_branch
      %361 = sbr.rel (0) target = $region173
    $region172: #{carso_forward.1} parent=1 // pred_region
      %362 = dma.done [#allocation3], 32
    $region173: #{carso_forward.1} parent=1 // pred_fallthru
      _
    // Predicated region
    $region174: #{carso_forward.1} parent=1 // pred_check
      _
    $region175: #{carso_forward.1} parent=1 // pred_check_branch
      %364 = sbr.rel (0) target = $region177
    $region176: #{carso_forward.1} parent=1 // pred_region
      %365 = dma.done [#allocation5], 32
    $region177: #{carso_forward.1} parent=1 // pred_fallthru
      _
    // Predicated region
    $region178: #{carso_forward.1} parent=1 // pred_check
      _
    $region179: #{carso_forward.1} parent=1 // pred_check_branch
      %367 = sbr.rel (0) target = $region181
    $region180: #{carso_forward.1} parent=1 // pred_region
      %368 = dma.done [#allocation5], 32
    $region181: #{carso_forward.1} parent=1 // pred_fallthru
      _
    // Predicated region
    $region182: #{carso_forward.1} parent=1 // pred_check
      _
    $region183: #{carso_forward.1} parent=1 // pred_check_branch
      %370 = sbr.rel (0) target = $region185
    $region184: #{carso_forward.1} parent=1 // pred_region
      %371 = dma.done [#allocation8], 32
    $region185: #{carso_forward.1} parent=1 // pred_fallthru
      _
    // Predicated region
    $region186: #{carso_forward.1} parent=1 // pred_check
      _
    $region187: #{carso_forward.1} parent=1 // pred_check_branch
      %373 = sbr.rel (0) target = $region189
    $region188: #{carso_forward.1} parent=1 // pred_region
      %374 = dma.done [#allocation8], 384
    $region189: #{carso_forward.1} parent=1 // pred_fallthru
      _
    // Predicated region
    $region190: #{carso_forward.1} parent=1 // pred_check
      _
    $region191: #{carso_forward.1} parent=1 // pred_check_branch
      %376 = sbr.rel (0) target = $region193
    $region192: #{carso_forward.1} parent=1 // pred_region
      %377 = dma.done [#allocation11], 16
    $region193: #{carso_forward.1} parent=1 // pred_fallthru
      _
    // Predicated region
    $region194: #{carso_forward.1} parent=1 // pred_check
      _
    $region195: #{carso_forward.1} parent=1 // pred_check_branch
      %379 = sbr.rel (0) target = $region197
    $region196: #{carso_forward.1} parent=1 // pred_region
      %380 = dma.done [#allocation11], 16
    $region197: #{carso_forward.1} parent=1 // pred_fallthru
      _
    // Predicated region
    $region198: #{carso_forward.1} parent=1 // pred_check
      _
    $region199: #{carso_forward.1} parent=1 // pred_check_branch
      %382 = sbr.rel (0) target = $region201
    $region200: #{carso_forward.1} parent=1 // pred_region
      %383 = dma.done [#allocation14], 16
    $region201: #{carso_forward.1} parent=1 // pred_fallthru
      _
    // Predicated region
    $region202: #{carso_forward.1} parent=1 // pred_check
      _
    $region203: #{carso_forward.1} parent=1 // pred_check_branch
      %385 = sbr.rel (0) target = $region205
    $region204: #{carso_forward.1} parent=1 // pred_region
      %386 = dma.done [#allocation14], 16
    $region205: #{carso_forward.1} parent=1 // pred_fallthru
      _
    // Predicated region
    $region206: #{carso_forward.1} parent=1 // pred_check
      _
    $region207: #{carso_forward.1} parent=1 // pred_check_branch
      %388 = sbr.rel (0) target = $region209
    $region208: #{carso_forward.1} parent=1 // pred_region
      %389 = dma.done [#allocation17], 512
    $region209: #{carso_forward.1} parent=1 // pred_fallthru
      _
    // Predicated region
    $region210: #{carso_forward.1} parent=1 // pred_check
      _
    $region211: #{carso_forward.1} parent=1 // pred_check_branch
      %391 = sbr.rel (0) target = $region213
    $region212: #{carso_forward.1} parent=1 // pred_region
      %392 = dma.done [#allocation17], 16
    $region213: #{carso_forward.1} parent=1 // pred_fallthru
      _
    // Predicated region
    $region214: #{carso_forward.1} parent=1 // pred_check
      _
    $region215: #{carso_forward.1} parent=1 // pred_check_branch
      %394 = sbr.rel (0) target = $region217
    $region216: #{carso_forward.1} parent=1 // pred_region
      %395 = dma.done [#allocation20], 16
    $region217: #{carso_forward.1} parent=1 // pred_fallthru
      _
    // Predicated region
    $region218: #{carso_forward.1} parent=1 // pred_check
      _
    $region219: #{carso_forward.1} parent=1 // pred_check_branch
      %397 = sbr.rel (0) target = $region221
    $region220: #{carso_forward.1} parent=1 // pred_region
      %398 = dma.done [#allocation20], 384
    $region221: #{carso_forward.1} parent=1 // pred_fallthru
      _
    // Predicated region
    $region222: #{carso_forward.1} parent=1 // pred_check
      _
    $region223: #{carso_forward.1} parent=1 // pred_check_branch
      %400 = sbr.rel (0) target = $region225
    $region224: #{carso_forward.1} parent=1 // pred_region
      %401 = dma.done [#allocation23], 768
    $region225: #{carso_forward.1} parent=1 // pred_fallthru
      _
    // Predicated region
    $region226: #{carso_forward.1} parent=1 // pred_check
      _
    $region227: #{carso_forward.1} parent=1 // pred_check_branch
      %403 = sbr.rel (0) target = $region229
    $region228: #{carso_forward.1} parent=1 // pred_region
      %404 = dma.done [#allocation23], 16
    $region229: #{carso_forward.1} parent=1 // pred_fallthru
      _
    // Predicated region
    $region230: #{carso_forward.1} parent=1 // pred_check
      _
    $region231: #{carso_forward.1} parent=1 // pred_check_branch
      %406 = sbr.rel (0) target = $region233
    $region232: #{carso_forward.1} parent=1 // pred_region
      %407 = dma.done [#allocation26], 16
    $region233: #{carso_forward.1} parent=1 // pred_fallthru
      _
    // Predicated region
    $region234: #{carso_forward.1} parent=1 // pred_check
      _
    $region235: #{carso_forward.1} parent=1 // pred_check_branch
      %409 = sbr.rel (0) target = $region237
    $region236: #{carso_forward.1} parent=1 // pred_region
      %410 = dma.done [#allocation26], 128
    $region237: #{carso_forward.1} parent=1 // pred_fallthru
      _
    // Predicated region
    $region238: #{carso_forward.1} parent=1 // pred_check
      _
    $region239: #{carso_forward.1} parent=1 // pred_check_branch
      %412 = sbr.rel (0) target = $region241
    $region240: #{carso_forward.1} parent=1 // pred_region
      %413 = dma.done [#allocation29], 16
    $region241: #{carso_forward.1} parent=1 // pred_fallthru
      _
    // Predicated region
    $region242: #{carso_forward.1} parent=1 // pred_check
      _
    $region243: #{carso_forward.1} parent=1 // pred_check_branch
      %415 = sbr.rel (0) target = $region245
    $region244: #{carso_forward.1} parent=1 // pred_region
      %416 = dma.done [#allocation29], 256
    $region245: #{carso_forward.1} parent=1 // pred_fallthru
      _
    // Predicated region
    $region246: #{carso_forward.1} parent=1 // pred_check
      _
    $region247: #{carso_forward.1} parent=1 // pred_check_branch
      %418 = sbr.rel (0) target = $region249
    $region248: #{carso_forward.1} parent=1 // pred_region
      %419 = dma.done [#allocation32], 16
    $region249: #{carso_forward.1} parent=1 // pred_fallthru
      _
    %v421 = vld [vmem:[%s1] sm:$0xff]
    %v422 = vld [vmem:[%s1 + $0x8] sm:$0xff]
    %v423 = vld [vmem:[%s1 + $0x10] sm:$0xff]
    %v424 = vld [vmem:[%s1 + $0x18] sm:$0xff]
    %v425 = vld [vmem:[%s1 + $0x20] sm:$0xff]
    %v426 = vld [vmem:[%s1 + $0x28] sm:$0xff]
    %v427 = vld [vmem:[%s1 + $0x30] sm:$0xff]
    %v428 = vld [vmem:[%s1 + $0x38] sm:$0xff]
    %v429 = vpack.c.bf16 %v422, %v421
    %v430 = vpack.c.bf16 %v424, %v423
    %v431 = vpack.c.bf16 %v426, %v425
    %v432 = vpack.c.bf16 %v428, %v427
    %v433 = vld [vmem:[%s5] sm:$0xf]
    %v434 = vld [vmem:[%s5 + $0x4] sm:$0xf]
    %v435 = vld [vmem:[%s5 + $0x8] sm:$0xf]
    %v436 = vld [vmem:[%s5 + $0xc] sm:$0xf]
    %v437 = vld [vmem:[%s5 + $0x10] sm:$0xf]
    %v438 = vld [vmem:[%s5 + $0x14] sm:$0xf]
    %v439 = vld [vmem:[%s5 + $0x18] sm:$0xf]
    %v440 = vld [vmem:[%s5 + $0x1c] sm:$0xf]
    %v449 = vunpack.c.l.b16 %v433
    %v450 = vunpack.c.l.b16 %v434
    %v451 = vunpack.c.l.b16 %v435
    %v452 = vunpack.c.l.b16 %v436
    %v453 = vunpack.c.l.b16 %v437
    %v454 = vunpack.c.l.b16 %v438
    %v455 = vunpack.c.l.b16 %v439
    %v456 = vunpack.c.l.b16 %v440
    %v457 = vpack.c.b16 %v450, %v449
    %v458 = vpack.c.b16 %v452, %v451
    %v459 = vpack.c.b16 %v454, %v453
    %v460 = vpack.c.b16 %v456, %v455
    %vm461 = vcmask 523264
    %v463 = vsel %vm461, %v457, 0
    %v466 = vsel %vm461, %v458, 0
    %v469 = vsel %vm461, %v459, 0
    %v472 = vsel %vm461, %v460, 0
    %474 = vmatprep.subr.bf16.mxu0 0
    %475 = vmatpush1.bf16.msra.mxu0 0
    %476 = vmatprep.subr.bf16.mxu0 0
    %477 = vmatpush1.bf16.msra.mxu0 0
    %478 = vmatprep.subr.bf16.mxu0 0
    %479 = vmatpush1.bf16.msra.mxu0 0
    %480 = vmatprep.subr.bf16.mxu0 0
    %481 = vmatpush1.bf16.msra.mxu0 0
    %482 = vmatprep.subr.bf16.mxu0 0
    %483 = vmatpush1.bf16.msra.mxu0 %v432
    %484 = vmatprep.subr.bf16.mxu0 0
    %485 = vmatpush1.bf16.msra.mxu0 %v431
    %486 = vmatprep.subr.bf16.mxu0 0
    %487 = vmatpush1.bf16.msra.mxu0 %v430
    %488 = vmatprep.subr.bf16.mxu0 0
    %489 = vmatpush1.bf16.msra.mxu0 %v429
    %490 = vmatprep.subr.bf16.mxu0 0
    %491 = vmatpush2.bf16.msra.mxu0 0
    %492 = vmatprep.subr.bf16.mxu0 0
    %493 = vmatpush2.bf16.msra.mxu0 0
    %494 = vmatprep.subr.bf16.mxu0 0
    %495 = vmatpush2.bf16.msra.mxu0 0
    %496 = vmatprep.subr.bf16.mxu0 0
    %497 = vmatpush2.bf16.msra.mxu0 0
    %498 = vmatprep.subr.bf16.mxu0 0
    %499 = vmatpush2.bf16.msra.mxu0 0
    %500 = vmatprep.subr.bf16.mxu0 0
    %501 = vmatpush2.bf16.msra.mxu0 0
    %502 = vmatprep.subr.bf16.mxu0 0
    %503 = vmatpush2.bf16.msra.mxu0 0
    %504 = vmatprep.subr.bf16.mxu0 0
    %505 = vmatpush2.bf16.msra.mxu0 0
    %506 = vmatprep.mubr.bf16.mxu0 0
    %507 = vmatmul.mubr.bf16.gmra.mxu0 %v463
    %v508 = vpop.f32.mrf.mxu0
    %v509 = vadd.f32 0.0, %v508
    %v510 = vpop.f32.mrf.mxu0
    %v511 = vpop.f32.mrf.mxu0
    %v512 = vadd.f32 0.0, %v511
    %v513 = vpop.f32.mrf.mxu0
    %514 = vmatprep.mubr.bf16.mxu0 0
    %515 = vmatmul.mubr.bf16.gmra.mxu0 %v466
    %v516 = vpop.f32.mrf.mxu0
    %v517 = vadd.f32 0.0, %v516
    %v518 = vpop.f32.mrf.mxu0
    %v519 = vpop.f32.mrf.mxu0
    %v520 = vadd.f32 0.0, %v519
    %v521 = vpop.f32.mrf.mxu0
    %522 = vmatprep.mubr.bf16.mxu0 0
    %523 = vmatmul.mubr.bf16.gmra.mxu0 %v469
    %v524 = vpop.f32.mrf.mxu0
    %v525 = vadd.f32 0.0, %v524
    %v526 = vpop.f32.mrf.mxu0
    %v527 = vpop.f32.mrf.mxu0
    %v528 = vadd.f32 0.0, %v527
    %v529 = vpop.f32.mrf.mxu0
    %530 = vmatprep.mubr.bf16.mxu0 0
    %531 = vmatmul.mubr.bf16.gmra.mxu0 %v472
    %v532 = vpop.f32.mrf.mxu0
    %v533 = vadd.f32 0.0, %v532
    %v534 = vpop.f32.mrf.mxu0
    %v535 = vpop.f32.mrf.mxu0
    %v536 = vadd.f32 0.0, %v535
    %v537 = vpop.f32.mrf.mxu0
    %538 = vdwg.mxu0
    %v539 = vpack.c.bf16 %v512, %v509
    %v540 = vpack.c.bf16 %v520, %v517
    %v541 = vpack.c.bf16 %v528, %v525
    %v542 = vpack.c.bf16 %v536, %v533
    %v543 = vld [vmem:[%s7] sm:$0xff]
    %v544 = vld [vmem:[%s7 + $0x8] sm:$0xff]
    %v545 = vld [vmem:[%s7 + $0x10] sm:$0xff]
    %v546 = vld [vmem:[%s7 + $0x18] sm:$0xff]
    %v547 = vld [vmem:[%s7 + $0x20] sm:$0xff]
    %v548 = vld [vmem:[%s7 + $0x28] sm:$0xff]
    %v549 = vld [vmem:[%s7 + $0x30] sm:$0xff]
    %v550 = vld [vmem:[%s7 + $0x38] sm:$0xff]
    %v551 = vld [vmem:[%s7 + $0x40] sm:$0xff]
    %v552 = vld [vmem:[%s7 + $0x48] sm:$0xff]
    %v553 = vld [vmem:[%s7 + $0x50] sm:$0xff]
    %v554 = vld [vmem:[%s7 + $0x58] sm:$0xff]
    %s555 = scalar_lea.vmem %s5, 32
    %v556 = vld [vmem:[%s555] sm:$0xf]
    %v557 = vld [vmem:[%s555 + $0x4] sm:$0xf]
    %v558 = vld [vmem:[%s555 + $0x8] sm:$0xf]
    %v559 = vld [vmem:[%s555 + $0xc] sm:$0xf]
    %v560 = vld [vmem:[%s555 + $0x10] sm:$0xf]
    %v561 = vld [vmem:[%s555 + $0x14] sm:$0xf]
    %v562 = vld [vmem:[%s555 + $0x18] sm:$0xf]
    %v563 = vld [vmem:[%s555 + $0x1c] sm:$0xf]
    %v572 = vunpack.c.l.b16 %v556
    %v573 = vunpack.c.l.b16 %v557
    %v574 = vunpack.c.l.b16 %v558
    %v575 = vunpack.c.l.b16 %v559
    %v576 = vunpack.c.l.b16 %v560
    %v577 = vunpack.c.l.b16 %v561
    %v578 = vunpack.c.l.b16 %v562
    %v579 = vunpack.c.l.b16 %v563
    %v580 = vpack.c.b16 %v573, %v572
    %v581 = vpack.c.b16 %v575, %v574
    %v582 = vpack.c.b16 %v577, %v576
    %v583 = vpack.c.b16 %v579, %v578
    %v585 = vsel %vm461, %v580, 0
    %v588 = vsel %vm461, %v581, 0
    %v591 = vsel %vm461, %v582, 0
    %v594 = vsel %vm461, %v583, 0
    %596 = vmatprep.subr.bf16.mxu0 0
    %597 = vmatpush1.bf16.msra.mxu0 0
    %598 = vmatprep.subr.bf16.mxu0 0
    %599 = vmatpush1.bf16.msra.mxu0 0
    %600 = vmatprep.subr.bf16.mxu0 0
    %601 = vmatpush1.bf16.msra.mxu0 0
    %602 = vmatprep.subr.bf16.mxu0 0
    %603 = vmatpush1.bf16.msra.mxu0 0
    %604 = vmatprep.subr.bf16.mxu0 0
    %605 = vmatpush1.bf16.msra.mxu0 %v432
    %606 = vmatprep.subr.bf16.mxu0 0
    %607 = vmatpush1.bf16.msra.mxu0 %v431
    %608 = vmatprep.subr.bf16.mxu0 0
    %609 = vmatpush1.bf16.msra.mxu0 %v430
    %610 = vmatprep.subr.bf16.mxu0 0
    %611 = vmatpush1.bf16.msra.mxu0 %v429
    %612 = vmatprep.subr.bf16.mxu0 0
    %613 = vmatpush2.bf16.msra.mxu0 0
    %614 = vmatprep.subr.bf16.mxu0 0
    %615 = vmatpush2.bf16.msra.mxu0 0
    %616 = vmatprep.subr.bf16.mxu0 0
    %617 = vmatpush2.bf16.msra.mxu0 0
    %618 = vmatprep.subr.bf16.mxu0 0
    %619 = vmatpush2.bf16.msra.mxu0 0
    %620 = vmatprep.subr.bf16.mxu0 0
    %621 = vmatpush2.bf16.msra.mxu0 0
    %622 = vmatprep.subr.bf16.mxu0 0
    %623 = vmatpush2.bf16.msra.mxu0 0
    %624 = vmatprep.subr.bf16.mxu0 0
    %625 = vmatpush2.bf16.msra.mxu0 0
    %626 = vmatprep.subr.bf16.mxu0 0
    %627 = vmatpush2.bf16.msra.mxu0 0
    %628 = vmatprep.mubr.bf16.mxu0 0
    %629 = vmatmul.mubr.bf16.gmra.mxu0 %v585
    %v630 = vpop.f32.mrf.mxu0
    %v631 = vadd.f32 0.0, %v630
    %v632 = vpop.f32.mrf.mxu0
    %v633 = vpop.f32.mrf.mxu0
    %v634 = vadd.f32 0.0, %v633
    %v635 = vpop.f32.mrf.mxu0
    %636 = vmatprep.mubr.bf16.mxu0 0
    %637 = vmatmul.mubr.bf16.gmra.mxu0 %v588
    %v638 = vpop.f32.mrf.mxu0
    %v639 = vadd.f32 0.0, %v638
    %v640 = vpop.f32.mrf.mxu0
    %v641 = vpop.f32.mrf.mxu0
    %v642 = vadd.f32 0.0, %v641
    %v643 = vpop.f32.mrf.mxu0
    %644 = vmatprep.mubr.bf16.mxu0 0
    %645 = vmatmul.mubr.bf16.gmra.mxu0 %v591
    %v646 = vpop.f32.mrf.mxu0
    %v647 = vadd.f32 0.0, %v646
    %v648 = vpop.f32.mrf.mxu0
    %v649 = vpop.f32.mrf.mxu0
    %v650 = vadd.f32 0.0, %v649
    %v651 = vpop.f32.mrf.mxu0
    %652 = vmatprep.mubr.bf16.mxu0 0
    %653 = vmatmul.mubr.bf16.gmra.mxu0 %v594
    %v654 = vpop.f32.mrf.mxu0
    %v655 = vadd.f32 0.0, %v654
    %v656 = vpop.f32.mrf.mxu0
    %v657 = vpop.f32.mrf.mxu0
    %v658 = vadd.f32 0.0, %v657
    %v659 = vpop.f32.mrf.mxu0
    %660 = vdwg.mxu0
    %v661 = vpack.c.bf16 %v634, %v631
    %v662 = vpack.c.bf16 %v642, %v639
    %v663 = vpack.c.bf16 %v650, %v647
    %v664 = vpack.c.bf16 %v658, %v655
    %s665 = scalar_lea.vmem %s7, 96
    %v666 = vld [vmem:[%s665] sm:$0xff]
    %v667 = vld [vmem:[%s665 + $0x8] sm:$0xff]
    %v668 = vld [vmem:[%s665 + $0x10] sm:$0xff]
    %v669 = vld [vmem:[%s665 + $0x18] sm:$0xff]
    %v670 = vld [vmem:[%s665 + $0x20] sm:$0xff]
    %v671 = vld [vmem:[%s665 + $0x28] sm:$0xff]
    %v672 = vld [vmem:[%s665 + $0x30] sm:$0xff]
    %v673 = vld [vmem:[%s665 + $0x38] sm:$0xff]
    %v674 = vld [vmem:[%s665 + $0x40] sm:$0xff]
    %v675 = vld [vmem:[%s665 + $0x48] sm:$0xff]
    %v676 = vld [vmem:[%s665 + $0x50] sm:$0xff]
    %v677 = vld [vmem:[%s665 + $0x58] sm:$0xff]
    %v690 = vunpack.c.l.b16 %v666
    %v691 = vunpack.c.h.b16 %v666
    %v692 = vunpack.c.l.b16 %v667
    %v693 = vunpack.c.h.b16 %v667
    %v694 = vunpack.c.l.b16 %v668
    %v695 = vunpack.c.h.b16 %v668
    %v696 = vunpack.c.l.b16 %v669
    %v697 = vunpack.c.h.b16 %v669
    %v698 = vunpack.c.l.b16 %v670
    %v699 = vunpack.c.h.b16 %v670
    %v700 = vunpack.c.l.b16 %v671
    %v701 = vunpack.c.h.b16 %v671
    %v702 = vunpack.c.l.b16 %v672
    %v703 = vunpack.c.h.b16 %v672
    %v704 = vunpack.c.l.b16 %v673
    %v705 = vunpack.c.h.b16 %v673
    %v706 = vunpack.c.l.b16 %v674
    %v707 = vunpack.c.h.b16 %v674
    %v708 = vunpack.c.l.b16 %v675
    %v709 = vunpack.c.h.b16 %v675
    %v710 = vunpack.c.l.b16 %v676
    %v711 = vunpack.c.h.b16 %v676
    %v712 = vunpack.c.l.b16 %v677
    %v713 = vunpack.c.h.b16 %v677
    %v714 = vpack.c.b16 %v692, %v690
    %v715 = vpack.c.b16 %v693, %v691
    %v716 = vpack.c.b16 %v696, %v694
    %v717 = vpack.c.b16 %v697, %v695
    %v718 = vpack.c.b16 %v700, %v698
    %v719 = vpack.c.b16 %v701, %v699
    %v720 = vpack.c.b16 %v704, %v702
    %v721 = vpack.c.b16 %v705, %v703
    %v722 = vpack.c.b16 %v708, %v706
    %v723 = vpack.c.b16 %v709, %v707
    %v724 = vpack.c.b16 %v712, %v710
    %v725 = vpack.c.b16 %v713, %v711
    %vm738 = vcmask 785408
    %v740 = vsel %vm738, %v661, 0
    %v743 = vsel %vm738, %v662, 0
    %v746 = vsel %vm738, %v663, 0
    %v749 = vsel %vm738, %v664, 0
    %751 = vmatprep.subr.bf16.mxu0 0
    %752 = vmatpush1.bf16.msra.mxu0 0
    %753 = vmatprep.subr.bf16.mxu0 0
    %754 = vmatpush1.bf16.msra.mxu0 0
    %755 = vmatprep.subr.bf16.mxu0 %v725
    %756 = vmatpush1.bf16.msra.mxu0 %v724
    %757 = vmatprep.subr.bf16.mxu0 %v723
    %758 = vmatpush1.bf16.msra.mxu0 %v722
    %759 = vmatprep.subr.bf16.mxu0 %v721
    %760 = vmatpush1.bf16.msra.mxu0 %v720
    %761 = vmatprep.subr.bf16.mxu0 %v719
    %762 = vmatpush1.bf16.msra.mxu0 %v718
    %763 = vmatprep.subr.bf16.mxu0 %v717
    %764 = vmatpush1.bf16.msra.mxu0 %v716
    %765 = vmatprep.subr.bf16.mxu0 %v715
    %766 = vmatpush1.bf16.msra.mxu0 %v714
    %767 = vmatprep.subr.bf16.mxu0 0
    %768 = vmatpush2.bf16.msra.mxu0 0
    %769 = vmatprep.subr.bf16.mxu0 0
    %770 = vmatpush2.bf16.msra.mxu0 0
    %771 = vmatprep.subr.bf16.mxu0 0
    %772 = vmatpush2.bf16.msra.mxu0 0
    %773 = vmatprep.subr.bf16.mxu0 0
    %774 = vmatpush2.bf16.msra.mxu0 0
    %775 = vmatprep.subr.bf16.mxu0 0
    %776 = vmatpush2.bf16.msra.mxu0 0
    %777 = vmatprep.subr.bf16.mxu0 0
    %778 = vmatpush2.bf16.msra.mxu0 0
    %779 = vmatprep.subr.bf16.mxu0 0
    %780 = vmatpush2.bf16.msra.mxu0 0
    %781 = vmatprep.subr.bf16.mxu0 0
    %782 = vmatpush2.bf16.msra.mxu0 0
    %783 = vmatprep.mubr.bf16.mxu0 0
    %784 = vmatmul.mubr.bf16.gmra.mxu0 %v740
    %v785 = vpop.f32.mrf.mxu0
    %v786 = vadd.f32 0.0, %v785
    %v787 = vpop.f32.mrf.mxu0
    %v788 = vadd.f32 0.0, %v787
    %v789 = vpop.f32.mrf.mxu0
    %v790 = vadd.f32 0.0, %v789
    %v791 = vpop.f32.mrf.mxu0
    %v792 = vadd.f32 0.0, %v791
    %793 = vmatprep.mubr.bf16.mxu0 0
    %794 = vmatmul.mubr.bf16.gmra.mxu0 %v743
    %v795 = vpop.f32.mrf.mxu0
    %v796 = vadd.f32 0.0, %v795
    %v797 = vpop.f32.mrf.mxu0
    %v798 = vadd.f32 0.0, %v797
    %v799 = vpop.f32.mrf.mxu0
    %v800 = vadd.f32 0.0, %v799
    %v801 = vpop.f32.mrf.mxu0
    %v802 = vadd.f32 0.0, %v801
    %803 = vmatprep.mubr.bf16.mxu0 0
    %804 = vmatmul.mubr.bf16.gmra.mxu0 %v746
    %v805 = vpop.f32.mrf.mxu0
    %v806 = vadd.f32 0.0, %v805
    %v807 = vpop.f32.mrf.mxu0
    %v808 = vadd.f32 0.0, %v807
    %v809 = vpop.f32.mrf.mxu0
    %v810 = vadd.f32 0.0, %v809
    %v811 = vpop.f32.mrf.mxu0
    %v812 = vadd.f32 0.0, %v811
    %813 = vmatprep.mubr.bf16.mxu0 0
    %814 = vmatmul.mubr.bf16.gmra.mxu0 %v749
    %v815 = vpop.f32.mrf.mxu0
    %v816 = vadd.f32 0.0, %v815
    %v817 = vpop.f32.mrf.mxu0
    %v818 = vadd.f32 0.0, %v817
    %v819 = vpop.f32.mrf.mxu0
    %v820 = vadd.f32 0.0, %v819
    %v821 = vpop.f32.mrf.mxu0
    %v822 = vadd.f32 0.0, %v821
    %823 = vdwg.mxu0
    %v836 = vunpack.c.l.b16 %v543
    %v837 = vunpack.c.h.b16 %v543
    %v838 = vunpack.c.l.b16 %v544
    %v839 = vunpack.c.h.b16 %v544
    %v840 = vunpack.c.l.b16 %v545
    %v841 = vunpack.c.h.b16 %v545
    %v842 = vunpack.c.l.b16 %v546
    %v843 = vunpack.c.h.b16 %v546
    %v844 = vunpack.c.l.b16 %v547
    %v845 = vunpack.c.h.b16 %v547
    %v846 = vunpack.c.l.b16 %v548
    %v847 = vunpack.c.h.b16 %v548
    %v848 = vunpack.c.l.b16 %v549
    %v849 = vunpack.c.h.b16 %v549
    %v850 = vunpack.c.l.b16 %v550
    %v851 = vunpack.c.h.b16 %v550
    %v852 = vunpack.c.l.b16 %v551
    %v853 = vunpack.c.h.b16 %v551
    %v854 = vunpack.c.l.b16 %v552
    %v855 = vunpack.c.h.b16 %v552
    %v856 = vunpack.c.l.b16 %v553
    %v857 = vunpack.c.h.b16 %v553
    %v858 = vunpack.c.l.b16 %v554
    %v859 = vunpack.c.h.b16 %v554
    %v860 = vpack.c.b16 %v838, %v836
    %v861 = vpack.c.b16 %v839, %v837
    %v862 = vpack.c.b16 %v842, %v840
    %v863 = vpack.c.b16 %v843, %v841
    %v864 = vpack.c.b16 %v846, %v844
    %v865 = vpack.c.b16 %v847, %v845
    %v866 = vpack.c.b16 %v850, %v848
    %v867 = vpack.c.b16 %v851, %v849
    %v868 = vpack.c.b16 %v854, %v852
    %v869 = vpack.c.b16 %v855, %v853
    %v870 = vpack.c.b16 %v858, %v856
    %v871 = vpack.c.b16 %v859, %v857
    %v885 = vsel %vm738, %v539, 0
    %v888 = vsel %vm738, %v540, 0
    %v891 = vsel %vm738, %v541, 0
    %v894 = vsel %vm738, %v542, 0
    %896 = vmatprep.subr.bf16.mxu0 0
    %897 = vmatpush1.bf16.msra.mxu0 0
    %898 = vmatprep.subr.bf16.mxu0 0
    %899 = vmatpush1.bf16.msra.mxu0 0
    %900 = vmatprep.subr.bf16.mxu0 %v871
    %901 = vmatpush1.bf16.msra.mxu0 %v870
    %902 = vmatprep.subr.bf16.mxu0 %v869
    %903 = vmatpush1.bf16.msra.mxu0 %v868
    %904 = vmatprep.subr.bf16.mxu0 %v867
    %905 = vmatpush1.bf16.msra.mxu0 %v866
    %906 = vmatprep.subr.bf16.mxu0 %v865
    %907 = vmatpush1.bf16.msra.mxu0 %v864
    %908 = vmatprep.subr.bf16.mxu0 %v863
    %909 = vmatpush1.bf16.msra.mxu0 %v862
    %910 = vmatprep.subr.bf16.mxu0 %v861
    %911 = vmatpush1.bf16.msra.mxu0 %v860
    %912 = vmatprep.subr.bf16.mxu0 0
    %913 = vmatpush2.bf16.msra.mxu0 0
    %914 = vmatprep.subr.bf16.mxu0 0
    %915 = vmatpush2.bf16.msra.mxu0 0
    %916 = vmatprep.subr.bf16.mxu0 0
    %917 = vmatpush2.bf16.msra.mxu0 0
    %918 = vmatprep.subr.bf16.mxu0 0
    %919 = vmatpush2.bf16.msra.mxu0 0
    %920 = vmatprep.subr.bf16.mxu0 0
    %921 = vmatpush2.bf16.msra.mxu0 0
    %922 = vmatprep.subr.bf16.mxu0 0
    %923 = vmatpush2.bf16.msra.mxu0 0
    %924 = vmatprep.subr.bf16.mxu0 0
    %925 = vmatpush2.bf16.msra.mxu0 0
    %926 = vmatprep.subr.bf16.mxu0 0
    %927 = vmatpush2.bf16.msra.mxu0 0
    %928 = vmatprep.mubr.bf16.mxu0 0
    %929 = vmatmul.mubr.bf16.gmra.mxu0 %v885
    %v930 = vpop.f32.mrf.mxu0
    %v931 = vadd.f32 %v786, %v930
    %v932 = vpop.f32.mrf.mxu0
    %v933 = vadd.f32 %v788, %v932
    %v934 = vpop.f32.mrf.mxu0
    %v935 = vadd.f32 %v790, %v934
    %v936 = vpop.f32.mrf.mxu0
    %v937 = vadd.f32 %v792, %v936
    %938 = vmatprep.mubr.bf16.mxu0 0
    %939 = vmatmul.mubr.bf16.gmra.mxu0 %v888
    %v940 = vpop.f32.mrf.mxu0
    %v941 = vadd.f32 %v796, %v940
    %v942 = vpop.f32.mrf.mxu0
    %v943 = vadd.f32 %v798, %v942
    %v944 = vpop.f32.mrf.mxu0
    %v945 = vadd.f32 %v800, %v944
    %v946 = vpop.f32.mrf.mxu0
    %v947 = vadd.f32 %v802, %v946
    %948 = vmatprep.mubr.bf16.mxu0 0
    %949 = vmatmul.mubr.bf16.gmra.mxu0 %v891
    %v950 = vpop.f32.mrf.mxu0
    %v951 = vadd.f32 %v806, %v950
    %v952 = vpop.f32.mrf.mxu0
    %v953 = vadd.f32 %v808, %v952
    %v954 = vpop.f32.mrf.mxu0
    %v955 = vadd.f32 %v810, %v954
    %v956 = vpop.f32.mrf.mxu0
    %v957 = vadd.f32 %v812, %v956
    %958 = vmatprep.mubr.bf16.mxu0 0
    %959 = vmatmul.mubr.bf16.gmra.mxu0 %v894
    %v960 = vpop.f32.mrf.mxu0
    %v961 = vadd.f32 %v816, %v960
    %v962 = vpop.f32.mrf.mxu0
    %v963 = vadd.f32 %v818, %v962
    %v964 = vpop.f32.mrf.mxu0
    %v965 = vadd.f32 %v820, %v964
    %v966 = vpop.f32.mrf.mxu0
    %v967 = vadd.f32 %v822, %v966
    %968 = vdwg.mxu0
    %s969 = scalar_lea.vmem %s5, 64
    %v970 = vld [vmem:[%s969] sm:$0xf]
    %v971 = vld [vmem:[%s969 + $0x4] sm:$0xf]
    %v972 = vld [vmem:[%s969 + $0x8] sm:$0xf]
    %v973 = vld [vmem:[%s969 + $0xc] sm:$0xf]
    %v974 = vld [vmem:[%s969 + $0x10] sm:$0xf]
    %v975 = vld [vmem:[%s969 + $0x14] sm:$0xf]
    %v976 = vld [vmem:[%s969 + $0x18] sm:$0xf]
    %v977 = vld [vmem:[%s969 + $0x1c] sm:$0xf]
    %v986 = vunpack.c.l.b16 %v970
    %v987 = vunpack.c.l.b16 %v971
    %v988 = vunpack.c.l.b16 %v972
    %v989 = vunpack.c.l.b16 %v973
    %v990 = vunpack.c.l.b16 %v974
    %v991 = vunpack.c.l.b16 %v975
    %v992 = vunpack.c.l.b16 %v976
    %v993 = vunpack.c.l.b16 %v977
    %v994 = vpack.c.b16 %v987, %v986
    %v995 = vpack.c.b16 %v989, %v988
    %v996 = vpack.c.b16 %v991, %v990
    %v997 = vpack.c.b16 %v993, %v992
    %v999 = vsel %vm461, %v994, 0
    %v1002 = vsel %vm461, %v995, 0
    %v1005 = vsel %vm461, %v996, 0
    %v1008 = vsel %vm461, %v997, 0
    %1010 = vmatprep.subr.bf16.mxu0 0
    %1011 = vmatpush1.bf16.msra.mxu0 0
    %1012 = vmatprep.subr.bf16.mxu0 0
    %1013 = vmatpush1.bf16.msra.mxu0 0
    %1014 = vmatprep.subr.bf16.mxu0 0
    %1015 = vmatpush1.bf16.msra.mxu0 0
    %1016 = vmatprep.subr.bf16.mxu0 0
    %1017 = vmatpush1.bf16.msra.mxu0 0
    %1018 = vmatprep.subr.bf16.mxu0 0
    %1019 = vmatpush1.bf16.msra.mxu0 %v432
    %1020 = vmatprep.subr.bf16.mxu0 0
    %1021 = vmatpush1.bf16.msra.mxu0 %v431
    %1022 = vmatprep.subr.bf16.mxu0 0
    %1023 = vmatpush1.bf16.msra.mxu0 %v430
    %1024 = vmatprep.subr.bf16.mxu0 0
    %1025 = vmatpush1.bf16.msra.mxu0 %v429
    %1026 = vmatprep.subr.bf16.mxu0 0
    %1027 = vmatpush2.bf16.msra.mxu0 0
    %1028 = vmatprep.subr.bf16.mxu0 0
    %1029 = vmatpush2.bf16.msra.mxu0 0
    %1030 = vmatprep.subr.bf16.mxu0 0
    %1031 = vmatpush2.bf16.msra.mxu0 0
    %1032 = vmatprep.subr.bf16.mxu0 0
    %1033 = vmatpush2.bf16.msra.mxu0 0
    %1034 = vmatprep.subr.bf16.mxu0 0
    %1035 = vmatpush2.bf16.msra.mxu0 0
    %1036 = vmatprep.subr.bf16.mxu0 0
    %1037 = vmatpush2.bf16.msra.mxu0 0
    %1038 = vmatprep.subr.bf16.mxu0 0
    %1039 = vmatpush2.bf16.msra.mxu0 0
    %1040 = vmatprep.subr.bf16.mxu0 0
    %1041 = vmatpush2.bf16.msra.mxu0 0
    %1042 = vmatprep.mubr.bf16.mxu0 0
    %1043 = vmatmul.mubr.bf16.gmra.mxu0 %v999
    %v1044 = vpop.f32.mrf.mxu0
    %v1045 = vadd.f32 0.0, %v1044
    %v1046 = vpop.f32.mrf.mxu0
    %v1047 = vpop.f32.mrf.mxu0
    %v1048 = vadd.f32 0.0, %v1047
    %v1049 = vpop.f32.mrf.mxu0
    %1050 = vmatprep.mubr.bf16.mxu0 0
    %1051 = vmatmul.mubr.bf16.gmra.mxu0 %v1002
    %v1052 = vpop.f32.mrf.mxu0
    %v1053 = vadd.f32 0.0, %v1052
    %v1054 = vpop.f32.mrf.mxu0
    %v1055 = vpop.f32.mrf.mxu0
    %v1056 = vadd.f32 0.0, %v1055
    %v1057 = vpop.f32.mrf.mxu0
    %1058 = vmatprep.mubr.bf16.mxu0 0
    %1059 = vmatmul.mubr.bf16.gmra.mxu0 %v1005
    %v1060 = vpop.f32.mrf.mxu0
    %v1061 = vadd.f32 0.0, %v1060
    %v1062 = vpop.f32.mrf.mxu0
    %v1063 = vpop.f32.mrf.mxu0
    %v1064 = vadd.f32 0.0, %v1063
    %v1065 = vpop.f32.mrf.mxu0
    %1066 = vmatprep.mubr.bf16.mxu0 0
    %1067 = vmatmul.mubr.bf16.gmra.mxu0 %v1008
    %v1068 = vpop.f32.mrf.mxu0
    %v1069 = vadd.f32 0.0, %v1068
    %v1070 = vpop.f32.mrf.mxu0
    %v1071 = vpop.f32.mrf.mxu0
    %v1072 = vadd.f32 0.0, %v1071
    %v1073 = vpop.f32.mrf.mxu0
    %1074 = vdwg.mxu0
    %v1075 = vpack.c.bf16 %v1048, %v1045
    %v1076 = vpack.c.bf16 %v1056, %v1053
    %v1077 = vpack.c.bf16 %v1064, %v1061
    %v1078 = vpack.c.bf16 %v1072, %v1069
    %s1079 = scalar_lea.vmem %s7, 192
    %v1080 = vld [vmem:[%s1079] sm:$0xff]
    %v1081 = vld [vmem:[%s1079 + $0x8] sm:$0xff]
    %v1082 = vld [vmem:[%s1079 + $0x10] sm:$0xff]
    %v1083 = vld [vmem:[%s1079 + $0x18] sm:$0xff]
    %v1084 = vld [vmem:[%s1079 + $0x20] sm:$0xff]
    %v1085 = vld [vmem:[%s1079 + $0x28] sm:$0xff]
    %v1086 = vld [vmem:[%s1079 + $0x30] sm:$0xff]
    %v1087 = vld [vmem:[%s1079 + $0x38] sm:$0xff]
    %v1088 = vld [vmem:[%s1079 + $0x40] sm:$0xff]
    %v1089 = vld [vmem:[%s1079 + $0x48] sm:$0xff]
    %v1090 = vld [vmem:[%s1079 + $0x50] sm:$0xff]
    %v1091 = vld [vmem:[%s1079 + $0x58] sm:$0xff]
    %v1104 = vunpack.c.l.b16 %v1080
    %v1105 = vunpack.c.h.b16 %v1080
    %v1106 = vunpack.c.l.b16 %v1081
    %v1107 = vunpack.c.h.b16 %v1081
    %v1108 = vunpack.c.l.b16 %v1082
    %v1109 = vunpack.c.h.b16 %v1082
    %v1110 = vunpack.c.l.b16 %v1083
    %v1111 = vunpack.c.h.b16 %v1083
    %v1112 = vunpack.c.l.b16 %v1084
    %v1113 = vunpack.c.h.b16 %v1084
    %v1114 = vunpack.c.l.b16 %v1085
    %v1115 = vunpack.c.h.b16 %v1085
    %v1116 = vunpack.c.l.b16 %v1086
    %v1117 = vunpack.c.h.b16 %v1086
    %v1118 = vunpack.c.l.b16 %v1087
    %v1119 = vunpack.c.h.b16 %v1087
    %v1120 = vunpack.c.l.b16 %v1088
    %v1121 = vunpack.c.h.b16 %v1088
    %v1122 = vunpack.c.l.b16 %v1089
    %v1123 = vunpack.c.h.b16 %v1089
    %v1124 = vunpack.c.l.b16 %v1090
    %v1125 = vunpack.c.h.b16 %v1090
    %v1126 = vunpack.c.l.b16 %v1091
    %v1127 = vunpack.c.h.b16 %v1091
    %v1128 = vpack.c.b16 %v1106, %v1104
    %v1129 = vpack.c.b16 %v1107, %v1105
    %v1130 = vpack.c.b16 %v1110, %v1108
    %v1131 = vpack.c.b16 %v1111, %v1109
    %v1132 = vpack.c.b16 %v1114, %v1112
    %v1133 = vpack.c.b16 %v1115, %v1113
    %v1134 = vpack.c.b16 %v1118, %v1116
    %v1135 = vpack.c.b16 %v1119, %v1117
    %v1136 = vpack.c.b16 %v1122, %v1120
    %v1137 = vpack.c.b16 %v1123, %v1121
    %v1138 = vpack.c.b16 %v1126, %v1124
    %v1139 = vpack.c.b16 %v1127, %v1125
    %v1153 = vsel %vm738, %v1075, 0
    %v1156 = vsel %vm738, %v1076, 0
    %v1159 = vsel %vm738, %v1077, 0
    %v1162 = vsel %vm738, %v1078, 0
    %1164 = vmatprep.subr.bf16.mxu0 0
    %1165 = vmatpush1.bf16.msra.mxu0 0
    %1166 = vmatprep.subr.bf16.mxu0 0
    %1167 = vmatpush1.bf16.msra.mxu0 0
    %1168 = vmatprep.subr.bf16.mxu0 %v1139
    %1169 = vmatpush1.bf16.msra.mxu0 %v1138
    %1170 = vmatprep.subr.bf16.mxu0 %v1137
    %1171 = vmatpush1.bf16.msra.mxu0 %v1136
    %1172 = vmatprep.subr.bf16.mxu0 %v1135
    %1173 = vmatpush1.bf16.msra.mxu0 %v1134
    %1174 = vmatprep.subr.bf16.mxu0 %v1133
    %1175 = vmatpush1.bf16.msra.mxu0 %v1132
    %1176 = vmatprep.subr.bf16.mxu0 %v1131
    %1177 = vmatpush1.bf16.msra.mxu0 %v1130
    %1178 = vmatprep.subr.bf16.mxu0 %v1129
    %1179 = vmatpush1.bf16.msra.mxu0 %v1128
    %1180 = vmatprep.subr.bf16.mxu0 0
    %1181 = vmatpush2.bf16.msra.mxu0 0
    %1182 = vmatprep.subr.bf16.mxu0 0
    %1183 = vmatpush2.bf16.msra.mxu0 0
    %1184 = vmatprep.subr.bf16.mxu0 0
    %1185 = vmatpush2.bf16.msra.mxu0 0
    %1186 = vmatprep.subr.bf16.mxu0 0
    %1187 = vmatpush2.bf16.msra.mxu0 0
    %1188 = vmatprep.subr.bf16.mxu0 0
    %1189 = vmatpush2.bf16.msra.mxu0 0
    %1190 = vmatprep.subr.bf16.mxu0 0
    %1191 = vmatpush2.bf16.msra.mxu0 0
    %1192 = vmatprep.subr.bf16.mxu0 0
    %1193 = vmatpush2.bf16.msra.mxu0 0
    %1194 = vmatprep.subr.bf16.mxu0 0
    %1195 = vmatpush2.bf16.msra.mxu0 0
    %1196 = vmatprep.mubr.bf16.mxu0 0
    %1197 = vmatmul.mubr.bf16.gmra.mxu0 %v1153
    %v1198 = vpop.f32.mrf.mxu0
    %v1199 = vadd.f32 0.0, %v1198
    %v1200 = vpop.f32.mrf.mxu0
    %v1201 = vadd.f32 0.0, %v1200
    %v1202 = vpop.f32.mrf.mxu0
    %v1203 = vadd.f32 0.0, %v1202
    %v1204 = vpop.f32.mrf.mxu0
    %v1205 = vadd.f32 0.0, %v1204
    %1206 = vmatprep.mubr.bf16.mxu0 0
    %1207 = vmatmul.mubr.bf16.gmra.mxu0 %v1156
    %v1208 = vpop.f32.mrf.mxu0
    %v1209 = vadd.f32 0.0, %v1208
    %v1210 = vpop.f32.mrf.mxu0
    %v1211 = vadd.f32 0.0, %v1210
    %v1212 = vpop.f32.mrf.mxu0
    %v1213 = vadd.f32 0.0, %v1212
    %v1214 = vpop.f32.mrf.mxu0
    %v1215 = vadd.f32 0.0, %v1214
    %1216 = vmatprep.mubr.bf16.mxu0 0
    %1217 = vmatmul.mubr.bf16.gmra.mxu0 %v1159
    %v1218 = vpop.f32.mrf.mxu0
    %v1219 = vadd.f32 0.0, %v1218
    %v1220 = vpop.f32.mrf.mxu0
    %v1221 = vadd.f32 0.0, %v1220
    %v1222 = vpop.f32.mrf.mxu0
    %v1223 = vadd.f32 0.0, %v1222
    %v1224 = vpop.f32.mrf.mxu0
    %v1225 = vadd.f32 0.0, %v1224
    %1226 = vmatprep.mubr.bf16.mxu0 0
    %1227 = vmatmul.mubr.bf16.gmra.mxu0 %v1162
    %v1228 = vpop.f32.mrf.mxu0
    %v1229 = vadd.f32 0.0, %v1228
    %v1230 = vpop.f32.mrf.mxu0
    %v1231 = vadd.f32 0.0, %v1230
    %v1232 = vpop.f32.mrf.mxu0
    %v1233 = vadd.f32 0.0, %v1232
    %v1234 = vpop.f32.mrf.mxu0
    %v1235 = vadd.f32 0.0, %v1234
    %1236 = vdwg.mxu0
    %v1237 = vadd.f32 %v931, %v1199
    %v1238 = vadd.f32 %v933, %v1201
    %v1239 = vadd.f32 %v935, %v1203
    %v1240 = vadd.f32 %v937, %v1205
    %v1241 = vadd.f32 %v941, %v1209
    %v1242 = vadd.f32 %v943, %v1211
    %v1243 = vadd.f32 %v945, %v1213
    %v1244 = vadd.f32 %v947, %v1215
    %v1245 = vadd.f32 %v951, %v1219
    %v1246 = vadd.f32 %v953, %v1221
    %v1247 = vadd.f32 %v955, %v1223
    %v1248 = vadd.f32 %v957, %v1225
    %v1249 = vadd.f32 %v961, %v1229
    %v1250 = vadd.f32 %v963, %v1231
    %v1251 = vadd.f32 %v965, %v1233
    %v1252 = vadd.f32 %v967, %v1235
    %v1253 = vld [vmem:[#allocation4] sm:$0x3]
    %v1255 = vlaneseq
    %v1256 = vshrl.u32 %v1255, 7
    %v1257 = vsub.s32 0, %v1256
    %v1258 = vrot.slane %v1253, %v1257
    %v1259 = vlaneseq
    %v1260 = vshrl.u32 %v1259, 7
    %v1261 = vsub.s32 1, %v1260
    %v1262 = vrot.slane %v1253, %v1261
    %v1265 = vadd.f32 %v1237, %v1258
    %v1266 = vadd.f32 %v1238, %v1262
    %v1267 = vadd.f32 %v1239, %v1258
    %v1268 = vadd.f32 %v1240, %v1262
    %v1269 = vadd.f32 %v1241, %v1258
    %v1270 = vadd.f32 %v1242, %v1262
    %v1271 = vadd.f32 %v1243, %v1258
    %v1272 = vadd.f32 %v1244, %v1262
    %v1273 = vadd.f32 %v1245, %v1258
    %v1274 = vadd.f32 %v1246, %v1262
    %v1275 = vadd.f32 %v1247, %v1258
    %v1276 = vadd.f32 %v1248, %v1262
    %v1277 = vadd.f32 %v1249, %v1258
    %v1278 = vadd.f32 %v1250, %v1262
    %v1279 = vadd.f32 %v1251, %v1258
    %v1280 = vadd.f32 %v1252, %v1262
    %v1281 = vmax.f32 %v1265, 0.0
    %v1282 = vmax.f32 %v1266, 0.0
    %v1283 = vmax.f32 %v1267, 0.0
    %v1284 = vmax.f32 %v1268, 0.0
    %v1285 = vmax.f32 %v1269, 0.0
    %v1286 = vmax.f32 %v1270, 0.0
    %v1287 = vmax.f32 %v1271, 0.0
    %v1288 = vmax.f32 %v1272, 0.0
    %v1289 = vmax.f32 %v1273, 0.0
    %v1290 = vmax.f32 %v1274, 0.0
    %v1291 = vmax.f32 %v1275, 0.0
    %v1292 = vmax.f32 %v1276, 0.0
    %v1293 = vmax.f32 %v1277, 0.0
    %v1294 = vmax.f32 %v1278, 0.0
    %v1295 = vmax.f32 %v1279, 0.0
    %v1296 = vmax.f32 %v1280, 0.0
    %v1297 = vpack.c.bf16 %v1283, %v1281
    %v1298 = vpack.c.bf16 %v1284, %v1282
    %v1299 = vpack.c.bf16 %v1287, %v1285
    %v1300 = vpack.c.bf16 %v1288, %v1286
    %v1301 = vpack.c.bf16 %v1291, %v1289
    %v1302 = vpack.c.bf16 %v1292, %v1290
    %v1303 = vpack.c.bf16 %v1295, %v1293
    %v1304 = vpack.c.bf16 %v1296, %v1294
    %v1305 = vld [vmem:[%s11] sm:$0xf]
    %v1306 = vld [vmem:[%s11 + $0x4] sm:$0xf]
    %v1307 = vld [vmem:[%s11 + $0x8] sm:$0xf]
    %v1308 = vld [vmem:[%s11 + $0xc] sm:$0xf]
    %v1313 = vunpack.c.l.b16 %v1305
    %v1314 = vunpack.c.l.b16 %v1306
    %v1315 = vunpack.c.l.b16 %v1307
    %v1316 = vunpack.c.l.b16 %v1308
    %v1317 = vpack.c.b16 %v1314, %v1313
    %v1318 = vpack.c.b16 %v1316, %v1315
    %v1320 = vsel %vm461, %v1317, 0
    %v1323 = vsel %vm461, %v1318, 0
    %1325 = vmatprep.subr.bf16.mxu0 0
    %1326 = vmatpush1.bf16.msra.mxu0 0
    %1327 = vmatprep.subr.bf16.mxu0 0
    %1328 = vmatpush1.bf16.msra.mxu0 0
    %1329 = vmatprep.subr.bf16.mxu0 0
    %1330 = vmatpush1.bf16.msra.mxu0 0
    %1331 = vmatprep.subr.bf16.mxu0 0
    %1332 = vmatpush1.bf16.msra.mxu0 0
    %1333 = vmatprep.subr.bf16.mxu0 %v1304
    %1334 = vmatpush1.bf16.msra.mxu0 %v1303
    %1335 = vmatprep.subr.bf16.mxu0 %v1302
    %1336 = vmatpush1.bf16.msra.mxu0 %v1301
    %1337 = vmatprep.subr.bf16.mxu0 %v1300
    %1338 = vmatpush1.bf16.msra.mxu0 %v1299
    %1339 = vmatprep.subr.bf16.mxu0 %v1298
    %1340 = vmatpush1.bf16.msra.mxu0 %v1297
    %1341 = vmatprep.subr.bf16.mxu0 0
    %1342 = vmatpush2.bf16.msra.mxu0 0
    %1343 = vmatprep.subr.bf16.mxu0 0
    %1344 = vmatpush2.bf16.msra.mxu0 0
    %1345 = vmatprep.subr.bf16.mxu0 0
    %1346 = vmatpush2.bf16.msra.mxu0 0
    %1347 = vmatprep.subr.bf16.mxu0 0
    %1348 = vmatpush2.bf16.msra.mxu0 0
    %1349 = vmatprep.subr.bf16.mxu0 0
    %1350 = vmatpush2.bf16.msra.mxu0 0
    %1351 = vmatprep.subr.bf16.mxu0 0
    %1352 = vmatpush2.bf16.msra.mxu0 0
    %1353 = vmatprep.subr.bf16.mxu0 0
    %1354 = vmatpush2.bf16.msra.mxu0 0
    %1355 = vmatprep.subr.bf16.mxu0 0
    %1356 = vmatpush2.bf16.msra.mxu0 0
    %1357 = vmatprep.mubr.bf16.mxu0 0
    %1358 = vmatmul.mubr.bf16.gmra.mxu0 %v1320
    %v1359 = vpop.f32.mrf.mxu0
    %v1360 = vadd.f32 0.0, %v1359
    %v1361 = vpop.f32.mrf.mxu0
    %v1362 = vadd.f32 0.0, %v1361
    %v1363 = vpop.f32.mrf.mxu0
    %v1364 = vadd.f32 0.0, %v1363
    %v1365 = vpop.f32.mrf.mxu0
    %v1366 = vadd.f32 0.0, %v1365
    %1367 = vmatprep.mubr.bf16.mxu0 0
    %1368 = vmatmul.mubr.bf16.gmra.mxu0 %v1323
    %v1369 = vpop.f32.mrf.mxu0
    %v1370 = vadd.f32 0.0, %v1369
    %v1371 = vpop.f32.mrf.mxu0
    %v1372 = vadd.f32 0.0, %v1371
    %v1373 = vpop.f32.mrf.mxu0
    %v1374 = vadd.f32 0.0, %v1373
    %v1375 = vpop.f32.mrf.mxu0
    %v1376 = vadd.f32 0.0, %v1375
    %1377 = vdwg.mxu0
    %v1378 = vpack.c.bf16 %v1364, %v1360
    %v1379 = vpack.c.bf16 %v1366, %v1362
    %v1380 = vpack.c.bf16 %v1374, %v1370
    %v1381 = vpack.c.bf16 %v1376, %v1372
    %v1382 = vld [vmem:[%s13] sm:$0xff]
    %v1383 = vld [vmem:[%s13 + $0x8] sm:$0xff]
    %v1384 = vld [vmem:[%s13 + $0x10] sm:$0xff]
    %v1385 = vld [vmem:[%s13 + $0x18] sm:$0xff]
    %v1386 = vld [vmem:[%s13 + $0x20] sm:$0xff]
    %v1387 = vld [vmem:[%s13 + $0x28] sm:$0xff]
    %v1388 = vld [vmem:[%s13 + $0x30] sm:$0xff]
    %v1389 = vld [vmem:[%s13 + $0x38] sm:$0xff]
    %v1390 = vld [vmem:[%s13 + $0x40] sm:$0xff]
    %v1391 = vld [vmem:[%s13 + $0x48] sm:$0xff]
    %v1392 = vld [vmem:[%s13 + $0x50] sm:$0xff]
    %v1393 = vld [vmem:[%s13 + $0x58] sm:$0xff]
    %v1394 = vld [vmem:[%s13 + $0x60] sm:$0xff]
    %v1395 = vld [vmem:[%s13 + $0x68] sm:$0xff]
    %v1396 = vld [vmem:[%s13 + $0x70] sm:$0xff]
    %v1397 = vld [vmem:[%s13 + $0x78] sm:$0xff]
    %v1398 = vld [vmem:[%s13 + $0x80] sm:$0xff]
    %v1399 = vld [vmem:[%s13 + $0x88] sm:$0xff]
    %v1400 = vld [vmem:[%s13 + $0x90] sm:$0xff]
    %v1401 = vld [vmem:[%s13 + $0x98] sm:$0xff]
    %v1402 = vld [vmem:[%s13 + $0xa0] sm:$0xff]
    %v1403 = vld [vmem:[%s13 + $0xa8] sm:$0xff]
    %v1404 = vld [vmem:[%s13 + $0xb0] sm:$0xff]
    %v1405 = vld [vmem:[%s13 + $0xb8] sm:$0xff]
    %v1406 = vld [vmem:[%s13 + $0xc0] sm:$0xff]
    %v1407 = vld [vmem:[%s13 + $0xc8] sm:$0xff]
    %v1408 = vld [vmem:[%s13 + $0xd0] sm:$0xff]
    %v1409 = vld [vmem:[%s13 + $0xd8] sm:$0xff]
    %v1410 = vld [vmem:[%s13 + $0xe0] sm:$0xff]
    %v1411 = vld [vmem:[%s13 + $0xe8] sm:$0xff]
    %v1412 = vld [vmem:[%s13 + $0xf0] sm:$0xff]
    %v1413 = vld [vmem:[%s13 + $0xf8] sm:$0xff]
    %s1414 = scalar_lea.vmem %s11, 16
    %v1415 = vld [vmem:[%s1414] sm:$0xf]
    %v1416 = vld [vmem:[%s1414 + $0x4] sm:$0xf]
    %v1417 = vld [vmem:[%s1414 + $0x8] sm:$0xf]
    %v1418 = vld [vmem:[%s1414 + $0xc] sm:$0xf]
    %v1423 = vunpack.c.l.b16 %v1415
    %v1424 = vunpack.c.l.b16 %v1416
    %v1425 = vunpack.c.l.b16 %v1417
    %v1426 = vunpack.c.l.b16 %v1418
    %v1427 = vpack.c.b16 %v1424, %v1423
    %v1428 = vpack.c.b16 %v1426, %v1425
    %v1430 = vsel %vm461, %v1427, 0
    %v1433 = vsel %vm461, %v1428, 0
    %1435 = vmatprep.subr.bf16.mxu0 0
    %1436 = vmatpush1.bf16.msra.mxu0 0
    %1437 = vmatprep.subr.bf16.mxu0 0
    %1438 = vmatpush1.bf16.msra.mxu0 0
    %1439 = vmatprep.subr.bf16.mxu0 0
    %1440 = vmatpush1.bf16.msra.mxu0 0
    %1441 = vmatprep.subr.bf16.mxu0 0
    %1442 = vmatpush1.bf16.msra.mxu0 0
    %1443 = vmatprep.subr.bf16.mxu0 %v1304
    %1444 = vmatpush1.bf16.msra.mxu0 %v1303
    %1445 = vmatprep.subr.bf16.mxu0 %v1302
    %1446 = vmatpush1.bf16.msra.mxu0 %v1301
    %1447 = vmatprep.subr.bf16.mxu0 %v1300
    %1448 = vmatpush1.bf16.msra.mxu0 %v1299
    %1449 = vmatprep.subr.bf16.mxu0 %v1298
    %1450 = vmatpush1.bf16.msra.mxu0 %v1297
    %1451 = vmatprep.subr.bf16.mxu0 0
    %1452 = vmatpush2.bf16.msra.mxu0 0
    %1453 = vmatprep.subr.bf16.mxu0 0
    %1454 = vmatpush2.bf16.msra.mxu0 0
    %1455 = vmatprep.subr.bf16.mxu0 0
    %1456 = vmatpush2.bf16.msra.mxu0 0
    %1457 = vmatprep.subr.bf16.mxu0 0
    %1458 = vmatpush2.bf16.msra.mxu0 0
    %1459 = vmatprep.subr.bf16.mxu0 0
    %1460 = vmatpush2.bf16.msra.mxu0 0
    %1461 = vmatprep.subr.bf16.mxu0 0
    %1462 = vmatpush2.bf16.msra.mxu0 0
    %1463 = vmatprep.subr.bf16.mxu0 0
    %1464 = vmatpush2.bf16.msra.mxu0 0
    %1465 = vmatprep.subr.bf16.mxu0 0
    %1466 = vmatpush2.bf16.msra.mxu0 0
    %1467 = vmatprep.mubr.bf16.mxu0 0
    %1468 = vmatmul.mubr.bf16.gmra.mxu0 %v1430
    %v1469 = vpop.f32.mrf.mxu0
    %v1470 = vadd.f32 0.0, %v1469
    %v1471 = vpop.f32.mrf.mxu0
    %v1472 = vadd.f32 0.0, %v1471
    %v1473 = vpop.f32.mrf.mxu0
    %v1474 = vadd.f32 0.0, %v1473
    %v1475 = vpop.f32.mrf.mxu0
    %v1476 = vadd.f32 0.0, %v1475
    %1477 = vmatprep.mubr.bf16.mxu0 0
    %1478 = vmatmul.mubr.bf16.gmra.mxu0 %v1433
    %v1479 = vpop.f32.mrf.mxu0
    %v1480 = vadd.f32 0.0, %v1479
    %v1481 = vpop.f32.mrf.mxu0
    %v1482 = vadd.f32 0.0, %v1481
    %v1483 = vpop.f32.mrf.mxu0
    %v1484 = vadd.f32 0.0, %v1483
    %v1485 = vpop.f32.mrf.mxu0
    %v1486 = vadd.f32 0.0, %v1485
    %1487 = vdwg.mxu0
    %v1488 = vpack.c.bf16 %v1474, %v1470
    %v1489 = vpack.c.bf16 %v1476, %v1472
    %v1490 = vpack.c.bf16 %v1484, %v1480
    %v1491 = vpack.c.bf16 %v1486, %v1482
    %s1492 = scalar_lea.vmem %s13, 256
    %v1493 = vld [vmem:[%s1492] sm:$0xff]
    %v1494 = vld [vmem:[%s1492 + $0x8] sm:$0xff]
    %v1495 = vld [vmem:[%s1492 + $0x10] sm:$0xff]
    %v1496 = vld [vmem:[%s1492 + $0x18] sm:$0xff]
    %v1497 = vld [vmem:[%s1492 + $0x20] sm:$0xff]
    %v1498 = vld [vmem:[%s1492 + $0x28] sm:$0xff]
    %v1499 = vld [vmem:[%s1492 + $0x30] sm:$0xff]
    %v1500 = vld [vmem:[%s1492 + $0x38] sm:$0xff]
    %v1501 = vld [vmem:[%s1492 + $0x40] sm:$0xff]
    %v1502 = vld [vmem:[%s1492 + $0x48] sm:$0xff]
    %v1503 = vld [vmem:[%s1492 + $0x50] sm:$0xff]
    %v1504 = vld [vmem:[%s1492 + $0x58] sm:$0xff]
    %v1505 = vld [vmem:[%s1492 + $0x60] sm:$0xff]
    %v1506 = vld [vmem:[%s1492 + $0x68] sm:$0xff]
    %v1507 = vld [vmem:[%s1492 + $0x70] sm:$0xff]
    %v1508 = vld [vmem:[%s1492 + $0x78] sm:$0xff]
    %v1509 = vld [vmem:[%s1492 + $0x80] sm:$0xff]
    %v1510 = vld [vmem:[%s1492 + $0x88] sm:$0xff]
    %v1511 = vld [vmem:[%s1492 + $0x90] sm:$0xff]
    %v1512 = vld [vmem:[%s1492 + $0x98] sm:$0xff]
    %v1513 = vld [vmem:[%s1492 + $0xa0] sm:$0xff]
    %v1514 = vld [vmem:[%s1492 + $0xa8] sm:$0xff]
    %v1515 = vld [vmem:[%s1492 + $0xb0] sm:$0xff]
    %v1516 = vld [vmem:[%s1492 + $0xb8] sm:$0xff]
    %v1517 = vld [vmem:[%s1492 + $0xc0] sm:$0xff]
    %v1518 = vld [vmem:[%s1492 + $0xc8] sm:$0xff]
    %v1519 = vld [vmem:[%s1492 + $0xd0] sm:$0xff]
    %v1520 = vld [vmem:[%s1492 + $0xd8] sm:$0xff]
    %v1521 = vld [vmem:[%s1492 + $0xe0] sm:$0xff]
    %v1522 = vld [vmem:[%s1492 + $0xe8] sm:$0xff]
    %v1523 = vld [vmem:[%s1492 + $0xf0] sm:$0xff]
    %v1524 = vld [vmem:[%s1492 + $0xf8] sm:$0xff]
    %v1557 = vunpack.c.l.b16 %v1493
    %v1558 = vunpack.c.h.b16 %v1493
    %v1559 = vunpack.c.l.b16 %v1494
    %v1560 = vunpack.c.h.b16 %v1494
    %v1561 = vunpack.c.l.b16 %v1495
    %v1562 = vunpack.c.h.b16 %v1495
    %v1563 = vunpack.c.l.b16 %v1496
    %v1564 = vunpack.c.h.b16 %v1496
    %v1565 = vunpack.c.l.b16 %v1497
    %v1566 = vunpack.c.h.b16 %v1497
    %v1567 = vunpack.c.l.b16 %v1498
    %v1568 = vunpack.c.h.b16 %v1498
    %v1569 = vunpack.c.l.b16 %v1499
    %v1570 = vunpack.c.h.b16 %v1499
    %v1571 = vunpack.c.l.b16 %v1500
    %v1572 = vunpack.c.h.b16 %v1500
    %v1573 = vunpack.c.l.b16 %v1501
    %v1574 = vunpack.c.h.b16 %v1501
    %v1575 = vunpack.c.l.b16 %v1502
    %v1576 = vunpack.c.h.b16 %v1502
    %v1577 = vunpack.c.l.b16 %v1503
    %v1578 = vunpack.c.h.b16 %v1503
    %v1579 = vunpack.c.l.b16 %v1504
    %v1580 = vunpack.c.h.b16 %v1504
    %v1581 = vunpack.c.l.b16 %v1505
    %v1582 = vunpack.c.h.b16 %v1505
    %v1583 = vunpack.c.l.b16 %v1506
    %v1584 = vunpack.c.h.b16 %v1506
    %v1585 = vunpack.c.l.b16 %v1507
    %v1586 = vunpack.c.h.b16 %v1507
    %v1587 = vunpack.c.l.b16 %v1508
    %v1588 = vunpack.c.h.b16 %v1508
    %v1589 = vunpack.c.l.b16 %v1509
    %v1590 = vunpack.c.h.b16 %v1509
    %v1591 = vunpack.c.l.b16 %v1510
    %v1592 = vunpack.c.h.b16 %v1510
    %v1593 = vunpack.c.l.b16 %v1511
    %v1594 = vunpack.c.h.b16 %v1511
    %v1595 = vunpack.c.l.b16 %v1512
    %v1596 = vunpack.c.h.b16 %v1512
    %v1597 = vunpack.c.l.b16 %v1513
    %v1598 = vunpack.c.h.b16 %v1513
    %v1599 = vunpack.c.l.b16 %v1514
    %v1600 = vunpack.c.h.b16 %v1514
    %v1601 = vunpack.c.l.b16 %v1515
    %v1602 = vunpack.c.h.b16 %v1515
    %v1603 = vunpack.c.l.b16 %v1516
    %v1604 = vunpack.c.h.b16 %v1516
    %v1605 = vunpack.c.l.b16 %v1517
    %v1606 = vunpack.c.h.b16 %v1517
    %v1607 = vunpack.c.l.b16 %v1518
    %v1608 = vunpack.c.h.b16 %v1518
    %v1609 = vunpack.c.l.b16 %v1519
    %v1610 = vunpack.c.h.b16 %v1519
    %v1611 = vunpack.c.l.b16 %v1520
    %v1612 = vunpack.c.h.b16 %v1520
    %v1613 = vunpack.c.l.b16 %v1521
    %v1614 = vunpack.c.h.b16 %v1521
    %v1615 = vunpack.c.l.b16 %v1522
    %v1616 = vunpack.c.h.b16 %v1522
    %v1617 = vunpack.c.l.b16 %v1523
    %v1618 = vunpack.c.h.b16 %v1523
    %v1619 = vunpack.c.l.b16 %v1524
    %v1620 = vunpack.c.h.b16 %v1524
    %v1621 = vpack.c.b16 %v1559, %v1557
    %v1622 = vpack.c.b16 %v1560, %v1558
    %v1623 = vpack.c.b16 %v1563, %v1561
    %v1624 = vpack.c.b16 %v1564, %v1562
    %v1625 = vpack.c.b16 %v1567, %v1565
    %v1626 = vpack.c.b16 %v1568, %v1566
    %v1627 = vpack.c.b16 %v1571, %v1569
    %v1628 = vpack.c.b16 %v1572, %v1570
    %v1629 = vpack.c.b16 %v1575, %v1573
    %v1630 = vpack.c.b16 %v1576, %v1574
    %v1631 = vpack.c.b16 %v1579, %v1577
    %v1632 = vpack.c.b16 %v1580, %v1578
    %v1633 = vpack.c.b16 %v1583, %v1581
    %v1634 = vpack.c.b16 %v1584, %v1582
    %v1635 = vpack.c.b16 %v1587, %v1585
    %v1636 = vpack.c.b16 %v1588, %v1586
    %v1637 = vpack.c.b16 %v1591, %v1589
    %v1638 = vpack.c.b16 %v1592, %v1590
    %v1639 = vpack.c.b16 %v1595, %v1593
    %v1640 = vpack.c.b16 %v1596, %v1594
    %v1641 = vpack.c.b16 %v1599, %v1597
    %v1642 = vpack.c.b16 %v1600, %v1598
    %v1643 = vpack.c.b16 %v1603, %v1601
    %v1644 = vpack.c.b16 %v1604, %v1602
    %v1645 = vpack.c.b16 %v1607, %v1605
    %v1646 = vpack.c.b16 %v1608, %v1606
    %v1647 = vpack.c.b16 %v1611, %v1609
    %v1648 = vpack.c.b16 %v1612, %v1610
    %v1649 = vpack.c.b16 %v1615, %v1613
    %v1650 = vpack.c.b16 %v1616, %v1614
    %v1651 = vpack.c.b16 %v1619, %v1617
    %v1652 = vpack.c.b16 %v1620, %v1618
    %1685 = vmatprep.subr.bf16.mxu0 %v1636
    %1686 = vmatpush1.bf16.msra.mxu0 %v1635
    %1687 = vmatprep.subr.bf16.mxu0 %v1634
    %1688 = vmatpush1.bf16.msra.mxu0 %v1633
    %1689 = vmatprep.subr.bf16.mxu0 %v1632
    %1690 = vmatpush1.bf16.msra.mxu0 %v1631
    %1691 = vmatprep.subr.bf16.mxu0 %v1630
    %1692 = vmatpush1.bf16.msra.mxu0 %v1629
    %1693 = vmatprep.subr.bf16.mxu0 %v1628
    %1694 = vmatpush1.bf16.msra.mxu0 %v1627
    %1695 = vmatprep.subr.bf16.mxu0 %v1626
    %1696 = vmatpush1.bf16.msra.mxu0 %v1625
    %1697 = vmatprep.subr.bf16.mxu0 %v1624
    %1698 = vmatpush1.bf16.msra.mxu0 %v1623
    %1699 = vmatprep.subr.bf16.mxu0 %v1622
    %1700 = vmatpush1.bf16.msra.mxu0 %v1621
    %1701 = vmatprep.subr.bf16.mxu0 %v1652
    %1702 = vmatpush2.bf16.msra.mxu0 %v1651
    %1703 = vmatprep.subr.bf16.mxu0 %v1650
    %1704 = vmatpush2.bf16.msra.mxu0 %v1649
    %1705 = vmatprep.subr.bf16.mxu0 %v1648
    %1706 = vmatpush2.bf16.msra.mxu0 %v1647
    %1707 = vmatprep.subr.bf16.mxu0 %v1646
    %1708 = vmatpush2.bf16.msra.mxu0 %v1645
    %1709 = vmatprep.subr.bf16.mxu0 %v1644
    %1710 = vmatpush2.bf16.msra.mxu0 %v1643
    %1711 = vmatprep.subr.bf16.mxu0 %v1642
    %1712 = vmatpush2.bf16.msra.mxu0 %v1641
    %1713 = vmatprep.subr.bf16.mxu0 %v1640
    %1714 = vmatpush2.bf16.msra.mxu0 %v1639
    %1715 = vmatprep.subr.bf16.mxu0 %v1638
    %1716 = vmatpush2.bf16.msra.mxu0 %v1637
    %1717 = vmatprep.mubr.bf16.mxu0 %v1489
    %1718 = vmatmul.mubr.bf16.gmra.mxu0 %v1488
    %v1719 = vpop.f32.mrf.mxu0
    %v1720 = vadd.f32 0.0, %v1719
    %v1721 = vpop.f32.mrf.mxu0
    %v1722 = vadd.f32 0.0, %v1721
    %v1723 = vpop.f32.mrf.mxu0
    %v1724 = vadd.f32 0.0, %v1723
    %v1725 = vpop.f32.mrf.mxu0
    %v1726 = vadd.f32 0.0, %v1725
    %1727 = vmatprep.mubr.bf16.mxu0 %v1491
    %1728 = vmatmul.mubr.bf16.gmra.mxu0 %v1490
    %v1729 = vpop.f32.mrf.mxu0
    %v1730 = vadd.f32 0.0, %v1729
    %v1731 = vpop.f32.mrf.mxu0
    %v1732 = vadd.f32 0.0, %v1731
    %v1733 = vpop.f32.mrf.mxu0
    %v1734 = vadd.f32 0.0, %v1733
    %v1735 = vpop.f32.mrf.mxu0
    %v1736 = vadd.f32 0.0, %v1735
    %1737 = vdwg.mxu0
    %v1770 = vunpack.c.l.b16 %v1382
    %v1771 = vunpack.c.h.b16 %v1382
    %v1772 = vunpack.c.l.b16 %v1383
    %v1773 = vunpack.c.h.b16 %v1383
    %v1774 = vunpack.c.l.b16 %v1384
    %v1775 = vunpack.c.h.b16 %v1384
    %v1776 = vunpack.c.l.b16 %v1385
    %v1777 = vunpack.c.h.b16 %v1385
    %v1778 = vunpack.c.l.b16 %v1386
    %v1779 = vunpack.c.h.b16 %v1386
    %v1780 = vunpack.c.l.b16 %v1387
    %v1781 = vunpack.c.h.b16 %v1387
    %v1782 = vunpack.c.l.b16 %v1388
    %v1783 = vunpack.c.h.b16 %v1388
    %v1784 = vunpack.c.l.b16 %v1389
    %v1785 = vunpack.c.h.b16 %v1389
    %v1786 = vunpack.c.l.b16 %v1390
    %v1787 = vunpack.c.h.b16 %v1390
    %v1788 = vunpack.c.l.b16 %v1391
    %v1789 = vunpack.c.h.b16 %v1391
    %v1790 = vunpack.c.l.b16 %v1392
    %v1791 = vunpack.c.h.b16 %v1392
    %v1792 = vunpack.c.l.b16 %v1393
    %v1793 = vunpack.c.h.b16 %v1393
    %v1794 = vunpack.c.l.b16 %v1394
    %v1795 = vunpack.c.h.b16 %v1394
    %v1796 = vunpack.c.l.b16 %v1395
    %v1797 = vunpack.c.h.b16 %v1395
    %v1798 = vunpack.c.l.b16 %v1396
    %v1799 = vunpack.c.h.b16 %v1396
    %v1800 = vunpack.c.l.b16 %v1397
    %v1801 = vunpack.c.h.b16 %v1397
    %v1802 = vunpack.c.l.b16 %v1398
    %v1803 = vunpack.c.h.b16 %v1398
    %v1804 = vunpack.c.l.b16 %v1399
    %v1805 = vunpack.c.h.b16 %v1399
    %v1806 = vunpack.c.l.b16 %v1400
    %v1807 = vunpack.c.h.b16 %v1400
    %v1808 = vunpack.c.l.b16 %v1401
    %v1809 = vunpack.c.h.b16 %v1401
    %v1810 = vunpack.c.l.b16 %v1402
    %v1811 = vunpack.c.h.b16 %v1402
    %v1812 = vunpack.c.l.b16 %v1403
    %v1813 = vunpack.c.h.b16 %v1403
    %v1814 = vunpack.c.l.b16 %v1404
    %v1815 = vunpack.c.h.b16 %v1404
    %v1816 = vunpack.c.l.b16 %v1405
    %v1817 = vunpack.c.h.b16 %v1405
    %v1818 = vunpack.c.l.b16 %v1406
    %v1819 = vunpack.c.h.b16 %v1406
    %v1820 = vunpack.c.l.b16 %v1407
    %v1821 = vunpack.c.h.b16 %v1407
    %v1822 = vunpack.c.l.b16 %v1408
    %v1823 = vunpack.c.h.b16 %v1408
    %v1824 = vunpack.c.l.b16 %v1409
    %v1825 = vunpack.c.h.b16 %v1409
    %v1826 = vunpack.c.l.b16 %v1410
    %v1827 = vunpack.c.h.b16 %v1410
    %v1828 = vunpack.c.l.b16 %v1411
    %v1829 = vunpack.c.h.b16 %v1411
    %v1830 = vunpack.c.l.b16 %v1412
    %v1831 = vunpack.c.h.b16 %v1412
    %v1832 = vunpack.c.l.b16 %v1413
    %v1833 = vunpack.c.h.b16 %v1413
    %v1834 = vpack.c.b16 %v1772, %v1770
    %v1835 = vpack.c.b16 %v1773, %v1771
    %v1836 = vpack.c.b16 %v1776, %v1774
    %v1837 = vpack.c.b16 %v1777, %v1775
    %v1838 = vpack.c.b16 %v1780, %v1778
    %v1839 = vpack.c.b16 %v1781, %v1779
    %v1840 = vpack.c.b16 %v1784, %v1782
    %v1841 = vpack.c.b16 %v1785, %v1783
    %v1842 = vpack.c.b16 %v1788, %v1786
    %v1843 = vpack.c.b16 %v1789, %v1787
    %v1844 = vpack.c.b16 %v1792, %v1790
    %v1845 = vpack.c.b16 %v1793, %v1791
    %v1846 = vpack.c.b16 %v1796, %v1794
    %v1847 = vpack.c.b16 %v1797, %v1795
    %v1848 = vpack.c.b16 %v1800, %v1798
    %v1849 = vpack.c.b16 %v1801, %v1799
    %v1850 = vpack.c.b16 %v1804, %v1802
    %v1851 = vpack.c.b16 %v1805, %v1803
    %v1852 = vpack.c.b16 %v1808, %v1806
    %v1853 = vpack.c.b16 %v1809, %v1807
    %v1854 = vpack.c.b16 %v1812, %v1810
    %v1855 = vpack.c.b16 %v1813, %v1811
    %v1856 = vpack.c.b16 %v1816, %v1814
    %v1857 = vpack.c.b16 %v1817, %v1815
    %v1858 = vpack.c.b16 %v1820, %v1818
    %v1859 = vpack.c.b16 %v1821, %v1819
    %v1860 = vpack.c.b16 %v1824, %v1822
    %v1861 = vpack.c.b16 %v1825, %v1823
    %v1862 = vpack.c.b16 %v1828, %v1826
    %v1863 = vpack.c.b16 %v1829, %v1827
    %v1864 = vpack.c.b16 %v1832, %v1830
    %v1865 = vpack.c.b16 %v1833, %v1831
    %1898 = vmatprep.subr.bf16.mxu0 %v1849
    %1899 = vmatpush1.bf16.msra.mxu0 %v1848
    %1900 = vmatprep.subr.bf16.mxu0 %v1847
    %1901 = vmatpush1.bf16.msra.mxu0 %v1846
    %1902 = vmatprep.subr.bf16.mxu0 %v1845
    %1903 = vmatpush1.bf16.msra.mxu0 %v1844
    %1904 = vmatprep.subr.bf16.mxu0 %v1843
    %1905 = vmatpush1.bf16.msra.mxu0 %v1842
    %1906 = vmatprep.subr.bf16.mxu0 %v1841
    %1907 = vmatpush1.bf16.msra.mxu0 %v1840
    %1908 = vmatprep.subr.bf16.mxu0 %v1839
    %1909 = vmatpush1.bf16.msra.mxu0 %v1838
    %1910 = vmatprep.subr.bf16.mxu0 %v1837
    %1911 = vmatpush1.bf16.msra.mxu0 %v1836
    %1912 = vmatprep.subr.bf16.mxu0 %v1835
    %1913 = vmatpush1.bf16.msra.mxu0 %v1834
    %1914 = vmatprep.subr.bf16.mxu0 %v1865
    %1915 = vmatpush2.bf16.msra.mxu0 %v1864
    %1916 = vmatprep.subr.bf16.mxu0 %v1863
    %1917 = vmatpush2.bf16.msra.mxu0 %v1862
    %1918 = vmatprep.subr.bf16.mxu0 %v1861
    %1919 = vmatpush2.bf16.msra.mxu0 %v1860
    %1920 = vmatprep.subr.bf16.mxu0 %v1859
    %1921 = vmatpush2.bf16.msra.mxu0 %v1858
    %1922 = vmatprep.subr.bf16.mxu0 %v1857
    %1923 = vmatpush2.bf16.msra.mxu0 %v1856
    %1924 = vmatprep.subr.bf16.mxu0 %v1855
    %1925 = vmatpush2.bf16.msra.mxu0 %v1854
    %1926 = vmatprep.subr.bf16.mxu0 %v1853
    %1927 = vmatpush2.bf16.msra.mxu0 %v1852
    %1928 = vmatprep.subr.bf16.mxu0 %v1851
    %1929 = vmatpush2.bf16.msra.mxu0 %v1850
    %1930 = vmatprep.mubr.bf16.mxu0 %v1379
    %1931 = vmatmul.mubr.bf16.gmra.mxu0 %v1378
    %v1932 = vpop.f32.mrf.mxu0
    %v1933 = vadd.f32 %v1720, %v1932
    %v1934 = vpop.f32.mrf.mxu0
    %v1935 = vadd.f32 %v1722, %v1934
    %v1936 = vpop.f32.mrf.mxu0
    %v1937 = vadd.f32 %v1724, %v1936
    %v1938 = vpop.f32.mrf.mxu0
    %v1939 = vadd.f32 %v1726, %v1938
    %1940 = vmatprep.mubr.bf16.mxu0 %v1381
    %1941 = vmatmul.mubr.bf16.gmra.mxu0 %v1380
    %v1942 = vpop.f32.mrf.mxu0
    %v1943 = vadd.f32 %v1730, %v1942
    %v1944 = vpop.f32.mrf.mxu0
    %v1945 = vadd.f32 %v1732, %v1944
    %v1946 = vpop.f32.mrf.mxu0
    %v1947 = vadd.f32 %v1734, %v1946
    %v1948 = vpop.f32.mrf.mxu0
    %v1949 = vadd.f32 %v1736, %v1948
    %1950 = vdwg.mxu0
    %s1951 = scalar_lea.vmem %s11, 32
    %v1952 = vld [vmem:[%s1951] sm:$0xf]
    %v1953 = vld [vmem:[%s1951 + $0x4] sm:$0xf]
    %v1954 = vld [vmem:[%s1951 + $0x8] sm:$0xf]
    %v1955 = vld [vmem:[%s1951 + $0xc] sm:$0xf]
    %v1960 = vunpack.c.l.b16 %v1952
    %v1961 = vunpack.c.l.b16 %v1953
    %v1962 = vunpack.c.l.b16 %v1954
    %v1963 = vunpack.c.l.b16 %v1955
    %v1964 = vpack.c.b16 %v1961, %v1960
    %v1965 = vpack.c.b16 %v1963, %v1962
    %v1967 = vsel %vm461, %v1964, 0
    %v1970 = vsel %vm461, %v1965, 0
    %1972 = vmatprep.subr.bf16.mxu0 0
    %1973 = vmatpush1.bf16.msra.mxu0 0
    %1974 = vmatprep.subr.bf16.mxu0 0
    %1975 = vmatpush1.bf16.msra.mxu0 0
    %1976 = vmatprep.subr.bf16.mxu0 0
    %1977 = vmatpush1.bf16.msra.mxu0 0
    %1978 = vmatprep.subr.bf16.mxu0 0
    %1979 = vmatpush1.bf16.msra.mxu0 0
    %1980 = vmatprep.subr.bf16.mxu0 %v1304
    %1981 = vmatpush1.bf16.msra.mxu0 %v1303
    %1982 = vmatprep.subr.bf16.mxu0 %v1302
    %1983 = vmatpush1.bf16.msra.mxu0 %v1301
    %1984 = vmatprep.subr.bf16.mxu0 %v1300
    %1985 = vmatpush1.bf16.msra.mxu0 %v1299
    %1986 = vmatprep.subr.bf16.mxu0 %v1298
    %1987 = vmatpush1.bf16.msra.mxu0 %v1297
    %1988 = vmatprep.subr.bf16.mxu0 0
    %1989 = vmatpush2.bf16.msra.mxu0 0
    %1990 = vmatprep.subr.bf16.mxu0 0
    %1991 = vmatpush2.bf16.msra.mxu0 0
    %1992 = vmatprep.subr.bf16.mxu0 0
    %1993 = vmatpush2.bf16.msra.mxu0 0
    %1994 = vmatprep.subr.bf16.mxu0 0
    %1995 = vmatpush2.bf16.msra.mxu0 0
    %1996 = vmatprep.subr.bf16.mxu0 0
    %1997 = vmatpush2.bf16.msra.mxu0 0
    %1998 = vmatprep.subr.bf16.mxu0 0
    %1999 = vmatpush2.bf16.msra.mxu0 0
    %2000 = vmatprep.subr.bf16.mxu0 0
    %2001 = vmatpush2.bf16.msra.mxu0 0
    %2002 = vmatprep.subr.bf16.mxu0 0
    %2003 = vmatpush2.bf16.msra.mxu0 0
    %2004 = vmatprep.mubr.bf16.mxu0 0
    %2005 = vmatmul.mubr.bf16.gmra.mxu0 %v1967
    %v2006 = vpop.f32.mrf.mxu0
    %v2007 = vadd.f32 0.0, %v2006
    %v2008 = vpop.f32.mrf.mxu0
    %v2009 = vadd.f32 0.0, %v2008
    %v2010 = vpop.f32.mrf.mxu0
    %v2011 = vadd.f32 0.0, %v2010
    %v2012 = vpop.f32.mrf.mxu0
    %v2013 = vadd.f32 0.0, %v2012
    %2014 = vmatprep.mubr.bf16.mxu0 0
    %2015 = vmatmul.mubr.bf16.gmra.mxu0 %v1970
    %v2016 = vpop.f32.mrf.mxu0
    %v2017 = vadd.f32 0.0, %v2016
    %v2018 = vpop.f32.mrf.mxu0
    %v2019 = vadd.f32 0.0, %v2018
    %v2020 = vpop.f32.mrf.mxu0
    %v2021 = vadd.f32 0.0, %v2020
    %v2022 = vpop.f32.mrf.mxu0
    %v2023 = vadd.f32 0.0, %v2022
    %2024 = vdwg.mxu0
    %v2025 = vpack.c.bf16 %v2011, %v2007
    %v2026 = vpack.c.bf16 %v2013, %v2009
    %v2027 = vpack.c.bf16 %v2021, %v2017
    %v2028 = vpack.c.bf16 %v2023, %v2019
    %s2029 = scalar_lea.vmem %s13, 512
    %v2030 = vld [vmem:[%s2029] sm:$0xff]
    %v2031 = vld [vmem:[%s2029 + $0x8] sm:$0xff]
    %v2032 = vld [vmem:[%s2029 + $0x10] sm:$0xff]
    %v2033 = vld [vmem:[%s2029 + $0x18] sm:$0xff]
    %v2034 = vld [vmem:[%s2029 + $0x20] sm:$0xff]
    %v2035 = vld [vmem:[%s2029 + $0x28] sm:$0xff]
    %v2036 = vld [vmem:[%s2029 + $0x30] sm:$0xff]
    %v2037 = vld [vmem:[%s2029 + $0x38] sm:$0xff]
    %v2038 = vld [vmem:[%s2029 + $0x40] sm:$0xff]
    %v2039 = vld [vmem:[%s2029 + $0x48] sm:$0xff]
    %v2040 = vld [vmem:[%s2029 + $0x50] sm:$0xff]
    %v2041 = vld [vmem:[%s2029 + $0x58] sm:$0xff]
    %v2042 = vld [vmem:[%s2029 + $0x60] sm:$0xff]
    %v2043 = vld [vmem:[%s2029 + $0x68] sm:$0xff]
    %v2044 = vld [vmem:[%s2029 + $0x70] sm:$0xff]
    %v2045 = vld [vmem:[%s2029 + $0x78] sm:$0xff]
    %v2046 = vld [vmem:[%s2029 + $0x80] sm:$0xff]
    %v2047 = vld [vmem:[%s2029 + $0x88] sm:$0xff]
    %v2048 = vld [vmem:[%s2029 + $0x90] sm:$0xff]
    %v2049 = vld [vmem:[%s2029 + $0x98] sm:$0xff]
    %v2050 = vld [vmem:[%s2029 + $0xa0] sm:$0xff]
    %v2051 = vld [vmem:[%s2029 + $0xa8] sm:$0xff]
    %v2052 = vld [vmem:[%s2029 + $0xb0] sm:$0xff]
    %v2053 = vld [vmem:[%s2029 + $0xb8] sm:$0xff]
    %v2054 = vld [vmem:[%s2029 + $0xc0] sm:$0xff]
    %v2055 = vld [vmem:[%s2029 + $0xc8] sm:$0xff]
    %v2056 = vld [vmem:[%s2029 + $0xd0] sm:$0xff]
    %v2057 = vld [vmem:[%s2029 + $0xd8] sm:$0xff]
    %v2058 = vld [vmem:[%s2029 + $0xe0] sm:$0xff]
    %v2059 = vld [vmem:[%s2029 + $0xe8] sm:$0xff]
    %v2060 = vld [vmem:[%s2029 + $0xf0] sm:$0xff]
    %v2061 = vld [vmem:[%s2029 + $0xf8] sm:$0xff]
    %v2094 = vunpack.c.l.b16 %v2030
    %v2095 = vunpack.c.h.b16 %v2030
    %v2096 = vunpack.c.l.b16 %v2031
    %v2097 = vunpack.c.h.b16 %v2031
    %v2098 = vunpack.c.l.b16 %v2032
    %v2099 = vunpack.c.h.b16 %v2032
    %v2100 = vunpack.c.l.b16 %v2033
    %v2101 = vunpack.c.h.b16 %v2033
    %v2102 = vunpack.c.l.b16 %v2034
    %v2103 = vunpack.c.h.b16 %v2034
    %v2104 = vunpack.c.l.b16 %v2035
    %v2105 = vunpack.c.h.b16 %v2035
    %v2106 = vunpack.c.l.b16 %v2036
    %v2107 = vunpack.c.h.b16 %v2036
    %v2108 = vunpack.c.l.b16 %v2037
    %v2109 = vunpack.c.h.b16 %v2037
    %v2110 = vunpack.c.l.b16 %v2038
    %v2111 = vunpack.c.h.b16 %v2038
    %v2112 = vunpack.c.l.b16 %v2039
    %v2113 = vunpack.c.h.b16 %v2039
    %v2114 = vunpack.c.l.b16 %v2040
    %v2115 = vunpack.c.h.b16 %v2040
    %v2116 = vunpack.c.l.b16 %v2041
    %v2117 = vunpack.c.h.b16 %v2041
    %v2118 = vunpack.c.l.b16 %v2042
    %v2119 = vunpack.c.h.b16 %v2042
    %v2120 = vunpack.c.l.b16 %v2043
    %v2121 = vunpack.c.h.b16 %v2043
    %v2122 = vunpack.c.l.b16 %v2044
    %v2123 = vunpack.c.h.b16 %v2044
    %v2124 = vunpack.c.l.b16 %v2045
    %v2125 = vunpack.c.h.b16 %v2045
    %v2126 = vunpack.c.l.b16 %v2046
    %v2127 = vunpack.c.h.b16 %v2046
    %v2128 = vunpack.c.l.b16 %v2047
    %v2129 = vunpack.c.h.b16 %v2047
    %v2130 = vunpack.c.l.b16 %v2048
    %v2131 = vunpack.c.h.b16 %v2048
    %v2132 = vunpack.c.l.b16 %v2049
    %v2133 = vunpack.c.h.b16 %v2049
    %v2134 = vunpack.c.l.b16 %v2050
    %v2135 = vunpack.c.h.b16 %v2050
    %v2136 = vunpack.c.l.b16 %v2051
    %v2137 = vunpack.c.h.b16 %v2051
    %v2138 = vunpack.c.l.b16 %v2052
    %v2139 = vunpack.c.h.b16 %v2052
    %v2140 = vunpack.c.l.b16 %v2053
    %v2141 = vunpack.c.h.b16 %v2053
    %v2142 = vunpack.c.l.b16 %v2054
    %v2143 = vunpack.c.h.b16 %v2054
    %v2144 = vunpack.c.l.b16 %v2055
    %v2145 = vunpack.c.h.b16 %v2055
    %v2146 = vunpack.c.l.b16 %v2056
    %v2147 = vunpack.c.h.b16 %v2056
    %v2148 = vunpack.c.l.b16 %v2057
    %v2149 = vunpack.c.h.b16 %v2057
    %v2150 = vunpack.c.l.b16 %v2058
    %v2151 = vunpack.c.h.b16 %v2058
    %v2152 = vunpack.c.l.b16 %v2059
    %v2153 = vunpack.c.h.b16 %v2059
    %v2154 = vunpack.c.l.b16 %v2060
    %v2155 = vunpack.c.h.b16 %v2060
    %v2156 = vunpack.c.l.b16 %v2061
    %v2157 = vunpack.c.h.b16 %v2061
    %v2158 = vpack.c.b16 %v2096, %v2094
    %v2159 = vpack.c.b16 %v2097, %v2095
    %v2160 = vpack.c.b16 %v2100, %v2098
    %v2161 = vpack.c.b16 %v2101, %v2099
    %v2162 = vpack.c.b16 %v2104, %v2102
    %v2163 = vpack.c.b16 %v2105, %v2103
    %v2164 = vpack.c.b16 %v2108, %v2106
    %v2165 = vpack.c.b16 %v2109, %v2107
    %v2166 = vpack.c.b16 %v2112, %v2110
    %v2167 = vpack.c.b16 %v2113, %v2111
    %v2168 = vpack.c.b16 %v2116, %v2114
    %v2169 = vpack.c.b16 %v2117, %v2115
    %v2170 = vpack.c.b16 %v2120, %v2118
    %v2171 = vpack.c.b16 %v2121, %v2119
    %v2172 = vpack.c.b16 %v2124, %v2122
    %v2173 = vpack.c.b16 %v2125, %v2123
    %v2174 = vpack.c.b16 %v2128, %v2126
    %v2175 = vpack.c.b16 %v2129, %v2127
    %v2176 = vpack.c.b16 %v2132, %v2130
    %v2177 = vpack.c.b16 %v2133, %v2131
    %v2178 = vpack.c.b16 %v2136, %v2134
    %v2179 = vpack.c.b16 %v2137, %v2135
    %v2180 = vpack.c.b16 %v2140, %v2138
    %v2181 = vpack.c.b16 %v2141, %v2139
    %v2182 = vpack.c.b16 %v2144, %v2142
    %v2183 = vpack.c.b16 %v2145, %v2143
    %v2184 = vpack.c.b16 %v2148, %v2146
    %v2185 = vpack.c.b16 %v2149, %v2147
    %v2186 = vpack.c.b16 %v2152, %v2150
    %v2187 = vpack.c.b16 %v2153, %v2151
    %v2188 = vpack.c.b16 %v2156, %v2154
    %v2189 = vpack.c.b16 %v2157, %v2155
    %2222 = vmatprep.subr.bf16.mxu0 %v2173
    %2223 = vmatpush1.bf16.msra.mxu0 %v2172
    %2224 = vmatprep.subr.bf16.mxu0 %v2171
    %2225 = vmatpush1.bf16.msra.mxu0 %v2170
    %2226 = vmatprep.subr.bf16.mxu0 %v2169
    %2227 = vmatpush1.bf16.msra.mxu0 %v2168
    %2228 = vmatprep.subr.bf16.mxu0 %v2167
    %2229 = vmatpush1.bf16.msra.mxu0 %v2166
    %2230 = vmatprep.subr.bf16.mxu0 %v2165
    %2231 = vmatpush1.bf16.msra.mxu0 %v2164
    %2232 = vmatprep.subr.bf16.mxu0 %v2163
    %2233 = vmatpush1.bf16.msra.mxu0 %v2162
    %2234 = vmatprep.subr.bf16.mxu0 %v2161
    %2235 = vmatpush1.bf16.msra.mxu0 %v2160
    %2236 = vmatprep.subr.bf16.mxu0 %v2159
    %2237 = vmatpush1.bf16.msra.mxu0 %v2158
    %2238 = vmatprep.subr.bf16.mxu0 %v2189
    %2239 = vmatpush2.bf16.msra.mxu0 %v2188
    %2240 = vmatprep.subr.bf16.mxu0 %v2187
    %2241 = vmatpush2.bf16.msra.mxu0 %v2186
    %2242 = vmatprep.subr.bf16.mxu0 %v2185
    %2243 = vmatpush2.bf16.msra.mxu0 %v2184
    %2244 = vmatprep.subr.bf16.mxu0 %v2183
    %2245 = vmatpush2.bf16.msra.mxu0 %v2182
    %2246 = vmatprep.subr.bf16.mxu0 %v2181
    %2247 = vmatpush2.bf16.msra.mxu0 %v2180
    %2248 = vmatprep.subr.bf16.mxu0 %v2179
    %2249 = vmatpush2.bf16.msra.mxu0 %v2178
    %2250 = vmatprep.subr.bf16.mxu0 %v2177
    %2251 = vmatpush2.bf16.msra.mxu0 %v2176
    %2252 = vmatprep.subr.bf16.mxu0 %v2175
    %2253 = vmatpush2.bf16.msra.mxu0 %v2174
    %2254 = vmatprep.mubr.bf16.mxu0 %v2026
    %2255 = vmatmul.mubr.bf16.gmra.mxu0 %v2025
    %v2256 = vpop.f32.mrf.mxu0
    %v2257 = vadd.f32 0.0, %v2256
    %v2258 = vpop.f32.mrf.mxu0
    %v2259 = vadd.f32 0.0, %v2258
    %v2260 = vpop.f32.mrf.mxu0
    %v2261 = vadd.f32 0.0, %v2260
    %v2262 = vpop.f32.mrf.mxu0
    %v2263 = vadd.f32 0.0, %v2262
    %2264 = vmatprep.mubr.bf16.mxu0 %v2028
    %2265 = vmatmul.mubr.bf16.gmra.mxu0 %v2027
    %v2266 = vpop.f32.mrf.mxu0
    %v2267 = vadd.f32 0.0, %v2266
    %v2268 = vpop.f32.mrf.mxu0
    %v2269 = vadd.f32 0.0, %v2268
    %v2270 = vpop.f32.mrf.mxu0
    %v2271 = vadd.f32 0.0, %v2270
    %v2272 = vpop.f32.mrf.mxu0
    %v2273 = vadd.f32 0.0, %v2272
    %2274 = vdwg.mxu0
    %v2275 = vadd.f32 %v1933, %v2257
    %v2276 = vadd.f32 %v1935, %v2259
    %v2277 = vadd.f32 %v1937, %v2261
    %v2278 = vadd.f32 %v1939, %v2263
    %v2279 = vadd.f32 %v1943, %v2267
    %v2280 = vadd.f32 %v1945, %v2269
    %v2281 = vadd.f32 %v1947, %v2271
    %v2282 = vadd.f32 %v1949, %v2273
    %v2283 = vld [vmem:[#allocation6] sm:$0x3]
    %v2285 = vlaneseq
    %v2286 = vshrl.u32 %v2285, 7
    %v2287 = vsub.s32 0, %v2286
    %v2288 = vrot.slane %v2283, %v2287
    %v2289 = vlaneseq
    %v2290 = vshrl.u32 %v2289, 7
    %v2291 = vsub.s32 1, %v2290
    %v2292 = vrot.slane %v2283, %v2291
    %v2295 = vadd.f32 %v2275, %v2288
    %v2296 = vadd.f32 %v2276, %v2292
    %v2297 = vadd.f32 %v2277, %v2288
    %v2298 = vadd.f32 %v2278, %v2292
    %v2299 = vadd.f32 %v2279, %v2288
    %v2300 = vadd.f32 %v2280, %v2292
    %v2301 = vadd.f32 %v2281, %v2288
    %v2302 = vadd.f32 %v2282, %v2292
    %v2303 = vmax.f32 %v2295, 0.0
    %v2304 = vmax.f32 %v2296, 0.0
    %v2305 = vmax.f32 %v2297, 0.0
    %v2306 = vmax.f32 %v2298, 0.0
    %v2307 = vmax.f32 %v2299, 0.0
    %v2308 = vmax.f32 %v2300, 0.0
    %v2309 = vmax.f32 %v2301, 0.0
    %v2310 = vmax.f32 %v2302, 0.0
    %v2311 = vld [vmem:[#allocation13] sm:$0x1]
    %v2313 = vlaneseq
    %v2314 = vshrl.u32 %v2313, 7
    %v2315 = vsub.s32 0, %v2314
    %v2316 = vrot.slane %v2311, %v2315
    %v2318 = vmul.f32 %v421, %v2316
    %v2319 = vmul.f32 %v422, %v2316
    %v2320 = vmul.f32 %v423, %v2316
    %v2321 = vmul.f32 %v424, %v2316
    %v2322 = vmul.f32 %v425, %v2316
    %v2323 = vmul.f32 %v426, %v2316
    %v2324 = vmul.f32 %v427, %v2316
    %v2325 = vmul.f32 %v428, %v2316
    %v2326 = vld [vmem:[#allocation15] sm:$0x1]
    %v2328 = vlaneseq
    %v2329 = vshrl.u32 %v2328, 7
    %v2330 = vsub.s32 0, %v2329
    %v2331 = vrot.slane %v2326, %v2330
    %v2333 = vadd.f32 %v2318, %v2331
    %v2334 = vadd.f32 %v2319, %v2331
    %v2335 = vadd.f32 %v2320, %v2331
    %v2336 = vadd.f32 %v2321, %v2331
    %v2337 = vadd.f32 %v2322, %v2331
    %v2338 = vadd.f32 %v2323, %v2331
    %v2339 = vadd.f32 %v2324, %v2331
    %v2340 = vadd.f32 %v2325, %v2331
    %v2341 = vpack.c.bf16 %v2334, %v2333
    %v2342 = vpack.c.bf16 %v2336, %v2335
    %v2343 = vpack.c.bf16 %v2338, %v2337
    %v2344 = vpack.c.bf16 %v2340, %v2339
    %v2345 = vld [vmem:[%s17] sm:$0xf]
    %v2346 = vld [vmem:[%s17 + $0x4] sm:$0xf]
    %v2347 = vld [vmem:[%s17 + $0x8] sm:$0xf]
    %v2348 = vld [vmem:[%s17 + $0xc] sm:$0xf]
    %v2353 = vunpack.c.l.b16 %v2345
    %v2354 = vunpack.c.l.b16 %v2346
    %v2355 = vunpack.c.l.b16 %v2347
    %v2356 = vunpack.c.l.b16 %v2348
    %v2357 = vpack.c.b16 %v2354, %v2353
    %v2358 = vpack.c.b16 %v2356, %v2355
    %v2360 = vsel %vm461, %v2357, 0
    %v2363 = vsel %vm461, %v2358, 0
    %2365 = vmatprep.subr.bf16.mxu0 0
    %2366 = vmatpush1.bf16.msra.mxu0 0
    %2367 = vmatprep.subr.bf16.mxu0 0
    %2368 = vmatpush1.bf16.msra.mxu0 0
    %2369 = vmatprep.subr.bf16.mxu0 0
    %2370 = vmatpush1.bf16.msra.mxu0 0
    %2371 = vmatprep.subr.bf16.mxu0 0
    %2372 = vmatpush1.bf16.msra.mxu0 0
    %2373 = vmatprep.subr.bf16.mxu0 0
    %2374 = vmatpush1.bf16.msra.mxu0 %v2344
    %2375 = vmatprep.subr.bf16.mxu0 0
    %2376 = vmatpush1.bf16.msra.mxu0 %v2343
    %2377 = vmatprep.subr.bf16.mxu0 0
    %2378 = vmatpush1.bf16.msra.mxu0 %v2342
    %2379 = vmatprep.subr.bf16.mxu0 0
    %2380 = vmatpush1.bf16.msra.mxu0 %v2341
    %2381 = vmatprep.subr.bf16.mxu0 0
    %2382 = vmatpush2.bf16.msra.mxu0 0
    %2383 = vmatprep.subr.bf16.mxu0 0
    %2384 = vmatpush2.bf16.msra.mxu0 0
    %2385 = vmatprep.subr.bf16.mxu0 0
    %2386 = vmatpush2.bf16.msra.mxu0 0
    %2387 = vmatprep.subr.bf16.mxu0 0
    %2388 = vmatpush2.bf16.msra.mxu0 0
    %2389 = vmatprep.subr.bf16.mxu0 0
    %2390 = vmatpush2.bf16.msra.mxu0 0
    %2391 = vmatprep.subr.bf16.mxu0 0
    %2392 = vmatpush2.bf16.msra.mxu0 0
    %2393 = vmatprep.subr.bf16.mxu0 0
    %2394 = vmatpush2.bf16.msra.mxu0 0
    %2395 = vmatprep.subr.bf16.mxu0 0
    %2396 = vmatpush2.bf16.msra.mxu0 0
    %2397 = vmatprep.mubr.bf16.mxu0 0
    %2398 = vmatmul.mubr.bf16.gmra.mxu0 %v2360
    %v2399 = vpop.f32.mrf.mxu0
    %v2400 = vadd.f32 0.0, %v2399
    %v2401 = vpop.f32.mrf.mxu0
    %v2402 = vpop.f32.mrf.mxu0
    %v2403 = vadd.f32 0.0, %v2402
    %v2404 = vpop.f32.mrf.mxu0
    %2405 = vmatprep.mubr.bf16.mxu0 0
    %2406 = vmatmul.mubr.bf16.gmra.mxu0 %v2363
    %v2407 = vpop.f32.mrf.mxu0
    %v2408 = vadd.f32 0.0, %v2407
    %v2409 = vpop.f32.mrf.mxu0
    %v2410 = vpop.f32.mrf.mxu0
    %v2411 = vadd.f32 0.0, %v2410
    %v2412 = vpop.f32.mrf.mxu0
    %2413 = vdwg.mxu0
    %v2414 = vpack.c.bf16 %v2403, %v2400
    %v2415 = vpack.c.bf16 %v2411, %v2408
    %v2416 = vld [vmem:[%s19] sm:$0xff]
    %v2417 = vld [vmem:[%s19 + $0x8] sm:$0xff]
    %v2418 = vld [vmem:[%s19 + $0x10] sm:$0xff]
    %v2419 = vld [vmem:[%s19 + $0x18] sm:$0xff]
    %v2420 = vld [vmem:[%s19 + $0x20] sm:$0xff]
    %v2421 = vld [vmem:[%s19 + $0x28] sm:$0xff]
    %v2422 = vld [vmem:[%s19 + $0x30] sm:$0xff]
    %v2423 = vld [vmem:[%s19 + $0x38] sm:$0xff]
    %v2424 = vld [vmem:[%s19 + $0x40] sm:$0xff]
    %v2425 = vld [vmem:[%s19 + $0x48] sm:$0xff]
    %v2426 = vld [vmem:[%s19 + $0x50] sm:$0xff]
    %v2427 = vld [vmem:[%s19 + $0x58] sm:$0xff]
    %s2428 = scalar_lea.vmem %s17, 16
    %v2429 = vld [vmem:[%s2428] sm:$0xf]
    %v2430 = vld [vmem:[%s2428 + $0x4] sm:$0xf]
    %v2431 = vld [vmem:[%s2428 + $0x8] sm:$0xf]
    %v2432 = vld [vmem:[%s2428 + $0xc] sm:$0xf]
    %v2437 = vunpack.c.l.b16 %v2429
    %v2438 = vunpack.c.l.b16 %v2430
    %v2439 = vunpack.c.l.b16 %v2431
    %v2440 = vunpack.c.l.b16 %v2432
    %v2441 = vpack.c.b16 %v2438, %v2437
    %v2442 = vpack.c.b16 %v2440, %v2439
    %v2444 = vsel %vm461, %v2441, 0
    %v2447 = vsel %vm461, %v2442, 0
    %2449 = vmatprep.subr.bf16.mxu0 0
    %2450 = vmatpush1.bf16.msra.mxu0 0
    %2451 = vmatprep.subr.bf16.mxu0 0
    %2452 = vmatpush1.bf16.msra.mxu0 0
    %2453 = vmatprep.subr.bf16.mxu0 0
    %2454 = vmatpush1.bf16.msra.mxu0 0
    %2455 = vmatprep.subr.bf16.mxu0 0
    %2456 = vmatpush1.bf16.msra.mxu0 0
    %2457 = vmatprep.subr.bf16.mxu0 0
    %2458 = vmatpush1.bf16.msra.mxu0 %v2344
    %2459 = vmatprep.subr.bf16.mxu0 0
    %2460 = vmatpush1.bf16.msra.mxu0 %v2343
    %2461 = vmatprep.subr.bf16.mxu0 0
    %2462 = vmatpush1.bf16.msra.mxu0 %v2342
    %2463 = vmatprep.subr.bf16.mxu0 0
    %2464 = vmatpush1.bf16.msra.mxu0 %v2341
    %2465 = vmatprep.subr.bf16.mxu0 0
    %2466 = vmatpush2.bf16.msra.mxu0 0
    %2467 = vmatprep.subr.bf16.mxu0 0
    %2468 = vmatpush2.bf16.msra.mxu0 0
    %2469 = vmatprep.subr.bf16.mxu0 0
    %2470 = vmatpush2.bf16.msra.mxu0 0
    %2471 = vmatprep.subr.bf16.mxu0 0
    %2472 = vmatpush2.bf16.msra.mxu0 0
    %2473 = vmatprep.subr.bf16.mxu0 0
    %2474 = vmatpush2.bf16.msra.mxu0 0
    %2475 = vmatprep.subr.bf16.mxu0 0
    %2476 = vmatpush2.bf16.msra.mxu0 0
    %2477 = vmatprep.subr.bf16.mxu0 0
    %2478 = vmatpush2.bf16.msra.mxu0 0
    %2479 = vmatprep.subr.bf16.mxu0 0
    %2480 = vmatpush2.bf16.msra.mxu0 0
    %2481 = vmatprep.mubr.bf16.mxu0 0
    %2482 = vmatmul.mubr.bf16.gmra.mxu0 %v2444
    %v2483 = vpop.f32.mrf.mxu0
    %v2484 = vadd.f32 0.0, %v2483
    %v2485 = vpop.f32.mrf.mxu0
    %v2486 = vpop.f32.mrf.mxu0
    %v2487 = vadd.f32 0.0, %v2486
    %v2488 = vpop.f32.mrf.mxu0
    %2489 = vmatprep.mubr.bf16.mxu0 0
    %2490 = vmatmul.mubr.bf16.gmra.mxu0 %v2447
    %v2491 = vpop.f32.mrf.mxu0
    %v2492 = vadd.f32 0.0, %v2491
    %v2493 = vpop.f32.mrf.mxu0
    %v2494 = vpop.f32.mrf.mxu0
    %v2495 = vadd.f32 0.0, %v2494
    %v2496 = vpop.f32.mrf.mxu0
    %2497 = vdwg.mxu0
    %v2498 = vpack.c.bf16 %v2487, %v2484
    %v2499 = vpack.c.bf16 %v2495, %v2492
    %s2500 = scalar_lea.vmem %s19, 96
    %v2501 = vld [vmem:[%s2500] sm:$0xff]
    %v2502 = vld [vmem:[%s2500 + $0x8] sm:$0xff]
    %v2503 = vld [vmem:[%s2500 + $0x10] sm:$0xff]
    %v2504 = vld [vmem:[%s2500 + $0x18] sm:$0xff]
    %v2505 = vld [vmem:[%s2500 + $0x20] sm:$0xff]
    %v2506 = vld [vmem:[%s2500 + $0x28] sm:$0xff]
    %v2507 = vld [vmem:[%s2500 + $0x30] sm:$0xff]
    %v2508 = vld [vmem:[%s2500 + $0x38] sm:$0xff]
    %v2509 = vld [vmem:[%s2500 + $0x40] sm:$0xff]
    %v2510 = vld [vmem:[%s2500 + $0x48] sm:$0xff]
    %v2511 = vld [vmem:[%s2500 + $0x50] sm:$0xff]
    %v2512 = vld [vmem:[%s2500 + $0x58] sm:$0xff]
    %v2525 = vunpack.c.l.b16 %v2501
    %v2526 = vunpack.c.h.b16 %v2501
    %v2527 = vunpack.c.l.b16 %v2502
    %v2528 = vunpack.c.h.b16 %v2502
    %v2529 = vunpack.c.l.b16 %v2503
    %v2530 = vunpack.c.h.b16 %v2503
    %v2531 = vunpack.c.l.b16 %v2504
    %v2532 = vunpack.c.h.b16 %v2504
    %v2533 = vunpack.c.l.b16 %v2505
    %v2534 = vunpack.c.h.b16 %v2505
    %v2535 = vunpack.c.l.b16 %v2506
    %v2536 = vunpack.c.h.b16 %v2506
    %v2537 = vunpack.c.l.b16 %v2507
    %v2538 = vunpack.c.h.b16 %v2507
    %v2539 = vunpack.c.l.b16 %v2508
    %v2540 = vunpack.c.h.b16 %v2508
    %v2541 = vunpack.c.l.b16 %v2509
    %v2542 = vunpack.c.h.b16 %v2509
    %v2543 = vunpack.c.l.b16 %v2510
    %v2544 = vunpack.c.h.b16 %v2510
    %v2545 = vunpack.c.l.b16 %v2511
    %v2546 = vunpack.c.h.b16 %v2511
    %v2547 = vunpack.c.l.b16 %v2512
    %v2548 = vunpack.c.h.b16 %v2512
    %v2549 = vpack.c.b16 %v2527, %v2525
    %v2550 = vpack.c.b16 %v2528, %v2526
    %v2551 = vpack.c.b16 %v2531, %v2529
    %v2552 = vpack.c.b16 %v2532, %v2530
    %v2553 = vpack.c.b16 %v2535, %v2533
    %v2554 = vpack.c.b16 %v2536, %v2534
    %v2555 = vpack.c.b16 %v2539, %v2537
    %v2556 = vpack.c.b16 %v2540, %v2538
    %v2557 = vpack.c.b16 %v2543, %v2541
    %v2558 = vpack.c.b16 %v2544, %v2542
    %v2559 = vpack.c.b16 %v2547, %v2545
    %v2560 = vpack.c.b16 %v2548, %v2546
    %v2574 = vsel %vm738, %v2498, 0
    %v2577 = vsel %vm738, %v2499, 0
    %2579 = vmatprep.subr.bf16.mxu0 0
    %2580 = vmatpush1.bf16.msra.mxu0 0
    %2581 = vmatprep.subr.bf16.mxu0 0
    %2582 = vmatpush1.bf16.msra.mxu0 0
    %2583 = vmatprep.subr.bf16.mxu0 %v2560
    %2584 = vmatpush1.bf16.msra.mxu0 %v2559
    %2585 = vmatprep.subr.bf16.mxu0 %v2558
    %2586 = vmatpush1.bf16.msra.mxu0 %v2557
    %2587 = vmatprep.subr.bf16.mxu0 %v2556
    %2588 = vmatpush1.bf16.msra.mxu0 %v2555
    %2589 = vmatprep.subr.bf16.mxu0 %v2554
    %2590 = vmatpush1.bf16.msra.mxu0 %v2553
    %2591 = vmatprep.subr.bf16.mxu0 %v2552
    %2592 = vmatpush1.bf16.msra.mxu0 %v2551
    %2593 = vmatprep.subr.bf16.mxu0 %v2550
    %2594 = vmatpush1.bf16.msra.mxu0 %v2549
    %2595 = vmatprep.subr.bf16.mxu0 0
    %2596 = vmatpush2.bf16.msra.mxu0 0
    %2597 = vmatprep.subr.bf16.mxu0 0
    %2598 = vmatpush2.bf16.msra.mxu0 0
    %2599 = vmatprep.subr.bf16.mxu0 0
    %2600 = vmatpush2.bf16.msra.mxu0 0
    %2601 = vmatprep.subr.bf16.mxu0 0
    %2602 = vmatpush2.bf16.msra.mxu0 0
    %2603 = vmatprep.subr.bf16.mxu0 0
    %2604 = vmatpush2.bf16.msra.mxu0 0
    %2605 = vmatprep.subr.bf16.mxu0 0
    %2606 = vmatpush2.bf16.msra.mxu0 0
    %2607 = vmatprep.subr.bf16.mxu0 0
    %2608 = vmatpush2.bf16.msra.mxu0 0
    %2609 = vmatprep.subr.bf16.mxu0 0
    %2610 = vmatpush2.bf16.msra.mxu0 0
    %2611 = vmatprep.mubr.bf16.mxu0 0
    %2612 = vmatmul.mubr.bf16.gmra.mxu0 %v2574
    %v2613 = vpop.f32.mrf.mxu0
    %v2614 = vadd.f32 0.0, %v2613
    %v2615 = vpop.f32.mrf.mxu0
    %v2616 = vadd.f32 0.0, %v2615
    %v2617 = vpop.f32.mrf.mxu0
    %v2618 = vadd.f32 0.0, %v2617
    %v2619 = vpop.f32.mrf.mxu0
    %v2620 = vadd.f32 0.0, %v2619
    %2621 = vmatprep.mubr.bf16.mxu0 0
    %2622 = vmatmul.mubr.bf16.gmra.mxu0 %v2577
    %v2623 = vpop.f32.mrf.mxu0
    %v2624 = vadd.f32 0.0, %v2623
    %v2625 = vpop.f32.mrf.mxu0
    %v2626 = vadd.f32 0.0, %v2625
    %v2627 = vpop.f32.mrf.mxu0
    %v2628 = vadd.f32 0.0, %v2627
    %v2629 = vpop.f32.mrf.mxu0
    %v2630 = vadd.f32 0.0, %v2629
    %2631 = vdwg.mxu0
    %v2644 = vunpack.c.l.b16 %v2416
    %v2645 = vunpack.c.h.b16 %v2416
    %v2646 = vunpack.c.l.b16 %v2417
    %v2647 = vunpack.c.h.b16 %v2417
    %v2648 = vunpack.c.l.b16 %v2418
    %v2649 = vunpack.c.h.b16 %v2418
    %v2650 = vunpack.c.l.b16 %v2419
    %v2651 = vunpack.c.h.b16 %v2419
    %v2652 = vunpack.c.l.b16 %v2420
    %v2653 = vunpack.c.h.b16 %v2420
    %v2654 = vunpack.c.l.b16 %v2421
    %v2655 = vunpack.c.h.b16 %v2421
    %v2656 = vunpack.c.l.b16 %v2422
    %v2657 = vunpack.c.h.b16 %v2422
    %v2658 = vunpack.c.l.b16 %v2423
    %v2659 = vunpack.c.h.b16 %v2423
    %v2660 = vunpack.c.l.b16 %v2424
    %v2661 = vunpack.c.h.b16 %v2424
    %v2662 = vunpack.c.l.b16 %v2425
    %v2663 = vunpack.c.h.b16 %v2425
    %v2664 = vunpack.c.l.b16 %v2426
    %v2665 = vunpack.c.h.b16 %v2426
    %v2666 = vunpack.c.l.b16 %v2427
    %v2667 = vunpack.c.h.b16 %v2427
    %v2668 = vpack.c.b16 %v2646, %v2644
    %v2669 = vpack.c.b16 %v2647, %v2645
    %v2670 = vpack.c.b16 %v2650, %v2648
    %v2671 = vpack.c.b16 %v2651, %v2649
    %v2672 = vpack.c.b16 %v2654, %v2652
    %v2673 = vpack.c.b16 %v2655, %v2653
    %v2674 = vpack.c.b16 %v2658, %v2656
    %v2675 = vpack.c.b16 %v2659, %v2657
    %v2676 = vpack.c.b16 %v2662, %v2660
    %v2677 = vpack.c.b16 %v2663, %v2661
    %v2678 = vpack.c.b16 %v2666, %v2664
    %v2679 = vpack.c.b16 %v2667, %v2665
    %v2693 = vsel %vm738, %v2414, 0
    %v2696 = vsel %vm738, %v2415, 0
    %2698 = vmatprep.subr.bf16.mxu0 0
    %2699 = vmatpush1.bf16.msra.mxu0 0
    %2700 = vmatprep.subr.bf16.mxu0 0
    %2701 = vmatpush1.bf16.msra.mxu0 0
    %2702 = vmatprep.subr.bf16.mxu0 %v2679
    %2703 = vmatpush1.bf16.msra.mxu0 %v2678
    %2704 = vmatprep.subr.bf16.mxu0 %v2677
    %2705 = vmatpush1.bf16.msra.mxu0 %v2676
    %2706 = vmatprep.subr.bf16.mxu0 %v2675
    %2707 = vmatpush1.bf16.msra.mxu0 %v2674
    %2708 = vmatprep.subr.bf16.mxu0 %v2673
    %2709 = vmatpush1.bf16.msra.mxu0 %v2672
    %2710 = vmatprep.subr.bf16.mxu0 %v2671
    %2711 = vmatpush1.bf16.msra.mxu0 %v2670
    %2712 = vmatprep.subr.bf16.mxu0 %v2669
    %2713 = vmatpush1.bf16.msra.mxu0 %v2668
    %2714 = vmatprep.subr.bf16.mxu0 0
    %2715 = vmatpush2.bf16.msra.mxu0 0
    %2716 = vmatprep.subr.bf16.mxu0 0
    %2717 = vmatpush2.bf16.msra.mxu0 0
    %2718 = vmatprep.subr.bf16.mxu0 0
    %2719 = vmatpush2.bf16.msra.mxu0 0
    %2720 = vmatprep.subr.bf16.mxu0 0
    %2721 = vmatpush2.bf16.msra.mxu0 0
    %2722 = vmatprep.subr.bf16.mxu0 0
    %2723 = vmatpush2.bf16.msra.mxu0 0
    %2724 = vmatprep.subr.bf16.mxu0 0
    %2725 = vmatpush2.bf16.msra.mxu0 0
    %2726 = vmatprep.subr.bf16.mxu0 0
    %2727 = vmatpush2.bf16.msra.mxu0 0
    %2728 = vmatprep.subr.bf16.mxu0 0
    %2729 = vmatpush2.bf16.msra.mxu0 0
    %2730 = vmatprep.mubr.bf16.mxu0 0
    %2731 = vmatmul.mubr.bf16.gmra.mxu0 %v2693
    %v2732 = vpop.f32.mrf.mxu0
    %v2733 = vadd.f32 %v2614, %v2732
    %v2734 = vpop.f32.mrf.mxu0
    %v2735 = vadd.f32 %v2616, %v2734
    %v2736 = vpop.f32.mrf.mxu0
    %v2737 = vadd.f32 %v2618, %v2736
    %v2738 = vpop.f32.mrf.mxu0
    %v2739 = vadd.f32 %v2620, %v2738
    %2740 = vmatprep.mubr.bf16.mxu0 0
    %2741 = vmatmul.mubr.bf16.gmra.mxu0 %v2696
    %v2742 = vpop.f32.mrf.mxu0
    %v2743 = vadd.f32 %v2624, %v2742
    %v2744 = vpop.f32.mrf.mxu0
    %v2745 = vadd.f32 %v2626, %v2744
    %v2746 = vpop.f32.mrf.mxu0
    %v2747 = vadd.f32 %v2628, %v2746
    %v2748 = vpop.f32.mrf.mxu0
    %v2749 = vadd.f32 %v2630, %v2748
    %2750 = vdwg.mxu0
    %s2751 = scalar_lea.vmem %s17, 32
    %v2752 = vld [vmem:[%s2751] sm:$0xf]
    %v2753 = vld [vmem:[%s2751 + $0x4] sm:$0xf]
    %v2754 = vld [vmem:[%s2751 + $0x8] sm:$0xf]
    %v2755 = vld [vmem:[%s2751 + $0xc] sm:$0xf]
    %v2760 = vunpack.c.l.b16 %v2752
    %v2761 = vunpack.c.l.b16 %v2753
    %v2762 = vunpack.c.l.b16 %v2754
    %v2763 = vunpack.c.l.b16 %v2755
    %v2764 = vpack.c.b16 %v2761, %v2760
    %v2765 = vpack.c.b16 %v2763, %v2762
    %v2767 = vsel %vm461, %v2764, 0
    %v2770 = vsel %vm461, %v2765, 0
    %2772 = vmatprep.subr.bf16.mxu0 0
    %2773 = vmatpush1.bf16.msra.mxu0 0
    %2774 = vmatprep.subr.bf16.mxu0 0
    %2775 = vmatpush1.bf16.msra.mxu0 0
    %2776 = vmatprep.subr.bf16.mxu0 0
    %2777 = vmatpush1.bf16.msra.mxu0 0
    %2778 = vmatprep.subr.bf16.mxu0 0
    %2779 = vmatpush1.bf16.msra.mxu0 0
    %2780 = vmatprep.subr.bf16.mxu0 0
    %2781 = vmatpush1.bf16.msra.mxu0 %v2344
    %2782 = vmatprep.subr.bf16.mxu0 0
    %2783 = vmatpush1.bf16.msra.mxu0 %v2343
    %2784 = vmatprep.subr.bf16.mxu0 0
    %2785 = vmatpush1.bf16.msra.mxu0 %v2342
    %2786 = vmatprep.subr.bf16.mxu0 0
    %2787 = vmatpush1.bf16.msra.mxu0 %v2341
    %2788 = vmatprep.subr.bf16.mxu0 0
    %2789 = vmatpush2.bf16.msra.mxu0 0
    %2790 = vmatprep.subr.bf16.mxu0 0
    %2791 = vmatpush2.bf16.msra.mxu0 0
    %2792 = vmatprep.subr.bf16.mxu0 0
    %2793 = vmatpush2.bf16.msra.mxu0 0
    %2794 = vmatprep.subr.bf16.mxu0 0
    %2795 = vmatpush2.bf16.msra.mxu0 0
    %2796 = vmatprep.subr.bf16.mxu0 0
    %2797 = vmatpush2.bf16.msra.mxu0 0
    %2798 = vmatprep.subr.bf16.mxu0 0
    %2799 = vmatpush2.bf16.msra.mxu0 0
    %2800 = vmatprep.subr.bf16.mxu0 0
    %2801 = vmatpush2.bf16.msra.mxu0 0
    %2802 = vmatprep.subr.bf16.mxu0 0
    %2803 = vmatpush2.bf16.msra.mxu0 0
    %2804 = vmatprep.mubr.bf16.mxu0 0
    %2805 = vmatmul.mubr.bf16.gmra.mxu0 %v2767
    %v2806 = vpop.f32.mrf.mxu0
    %v2807 = vadd.f32 0.0, %v2806
    %v2808 = vpop.f32.mrf.mxu0
    %v2809 = vpop.f32.mrf.mxu0
    %v2810 = vadd.f32 0.0, %v2809
    %v2811 = vpop.f32.mrf.mxu0
    %2812 = vmatprep.mubr.bf16.mxu0 0
    %2813 = vmatmul.mubr.bf16.gmra.mxu0 %v2770
    %v2814 = vpop.f32.mrf.mxu0
    %v2815 = vadd.f32 0.0, %v2814
    %v2816 = vpop.f32.mrf.mxu0
    %v2817 = vpop.f32.mrf.mxu0
    %v2818 = vadd.f32 0.0, %v2817
    %v2819 = vpop.f32.mrf.mxu0
    %2820 = vdwg.mxu0
    %v2821 = vpack.c.bf16 %v2810, %v2807
    %v2822 = vpack.c.bf16 %v2818, %v2815
    %s2823 = scalar_lea.vmem %s19, 192
    %v2824 = vld [vmem:[%s2823] sm:$0xff]
    %v2825 = vld [vmem:[%s2823 + $0x8] sm:$0xff]
    %v2826 = vld [vmem:[%s2823 + $0x10] sm:$0xff]
    %v2827 = vld [vmem:[%s2823 + $0x18] sm:$0xff]
    %v2828 = vld [vmem:[%s2823 + $0x20] sm:$0xff]
    %v2829 = vld [vmem:[%s2823 + $0x28] sm:$0xff]
    %v2830 = vld [vmem:[%s2823 + $0x30] sm:$0xff]
    %v2831 = vld [vmem:[%s2823 + $0x38] sm:$0xff]
    %v2832 = vld [vmem:[%s2823 + $0x40] sm:$0xff]
    %v2833 = vld [vmem:[%s2823 + $0x48] sm:$0xff]
    %v2834 = vld [vmem:[%s2823 + $0x50] sm:$0xff]
    %v2835 = vld [vmem:[%s2823 + $0x58] sm:$0xff]
    %v2848 = vunpack.c.l.b16 %v2824
    %v2849 = vunpack.c.h.b16 %v2824
    %v2850 = vunpack.c.l.b16 %v2825
    %v2851 = vunpack.c.h.b16 %v2825
    %v2852 = vunpack.c.l.b16 %v2826
    %v2853 = vunpack.c.h.b16 %v2826
    %v2854 = vunpack.c.l.b16 %v2827
    %v2855 = vunpack.c.h.b16 %v2827
    %v2856 = vunpack.c.l.b16 %v2828
    %v2857 = vunpack.c.h.b16 %v2828
    %v2858 = vunpack.c.l.b16 %v2829
    %v2859 = vunpack.c.h.b16 %v2829
    %v2860 = vunpack.c.l.b16 %v2830
    %v2861 = vunpack.c.h.b16 %v2830
    %v2862 = vunpack.c.l.b16 %v2831
    %v2863 = vunpack.c.h.b16 %v2831
    %v2864 = vunpack.c.l.b16 %v2832
    %v2865 = vunpack.c.h.b16 %v2832
    %v2866 = vunpack.c.l.b16 %v2833
    %v2867 = vunpack.c.h.b16 %v2833
    %v2868 = vunpack.c.l.b16 %v2834
    %v2869 = vunpack.c.h.b16 %v2834
    %v2870 = vunpack.c.l.b16 %v2835
    %v2871 = vunpack.c.h.b16 %v2835
    %v2872 = vpack.c.b16 %v2850, %v2848
    %v2873 = vpack.c.b16 %v2851, %v2849
    %v2874 = vpack.c.b16 %v2854, %v2852
    %v2875 = vpack.c.b16 %v2855, %v2853
    %v2876 = vpack.c.b16 %v2858, %v2856
    %v2877 = vpack.c.b16 %v2859, %v2857
    %v2878 = vpack.c.b16 %v2862, %v2860
    %v2879 = vpack.c.b16 %v2863, %v2861
    %v2880 = vpack.c.b16 %v2866, %v2864
    %v2881 = vpack.c.b16 %v2867, %v2865
    %v2882 = vpack.c.b16 %v2870, %v2868
    %v2883 = vpack.c.b16 %v2871, %v2869
    %v2897 = vsel %vm738, %v2821, 0
    %v2900 = vsel %vm738, %v2822, 0
    %2902 = vmatprep.subr.bf16.mxu0 0
    %2903 = vmatpush1.bf16.msra.mxu0 0
    %2904 = vmatprep.subr.bf16.mxu0 0
    %2905 = vmatpush1.bf16.msra.mxu0 0
    %2906 = vmatprep.subr.bf16.mxu0 %v2883
    %2907 = vmatpush1.bf16.msra.mxu0 %v2882
    %2908 = vmatprep.subr.bf16.mxu0 %v2881
    %2909 = vmatpush1.bf16.msra.mxu0 %v2880
    %2910 = vmatprep.subr.bf16.mxu0 %v2879
    %2911 = vmatpush1.bf16.msra.mxu0 %v2878
    %2912 = vmatprep.subr.bf16.mxu0 %v2877
    %2913 = vmatpush1.bf16.msra.mxu0 %v2876
    %2914 = vmatprep.subr.bf16.mxu0 %v2875
    %2915 = vmatpush1.bf16.msra.mxu0 %v2874
    %2916 = vmatprep.subr.bf16.mxu0 %v2873
    %2917 = vmatpush1.bf16.msra.mxu0 %v2872
    %2918 = vmatprep.subr.bf16.mxu0 0
    %2919 = vmatpush2.bf16.msra.mxu0 0
    %2920 = vmatprep.subr.bf16.mxu0 0
    %2921 = vmatpush2.bf16.msra.mxu0 0
    %2922 = vmatprep.subr.bf16.mxu0 0
    %2923 = vmatpush2.bf16.msra.mxu0 0
    %2924 = vmatprep.subr.bf16.mxu0 0
    %2925 = vmatpush2.bf16.msra.mxu0 0
    %2926 = vmatprep.subr.bf16.mxu0 0
    %2927 = vmatpush2.bf16.msra.mxu0 0
    %2928 = vmatprep.subr.bf16.mxu0 0
    %2929 = vmatpush2.bf16.msra.mxu0 0
    %2930 = vmatprep.subr.bf16.mxu0 0
    %2931 = vmatpush2.bf16.msra.mxu0 0
    %2932 = vmatprep.subr.bf16.mxu0 0
    %2933 = vmatpush2.bf16.msra.mxu0 0
    %2934 = vmatprep.mubr.bf16.mxu0 0
    %2935 = vmatmul.mubr.bf16.gmra.mxu0 %v2897
    %v2936 = vpop.f32.mrf.mxu0
    %v2937 = vadd.f32 0.0, %v2936
    %v2938 = vpop.f32.mrf.mxu0
    %v2939 = vadd.f32 0.0, %v2938
    %v2940 = vpop.f32.mrf.mxu0
    %v2941 = vadd.f32 0.0, %v2940
    %v2942 = vpop.f32.mrf.mxu0
    %v2943 = vadd.f32 0.0, %v2942
    %2944 = vmatprep.mubr.bf16.mxu0 0
    %2945 = vmatmul.mubr.bf16.gmra.mxu0 %v2900
    %v2946 = vpop.f32.mrf.mxu0
    %v2947 = vadd.f32 0.0, %v2946
    %v2948 = vpop.f32.mrf.mxu0
    %v2949 = vadd.f32 0.0, %v2948
    %v2950 = vpop.f32.mrf.mxu0
    %v2951 = vadd.f32 0.0, %v2950
    %v2952 = vpop.f32.mrf.mxu0
    %v2953 = vadd.f32 0.0, %v2952
    %2954 = vdwg.mxu0
    %v2955 = vadd.f32 %v2733, %v2937
    %v2956 = vadd.f32 %v2735, %v2939
    %v2957 = vadd.f32 %v2737, %v2941
    %v2958 = vadd.f32 %v2739, %v2943
    %v2959 = vadd.f32 %v2743, %v2947
    %v2960 = vadd.f32 %v2745, %v2949
    %v2961 = vadd.f32 %v2747, %v2951
    %v2962 = vadd.f32 %v2749, %v2953
    %v2963 = vld [vmem:[#allocation7] sm:$0x3]
    %v2965 = vlaneseq
    %v2966 = vshrl.u32 %v2965, 7
    %v2967 = vsub.s32 0, %v2966
    %v2968 = vrot.slane %v2963, %v2967
    %v2969 = vlaneseq
    %v2970 = vshrl.u32 %v2969, 7
    %v2971 = vsub.s32 1, %v2970
    %v2972 = vrot.slane %v2963, %v2971
    %v2975 = vadd.f32 %v2955, %v2968
    %v2976 = vadd.f32 %v2956, %v2972
    %v2977 = vadd.f32 %v2957, %v2968
    %v2978 = vadd.f32 %v2958, %v2972
    %v2979 = vadd.f32 %v2959, %v2968
    %v2980 = vadd.f32 %v2960, %v2972
    %v2981 = vadd.f32 %v2961, %v2968
    %v2982 = vadd.f32 %v2962, %v2972
    %v2983 = vmax.f32 %v2975, 0.0
    %v2984 = vmax.f32 %v2976, 0.0
    %v2985 = vmax.f32 %v2977, 0.0
    %v2986 = vmax.f32 %v2978, 0.0
    %v2987 = vmax.f32 %v2979, 0.0
    %v2988 = vmax.f32 %v2980, 0.0
    %v2989 = vmax.f32 %v2981, 0.0
    %v2990 = vmax.f32 %v2982, 0.0
    %v2991 = vpack.c.bf16 %v2985, %v2983
    %v2992 = vpack.c.bf16 %v2986, %v2984
    %v2993 = vpack.c.bf16 %v2989, %v2987
    %v2994 = vpack.c.bf16 %v2990, %v2988
    %v2995 = vld [vmem:[#allocation9] sm:$0xf]
    %v2996 = vld [vmem:[#allocation9 + $0x4] sm:$0xf]
    %v2999 = vunpack.c.l.b16 %v2995
    %v3000 = vunpack.c.l.b16 %v2996
    %v3001 = vpack.c.b16 %v3000, %v2999
    %vm3002 = vcmask 261120
    %v3004 = vsel %vm3002, %v3001, 0
    %3006 = vmatprep.subr.bf16.mxu0 0
    %3007 = vmatpush1.bf16.msra.mxu0 0
    %3008 = vmatprep.subr.bf16.mxu0 0
    %3009 = vmatpush1.bf16.msra.mxu0 0
    %3010 = vmatprep.subr.bf16.mxu0 0
    %3011 = vmatpush1.bf16.msra.mxu0 0
    %3012 = vmatprep.subr.bf16.mxu0 0
    %3013 = vmatpush1.bf16.msra.mxu0 0
    %3014 = vmatprep.subr.bf16.mxu0 0
    %3015 = vmatpush1.bf16.msra.mxu0 0
    %3016 = vmatprep.subr.bf16.mxu0 0
    %3017 = vmatpush1.bf16.msra.mxu0 0
    %3018 = vmatprep.subr.bf16.mxu0 %v2994
    %3019 = vmatpush1.bf16.msra.mxu0 %v2993
    %3020 = vmatprep.subr.bf16.mxu0 %v2992
    %3021 = vmatpush1.bf16.msra.mxu0 %v2991
    %3022 = vmatprep.subr.bf16.mxu0 0
    %3023 = vmatpush2.bf16.msra.mxu0 0
    %3024 = vmatprep.subr.bf16.mxu0 0
    %3025 = vmatpush2.bf16.msra.mxu0 0
    %3026 = vmatprep.subr.bf16.mxu0 0
    %3027 = vmatpush2.bf16.msra.mxu0 0
    %3028 = vmatprep.subr.bf16.mxu0 0
    %3029 = vmatpush2.bf16.msra.mxu0 0
    %3030 = vmatprep.subr.bf16.mxu0 0
    %3031 = vmatpush2.bf16.msra.mxu0 0
    %3032 = vmatprep.subr.bf16.mxu0 0
    %3033 = vmatpush2.bf16.msra.mxu0 0
    %3034 = vmatprep.subr.bf16.mxu0 0
    %3035 = vmatpush2.bf16.msra.mxu0 0
    %3036 = vmatprep.subr.bf16.mxu0 0
    %3037 = vmatpush2.bf16.msra.mxu0 0
    %3038 = vmatprep.mubr.bf16.mxu0 0
    %3039 = vmatmul.mubr.bf16.gmra.mxu0 %v3004
    %v3040 = vpop.f32.mrf.mxu0
    %v3041 = vadd.f32 0.0, %v3040
    %v3042 = vpop.f32.mrf.mxu0
    %v3043 = vadd.f32 0.0, %v3042
    %v3044 = vpop.f32.mrf.mxu0
    %v3045 = vadd.f32 0.0, %v3044
    %v3046 = vpop.f32.mrf.mxu0
    %v3047 = vadd.f32 0.0, %v3046
    %3048 = vdwg.mxu0
    %v3049 = vpack.c.bf16 %v3045, %v3041
    %v3050 = vpack.c.bf16 %v3047, %v3043
    %v3051 = vld [vmem:[%s25] sm:$0xf]
    %v3052 = vld [vmem:[%s25 + $0x4] sm:$0xf]
    %v3053 = vld [vmem:[%s25 + $0x8] sm:$0xf]
    %v3054 = vld [vmem:[%s25 + $0xc] sm:$0xf]
    %v3055 = vld [vmem:[%s25 + $0x10] sm:$0xf]
    %v3056 = vld [vmem:[%s25 + $0x14] sm:$0xf]
    %v3057 = vld [vmem:[%s25 + $0x18] sm:$0xf]
    %v3058 = vld [vmem:[%s25 + $0x1c] sm:$0xf]
    %v3059 = vld [vmem:[%s25 + $0x20] sm:$0xf]
    %v3060 = vld [vmem:[%s25 + $0x24] sm:$0xf]
    %v3061 = vld [vmem:[%s25 + $0x28] sm:$0xf]
    %v3062 = vld [vmem:[%s25 + $0x2c] sm:$0xf]
    %v3063 = vld [vmem:[%s25 + $0x30] sm:$0xf]
    %v3064 = vld [vmem:[%s25 + $0x34] sm:$0xf]
    %v3065 = vld [vmem:[%s25 + $0x38] sm:$0xf]
    %v3066 = vld [vmem:[%s25 + $0x3c] sm:$0xf]
    %v3067 = vld [vmem:[%s25 + $0x40] sm:$0xf]
    %v3068 = vld [vmem:[%s25 + $0x44] sm:$0xf]
    %v3069 = vld [vmem:[%s25 + $0x48] sm:$0xf]
    %v3070 = vld [vmem:[%s25 + $0x4c] sm:$0xf]
    %v3071 = vld [vmem:[%s25 + $0x50] sm:$0xf]
    %v3072 = vld [vmem:[%s25 + $0x54] sm:$0xf]
    %v3073 = vld [vmem:[%s25 + $0x58] sm:$0xf]
    %v3074 = vld [vmem:[%s25 + $0x5c] sm:$0xf]
    %s3075 = scalar_lea.vmem [#allocation9], 8
    %v3076 = vld [vmem:[%s3075] sm:$0xf]
    %v3077 = vld [vmem:[%s3075 + $0x4] sm:$0xf]
    %v3080 = vunpack.c.l.b16 %v3076
    %v3081 = vunpack.c.l.b16 %v3077
    %v3082 = vpack.c.b16 %v3081, %v3080
    %v3084 = vsel %vm3002, %v3082, 0
    %3086 = vmatprep.subr.bf16.mxu0 0
    %3087 = vmatpush1.bf16.msra.mxu0 0
    %3088 = vmatprep.subr.bf16.mxu0 0
    %3089 = vmatpush1.bf16.msra.mxu0 0
    %3090 = vmatprep.subr.bf16.mxu0 0
    %3091 = vmatpush1.bf16.msra.mxu0 0
    %3092 = vmatprep.subr.bf16.mxu0 0
    %3093 = vmatpush1.bf16.msra.mxu0 0
    %3094 = vmatprep.subr.bf16.mxu0 0
    %3095 = vmatpush1.bf16.msra.mxu0 0
    %3096 = vmatprep.subr.bf16.mxu0 0
    %3097 = vmatpush1.bf16.msra.mxu0 0
    %3098 = vmatprep.subr.bf16.mxu0 %v2994
    %3099 = vmatpush1.bf16.msra.mxu0 %v2993
    %3100 = vmatprep.subr.bf16.mxu0 %v2992
    %3101 = vmatpush1.bf16.msra.mxu0 %v2991
    %3102 = vmatprep.subr.bf16.mxu0 0
    %3103 = vmatpush2.bf16.msra.mxu0 0
    %3104 = vmatprep.subr.bf16.mxu0 0
    %3105 = vmatpush2.bf16.msra.mxu0 0
    %3106 = vmatprep.subr.bf16.mxu0 0
    %3107 = vmatpush2.bf16.msra.mxu0 0
    %3108 = vmatprep.subr.bf16.mxu0 0
    %3109 = vmatpush2.bf16.msra.mxu0 0
    %3110 = vmatprep.subr.bf16.mxu0 0
    %3111 = vmatpush2.bf16.msra.mxu0 0
    %3112 = vmatprep.subr.bf16.mxu0 0
    %3113 = vmatpush2.bf16.msra.mxu0 0
    %3114 = vmatprep.subr.bf16.mxu0 0
    %3115 = vmatpush2.bf16.msra.mxu0 0
    %3116 = vmatprep.subr.bf16.mxu0 0
    %3117 = vmatpush2.bf16.msra.mxu0 0
    %3118 = vmatprep.mubr.bf16.mxu0 0
    %3119 = vmatmul.mubr.bf16.gmra.mxu0 %v3084
    %v3120 = vpop.f32.mrf.mxu0
    %v3121 = vadd.f32 0.0, %v3120
    %v3122 = vpop.f32.mrf.mxu0
    %v3123 = vadd.f32 0.0, %v3122
    %v3124 = vpop.f32.mrf.mxu0
    %v3125 = vadd.f32 0.0, %v3124
    %v3126 = vpop.f32.mrf.mxu0
    %v3127 = vadd.f32 0.0, %v3126
    %3128 = vdwg.mxu0
    %v3129 = vpack.c.bf16 %v3125, %v3121
    %v3130 = vpack.c.bf16 %v3127, %v3123
    %s3131 = scalar_lea.vmem %s25, 96
    %v3132 = vld [vmem:[%s3131] sm:$0xf]
    %v3133 = vld [vmem:[%s3131 + $0x4] sm:$0xf]
    %v3134 = vld [vmem:[%s3131 + $0x8] sm:$0xf]
    %v3135 = vld [vmem:[%s3131 + $0xc] sm:$0xf]
    %v3136 = vld [vmem:[%s3131 + $0x10] sm:$0xf]
    %v3137 = vld [vmem:[%s3131 + $0x14] sm:$0xf]
    %v3138 = vld [vmem:[%s3131 + $0x18] sm:$0xf]
    %v3139 = vld [vmem:[%s3131 + $0x1c] sm:$0xf]
    %v3140 = vld [vmem:[%s3131 + $0x20] sm:$0xf]
    %v3141 = vld [vmem:[%s3131 + $0x24] sm:$0xf]
    %v3142 = vld [vmem:[%s3131 + $0x28] sm:$0xf]
    %v3143 = vld [vmem:[%s3131 + $0x2c] sm:$0xf]
    %v3144 = vld [vmem:[%s3131 + $0x30] sm:$0xf]
    %v3145 = vld [vmem:[%s3131 + $0x34] sm:$0xf]
    %v3146 = vld [vmem:[%s3131 + $0x38] sm:$0xf]
    %v3147 = vld [vmem:[%s3131 + $0x3c] sm:$0xf]
    %v3148 = vld [vmem:[%s3131 + $0x40] sm:$0xf]
    %v3149 = vld [vmem:[%s3131 + $0x44] sm:$0xf]
    %v3150 = vld [vmem:[%s3131 + $0x48] sm:$0xf]
    %v3151 = vld [vmem:[%s3131 + $0x4c] sm:$0xf]
    %v3152 = vld [vmem:[%s3131 + $0x50] sm:$0xf]
    %v3153 = vld [vmem:[%s3131 + $0x54] sm:$0xf]
    %v3154 = vld [vmem:[%s3131 + $0x58] sm:$0xf]
    %v3155 = vld [vmem:[%s3131 + $0x5c] sm:$0xf]
    %v3180 = vunpack.c.l.b16 %v3132
    %v3181 = vunpack.c.l.b16 %v3133
    %v3182 = vunpack.c.l.b16 %v3134
    %v3183 = vunpack.c.l.b16 %v3135
    %v3184 = vunpack.c.l.b16 %v3136
    %v3185 = vunpack.c.l.b16 %v3137
    %v3186 = vunpack.c.l.b16 %v3138
    %v3187 = vunpack.c.l.b16 %v3139
    %v3188 = vunpack.c.l.b16 %v3140
    %v3189 = vunpack.c.l.b16 %v3141
    %v3190 = vunpack.c.l.b16 %v3142
    %v3191 = vunpack.c.l.b16 %v3143
    %v3192 = vunpack.c.l.b16 %v3144
    %v3193 = vunpack.c.l.b16 %v3145
    %v3194 = vunpack.c.l.b16 %v3146
    %v3195 = vunpack.c.l.b16 %v3147
    %v3196 = vunpack.c.l.b16 %v3148
    %v3197 = vunpack.c.l.b16 %v3149
    %v3198 = vunpack.c.l.b16 %v3150
    %v3199 = vunpack.c.l.b16 %v3151
    %v3200 = vunpack.c.l.b16 %v3152
    %v3201 = vunpack.c.l.b16 %v3153
    %v3202 = vunpack.c.l.b16 %v3154
    %v3203 = vunpack.c.l.b16 %v3155
    %v3204 = vpack.c.b16 %v3181, %v3180
    %v3205 = vpack.c.b16 %v3183, %v3182
    %v3206 = vpack.c.b16 %v3185, %v3184
    %v3207 = vpack.c.b16 %v3187, %v3186
    %v3208 = vpack.c.b16 %v3189, %v3188
    %v3209 = vpack.c.b16 %v3191, %v3190
    %v3210 = vpack.c.b16 %v3193, %v3192
    %v3211 = vpack.c.b16 %v3195, %v3194
    %v3212 = vpack.c.b16 %v3197, %v3196
    %v3213 = vpack.c.b16 %v3199, %v3198
    %v3214 = vpack.c.b16 %v3201, %v3200
    %v3215 = vpack.c.b16 %v3203, %v3202
    %v3229 = vsel %vm461, %v3130, 0
    %3231 = vmatprep.subr.bf16.mxu0 0
    %3232 = vmatpush1.bf16.msra.mxu0 %v3211
    %3233 = vmatprep.subr.bf16.mxu0 0
    %3234 = vmatpush1.bf16.msra.mxu0 %v3210
    %3235 = vmatprep.subr.bf16.mxu0 0
    %3236 = vmatpush1.bf16.msra.mxu0 %v3209
    %3237 = vmatprep.subr.bf16.mxu0 0
    %3238 = vmatpush1.bf16.msra.mxu0 %v3208
    %3239 = vmatprep.subr.bf16.mxu0 0
    %3240 = vmatpush1.bf16.msra.mxu0 %v3207
    %3241 = vmatprep.subr.bf16.mxu0 0
    %3242 = vmatpush1.bf16.msra.mxu0 %v3206
    %3243 = vmatprep.subr.bf16.mxu0 0
    %3244 = vmatpush1.bf16.msra.mxu0 %v3205
    %3245 = vmatprep.subr.bf16.mxu0 0
    %3246 = vmatpush1.bf16.msra.mxu0 %v3204
    %3247 = vmatprep.subr.bf16.mxu0 0
    %3248 = vmatpush2.bf16.msra.mxu0 0
    %3249 = vmatprep.subr.bf16.mxu0 0
    %3250 = vmatpush2.bf16.msra.mxu0 0
    %3251 = vmatprep.subr.bf16.mxu0 0
    %3252 = vmatpush2.bf16.msra.mxu0 0
    %3253 = vmatprep.subr.bf16.mxu0 0
    %3254 = vmatpush2.bf16.msra.mxu0 0
    %3255 = vmatprep.subr.bf16.mxu0 0
    %3256 = vmatpush2.bf16.msra.mxu0 %v3215
    %3257 = vmatprep.subr.bf16.mxu0 0
    %3258 = vmatpush2.bf16.msra.mxu0 %v3214
    %3259 = vmatprep.subr.bf16.mxu0 0
    %3260 = vmatpush2.bf16.msra.mxu0 %v3213
    %3261 = vmatprep.subr.bf16.mxu0 0
    %3262 = vmatpush2.bf16.msra.mxu0 %v3212
    %3263 = vmatprep.mubr.bf16.mxu0 %v3229
    %3264 = vmatmul.mubr.bf16.gmra.mxu0 %v3129
    %v3265 = vpop.f32.mrf.mxu0
    %v3266 = vadd.f32 0.0, %v3265
    %v3267 = vpop.f32.mrf.mxu0
    %v3268 = vpop.f32.mrf.mxu0
    %v3269 = vadd.f32 0.0, %v3268
    %v3270 = vpop.f32.mrf.mxu0
    %3271 = vdwg.mxu0
    %v3296 = vunpack.c.l.b16 %v3051
    %v3297 = vunpack.c.l.b16 %v3052
    %v3298 = vunpack.c.l.b16 %v3053
    %v3299 = vunpack.c.l.b16 %v3054
    %v3300 = vunpack.c.l.b16 %v3055
    %v3301 = vunpack.c.l.b16 %v3056
    %v3302 = vunpack.c.l.b16 %v3057
    %v3303 = vunpack.c.l.b16 %v3058
    %v3304 = vunpack.c.l.b16 %v3059
    %v3305 = vunpack.c.l.b16 %v3060
    %v3306 = vunpack.c.l.b16 %v3061
    %v3307 = vunpack.c.l.b16 %v3062
    %v3308 = vunpack.c.l.b16 %v3063
    %v3309 = vunpack.c.l.b16 %v3064
    %v3310 = vunpack.c.l.b16 %v3065
    %v3311 = vunpack.c.l.b16 %v3066
    %v3312 = vunpack.c.l.b16 %v3067
    %v3313 = vunpack.c.l.b16 %v3068
    %v3314 = vunpack.c.l.b16 %v3069
    %v3315 = vunpack.c.l.b16 %v3070
    %v3316 = vunpack.c.l.b16 %v3071
    %v3317 = vunpack.c.l.b16 %v3072
    %v3318 = vunpack.c.l.b16 %v3073
    %v3319 = vunpack.c.l.b16 %v3074
    %v3320 = vpack.c.b16 %v3297, %v3296
    %v3321 = vpack.c.b16 %v3299, %v3298
    %v3322 = vpack.c.b16 %v3301, %v3300
    %v3323 = vpack.c.b16 %v3303, %v3302
    %v3324 = vpack.c.b16 %v3305, %v3304
    %v3325 = vpack.c.b16 %v3307, %v3306
    %v3326 = vpack.c.b16 %v3309, %v3308
    %v3327 = vpack.c.b16 %v3311, %v3310
    %v3328 = vpack.c.b16 %v3313, %v3312
    %v3329 = vpack.c.b16 %v3315, %v3314
    %v3330 = vpack.c.b16 %v3317, %v3316
    %v3331 = vpack.c.b16 %v3319, %v3318
    %v3345 = vsel %vm461, %v3050, 0
    %3347 = vmatprep.subr.bf16.mxu0 0
    %3348 = vmatpush1.bf16.msra.mxu0 %v3327
    %3349 = vmatprep.subr.bf16.mxu0 0
    %3350 = vmatpush1.bf16.msra.mxu0 %v3326
    %3351 = vmatprep.subr.bf16.mxu0 0
    %3352 = vmatpush1.bf16.msra.mxu0 %v3325
    %3353 = vmatprep.subr.bf16.mxu0 0
    %3354 = vmatpush1.bf16.msra.mxu0 %v3324
    %3355 = vmatprep.subr.bf16.mxu0 0
    %3356 = vmatpush1.bf16.msra.mxu0 %v3323
    %3357 = vmatprep.subr.bf16.mxu0 0
    %3358 = vmatpush1.bf16.msra.mxu0 %v3322
    %3359 = vmatprep.subr.bf16.mxu0 0
    %3360 = vmatpush1.bf16.msra.mxu0 %v3321
    %3361 = vmatprep.subr.bf16.mxu0 0
    %3362 = vmatpush1.bf16.msra.mxu0 %v3320
    %3363 = vmatprep.subr.bf16.mxu0 0
    %3364 = vmatpush2.bf16.msra.mxu0 0
    %3365 = vmatprep.subr.bf16.mxu0 0
    %3366 = vmatpush2.bf16.msra.mxu0 0
    %3367 = vmatprep.subr.bf16.mxu0 0
    %3368 = vmatpush2.bf16.msra.mxu0 0
    %3369 = vmatprep.subr.bf16.mxu0 0
    %3370 = vmatpush2.bf16.msra.mxu0 0
    %3371 = vmatprep.subr.bf16.mxu0 0
    %3372 = vmatpush2.bf16.msra.mxu0 %v3331
    %3373 = vmatprep.subr.bf16.mxu0 0
    %3374 = vmatpush2.bf16.msra.mxu0 %v3330
    %3375 = vmatprep.subr.bf16.mxu0 0
    %3376 = vmatpush2.bf16.msra.mxu0 %v3329
    %3377 = vmatprep.subr.bf16.mxu0 0
    %3378 = vmatpush2.bf16.msra.mxu0 %v3328
    %3379 = vmatprep.mubr.bf16.mxu0 %v3345
    %3380 = vmatmul.mubr.bf16.gmra.mxu0 %v3049
    %v3381 = vpop.f32.mrf.mxu0
    %v3382 = vadd.f32 %v3266, %v3381
    %v3383 = vpop.f32.mrf.mxu0
    %v3384 = vpop.f32.mrf.mxu0
    %v3385 = vadd.f32 %v3269, %v3384
    %v3386 = vpop.f32.mrf.mxu0
    %3387 = vdwg.mxu0
    %s3388 = scalar_lea.vmem [#allocation9], 16
    %v3389 = vld [vmem:[%s3388] sm:$0xf]
    %v3390 = vld [vmem:[%s3388 + $0x4] sm:$0xf]
    %v3393 = vunpack.c.l.b16 %v3389
    %v3394 = vunpack.c.l.b16 %v3390
    %v3395 = vpack.c.b16 %v3394, %v3393
    %v3397 = vsel %vm3002, %v3395, 0
    %3399 = vmatprep.subr.bf16.mxu0 0
    %3400 = vmatpush1.bf16.msra.mxu0 0
    %3401 = vmatprep.subr.bf16.mxu0 0
    %3402 = vmatpush1.bf16.msra.mxu0 0
    %3403 = vmatprep.subr.bf16.mxu0 0
    %3404 = vmatpush1.bf16.msra.mxu0 0
    %3405 = vmatprep.subr.bf16.mxu0 0
    %3406 = vmatpush1.bf16.msra.mxu0 0
    %3407 = vmatprep.subr.bf16.mxu0 0
    %3408 = vmatpush1.bf16.msra.mxu0 0
    %3409 = vmatprep.subr.bf16.mxu0 0
    %3410 = vmatpush1.bf16.msra.mxu0 0
    %3411 = vmatprep.subr.bf16.mxu0 %v2994
    %3412 = vmatpush1.bf16.msra.mxu0 %v2993
    %3413 = vmatprep.subr.bf16.mxu0 %v2992
    %3414 = vmatpush1.bf16.msra.mxu0 %v2991
    %3415 = vmatprep.subr.bf16.mxu0 0
    %3416 = vmatpush2.bf16.msra.mxu0 0
    %3417 = vmatprep.subr.bf16.mxu0 0
    %3418 = vmatpush2.bf16.msra.mxu0 0
    %3419 = vmatprep.subr.bf16.mxu0 0
    %3420 = vmatpush2.bf16.msra.mxu0 0
    %3421 = vmatprep.subr.bf16.mxu0 0
    %3422 = vmatpush2.bf16.msra.mxu0 0
    %3423 = vmatprep.subr.bf16.mxu0 0
    %3424 = vmatpush2.bf16.msra.mxu0 0
    %3425 = vmatprep.subr.bf16.mxu0 0
    %3426 = vmatpush2.bf16.msra.mxu0 0
    %3427 = vmatprep.subr.bf16.mxu0 0
    %3428 = vmatpush2.bf16.msra.mxu0 0
    %3429 = vmatprep.subr.bf16.mxu0 0
    %3430 = vmatpush2.bf16.msra.mxu0 0
    %3431 = vmatprep.mubr.bf16.mxu0 0
    %3432 = vmatmul.mubr.bf16.gmra.mxu0 %v3397
    %v3433 = vpop.f32.mrf.mxu0
    %v3434 = vadd.f32 0.0, %v3433
    %v3435 = vpop.f32.mrf.mxu0
    %v3436 = vadd.f32 0.0, %v3435
    %v3437 = vpop.f32.mrf.mxu0
    %v3438 = vadd.f32 0.0, %v3437
    %v3439 = vpop.f32.mrf.mxu0
    %v3440 = vadd.f32 0.0, %v3439
    %3441 = vdwg.mxu0
    %v3442 = vpack.c.bf16 %v3438, %v3434
    %v3443 = vpack.c.bf16 %v3440, %v3436
    %s3444 = scalar_lea.vmem %s25, 192
    %v3445 = vld [vmem:[%s3444] sm:$0xf]
    %v3446 = vld [vmem:[%s3444 + $0x4] sm:$0xf]
    %v3447 = vld [vmem:[%s3444 + $0x8] sm:$0xf]
    %v3448 = vld [vmem:[%s3444 + $0xc] sm:$0xf]
    %v3449 = vld [vmem:[%s3444 + $0x10] sm:$0xf]
    %v3450 = vld [vmem:[%s3444 + $0x14] sm:$0xf]
    %v3451 = vld [vmem:[%s3444 + $0x18] sm:$0xf]
    %v3452 = vld [vmem:[%s3444 + $0x1c] sm:$0xf]
    %v3453 = vld [vmem:[%s3444 + $0x20] sm:$0xf]
    %v3454 = vld [vmem:[%s3444 + $0x24] sm:$0xf]
    %v3455 = vld [vmem:[%s3444 + $0x28] sm:$0xf]
    %v3456 = vld [vmem:[%s3444 + $0x2c] sm:$0xf]
    %v3457 = vld [vmem:[%s3444 + $0x30] sm:$0xf]
    %v3458 = vld [vmem:[%s3444 + $0x34] sm:$0xf]
    %v3459 = vld [vmem:[%s3444 + $0x38] sm:$0xf]
    %v3460 = vld [vmem:[%s3444 + $0x3c] sm:$0xf]
    %v3461 = vld [vmem:[%s3444 + $0x40] sm:$0xf]
    %v3462 = vld [vmem:[%s3444 + $0x44] sm:$0xf]
    %v3463 = vld [vmem:[%s3444 + $0x48] sm:$0xf]
    %v3464 = vld [vmem:[%s3444 + $0x4c] sm:$0xf]
    %v3465 = vld [vmem:[%s3444 + $0x50] sm:$0xf]
    %v3466 = vld [vmem:[%s3444 + $0x54] sm:$0xf]
    %v3467 = vld [vmem:[%s3444 + $0x58] sm:$0xf]
    %v3468 = vld [vmem:[%s3444 + $0x5c] sm:$0xf]
    %v3493 = vunpack.c.l.b16 %v3445
    %v3494 = vunpack.c.l.b16 %v3446
    %v3495 = vunpack.c.l.b16 %v3447
    %v3496 = vunpack.c.l.b16 %v3448
    %v3497 = vunpack.c.l.b16 %v3449
    %v3498 = vunpack.c.l.b16 %v3450
    %v3499 = vunpack.c.l.b16 %v3451
    %v3500 = vunpack.c.l.b16 %v3452
    %v3501 = vunpack.c.l.b16 %v3453
    %v3502 = vunpack.c.l.b16 %v3454
    %v3503 = vunpack.c.l.b16 %v3455
    %v3504 = vunpack.c.l.b16 %v3456
    %v3505 = vunpack.c.l.b16 %v3457
    %v3506 = vunpack.c.l.b16 %v3458
    %v3507 = vunpack.c.l.b16 %v3459
    %v3508 = vunpack.c.l.b16 %v3460
    %v3509 = vunpack.c.l.b16 %v3461
    %v3510 = vunpack.c.l.b16 %v3462
    %v3511 = vunpack.c.l.b16 %v3463
    %v3512 = vunpack.c.l.b16 %v3464
    %v3513 = vunpack.c.l.b16 %v3465
    %v3514 = vunpack.c.l.b16 %v3466
    %v3515 = vunpack.c.l.b16 %v3467
    %v3516 = vunpack.c.l.b16 %v3468
    %v3517 = vpack.c.b16 %v3494, %v3493
    %v3518 = vpack.c.b16 %v3496, %v3495
    %v3519 = vpack.c.b16 %v3498, %v3497
    %v3520 = vpack.c.b16 %v3500, %v3499
    %v3521 = vpack.c.b16 %v3502, %v3501
    %v3522 = vpack.c.b16 %v3504, %v3503
    %v3523 = vpack.c.b16 %v3506, %v3505
    %v3524 = vpack.c.b16 %v3508, %v3507
    %v3525 = vpack.c.b16 %v3510, %v3509
    %v3526 = vpack.c.b16 %v3512, %v3511
    %v3527 = vpack.c.b16 %v3514, %v3513
    %v3528 = vpack.c.b16 %v3516, %v3515
    %v3542 = vsel %vm461, %v3443, 0
    %3544 = vmatprep.subr.bf16.mxu0 0
    %3545 = vmatpush1.bf16.msra.mxu0 %v3524
    %3546 = vmatprep.subr.bf16.mxu0 0
    %3547 = vmatpush1.bf16.msra.mxu0 %v3523
    %3548 = vmatprep.subr.bf16.mxu0 0
    %3549 = vmatpush1.bf16.msra.mxu0 %v3522
    %3550 = vmatprep.subr.bf16.mxu0 0
    %3551 = vmatpush1.bf16.msra.mxu0 %v3521
    %3552 = vmatprep.subr.bf16.mxu0 0
    %3553 = vmatpush1.bf16.msra.mxu0 %v3520
    %3554 = vmatprep.subr.bf16.mxu0 0
    %3555 = vmatpush1.bf16.msra.mxu0 %v3519
    %3556 = vmatprep.subr.bf16.mxu0 0
    %3557 = vmatpush1.bf16.msra.mxu0 %v3518
    %3558 = vmatprep.subr.bf16.mxu0 0
    %3559 = vmatpush1.bf16.msra.mxu0 %v3517
    %3560 = vmatprep.subr.bf16.mxu0 0
    %3561 = vmatpush2.bf16.msra.mxu0 0
    %3562 = vmatprep.subr.bf16.mxu0 0
    %3563 = vmatpush2.bf16.msra.mxu0 0
    %3564 = vmatprep.subr.bf16.mxu0 0
    %3565 = vmatpush2.bf16.msra.mxu0 0
    %3566 = vmatprep.subr.bf16.mxu0 0
    %3567 = vmatpush2.bf16.msra.mxu0 0
    %3568 = vmatprep.subr.bf16.mxu0 0
    %3569 = vmatpush2.bf16.msra.mxu0 %v3528
    %3570 = vmatprep.subr.bf16.mxu0 0
    %3571 = vmatpush2.bf16.msra.mxu0 %v3527
    %3572 = vmatprep.subr.bf16.mxu0 0
    %3573 = vmatpush2.bf16.msra.mxu0 %v3526
    %3574 = vmatprep.subr.bf16.mxu0 0
    %3575 = vmatpush2.bf16.msra.mxu0 %v3525
    %3576 = vmatprep.mubr.bf16.mxu0 %v3542
    %3577 = vmatmul.mubr.bf16.gmra.mxu0 %v3442
    %v3578 = vpop.f32.mrf.mxu0
    %v3579 = vadd.f32 0.0, %v3578
    %v3580 = vpop.f32.mrf.mxu0
    %v3581 = vpop.f32.mrf.mxu0
    %v3582 = vadd.f32 0.0, %v3581
    %v3583 = vpop.f32.mrf.mxu0
    %3584 = vdwg.mxu0
    %v3585 = vadd.f32 %v3382, %v3579
    %v3586 = vadd.f32 %v3385, %v3582
    %v3587 = vld [vmem:[#allocation10] sm:$0x1]
    %v3589 = vlaneseq
    %v3590 = vshrl.u32 %v3589, 7
    %v3591 = vsub.s32 0, %v3590
    %v3592 = vrot.slane %v3587, %v3591
    %v3594 = vadd.f32 %v3585, %v3592
    %v3595 = vadd.f32 %v3586, %v3592
    %v3596 = vmax.f32 %v3594, 0.0
    %v3597 = vmax.f32 %v3595, 0.0
    %v3598 = vld [vmem:[%s29] sm:$0xf]
    %v3599 = vld [vmem:[%s29 + $0x4] sm:$0xf]
    %v3600 = vld [vmem:[%s29 + $0x8] sm:$0xf]
    %v3601 = vld [vmem:[%s29 + $0xc] sm:$0xf]
    %v3602 = vld [vmem:[%s29 + $0x10] sm:$0xf]
    %v3603 = vld [vmem:[%s29 + $0x14] sm:$0xf]
    %v3604 = vld [vmem:[%s29 + $0x18] sm:$0x3]
    %v3612 = vunpack.c.l.b16 %v3598
    %v3613 = vunpack.c.l.b16 %v3599
    %v3614 = vunpack.c.l.b16 %v3600
    %v3615 = vunpack.c.l.b16 %v3601
    %v3616 = vunpack.c.l.b16 %v3602
    %v3617 = vunpack.c.l.b16 %v3603
    %v3618 = vunpack.c.l.b16 %v3604
    %v3619 = vpack.c.b16 %v3613, %v3612
    %v3620 = vpack.c.b16 %v3615, %v3614
    %v3621 = vpack.c.b16 %v3617, %v3616
    %v3622 = vpack.c.b16 %v3618, %v3618
    %v3624 = vsel %vm461, %v3619, 0
    %v3627 = vsel %vm461, %v3620, 0
    %v3630 = vsel %vm461, %v3621, 0
    %v3633 = vsel %vm461, %v3622, 0
    %3635 = vmatprep.subr.bf16.mxu0 0
    %3636 = vmatpush1.bf16.msra.mxu0 0
    %3637 = vmatprep.subr.bf16.mxu0 0
    %3638 = vmatpush1.bf16.msra.mxu0 0
    %3639 = vmatprep.subr.bf16.mxu0 0
    %3640 = vmatpush1.bf16.msra.mxu0 0
    %3641 = vmatprep.subr.bf16.mxu0 0
    %3642 = vmatpush1.bf16.msra.mxu0 0
    %3643 = vmatprep.subr.bf16.mxu0 %v1304
    %3644 = vmatpush1.bf16.msra.mxu0 %v1303
    %3645 = vmatprep.subr.bf16.mxu0 %v1302
    %3646 = vmatpush1.bf16.msra.mxu0 %v1301
    %3647 = vmatprep.subr.bf16.mxu0 %v1300
    %3648 = vmatpush1.bf16.msra.mxu0 %v1299
    %3649 = vmatprep.subr.bf16.mxu0 %v1298
    %3650 = vmatpush1.bf16.msra.mxu0 %v1297
    %3651 = vmatprep.subr.bf16.mxu0 0
    %3652 = vmatpush2.bf16.msra.mxu0 0
    %3653 = vmatprep.subr.bf16.mxu0 0
    %3654 = vmatpush2.bf16.msra.mxu0 0
    %3655 = vmatprep.subr.bf16.mxu0 0
    %3656 = vmatpush2.bf16.msra.mxu0 0
    %3657 = vmatprep.subr.bf16.mxu0 0
    %3658 = vmatpush2.bf16.msra.mxu0 0
    %3659 = vmatprep.subr.bf16.mxu0 0
    %3660 = vmatpush2.bf16.msra.mxu0 0
    %3661 = vmatprep.subr.bf16.mxu0 0
    %3662 = vmatpush2.bf16.msra.mxu0 0
    %3663 = vmatprep.subr.bf16.mxu0 0
    %3664 = vmatpush2.bf16.msra.mxu0 0
    %3665 = vmatprep.subr.bf16.mxu0 0
    %3666 = vmatpush2.bf16.msra.mxu0 0
    %3667 = vmatprep.mubr.bf16.mxu0 0
    %3668 = vmatmul.mubr.bf16.gmra.mxu0 %v3624
    %v3669 = vpop.f32.mrf.mxu0
    %v3670 = vadd.f32 0.0, %v3669
    %v3671 = vpop.f32.mrf.mxu0
    %v3672 = vadd.f32 0.0, %v3671
    %v3673 = vpop.f32.mrf.mxu0
    %v3674 = vadd.f32 0.0, %v3673
    %v3675 = vpop.f32.mrf.mxu0
    %v3676 = vadd.f32 0.0, %v3675
    %3677 = vmatprep.mubr.bf16.mxu0 0
    %3678 = vmatmul.mubr.bf16.gmra.mxu0 %v3627
    %v3679 = vpop.f32.mrf.mxu0
    %v3680 = vadd.f32 0.0, %v3679
    %v3681 = vpop.f32.mrf.mxu0
    %v3682 = vadd.f32 0.0, %v3681
    %v3683 = vpop.f32.mrf.mxu0
    %v3684 = vadd.f32 0.0, %v3683
    %v3685 = vpop.f32.mrf.mxu0
    %v3686 = vadd.f32 0.0, %v3685
    %3687 = vmatprep.mubr.bf16.mxu0 0
    %3688 = vmatmul.mubr.bf16.gmra.mxu0 %v3630
    %v3689 = vpop.f32.mrf.mxu0
    %v3690 = vadd.f32 0.0, %v3689
    %v3691 = vpop.f32.mrf.mxu0
    %v3692 = vadd.f32 0.0, %v3691
    %v3693 = vpop.f32.mrf.mxu0
    %v3694 = vadd.f32 0.0, %v3693
    %v3695 = vpop.f32.mrf.mxu0
    %v3696 = vadd.f32 0.0, %v3695
    %3697 = vmatprep.mubr.bf16.mxu0 0
    %3698 = vmatmul.mubr.bf16.gmra.mxu0 %v3633
    %v3699 = vpop.f32.mrf.mxu0
    %v3700 = vadd.f32 0.0, %v3699
    %v3701 = vpop.f32.mrf.mxu0
    %v3702 = vadd.f32 0.0, %v3701
    %v3703 = vpop.f32.mrf.mxu0
    %v3704 = vpop.f32.mrf.mxu0
    %3705 = vdwg.mxu0
    %v3706 = vpack.c.bf16 %v3674, %v3670
    %v3707 = vpack.c.bf16 %v3676, %v3672
    %v3708 = vpack.c.bf16 %v3684, %v3680
    %v3709 = vpack.c.bf16 %v3686, %v3682
    %v3710 = vpack.c.bf16 %v3694, %v3690
    %v3711 = vpack.c.bf16 %v3696, %v3692
    %v3712 = vpack.c.bf16 %v3700, %v3700
    %v3713 = vpack.c.bf16 %v3702, %v3702
    %v3714 = vld [vmem:[%s31] sm:$0xf]
    %v3715 = vld [vmem:[%s31 + $0x4] sm:$0xf]
    %v3716 = vld [vmem:[%s31 + $0x8] sm:$0xf]
    %v3717 = vld [vmem:[%s31 + $0xc] sm:$0xf]
    %v3718 = vld [vmem:[%s31 + $0x10] sm:$0xf]
    %v3719 = vld [vmem:[%s31 + $0x14] sm:$0xf]
    %v3720 = vld [vmem:[%s31 + $0x18] sm:$0xf]
    %v3721 = vld [vmem:[%s31 + $0x1c] sm:$0xf]
    %v3722 = vld [vmem:[%s31 + $0x20] sm:$0xf]
    %v3723 = vld [vmem:[%s31 + $0x24] sm:$0xf]
    %v3724 = vld [vmem:[%s31 + $0x28] sm:$0xf]
    %v3725 = vld [vmem:[%s31 + $0x2c] sm:$0xf]
    %v3726 = vld [vmem:[%s31 + $0x30] sm:$0xf]
    %v3727 = vld [vmem:[%s31 + $0x34] sm:$0xf]
    %v3728 = vld [vmem:[%s31 + $0x38] sm:$0xf]
    %v3729 = vld [vmem:[%s31 + $0x3c] sm:$0xf]
    %v3730 = vld [vmem:[%s31 + $0x40] sm:$0xf]
    %v3731 = vld [vmem:[%s31 + $0x44] sm:$0xf]
    %v3732 = vld [vmem:[%s31 + $0x48] sm:$0xf]
    %v3733 = vld [vmem:[%s31 + $0x4c] sm:$0xf]
    %v3734 = vld [vmem:[%s31 + $0x50] sm:$0xf]
    %v3735 = vld [vmem:[%s31 + $0x54] sm:$0xf]
    %v3736 = vld [vmem:[%s31 + $0x58] sm:$0xf]
    %v3737 = vld [vmem:[%s31 + $0x5c] sm:$0xf]
    %v3738 = vld [vmem:[%s31 + $0x60] sm:$0xf]
    %v3739 = vld [vmem:[%s31 + $0x64] sm:$0xf]
    %v3740 = vld [vmem:[%s31 + $0x68] sm:$0xf]
    %v3741 = vld [vmem:[%s31 + $0x6c] sm:$0xf]
    %v3742 = vld [vmem:[%s31 + $0x70] sm:$0xf]
    %v3743 = vld [vmem:[%s31 + $0x74] sm:$0xf]
    %v3744 = vld [vmem:[%s31 + $0x78] sm:$0xf]
    %v3745 = vld [vmem:[%s31 + $0x7c] sm:$0xf]
    %s3746 = scalar_lea.vmem %s29, 28
    %v3747 = vld [vmem:[%s3746] sm:$0xf]
    %v3748 = vld [vmem:[%s3746 + $0x4] sm:$0xf]
    %v3749 = vld [vmem:[%s3746 + $0x8] sm:$0xf]
    %v3750 = vld [vmem:[%s3746 + $0xc] sm:$0xf]
    %v3751 = vld [vmem:[%s3746 + $0x10] sm:$0xf]
    %v3752 = vld [vmem:[%s3746 + $0x14] sm:$0xf]
    %v3753 = vld [vmem:[%s3746 + $0x18] sm:$0x3]
    %v3761 = vunpack.c.l.b16 %v3747
    %v3762 = vunpack.c.l.b16 %v3748
    %v3763 = vunpack.c.l.b16 %v3749
    %v3764 = vunpack.c.l.b16 %v3750
    %v3765 = vunpack.c.l.b16 %v3751
    %v3766 = vunpack.c.l.b16 %v3752
    %v3767 = vunpack.c.l.b16 %v3753
    %v3768 = vpack.c.b16 %v3762, %v3761
    %v3769 = vpack.c.b16 %v3764, %v3763
    %v3770 = vpack.c.b16 %v3766, %v3765
    %v3771 = vpack.c.b16 %v3767, %v3767
    %v3773 = vsel %vm461, %v3768, 0
    %v3776 = vsel %vm461, %v3769, 0
    %v3779 = vsel %vm461, %v3770, 0
    %v3782 = vsel %vm461, %v3771, 0
    %3784 = vmatprep.subr.bf16.mxu0 0
    %3785 = vmatpush1.bf16.msra.mxu0 0
    %3786 = vmatprep.subr.bf16.mxu0 0
    %3787 = vmatpush1.bf16.msra.mxu0 0
    %3788 = vmatprep.subr.bf16.mxu0 0
    %3789 = vmatpush1.bf16.msra.mxu0 0
    %3790 = vmatprep.subr.bf16.mxu0 0
    %3791 = vmatpush1.bf16.msra.mxu0 0
    %3792 = vmatprep.subr.bf16.mxu0 %v1304
    %3793 = vmatpush1.bf16.msra.mxu0 %v1303
    %3794 = vmatprep.subr.bf16.mxu0 %v1302
    %3795 = vmatpush1.bf16.msra.mxu0 %v1301
    %3796 = vmatprep.subr.bf16.mxu0 %v1300
    %3797 = vmatpush1.bf16.msra.mxu0 %v1299
    %3798 = vmatprep.subr.bf16.mxu0 %v1298
    %3799 = vmatpush1.bf16.msra.mxu0 %v1297
    %3800 = vmatprep.subr.bf16.mxu0 0
    %3801 = vmatpush2.bf16.msra.mxu0 0
    %3802 = vmatprep.subr.bf16.mxu0 0
    %3803 = vmatpush2.bf16.msra.mxu0 0
    %3804 = vmatprep.subr.bf16.mxu0 0
    %3805 = vmatpush2.bf16.msra.mxu0 0
    %3806 = vmatprep.subr.bf16.mxu0 0
    %3807 = vmatpush2.bf16.msra.mxu0 0
    %3808 = vmatprep.subr.bf16.mxu0 0
    %3809 = vmatpush2.bf16.msra.mxu0 0
    %3810 = vmatprep.subr.bf16.mxu0 0
    %3811 = vmatpush2.bf16.msra.mxu0 0
    %3812 = vmatprep.subr.bf16.mxu0 0
    %3813 = vmatpush2.bf16.msra.mxu0 0
    %3814 = vmatprep.subr.bf16.mxu0 0
    %3815 = vmatpush2.bf16.msra.mxu0 0
    %3816 = vmatprep.mubr.bf16.mxu0 0
    %3817 = vmatmul.mubr.bf16.gmra.mxu0 %v3773
    %v3818 = vpop.f32.mrf.mxu0
    %v3819 = vadd.f32 0.0, %v3818
    %v3820 = vpop.f32.mrf.mxu0
    %v3821 = vadd.f32 0.0, %v3820
    %v3822 = vpop.f32.mrf.mxu0
    %v3823 = vadd.f32 0.0, %v3822
    %v3824 = vpop.f32.mrf.mxu0
    %v3825 = vadd.f32 0.0, %v3824
    %3826 = vmatprep.mubr.bf16.mxu0 0
    %3827 = vmatmul.mubr.bf16.gmra.mxu0 %v3776
    %v3828 = vpop.f32.mrf.mxu0
    %v3829 = vadd.f32 0.0, %v3828
    %v3830 = vpop.f32.mrf.mxu0
    %v3831 = vadd.f32 0.0, %v3830
    %v3832 = vpop.f32.mrf.mxu0
    %v3833 = vadd.f32 0.0, %v3832
    %v3834 = vpop.f32.mrf.mxu0
    %v3835 = vadd.f32 0.0, %v3834
    %3836 = vmatprep.mubr.bf16.mxu0 0
    %3837 = vmatmul.mubr.bf16.gmra.mxu0 %v3779
    %v3838 = vpop.f32.mrf.mxu0
    %v3839 = vadd.f32 0.0, %v3838
    %v3840 = vpop.f32.mrf.mxu0
    %v3841 = vadd.f32 0.0, %v3840
    %v3842 = vpop.f32.mrf.mxu0
    %v3843 = vadd.f32 0.0, %v3842
    %v3844 = vpop.f32.mrf.mxu0
    %v3845 = vadd.f32 0.0, %v3844
    %3846 = vmatprep.mubr.bf16.mxu0 0
    %3847 = vmatmul.mubr.bf16.gmra.mxu0 %v3782
    %v3848 = vpop.f32.mrf.mxu0
    %v3849 = vadd.f32 0.0, %v3848
    %v3850 = vpop.f32.mrf.mxu0
    %v3851 = vadd.f32 0.0, %v3850
    %v3852 = vpop.f32.mrf.mxu0
    %v3853 = vpop.f32.mrf.mxu0
    %3854 = vdwg.mxu0
    %v3855 = vpack.c.bf16 %v3823, %v3819
    %v3856 = vpack.c.bf16 %v3825, %v3821
    %v3857 = vpack.c.bf16 %v3833, %v3829
    %v3858 = vpack.c.bf16 %v3835, %v3831
    %v3859 = vpack.c.bf16 %v3843, %v3839
    %v3860 = vpack.c.bf16 %v3845, %v3841
    %v3861 = vpack.c.bf16 %v3849, %v3849
    %v3862 = vpack.c.bf16 %v3851, %v3851
    %s3863 = scalar_lea.vmem %s31, 128
    %v3864 = vld [vmem:[%s3863] sm:$0xf]
    %v3865 = vld [vmem:[%s3863 + $0x4] sm:$0xf]
    %v3866 = vld [vmem:[%s3863 + $0x8] sm:$0xf]
    %v3867 = vld [vmem:[%s3863 + $0xc] sm:$0xf]
    %v3868 = vld [vmem:[%s3863 + $0x10] sm:$0xf]
    %v3869 = vld [vmem:[%s3863 + $0x14] sm:$0xf]
    %v3870 = vld [vmem:[%s3863 + $0x18] sm:$0xf]
    %v3871 = vld [vmem:[%s3863 + $0x1c] sm:$0xf]
    %v3872 = vld [vmem:[%s3863 + $0x20] sm:$0xf]
    %v3873 = vld [vmem:[%s3863 + $0x24] sm:$0xf]
    %v3874 = vld [vmem:[%s3863 + $0x28] sm:$0xf]
    %v3875 = vld [vmem:[%s3863 + $0x2c] sm:$0xf]
    %v3876 = vld [vmem:[%s3863 + $0x30] sm:$0xf]
    %v3877 = vld [vmem:[%s3863 + $0x34] sm:$0xf]
    %v3878 = vld [vmem:[%s3863 + $0x38] sm:$0xf]
    %v3879 = vld [vmem:[%s3863 + $0x3c] sm:$0xf]
    %v3880 = vld [vmem:[%s3863 + $0x40] sm:$0xf]
    %v3881 = vld [vmem:[%s3863 + $0x44] sm:$0xf]
    %v3882 = vld [vmem:[%s3863 + $0x48] sm:$0xf]
    %v3883 = vld [vmem:[%s3863 + $0x4c] sm:$0xf]
    %v3884 = vld [vmem:[%s3863 + $0x50] sm:$0xf]
    %v3885 = vld [vmem:[%s3863 + $0x54] sm:$0xf]
    %v3886 = vld [vmem:[%s3863 + $0x58] sm:$0xf]
    %v3887 = vld [vmem:[%s3863 + $0x5c] sm:$0xf]
    %v3888 = vld [vmem:[%s3863 + $0x60] sm:$0xf]
    %v3889 = vld [vmem:[%s3863 + $0x64] sm:$0xf]
    %v3890 = vld [vmem:[%s3863 + $0x68] sm:$0xf]
    %v3891 = vld [vmem:[%s3863 + $0x6c] sm:$0xf]
    %v3892 = vld [vmem:[%s3863 + $0x70] sm:$0xf]
    %v3893 = vld [vmem:[%s3863 + $0x74] sm:$0xf]
    %v3894 = vld [vmem:[%s3863 + $0x78] sm:$0xf]
    %v3895 = vld [vmem:[%s3863 + $0x7c] sm:$0xf]
    %v3928 = vunpack.c.l.b16 %v3864
    %v3929 = vunpack.c.l.b16 %v3865
    %v3930 = vunpack.c.l.b16 %v3866
    %v3931 = vunpack.c.l.b16 %v3867
    %v3932 = vunpack.c.l.b16 %v3868
    %v3933 = vunpack.c.l.b16 %v3869
    %v3934 = vunpack.c.l.b16 %v3870
    %v3935 = vunpack.c.l.b16 %v3871
    %v3936 = vunpack.c.l.b16 %v3872
    %v3937 = vunpack.c.l.b16 %v3873
    %v3938 = vunpack.c.l.b16 %v3874
    %v3939 = vunpack.c.l.b16 %v3875
    %v3940 = vunpack.c.l.b16 %v3876
    %v3941 = vunpack.c.l.b16 %v3877
    %v3942 = vunpack.c.l.b16 %v3878
    %v3943 = vunpack.c.l.b16 %v3879
    %v3944 = vunpack.c.l.b16 %v3880
    %v3945 = vunpack.c.l.b16 %v3881
    %v3946 = vunpack.c.l.b16 %v3882
    %v3947 = vunpack.c.l.b16 %v3883
    %v3948 = vunpack.c.l.b16 %v3884
    %v3949 = vunpack.c.l.b16 %v3885
    %v3950 = vunpack.c.l.b16 %v3886
    %v3951 = vunpack.c.l.b16 %v3887
    %v3952 = vunpack.c.l.b16 %v3888
    %v3953 = vunpack.c.l.b16 %v3889
    %v3954 = vunpack.c.l.b16 %v3890
    %v3955 = vunpack.c.l.b16 %v3891
    %v3956 = vunpack.c.l.b16 %v3892
    %v3957 = vunpack.c.l.b16 %v3893
    %v3958 = vunpack.c.l.b16 %v3894
    %v3959 = vunpack.c.l.b16 %v3895
    %v3960 = vpack.c.b16 %v3929, %v3928
    %v3961 = vpack.c.b16 %v3931, %v3930
    %v3962 = vpack.c.b16 %v3933, %v3932
    %v3963 = vpack.c.b16 %v3935, %v3934
    %v3964 = vpack.c.b16 %v3937, %v3936
    %v3965 = vpack.c.b16 %v3939, %v3938
    %v3966 = vpack.c.b16 %v3941, %v3940
    %v3967 = vpack.c.b16 %v3943, %v3942
    %v3968 = vpack.c.b16 %v3945, %v3944
    %v3969 = vpack.c.b16 %v3947, %v3946
    %v3970 = vpack.c.b16 %v3949, %v3948
    %v3971 = vpack.c.b16 %v3951, %v3950
    %v3972 = vpack.c.b16 %v3953, %v3952
    %v3973 = vpack.c.b16 %v3955, %v3954
    %v3974 = vpack.c.b16 %v3957, %v3956
    %v3975 = vpack.c.b16 %v3959, %v3958
    %3992 = vmatprep.subr.bf16.mxu0 0
    %3993 = vmatpush1.bf16.msra.mxu0 %v3967
    %3994 = vmatprep.subr.bf16.mxu0 0
    %3995 = vmatpush1.bf16.msra.mxu0 %v3966
    %3996 = vmatprep.subr.bf16.mxu0 0
    %3997 = vmatpush1.bf16.msra.mxu0 %v3965
    %3998 = vmatprep.subr.bf16.mxu0 0
    %3999 = vmatpush1.bf16.msra.mxu0 %v3964
    %4000 = vmatprep.subr.bf16.mxu0 0
    %4001 = vmatpush1.bf16.msra.mxu0 %v3963
    %4002 = vmatprep.subr.bf16.mxu0 0
    %4003 = vmatpush1.bf16.msra.mxu0 %v3962
    %4004 = vmatprep.subr.bf16.mxu0 0
    %4005 = vmatpush1.bf16.msra.mxu0 %v3961
    %4006 = vmatprep.subr.bf16.mxu0 0
    %4007 = vmatpush1.bf16.msra.mxu0 %v3960
    %4008 = vmatprep.subr.bf16.mxu0 0
    %4009 = vmatpush2.bf16.msra.mxu0 %v3975
    %4010 = vmatprep.subr.bf16.mxu0 0
    %4011 = vmatpush2.bf16.msra.mxu0 %v3974
    %4012 = vmatprep.subr.bf16.mxu0 0
    %4013 = vmatpush2.bf16.msra.mxu0 %v3973
    %4014 = vmatprep.subr.bf16.mxu0 0
    %4015 = vmatpush2.bf16.msra.mxu0 %v3972
    %4016 = vmatprep.subr.bf16.mxu0 0
    %4017 = vmatpush2.bf16.msra.mxu0 %v3971
    %4018 = vmatprep.subr.bf16.mxu0 0
    %4019 = vmatpush2.bf16.msra.mxu0 %v3970
    %4020 = vmatprep.subr.bf16.mxu0 0
    %4021 = vmatpush2.bf16.msra.mxu0 %v3969
    %4022 = vmatprep.subr.bf16.mxu0 0
    %4023 = vmatpush2.bf16.msra.mxu0 %v3968
    %4024 = vmatprep.mubr.bf16.mxu0 %v3856
    %4025 = vmatmul.mubr.bf16.gmra.mxu0 %v3855
    %v4026 = vpop.f32.mrf.mxu0
    %v4027 = vadd.f32 0.0, %v4026
    %v4028 = vpop.f32.mrf.mxu0
    %v4029 = vpop.f32.mrf.mxu0
    %v4030 = vadd.f32 0.0, %v4029
    %v4031 = vpop.f32.mrf.mxu0
    %4032 = vmatprep.mubr.bf16.mxu0 %v3858
    %4033 = vmatmul.mubr.bf16.gmra.mxu0 %v3857
    %v4034 = vpop.f32.mrf.mxu0
    %v4035 = vadd.f32 0.0, %v4034
    %v4036 = vpop.f32.mrf.mxu0
    %v4037 = vpop.f32.mrf.mxu0
    %v4038 = vadd.f32 0.0, %v4037
    %v4039 = vpop.f32.mrf.mxu0
    %4040 = vmatprep.mubr.bf16.mxu0 %v3860
    %4041 = vmatmul.mubr.bf16.gmra.mxu0 %v3859
    %v4042 = vpop.f32.mrf.mxu0
    %v4043 = vadd.f32 0.0, %v4042
    %v4044 = vpop.f32.mrf.mxu0
    %v4045 = vpop.f32.mrf.mxu0
    %v4046 = vadd.f32 0.0, %v4045
    %v4047 = vpop.f32.mrf.mxu0
    %4048 = vmatprep.mubr.bf16.mxu0 %v3862
    %4049 = vmatmul.mubr.bf16.gmra.mxu0 %v3861
    %v4050 = vpop.f32.mrf.mxu0
    %v4051 = vadd.f32 0.0, %v4050
    %v4052 = vpop.f32.mrf.mxu0
    %v4053 = vpop.f32.mrf.mxu0
    %v4054 = vpop.f32.mrf.mxu0
    %4055 = vdwg.mxu0
    %v4088 = vunpack.c.l.b16 %v3714
    %v4089 = vunpack.c.l.b16 %v3715
    %v4090 = vunpack.c.l.b16 %v3716
    %v4091 = vunpack.c.l.b16 %v3717
    %v4092 = vunpack.c.l.b16 %v3718
    %v4093 = vunpack.c.l.b16 %v3719
    %v4094 = vunpack.c.l.b16 %v3720
    %v4095 = vunpack.c.l.b16 %v3721
    %v4096 = vunpack.c.l.b16 %v3722
    %v4097 = vunpack.c.l.b16 %v3723
    %v4098 = vunpack.c.l.b16 %v3724
    %v4099 = vunpack.c.l.b16 %v3725
    %v4100 = vunpack.c.l.b16 %v3726
    %v4101 = vunpack.c.l.b16 %v3727
    %v4102 = vunpack.c.l.b16 %v3728
    %v4103 = vunpack.c.l.b16 %v3729
    %v4104 = vunpack.c.l.b16 %v3730
    %v4105 = vunpack.c.l.b16 %v3731
    %v4106 = vunpack.c.l.b16 %v3732
    %v4107 = vunpack.c.l.b16 %v3733
    %v4108 = vunpack.c.l.b16 %v3734
    %v4109 = vunpack.c.l.b16 %v3735
    %v4110 = vunpack.c.l.b16 %v3736
    %v4111 = vunpack.c.l.b16 %v3737
    %v4112 = vunpack.c.l.b16 %v3738
    %v4113 = vunpack.c.l.b16 %v3739
    %v4114 = vunpack.c.l.b16 %v3740
    %v4115 = vunpack.c.l.b16 %v3741
    %v4116 = vunpack.c.l.b16 %v3742
    %v4117 = vunpack.c.l.b16 %v3743
    %v4118 = vunpack.c.l.b16 %v3744
    %v4119 = vunpack.c.l.b16 %v3745
    %v4120 = vpack.c.b16 %v4089, %v4088
    %v4121 = vpack.c.b16 %v4091, %v4090
    %v4122 = vpack.c.b16 %v4093, %v4092
    %v4123 = vpack.c.b16 %v4095, %v4094
    %v4124 = vpack.c.b16 %v4097, %v4096
    %v4125 = vpack.c.b16 %v4099, %v4098
    %v4126 = vpack.c.b16 %v4101, %v4100
    %v4127 = vpack.c.b16 %v4103, %v4102
    %v4128 = vpack.c.b16 %v4105, %v4104
    %v4129 = vpack.c.b16 %v4107, %v4106
    %v4130 = vpack.c.b16 %v4109, %v4108
    %v4131 = vpack.c.b16 %v4111, %v4110
    %v4132 = vpack.c.b16 %v4113, %v4112
    %v4133 = vpack.c.b16 %v4115, %v4114
    %v4134 = vpack.c.b16 %v4117, %v4116
    %v4135 = vpack.c.b16 %v4119, %v4118
    %4152 = vmatprep.subr.bf16.mxu0 0
    %4153 = vmatpush1.bf16.msra.mxu0 %v4127
    %4154 = vmatprep.subr.bf16.mxu0 0
    %4155 = vmatpush1.bf16.msra.mxu0 %v4126
    %4156 = vmatprep.subr.bf16.mxu0 0
    %4157 = vmatpush1.bf16.msra.mxu0 %v4125
    %4158 = vmatprep.subr.bf16.mxu0 0
    %4159 = vmatpush1.bf16.msra.mxu0 %v4124
    %4160 = vmatprep.subr.bf16.mxu0 0
    %4161 = vmatpush1.bf16.msra.mxu0 %v4123
    %4162 = vmatprep.subr.bf16.mxu0 0
    %4163 = vmatpush1.bf16.msra.mxu0 %v4122
    %4164 = vmatprep.subr.bf16.mxu0 0
    %4165 = vmatpush1.bf16.msra.mxu0 %v4121
    %4166 = vmatprep.subr.bf16.mxu0 0
    %4167 = vmatpush1.bf16.msra.mxu0 %v4120
    %4168 = vmatprep.subr.bf16.mxu0 0
    %4169 = vmatpush2.bf16.msra.mxu0 %v4135
    %4170 = vmatprep.subr.bf16.mxu0 0
    %4171 = vmatpush2.bf16.msra.mxu0 %v4134
    %4172 = vmatprep.subr.bf16.mxu0 0
    %4173 = vmatpush2.bf16.msra.mxu0 %v4133
    %4174 = vmatprep.subr.bf16.mxu0 0
    %4175 = vmatpush2.bf16.msra.mxu0 %v4132
    %4176 = vmatprep.subr.bf16.mxu0 0
    %4177 = vmatpush2.bf16.msra.mxu0 %v4131
    %4178 = vmatprep.subr.bf16.mxu0 0
    %4179 = vmatpush2.bf16.msra.mxu0 %v4130
    %4180 = vmatprep.subr.bf16.mxu0 0
    %4181 = vmatpush2.bf16.msra.mxu0 %v4129
    %4182 = vmatprep.subr.bf16.mxu0 0
    %4183 = vmatpush2.bf16.msra.mxu0 %v4128
    %4184 = vmatprep.mubr.bf16.mxu0 %v3707
    %4185 = vmatmul.mubr.bf16.gmra.mxu0 %v3706
    %v4186 = vpop.f32.mrf.mxu0
    %v4187 = vadd.f32 %v4027, %v4186
    %v4188 = vpop.f32.mrf.mxu0
    %v4189 = vpop.f32.mrf.mxu0
    %v4190 = vadd.f32 %v4030, %v4189
    %v4191 = vpop.f32.mrf.mxu0
    %4192 = vmatprep.mubr.bf16.mxu0 %v3709
    %4193 = vmatmul.mubr.bf16.gmra.mxu0 %v3708
    %v4194 = vpop.f32.mrf.mxu0
    %v4195 = vadd.f32 %v4035, %v4194
    %v4196 = vpop.f32.mrf.mxu0
    %v4197 = vpop.f32.mrf.mxu0
    %v4198 = vadd.f32 %v4038, %v4197
    %v4199 = vpop.f32.mrf.mxu0
    %4200 = vmatprep.mubr.bf16.mxu0 %v3711
    %4201 = vmatmul.mubr.bf16.gmra.mxu0 %v3710
    %v4202 = vpop.f32.mrf.mxu0
    %v4203 = vadd.f32 %v4043, %v4202
    %v4204 = vpop.f32.mrf.mxu0
    %v4205 = vpop.f32.mrf.mxu0
    %v4206 = vadd.f32 %v4046, %v4205
    %v4207 = vpop.f32.mrf.mxu0
    %4208 = vmatprep.mubr.bf16.mxu0 %v3713
    %4209 = vmatmul.mubr.bf16.gmra.mxu0 %v3712
    %v4210 = vpop.f32.mrf.mxu0
    %v4211 = vadd.f32 %v4051, %v4210
    %v4212 = vpop.f32.mrf.mxu0
    %v4213 = vpop.f32.mrf.mxu0
    %v4214 = vpop.f32.mrf.mxu0
    %4215 = vdwg.mxu0
    %s4216 = scalar_lea.vmem %s29, 56
    %v4217 = vld [vmem:[%s4216] sm:$0xf]
    %v4218 = vld [vmem:[%s4216 + $0x4] sm:$0xf]
    %v4219 = vld [vmem:[%s4216 + $0x8] sm:$0xf]
    %v4220 = vld [vmem:[%s4216 + $0xc] sm:$0xf]
    %v4221 = vld [vmem:[%s4216 + $0x10] sm:$0xf]
    %v4222 = vld [vmem:[%s4216 + $0x14] sm:$0xf]
    %v4223 = vld [vmem:[%s4216 + $0x18] sm:$0x3]
    %v4231 = vunpack.c.l.b16 %v4217
    %v4232 = vunpack.c.l.b16 %v4218
    %v4233 = vunpack.c.l.b16 %v4219
    %v4234 = vunpack.c.l.b16 %v4220
    %v4235 = vunpack.c.l.b16 %v4221
    %v4236 = vunpack.c.l.b16 %v4222
    %v4237 = vunpack.c.l.b16 %v4223
    %v4238 = vpack.c.b16 %v4232, %v4231
    %v4239 = vpack.c.b16 %v4234, %v4233
    %v4240 = vpack.c.b16 %v4236, %v4235
    %v4241 = vpack.c.b16 %v4237, %v4237
    %v4243 = vsel %vm461, %v4238, 0
    %v4246 = vsel %vm461, %v4239, 0
    %v4249 = vsel %vm461, %v4240, 0
    %v4252 = vsel %vm461, %v4241, 0
    %4254 = vmatprep.subr.bf16.mxu0 0
    %4255 = vmatpush1.bf16.msra.mxu0 0
    %4256 = vmatprep.subr.bf16.mxu0 0
    %4257 = vmatpush1.bf16.msra.mxu0 0
    %4258 = vmatprep.subr.bf16.mxu0 0
    %4259 = vmatpush1.bf16.msra.mxu0 0
    %4260 = vmatprep.subr.bf16.mxu0 0
    %4261 = vmatpush1.bf16.msra.mxu0 0
    %4262 = vmatprep.subr.bf16.mxu0 %v1304
    %4263 = vmatpush1.bf16.msra.mxu0 %v1303
    %4264 = vmatprep.subr.bf16.mxu0 %v1302
    %4265 = vmatpush1.bf16.msra.mxu0 %v1301
    %4266 = vmatprep.subr.bf16.mxu0 %v1300
    %4267 = vmatpush1.bf16.msra.mxu0 %v1299
    %4268 = vmatprep.subr.bf16.mxu0 %v1298
    %4269 = vmatpush1.bf16.msra.mxu0 %v1297
    %4270 = vmatprep.subr.bf16.mxu0 0
    %4271 = vmatpush2.bf16.msra.mxu0 0
    %4272 = vmatprep.subr.bf16.mxu0 0
    %4273 = vmatpush2.bf16.msra.mxu0 0
    %4274 = vmatprep.subr.bf16.mxu0 0
    %4275 = vmatpush2.bf16.msra.mxu0 0
    %4276 = vmatprep.subr.bf16.mxu0 0
    %4277 = vmatpush2.bf16.msra.mxu0 0
    %4278 = vmatprep.subr.bf16.mxu0 0
    %4279 = vmatpush2.bf16.msra.mxu0 0
    %4280 = vmatprep.subr.bf16.mxu0 0
    %4281 = vmatpush2.bf16.msra.mxu0 0
    %4282 = vmatprep.subr.bf16.mxu0 0
    %4283 = vmatpush2.bf16.msra.mxu0 0
    %4284 = vmatprep.subr.bf16.mxu0 0
    %4285 = vmatpush2.bf16.msra.mxu0 0
    %4286 = vmatprep.mubr.bf16.mxu0 0
    %4287 = vmatmul.mubr.bf16.gmra.mxu0 %v4243
    %v4288 = vpop.f32.mrf.mxu0
    %v4289 = vadd.f32 0.0, %v4288
    %v4290 = vpop.f32.mrf.mxu0
    %v4291 = vadd.f32 0.0, %v4290
    %v4292 = vpop.f32.mrf.mxu0
    %v4293 = vadd.f32 0.0, %v4292
    %v4294 = vpop.f32.mrf.mxu0
    %v4295 = vadd.f32 0.0, %v4294
    %4296 = vmatprep.mubr.bf16.mxu0 0
    %4297 = vmatmul.mubr.bf16.gmra.mxu0 %v4246
    %v4298 = vpop.f32.mrf.mxu0
    %v4299 = vadd.f32 0.0, %v4298
    %v4300 = vpop.f32.mrf.mxu0
    %v4301 = vadd.f32 0.0, %v4300
    %v4302 = vpop.f32.mrf.mxu0
    %v4303 = vadd.f32 0.0, %v4302
    %v4304 = vpop.f32.mrf.mxu0
    %v4305 = vadd.f32 0.0, %v4304
    %4306 = vmatprep.mubr.bf16.mxu0 0
    %4307 = vmatmul.mubr.bf16.gmra.mxu0 %v4249
    %v4308 = vpop.f32.mrf.mxu0
    %v4309 = vadd.f32 0.0, %v4308
    %v4310 = vpop.f32.mrf.mxu0
    %v4311 = vadd.f32 0.0, %v4310
    %v4312 = vpop.f32.mrf.mxu0
    %v4313 = vadd.f32 0.0, %v4312
    %v4314 = vpop.f32.mrf.mxu0
    %v4315 = vadd.f32 0.0, %v4314
    %4316 = vmatprep.mubr.bf16.mxu0 0
    %4317 = vmatmul.mubr.bf16.gmra.mxu0 %v4252
    %v4318 = vpop.f32.mrf.mxu0
    %v4319 = vadd.f32 0.0, %v4318
    %v4320 = vpop.f32.mrf.mxu0
    %v4321 = vadd.f32 0.0, %v4320
    %v4322 = vpop.f32.mrf.mxu0
    %v4323 = vpop.f32.mrf.mxu0
    %4324 = vdwg.mxu0
    %v4325 = vpack.c.bf16 %v4293, %v4289
    %v4326 = vpack.c.bf16 %v4295, %v4291
    %v4327 = vpack.c.bf16 %v4303, %v4299
    %v4328 = vpack.c.bf16 %v4305, %v4301
    %v4329 = vpack.c.bf16 %v4313, %v4309
    %v4330 = vpack.c.bf16 %v4315, %v4311
    %v4331 = vpack.c.bf16 %v4319, %v4319
    %v4332 = vpack.c.bf16 %v4321, %v4321
    %s4333 = scalar_lea.vmem %s31, 256
    %v4334 = vld [vmem:[%s4333] sm:$0xf]
    %v4335 = vld [vmem:[%s4333 + $0x4] sm:$0xf]
    %v4336 = vld [vmem:[%s4333 + $0x8] sm:$0xf]
    %v4337 = vld [vmem:[%s4333 + $0xc] sm:$0xf]
    %v4338 = vld [vmem:[%s4333 + $0x10] sm:$0xf]
    %v4339 = vld [vmem:[%s4333 + $0x14] sm:$0xf]
    %v4340 = vld [vmem:[%s4333 + $0x18] sm:$0xf]
    %v4341 = vld [vmem:[%s4333 + $0x1c] sm:$0xf]
    %v4342 = vld [vmem:[%s4333 + $0x20] sm:$0xf]
    %v4343 = vld [vmem:[%s4333 + $0x24] sm:$0xf]
    %v4344 = vld [vmem:[%s4333 + $0x28] sm:$0xf]
    %v4345 = vld [vmem:[%s4333 + $0x2c] sm:$0xf]
    %v4346 = vld [vmem:[%s4333 + $0x30] sm:$0xf]
    %v4347 = vld [vmem:[%s4333 + $0x34] sm:$0xf]
    %v4348 = vld [vmem:[%s4333 + $0x38] sm:$0xf]
    %v4349 = vld [vmem:[%s4333 + $0x3c] sm:$0xf]
    %v4350 = vld [vmem:[%s4333 + $0x40] sm:$0xf]
    %v4351 = vld [vmem:[%s4333 + $0x44] sm:$0xf]
    %v4352 = vld [vmem:[%s4333 + $0x48] sm:$0xf]
    %v4353 = vld [vmem:[%s4333 + $0x4c] sm:$0xf]
    %v4354 = vld [vmem:[%s4333 + $0x50] sm:$0xf]
    %v4355 = vld [vmem:[%s4333 + $0x54] sm:$0xf]
    %v4356 = vld [vmem:[%s4333 + $0x58] sm:$0xf]
    %v4357 = vld [vmem:[%s4333 + $0x5c] sm:$0xf]
    %v4358 = vld [vmem:[%s4333 + $0x60] sm:$0xf]
    %v4359 = vld [vmem:[%s4333 + $0x64] sm:$0xf]
    %v4360 = vld [vmem:[%s4333 + $0x68] sm:$0xf]
    %v4361 = vld [vmem:[%s4333 + $0x6c] sm:$0xf]
    %v4362 = vld [vmem:[%s4333 + $0x70] sm:$0xf]
    %v4363 = vld [vmem:[%s4333 + $0x74] sm:$0xf]
    %v4364 = vld [vmem:[%s4333 + $0x78] sm:$0xf]
    %v4365 = vld [vmem:[%s4333 + $0x7c] sm:$0xf]
    %v4398 = vunpack.c.l.b16 %v4334
    %v4399 = vunpack.c.l.b16 %v4335
    %v4400 = vunpack.c.l.b16 %v4336
    %v4401 = vunpack.c.l.b16 %v4337
    %v4402 = vunpack.c.l.b16 %v4338
    %v4403 = vunpack.c.l.b16 %v4339
    %v4404 = vunpack.c.l.b16 %v4340
    %v4405 = vunpack.c.l.b16 %v4341
    %v4406 = vunpack.c.l.b16 %v4342
    %v4407 = vunpack.c.l.b16 %v4343
    %v4408 = vunpack.c.l.b16 %v4344
    %v4409 = vunpack.c.l.b16 %v4345
    %v4410 = vunpack.c.l.b16 %v4346
    %v4411 = vunpack.c.l.b16 %v4347
    %v4412 = vunpack.c.l.b16 %v4348
    %v4413 = vunpack.c.l.b16 %v4349
    %v4414 = vunpack.c.l.b16 %v4350
    %v4415 = vunpack.c.l.b16 %v4351
    %v4416 = vunpack.c.l.b16 %v4352
    %v4417 = vunpack.c.l.b16 %v4353
    %v4418 = vunpack.c.l.b16 %v4354
    %v4419 = vunpack.c.l.b16 %v4355
    %v4420 = vunpack.c.l.b16 %v4356
    %v4421 = vunpack.c.l.b16 %v4357
    %v4422 = vunpack.c.l.b16 %v4358
    %v4423 = vunpack.c.l.b16 %v4359
    %v4424 = vunpack.c.l.b16 %v4360
    %v4425 = vunpack.c.l.b16 %v4361
    %v4426 = vunpack.c.l.b16 %v4362
    %v4427 = vunpack.c.l.b16 %v4363
    %v4428 = vunpack.c.l.b16 %v4364
    %v4429 = vunpack.c.l.b16 %v4365
    %v4430 = vpack.c.b16 %v4399, %v4398
    %v4431 = vpack.c.b16 %v4401, %v4400
    %v4432 = vpack.c.b16 %v4403, %v4402
    %v4433 = vpack.c.b16 %v4405, %v4404
    %v4434 = vpack.c.b16 %v4407, %v4406
    %v4435 = vpack.c.b16 %v4409, %v4408
    %v4436 = vpack.c.b16 %v4411, %v4410
    %v4437 = vpack.c.b16 %v4413, %v4412
    %v4438 = vpack.c.b16 %v4415, %v4414
    %v4439 = vpack.c.b16 %v4417, %v4416
    %v4440 = vpack.c.b16 %v4419, %v4418
    %v4441 = vpack.c.b16 %v4421, %v4420
    %v4442 = vpack.c.b16 %v4423, %v4422
    %v4443 = vpack.c.b16 %v4425, %v4424
    %v4444 = vpack.c.b16 %v4427, %v4426
    %v4445 = vpack.c.b16 %v4429, %v4428
    %4462 = vmatprep.subr.bf16.mxu0 0
    %4463 = vmatpush1.bf16.msra.mxu0 %v4437
    %4464 = vmatprep.subr.bf16.mxu0 0
    %4465 = vmatpush1.bf16.msra.mxu0 %v4436
    %4466 = vmatprep.subr.bf16.mxu0 0
    %4467 = vmatpush1.bf16.msra.mxu0 %v4435
    %4468 = vmatprep.subr.bf16.mxu0 0
    %4469 = vmatpush1.bf16.msra.mxu0 %v4434
    %4470 = vmatprep.subr.bf16.mxu0 0
    %4471 = vmatpush1.bf16.msra.mxu0 %v4433
    %4472 = vmatprep.subr.bf16.mxu0 0
    %4473 = vmatpush1.bf16.msra.mxu0 %v4432
    %4474 = vmatprep.subr.bf16.mxu0 0
    %4475 = vmatpush1.bf16.msra.mxu0 %v4431
    %4476 = vmatprep.subr.bf16.mxu0 0
    %4477 = vmatpush1.bf16.msra.mxu0 %v4430
    %4478 = vmatprep.subr.bf16.mxu0 0
    %4479 = vmatpush2.bf16.msra.mxu0 %v4445
    %4480 = vmatprep.subr.bf16.mxu0 0
    %4481 = vmatpush2.bf16.msra.mxu0 %v4444
    %4482 = vmatprep.subr.bf16.mxu0 0
    %4483 = vmatpush2.bf16.msra.mxu0 %v4443
    %4484 = vmatprep.subr.bf16.mxu0 0
    %4485 = vmatpush2.bf16.msra.mxu0 %v4442
    %4486 = vmatprep.subr.bf16.mxu0 0
    %4487 = vmatpush2.bf16.msra.mxu0 %v4441
    %4488 = vmatprep.subr.bf16.mxu0 0
    %4489 = vmatpush2.bf16.msra.mxu0 %v4440
    %4490 = vmatprep.subr.bf16.mxu0 0
    %4491 = vmatpush2.bf16.msra.mxu0 %v4439
    %4492 = vmatprep.subr.bf16.mxu0 0
    %4493 = vmatpush2.bf16.msra.mxu0 %v4438
    %4494 = vmatprep.mubr.bf16.mxu0 %v4326
    %4495 = vmatmul.mubr.bf16.gmra.mxu0 %v4325
    %v4496 = vpop.f32.mrf.mxu0
    %v4497 = vadd.f32 0.0, %v4496
    %v4498 = vpop.f32.mrf.mxu0
    %v4499 = vpop.f32.mrf.mxu0
    %v4500 = vadd.f32 0.0, %v4499
    %v4501 = vpop.f32.mrf.mxu0
    %4502 = vmatprep.mubr.bf16.mxu0 %v4328
    %4503 = vmatmul.mubr.bf16.gmra.mxu0 %v4327
    %v4504 = vpop.f32.mrf.mxu0
    %v4505 = vadd.f32 0.0, %v4504
    %v4506 = vpop.f32.mrf.mxu0
    %v4507 = vpop.f32.mrf.mxu0
    %v4508 = vadd.f32 0.0, %v4507
    %v4509 = vpop.f32.mrf.mxu0
    %4510 = vmatprep.mubr.bf16.mxu0 %v4330
    %4511 = vmatmul.mubr.bf16.gmra.mxu0 %v4329
    %v4512 = vpop.f32.mrf.mxu0
    %v4513 = vadd.f32 0.0, %v4512
    %v4514 = vpop.f32.mrf.mxu0
    %v4515 = vpop.f32.mrf.mxu0
    %v4516 = vadd.f32 0.0, %v4515
    %v4517 = vpop.f32.mrf.mxu0
    %4518 = vmatprep.mubr.bf16.mxu0 %v4332
    %4519 = vmatmul.mubr.bf16.gmra.mxu0 %v4331
    %v4520 = vpop.f32.mrf.mxu0
    %v4521 = vadd.f32 0.0, %v4520
    %v4522 = vpop.f32.mrf.mxu0
    %v4523 = vpop.f32.mrf.mxu0
    %v4524 = vpop.f32.mrf.mxu0
    %4525 = vdwg.mxu0
    %v4526 = vadd.f32 %v4187, %v4497
    %v4527 = vadd.f32 %v4190, %v4500
    %v4528 = vadd.f32 %v4195, %v4505
    %v4529 = vadd.f32 %v4198, %v4508
    %v4530 = vadd.f32 %v4203, %v4513
    %v4531 = vadd.f32 %v4206, %v4516
    %v4532 = vadd.f32 %v4211, %v4521
    %s4533 = scalar_lea.vmem %s29, 84
    %v4534 = vld [vmem:[%s4533] sm:$0xf]
    %v4535 = vld [vmem:[%s4533 + $0x4] sm:$0xf]
    %v4536 = vld [vmem:[%s4533 + $0x8] sm:$0xf]
    %v4537 = vld [vmem:[%s4533 + $0xc] sm:$0xf]
    %v4538 = vld [vmem:[%s4533 + $0x10] sm:$0xf]
    %v4539 = vld [vmem:[%s4533 + $0x14] sm:$0xf]
    %v4540 = vld [vmem:[%s4533 + $0x18] sm:$0x3]
    %v4548 = vunpack.c.l.b16 %v4534
    %v4549 = vunpack.c.l.b16 %v4535
    %v4550 = vunpack.c.l.b16 %v4536
    %v4551 = vunpack.c.l.b16 %v4537
    %v4552 = vunpack.c.l.b16 %v4538
    %v4553 = vunpack.c.l.b16 %v4539
    %v4554 = vunpack.c.l.b16 %v4540
    %v4555 = vpack.c.b16 %v4549, %v4548
    %v4556 = vpack.c.b16 %v4551, %v4550
    %v4557 = vpack.c.b16 %v4553, %v4552
    %v4558 = vpack.c.b16 %v4554, %v4554
    %v4560 = vsel %vm461, %v4555, 0
    %v4563 = vsel %vm461, %v4556, 0
    %v4566 = vsel %vm461, %v4557, 0
    %v4569 = vsel %vm461, %v4558, 0
    %4571 = vmatprep.subr.bf16.mxu0 0
    %4572 = vmatpush1.bf16.msra.mxu0 0
    %4573 = vmatprep.subr.bf16.mxu0 0
    %4574 = vmatpush1.bf16.msra.mxu0 0
    %4575 = vmatprep.subr.bf16.mxu0 0
    %4576 = vmatpush1.bf16.msra.mxu0 0
    %4577 = vmatprep.subr.bf16.mxu0 0
    %4578 = vmatpush1.bf16.msra.mxu0 0
    %4579 = vmatprep.subr.bf16.mxu0 %v1304
    %4580 = vmatpush1.bf16.msra.mxu0 %v1303
    %4581 = vmatprep.subr.bf16.mxu0 %v1302
    %4582 = vmatpush1.bf16.msra.mxu0 %v1301
    %4583 = vmatprep.subr.bf16.mxu0 %v1300
    %4584 = vmatpush1.bf16.msra.mxu0 %v1299
    %4585 = vmatprep.subr.bf16.mxu0 %v1298
    %4586 = vmatpush1.bf16.msra.mxu0 %v1297
    %4587 = vmatprep.subr.bf16.mxu0 0
    %4588 = vmatpush2.bf16.msra.mxu0 0
    %4589 = vmatprep.subr.bf16.mxu0 0
    %4590 = vmatpush2.bf16.msra.mxu0 0
    %4591 = vmatprep.subr.bf16.mxu0 0
    %4592 = vmatpush2.bf16.msra.mxu0 0
    %4593 = vmatprep.subr.bf16.mxu0 0
    %4594 = vmatpush2.bf16.msra.mxu0 0
    %4595 = vmatprep.subr.bf16.mxu0 0
    %4596 = vmatpush2.bf16.msra.mxu0 0
    %4597 = vmatprep.subr.bf16.mxu0 0
    %4598 = vmatpush2.bf16.msra.mxu0 0
    %4599 = vmatprep.subr.bf16.mxu0 0
    %4600 = vmatpush2.bf16.msra.mxu0 0
    %4601 = vmatprep.subr.bf16.mxu0 0
    %4602 = vmatpush2.bf16.msra.mxu0 0
    %4603 = vmatprep.mubr.bf16.mxu0 0
    %4604 = vmatmul.mubr.bf16.gmra.mxu0 %v4560
    %v4605 = vpop.f32.mrf.mxu0
    %v4606 = vadd.f32 0.0, %v4605
    %v4607 = vpop.f32.mrf.mxu0
    %v4608 = vadd.f32 0.0, %v4607
    %v4609 = vpop.f32.mrf.mxu0
    %v4610 = vadd.f32 0.0, %v4609
    %v4611 = vpop.f32.mrf.mxu0
    %v4612 = vadd.f32 0.0, %v4611
    %4613 = vmatprep.mubr.bf16.mxu0 0
    %4614 = vmatmul.mubr.bf16.gmra.mxu0 %v4563
    %v4615 = vpop.f32.mrf.mxu0
    %v4616 = vadd.f32 0.0, %v4615
    %v4617 = vpop.f32.mrf.mxu0
    %v4618 = vadd.f32 0.0, %v4617
    %v4619 = vpop.f32.mrf.mxu0
    %v4620 = vadd.f32 0.0, %v4619
    %v4621 = vpop.f32.mrf.mxu0
    %v4622 = vadd.f32 0.0, %v4621
    %4623 = vmatprep.mubr.bf16.mxu0 0
    %4624 = vmatmul.mubr.bf16.gmra.mxu0 %v4566
    %v4625 = vpop.f32.mrf.mxu0
    %v4626 = vadd.f32 0.0, %v4625
    %v4627 = vpop.f32.mrf.mxu0
    %v4628 = vadd.f32 0.0, %v4627
    %v4629 = vpop.f32.mrf.mxu0
    %v4630 = vadd.f32 0.0, %v4629
    %v4631 = vpop.f32.mrf.mxu0
    %v4632 = vadd.f32 0.0, %v4631
    %4633 = vmatprep.mubr.bf16.mxu0 0
    %4634 = vmatmul.mubr.bf16.gmra.mxu0 %v4569
    %v4635 = vpop.f32.mrf.mxu0
    %v4636 = vadd.f32 0.0, %v4635
    %v4637 = vpop.f32.mrf.mxu0
    %v4638 = vadd.f32 0.0, %v4637
    %v4639 = vpop.f32.mrf.mxu0
    %v4640 = vpop.f32.mrf.mxu0
    %4641 = vdwg.mxu0
    %v4642 = vpack.c.bf16 %v4610, %v4606
    %v4643 = vpack.c.bf16 %v4612, %v4608
    %v4644 = vpack.c.bf16 %v4620, %v4616
    %v4645 = vpack.c.bf16 %v4622, %v4618
    %v4646 = vpack.c.bf16 %v4630, %v4626
    %v4647 = vpack.c.bf16 %v4632, %v4628
    %v4648 = vpack.c.bf16 %v4636, %v4636
    %v4649 = vpack.c.bf16 %v4638, %v4638
    %s4650 = scalar_lea.vmem %s31, 384
    %v4651 = vld [vmem:[%s4650] sm:$0xf]
    %v4652 = vld [vmem:[%s4650 + $0x4] sm:$0xf]
    %v4653 = vld [vmem:[%s4650 + $0x8] sm:$0xf]
    %v4654 = vld [vmem:[%s4650 + $0xc] sm:$0xf]
    %v4655 = vld [vmem:[%s4650 + $0x10] sm:$0xf]
    %v4656 = vld [vmem:[%s4650 + $0x14] sm:$0xf]
    %v4657 = vld [vmem:[%s4650 + $0x18] sm:$0xf]
    %v4658 = vld [vmem:[%s4650 + $0x1c] sm:$0xf]
    %v4659 = vld [vmem:[%s4650 + $0x20] sm:$0xf]
    %v4660 = vld [vmem:[%s4650 + $0x24] sm:$0xf]
    %v4661 = vld [vmem:[%s4650 + $0x28] sm:$0xf]
    %v4662 = vld [vmem:[%s4650 + $0x2c] sm:$0xf]
    %v4663 = vld [vmem:[%s4650 + $0x30] sm:$0xf]
    %v4664 = vld [vmem:[%s4650 + $0x34] sm:$0xf]
    %v4665 = vld [vmem:[%s4650 + $0x38] sm:$0xf]
    %v4666 = vld [vmem:[%s4650 + $0x3c] sm:$0xf]
    %v4667 = vld [vmem:[%s4650 + $0x40] sm:$0xf]
    %v4668 = vld [vmem:[%s4650 + $0x44] sm:$0xf]
    %v4669 = vld [vmem:[%s4650 + $0x48] sm:$0xf]
    %v4670 = vld [vmem:[%s4650 + $0x4c] sm:$0xf]
    %v4671 = vld [vmem:[%s4650 + $0x50] sm:$0xf]
    %v4672 = vld [vmem:[%s4650 + $0x54] sm:$0xf]
    %v4673 = vld [vmem:[%s4650 + $0x58] sm:$0xf]
    %v4674 = vld [vmem:[%s4650 + $0x5c] sm:$0xf]
    %v4675 = vld [vmem:[%s4650 + $0x60] sm:$0xf]
    %v4676 = vld [vmem:[%s4650 + $0x64] sm:$0xf]
    %v4677 = vld [vmem:[%s4650 + $0x68] sm:$0xf]
    %v4678 = vld [vmem:[%s4650 + $0x6c] sm:$0xf]
    %v4679 = vld [vmem:[%s4650 + $0x70] sm:$0xf]
    %v4680 = vld [vmem:[%s4650 + $0x74] sm:$0xf]
    %v4681 = vld [vmem:[%s4650 + $0x78] sm:$0xf]
    %v4682 = vld [vmem:[%s4650 + $0x7c] sm:$0xf]
    %v4715 = vunpack.c.l.b16 %v4651
    %v4716 = vunpack.c.l.b16 %v4652
    %v4717 = vunpack.c.l.b16 %v4653
    %v4718 = vunpack.c.l.b16 %v4654
    %v4719 = vunpack.c.l.b16 %v4655
    %v4720 = vunpack.c.l.b16 %v4656
    %v4721 = vunpack.c.l.b16 %v4657
    %v4722 = vunpack.c.l.b16 %v4658
    %v4723 = vunpack.c.l.b16 %v4659
    %v4724 = vunpack.c.l.b16 %v4660
    %v4725 = vunpack.c.l.b16 %v4661
    %v4726 = vunpack.c.l.b16 %v4662
    %v4727 = vunpack.c.l.b16 %v4663
    %v4728 = vunpack.c.l.b16 %v4664
    %v4729 = vunpack.c.l.b16 %v4665
    %v4730 = vunpack.c.l.b16 %v4666
    %v4731 = vunpack.c.l.b16 %v4667
    %v4732 = vunpack.c.l.b16 %v4668
    %v4733 = vunpack.c.l.b16 %v4669
    %v4734 = vunpack.c.l.b16 %v4670
    %v4735 = vunpack.c.l.b16 %v4671
    %v4736 = vunpack.c.l.b16 %v4672
    %v4737 = vunpack.c.l.b16 %v4673
    %v4738 = vunpack.c.l.b16 %v4674
    %v4739 = vunpack.c.l.b16 %v4675
    %v4740 = vunpack.c.l.b16 %v4676
    %v4741 = vunpack.c.l.b16 %v4677
    %v4742 = vunpack.c.l.b16 %v4678
    %v4743 = vunpack.c.l.b16 %v4679
    %v4744 = vunpack.c.l.b16 %v4680
    %v4745 = vunpack.c.l.b16 %v4681
    %v4746 = vunpack.c.l.b16 %v4682
    %v4747 = vpack.c.b16 %v4716, %v4715
    %v4748 = vpack.c.b16 %v4718, %v4717
    %v4749 = vpack.c.b16 %v4720, %v4719
    %v4750 = vpack.c.b16 %v4722, %v4721
    %v4751 = vpack.c.b16 %v4724, %v4723
    %v4752 = vpack.c.b16 %v4726, %v4725
    %v4753 = vpack.c.b16 %v4728, %v4727
    %v4754 = vpack.c.b16 %v4730, %v4729
    %v4755 = vpack.c.b16 %v4732, %v4731
    %v4756 = vpack.c.b16 %v4734, %v4733
    %v4757 = vpack.c.b16 %v4736, %v4735
    %v4758 = vpack.c.b16 %v4738, %v4737
    %v4759 = vpack.c.b16 %v4740, %v4739
    %v4760 = vpack.c.b16 %v4742, %v4741
    %v4761 = vpack.c.b16 %v4744, %v4743
    %v4762 = vpack.c.b16 %v4746, %v4745
    %4779 = vmatprep.subr.bf16.mxu0 0
    %4780 = vmatpush1.bf16.msra.mxu0 %v4754
    %4781 = vmatprep.subr.bf16.mxu0 0
    %4782 = vmatpush1.bf16.msra.mxu0 %v4753
    %4783 = vmatprep.subr.bf16.mxu0 0
    %4784 = vmatpush1.bf16.msra.mxu0 %v4752
    %4785 = vmatprep.subr.bf16.mxu0 0
    %4786 = vmatpush1.bf16.msra.mxu0 %v4751
    %4787 = vmatprep.subr.bf16.mxu0 0
    %4788 = vmatpush1.bf16.msra.mxu0 %v4750
    %4789 = vmatprep.subr.bf16.mxu0 0
    %4790 = vmatpush1.bf16.msra.mxu0 %v4749
    %4791 = vmatprep.subr.bf16.mxu0 0
    %4792 = vmatpush1.bf16.msra.mxu0 %v4748
    %4793 = vmatprep.subr.bf16.mxu0 0
    %4794 = vmatpush1.bf16.msra.mxu0 %v4747
    %4795 = vmatprep.subr.bf16.mxu0 0
    %4796 = vmatpush2.bf16.msra.mxu0 %v4762
    %4797 = vmatprep.subr.bf16.mxu0 0
    %4798 = vmatpush2.bf16.msra.mxu0 %v4761
    %4799 = vmatprep.subr.bf16.mxu0 0
    %4800 = vmatpush2.bf16.msra.mxu0 %v4760
    %4801 = vmatprep.subr.bf16.mxu0 0
    %4802 = vmatpush2.bf16.msra.mxu0 %v4759
    %4803 = vmatprep.subr.bf16.mxu0 0
    %4804 = vmatpush2.bf16.msra.mxu0 %v4758
    %4805 = vmatprep.subr.bf16.mxu0 0
    %4806 = vmatpush2.bf16.msra.mxu0 %v4757
    %4807 = vmatprep.subr.bf16.mxu0 0
    %4808 = vmatpush2.bf16.msra.mxu0 %v4756
    %4809 = vmatprep.subr.bf16.mxu0 0
    %4810 = vmatpush2.bf16.msra.mxu0 %v4755
    %4811 = vmatprep.mubr.bf16.mxu0 %v4643
    %4812 = vmatmul.mubr.bf16.gmra.mxu0 %v4642
    %v4813 = vpop.f32.mrf.mxu0
    %v4814 = vadd.f32 0.0, %v4813
    %v4815 = vpop.f32.mrf.mxu0
    %v4816 = vpop.f32.mrf.mxu0
    %v4817 = vadd.f32 0.0, %v4816
    %v4818 = vpop.f32.mrf.mxu0
    %4819 = vmatprep.mubr.bf16.mxu0 %v4645
    %4820 = vmatmul.mubr.bf16.gmra.mxu0 %v4644
    %v4821 = vpop.f32.mrf.mxu0
    %v4822 = vadd.f32 0.0, %v4821
    %v4823 = vpop.f32.mrf.mxu0
    %v4824 = vpop.f32.mrf.mxu0
    %v4825 = vadd.f32 0.0, %v4824
    %v4826 = vpop.f32.mrf.mxu0
    %4827 = vmatprep.mubr.bf16.mxu0 %v4647
    %4828 = vmatmul.mubr.bf16.gmra.mxu0 %v4646
    %v4829 = vpop.f32.mrf.mxu0
    %v4830 = vadd.f32 0.0, %v4829
    %v4831 = vpop.f32.mrf.mxu0
    %v4832 = vpop.f32.mrf.mxu0
    %v4833 = vadd.f32 0.0, %v4832
    %v4834 = vpop.f32.mrf.mxu0
    %4835 = vmatprep.mubr.bf16.mxu0 %v4649
    %4836 = vmatmul.mubr.bf16.gmra.mxu0 %v4648
    %v4837 = vpop.f32.mrf.mxu0
    %v4838 = vadd.f32 0.0, %v4837
    %v4839 = vpop.f32.mrf.mxu0
    %v4840 = vpop.f32.mrf.mxu0
    %v4841 = vpop.f32.mrf.mxu0
    %4842 = vdwg.mxu0
    %v4843 = vadd.f32 %v4526, %v4814
    %v4844 = vadd.f32 %v4527, %v4817
    %v4845 = vadd.f32 %v4528, %v4822
    %v4846 = vadd.f32 %v4529, %v4825
    %v4847 = vadd.f32 %v4530, %v4830
    %v4848 = vadd.f32 %v4531, %v4833
    %v4849 = vadd.f32 %v4532, %v4838
    %s4850 = scalar_lea.vmem %s29, 112
    %v4851 = vld [vmem:[%s4850] sm:$0xf]
    %v4852 = vld [vmem:[%s4850 + $0x4] sm:$0xf]
    %v4853 = vld [vmem:[%s4850 + $0x8] sm:$0xf]
    %v4854 = vld [vmem:[%s4850 + $0xc] sm:$0xf]
    %v4855 = vld [vmem:[%s4850 + $0x10] sm:$0xf]
    %v4856 = vld [vmem:[%s4850 + $0x14] sm:$0xf]
    %v4857 = vld [vmem:[%s4850 + $0x18] sm:$0x3]
    %v4865 = vunpack.c.l.b16 %v4851
    %v4866 = vunpack.c.l.b16 %v4852
    %v4867 = vunpack.c.l.b16 %v4853
    %v4868 = vunpack.c.l.b16 %v4854
    %v4869 = vunpack.c.l.b16 %v4855
    %v4870 = vunpack.c.l.b16 %v4856
    %v4871 = vunpack.c.l.b16 %v4857
    %v4872 = vpack.c.b16 %v4866, %v4865
    %v4873 = vpack.c.b16 %v4868, %v4867
    %v4874 = vpack.c.b16 %v4870, %v4869
    %v4875 = vpack.c.b16 %v4871, %v4871
    %v4877 = vsel %vm461, %v4872, 0
    %v4880 = vsel %vm461, %v4873, 0
    %v4883 = vsel %vm461, %v4874, 0
    %v4886 = vsel %vm461, %v4875, 0
    %4888 = vmatprep.subr.bf16.mxu0 0
    %4889 = vmatpush1.bf16.msra.mxu0 0
    %4890 = vmatprep.subr.bf16.mxu0 0
    %4891 = vmatpush1.bf16.msra.mxu0 0
    %4892 = vmatprep.subr.bf16.mxu0 0
    %4893 = vmatpush1.bf16.msra.mxu0 0
    %4894 = vmatprep.subr.bf16.mxu0 0
    %4895 = vmatpush1.bf16.msra.mxu0 0
    %4896 = vmatprep.subr.bf16.mxu0 %v1304
    %4897 = vmatpush1.bf16.msra.mxu0 %v1303
    %4898 = vmatprep.subr.bf16.mxu0 %v1302
    %4899 = vmatpush1.bf16.msra.mxu0 %v1301
    %4900 = vmatprep.subr.bf16.mxu0 %v1300
    %4901 = vmatpush1.bf16.msra.mxu0 %v1299
    %4902 = vmatprep.subr.bf16.mxu0 %v1298
    %4903 = vmatpush1.bf16.msra.mxu0 %v1297
    %4904 = vmatprep.subr.bf16.mxu0 0
    %4905 = vmatpush2.bf16.msra.mxu0 0
    %4906 = vmatprep.subr.bf16.mxu0 0
    %4907 = vmatpush2.bf16.msra.mxu0 0
    %4908 = vmatprep.subr.bf16.mxu0 0
    %4909 = vmatpush2.bf16.msra.mxu0 0
    %4910 = vmatprep.subr.bf16.mxu0 0
    %4911 = vmatpush2.bf16.msra.mxu0 0
    %4912 = vmatprep.subr.bf16.mxu0 0
    %4913 = vmatpush2.bf16.msra.mxu0 0
    %4914 = vmatprep.subr.bf16.mxu0 0
    %4915 = vmatpush2.bf16.msra.mxu0 0
    %4916 = vmatprep.subr.bf16.mxu0 0
    %4917 = vmatpush2.bf16.msra.mxu0 0
    %4918 = vmatprep.subr.bf16.mxu0 0
    %4919 = vmatpush2.bf16.msra.mxu0 0
    %4920 = vmatprep.mubr.bf16.mxu0 0
    %4921 = vmatmul.mubr.bf16.gmra.mxu0 %v4877
    %v4922 = vpop.f32.mrf.mxu0
    %v4923 = vadd.f32 0.0, %v4922
    %v4924 = vpop.f32.mrf.mxu0
    %v4925 = vadd.f32 0.0, %v4924
    %v4926 = vpop.f32.mrf.mxu0
    %v4927 = vadd.f32 0.0, %v4926
    %v4928 = vpop.f32.mrf.mxu0
    %v4929 = vadd.f32 0.0, %v4928
    %4930 = vmatprep.mubr.bf16.mxu0 0
    %4931 = vmatmul.mubr.bf16.gmra.mxu0 %v4880
    %v4932 = vpop.f32.mrf.mxu0
    %v4933 = vadd.f32 0.0, %v4932
    %v4934 = vpop.f32.mrf.mxu0
    %v4935 = vadd.f32 0.0, %v4934
    %v4936 = vpop.f32.mrf.mxu0
    %v4937 = vadd.f32 0.0, %v4936
    %v4938 = vpop.f32.mrf.mxu0
    %v4939 = vadd.f32 0.0, %v4938
    %4940 = vmatprep.mubr.bf16.mxu0 0
    %4941 = vmatmul.mubr.bf16.gmra.mxu0 %v4883
    %v4942 = vpop.f32.mrf.mxu0
    %v4943 = vadd.f32 0.0, %v4942
    %v4944 = vpop.f32.mrf.mxu0
    %v4945 = vadd.f32 0.0, %v4944
    %v4946 = vpop.f32.mrf.mxu0
    %v4947 = vadd.f32 0.0, %v4946
    %v4948 = vpop.f32.mrf.mxu0
    %v4949 = vadd.f32 0.0, %v4948
    %4950 = vmatprep.mubr.bf16.mxu0 0
    %4951 = vmatmul.mubr.bf16.gmra.mxu0 %v4886
    %v4952 = vpop.f32.mrf.mxu0
    %v4953 = vadd.f32 0.0, %v4952
    %v4954 = vpop.f32.mrf.mxu0
    %v4955 = vadd.f32 0.0, %v4954
    %v4956 = vpop.f32.mrf.mxu0
    %v4957 = vpop.f32.mrf.mxu0
    %4958 = vdwg.mxu0
    %v4959 = vpack.c.bf16 %v4927, %v4923
    %v4960 = vpack.c.bf16 %v4929, %v4925
    %v4961 = vpack.c.bf16 %v4937, %v4933
    %v4962 = vpack.c.bf16 %v4939, %v4935
    %v4963 = vpack.c.bf16 %v4947, %v4943
    %v4964 = vpack.c.bf16 %v4949, %v4945
    %v4965 = vpack.c.bf16 %v4953, %v4953
    %v4966 = vpack.c.bf16 %v4955, %v4955
    %s4967 = scalar_lea.vmem %s31, 512
    %v4968 = vld [vmem:[%s4967] sm:$0xf]
    %v4969 = vld [vmem:[%s4967 + $0x4] sm:$0xf]
    %v4970 = vld [vmem:[%s4967 + $0x8] sm:$0xf]
    %v4971 = vld [vmem:[%s4967 + $0xc] sm:$0xf]
    %v4972 = vld [vmem:[%s4967 + $0x10] sm:$0xf]
    %v4973 = vld [vmem:[%s4967 + $0x14] sm:$0xf]
    %v4974 = vld [vmem:[%s4967 + $0x18] sm:$0xf]
    %v4975 = vld [vmem:[%s4967 + $0x1c] sm:$0xf]
    %v4976 = vld [vmem:[%s4967 + $0x20] sm:$0xf]
    %v4977 = vld [vmem:[%s4967 + $0x24] sm:$0xf]
    %v4978 = vld [vmem:[%s4967 + $0x28] sm:$0xf]
    %v4979 = vld [vmem:[%s4967 + $0x2c] sm:$0xf]
    %v4980 = vld [vmem:[%s4967 + $0x30] sm:$0xf]
    %v4981 = vld [vmem:[%s4967 + $0x34] sm:$0xf]
    %v4982 = vld [vmem:[%s4967 + $0x38] sm:$0xf]
    %v4983 = vld [vmem:[%s4967 + $0x3c] sm:$0xf]
    %v4984 = vld [vmem:[%s4967 + $0x40] sm:$0xf]
    %v4985 = vld [vmem:[%s4967 + $0x44] sm:$0xf]
    %v4986 = vld [vmem:[%s4967 + $0x48] sm:$0xf]
    %v4987 = vld [vmem:[%s4967 + $0x4c] sm:$0xf]
    %v4988 = vld [vmem:[%s4967 + $0x50] sm:$0xf]
    %v4989 = vld [vmem:[%s4967 + $0x54] sm:$0xf]
    %v4990 = vld [vmem:[%s4967 + $0x58] sm:$0xf]
    %v4991 = vld [vmem:[%s4967 + $0x5c] sm:$0xf]
    %v4992 = vld [vmem:[%s4967 + $0x60] sm:$0xf]
    %v4993 = vld [vmem:[%s4967 + $0x64] sm:$0xf]
    %v4994 = vld [vmem:[%s4967 + $0x68] sm:$0xf]
    %v4995 = vld [vmem:[%s4967 + $0x6c] sm:$0xf]
    %v4996 = vld [vmem:[%s4967 + $0x70] sm:$0xf]
    %v4997 = vld [vmem:[%s4967 + $0x74] sm:$0xf]
    %v4998 = vld [vmem:[%s4967 + $0x78] sm:$0xf]
    %v4999 = vld [vmem:[%s4967 + $0x7c] sm:$0xf]
    %v5032 = vunpack.c.l.b16 %v4968
    %v5033 = vunpack.c.l.b16 %v4969
    %v5034 = vunpack.c.l.b16 %v4970
    %v5035 = vunpack.c.l.b16 %v4971
    %v5036 = vunpack.c.l.b16 %v4972
    %v5037 = vunpack.c.l.b16 %v4973
    %v5038 = vunpack.c.l.b16 %v4974
    %v5039 = vunpack.c.l.b16 %v4975
    %v5040 = vunpack.c.l.b16 %v4976
    %v5041 = vunpack.c.l.b16 %v4977
    %v5042 = vunpack.c.l.b16 %v4978
    %v5043 = vunpack.c.l.b16 %v4979
    %v5044 = vunpack.c.l.b16 %v4980
    %v5045 = vunpack.c.l.b16 %v4981
    %v5046 = vunpack.c.l.b16 %v4982
    %v5047 = vunpack.c.l.b16 %v4983
    %v5048 = vunpack.c.l.b16 %v4984
    %v5049 = vunpack.c.l.b16 %v4985
    %v5050 = vunpack.c.l.b16 %v4986
    %v5051 = vunpack.c.l.b16 %v4987
    %v5052 = vunpack.c.l.b16 %v4988
    %v5053 = vunpack.c.l.b16 %v4989
    %v5054 = vunpack.c.l.b16 %v4990
    %v5055 = vunpack.c.l.b16 %v4991
    %v5056 = vunpack.c.l.b16 %v4992
    %v5057 = vunpack.c.l.b16 %v4993
    %v5058 = vunpack.c.l.b16 %v4994
    %v5059 = vunpack.c.l.b16 %v4995
    %v5060 = vunpack.c.l.b16 %v4996
    %v5061 = vunpack.c.l.b16 %v4997
    %v5062 = vunpack.c.l.b16 %v4998
    %v5063 = vunpack.c.l.b16 %v4999
    %v5064 = vpack.c.b16 %v5033, %v5032
    %v5065 = vpack.c.b16 %v5035, %v5034
    %v5066 = vpack.c.b16 %v5037, %v5036
    %v5067 = vpack.c.b16 %v5039, %v5038
    %v5068 = vpack.c.b16 %v5041, %v5040
    %v5069 = vpack.c.b16 %v5043, %v5042
    %v5070 = vpack.c.b16 %v5045, %v5044
    %v5071 = vpack.c.b16 %v5047, %v5046
    %v5072 = vpack.c.b16 %v5049, %v5048
    %v5073 = vpack.c.b16 %v5051, %v5050
    %v5074 = vpack.c.b16 %v5053, %v5052
    %v5075 = vpack.c.b16 %v5055, %v5054
    %v5076 = vpack.c.b16 %v5057, %v5056
    %v5077 = vpack.c.b16 %v5059, %v5058
    %v5078 = vpack.c.b16 %v5061, %v5060
    %v5079 = vpack.c.b16 %v5063, %v5062
    %5096 = vmatprep.subr.bf16.mxu0 0
    %5097 = vmatpush1.bf16.msra.mxu0 %v5071
    %5098 = vmatprep.subr.bf16.mxu0 0
    %5099 = vmatpush1.bf16.msra.mxu0 %v5070
    %5100 = vmatprep.subr.bf16.mxu0 0
    %5101 = vmatpush1.bf16.msra.mxu0 %v5069
    %5102 = vmatprep.subr.bf16.mxu0 0
    %5103 = vmatpush1.bf16.msra.mxu0 %v5068
    %5104 = vmatprep.subr.bf16.mxu0 0
    %5105 = vmatpush1.bf16.msra.mxu0 %v5067
    %5106 = vmatprep.subr.bf16.mxu0 0
    %5107 = vmatpush1.bf16.msra.mxu0 %v5066
    %5108 = vmatprep.subr.bf16.mxu0 0
    %5109 = vmatpush1.bf16.msra.mxu0 %v5065
    %5110 = vmatprep.subr.bf16.mxu0 0
    %5111 = vmatpush1.bf16.msra.mxu0 %v5064
    %5112 = vmatprep.subr.bf16.mxu0 0
    %5113 = vmatpush2.bf16.msra.mxu0 %v5079
    %5114 = vmatprep.subr.bf16.mxu0 0
    %5115 = vmatpush2.bf16.msra.mxu0 %v5078
    %5116 = vmatprep.subr.bf16.mxu0 0
    %5117 = vmatpush2.bf16.msra.mxu0 %v5077
    %5118 = vmatprep.subr.bf16.mxu0 0
    %5119 = vmatpush2.bf16.msra.mxu0 %v5076
    %5120 = vmatprep.subr.bf16.mxu0 0
    %5121 = vmatpush2.bf16.msra.mxu0 %v5075
    %5122 = vmatprep.subr.bf16.mxu0 0
    %5123 = vmatpush2.bf16.msra.mxu0 %v5074
    %5124 = vmatprep.subr.bf16.mxu0 0
    %5125 = vmatpush2.bf16.msra.mxu0 %v5073
    %5126 = vmatprep.subr.bf16.mxu0 0
    %5127 = vmatpush2.bf16.msra.mxu0 %v5072
    %5128 = vmatprep.mubr.bf16.mxu0 %v4960
    %5129 = vmatmul.mubr.bf16.gmra.mxu0 %v4959
    %v5130 = vpop.f32.mrf.mxu0
    %v5131 = vadd.f32 0.0, %v5130
    %v5132 = vpop.f32.mrf.mxu0
    %v5133 = vpop.f32.mrf.mxu0
    %v5134 = vadd.f32 0.0, %v5133
    %v5135 = vpop.f32.mrf.mxu0
    %5136 = vmatprep.mubr.bf16.mxu0 %v4962
    %5137 = vmatmul.mubr.bf16.gmra.mxu0 %v4961
    %v5138 = vpop.f32.mrf.mxu0
    %v5139 = vadd.f32 0.0, %v5138
    %v5140 = vpop.f32.mrf.mxu0
    %v5141 = vpop.f32.mrf.mxu0
    %v5142 = vadd.f32 0.0, %v5141
    %v5143 = vpop.f32.mrf.mxu0
    %5144 = vmatprep.mubr.bf16.mxu0 %v4964
    %5145 = vmatmul.mubr.bf16.gmra.mxu0 %v4963
    %v5146 = vpop.f32.mrf.mxu0
    %v5147 = vadd.f32 0.0, %v5146
    %v5148 = vpop.f32.mrf.mxu0
    %v5149 = vpop.f32.mrf.mxu0
    %v5150 = vadd.f32 0.0, %v5149
    %v5151 = vpop.f32.mrf.mxu0
    %5152 = vmatprep.mubr.bf16.mxu0 %v4966
    %5153 = vmatmul.mubr.bf16.gmra.mxu0 %v4965
    %v5154 = vpop.f32.mrf.mxu0
    %v5155 = vadd.f32 0.0, %v5154
    %v5156 = vpop.f32.mrf.mxu0
    %v5157 = vpop.f32.mrf.mxu0
    %v5158 = vpop.f32.mrf.mxu0
    %5159 = vdwg.mxu0
    %v5160 = vadd.f32 %v4843, %v5131
    %v5161 = vadd.f32 %v4844, %v5134
    %v5162 = vadd.f32 %v4845, %v5139
    %v5163 = vadd.f32 %v4846, %v5142
    %v5164 = vadd.f32 %v4847, %v5147
    %v5165 = vadd.f32 %v4848, %v5150
    %v5166 = vadd.f32 %v4849, %v5155
    %s5167 = scalar_lea.vmem %s29, 140
    %v5168 = vld [vmem:[%s5167] sm:$0xf]
    %v5169 = vld [vmem:[%s5167 + $0x4] sm:$0xf]
    %v5170 = vld [vmem:[%s5167 + $0x8] sm:$0xf]
    %v5171 = vld [vmem:[%s5167 + $0xc] sm:$0xf]
    %v5172 = vld [vmem:[%s5167 + $0x10] sm:$0xf]
    %v5173 = vld [vmem:[%s5167 + $0x14] sm:$0xf]
    %v5174 = vld [vmem:[%s5167 + $0x18] sm:$0x3]
    %v5182 = vunpack.c.l.b16 %v5168
    %v5183 = vunpack.c.l.b16 %v5169
    %v5184 = vunpack.c.l.b16 %v5170
    %v5185 = vunpack.c.l.b16 %v5171
    %v5186 = vunpack.c.l.b16 %v5172
    %v5187 = vunpack.c.l.b16 %v5173
    %v5188 = vunpack.c.l.b16 %v5174
    %v5189 = vpack.c.b16 %v5183, %v5182
    %v5190 = vpack.c.b16 %v5185, %v5184
    %v5191 = vpack.c.b16 %v5187, %v5186
    %v5192 = vpack.c.b16 %v5188, %v5188
    %v5194 = vsel %vm461, %v5189, 0
    %v5197 = vsel %vm461, %v5190, 0
    %v5200 = vsel %vm461, %v5191, 0
    %v5203 = vsel %vm461, %v5192, 0
    %5205 = vmatprep.subr.bf16.mxu0 0
    %5206 = vmatpush1.bf16.msra.mxu0 0
    %5207 = vmatprep.subr.bf16.mxu0 0
    %5208 = vmatpush1.bf16.msra.mxu0 0
    %5209 = vmatprep.subr.bf16.mxu0 0
    %5210 = vmatpush1.bf16.msra.mxu0 0
    %5211 = vmatprep.subr.bf16.mxu0 0
    %5212 = vmatpush1.bf16.msra.mxu0 0
    %5213 = vmatprep.subr.bf16.mxu0 %v1304
    %5214 = vmatpush1.bf16.msra.mxu0 %v1303
    %5215 = vmatprep.subr.bf16.mxu0 %v1302
    %5216 = vmatpush1.bf16.msra.mxu0 %v1301
    %5217 = vmatprep.subr.bf16.mxu0 %v1300
    %5218 = vmatpush1.bf16.msra.mxu0 %v1299
    %5219 = vmatprep.subr.bf16.mxu0 %v1298
    %5220 = vmatpush1.bf16.msra.mxu0 %v1297
    %5221 = vmatprep.subr.bf16.mxu0 0
    %5222 = vmatpush2.bf16.msra.mxu0 0
    %5223 = vmatprep.subr.bf16.mxu0 0
    %5224 = vmatpush2.bf16.msra.mxu0 0
    %5225 = vmatprep.subr.bf16.mxu0 0
    %5226 = vmatpush2.bf16.msra.mxu0 0
    %5227 = vmatprep.subr.bf16.mxu0 0
    %5228 = vmatpush2.bf16.msra.mxu0 0
    %5229 = vmatprep.subr.bf16.mxu0 0
    %5230 = vmatpush2.bf16.msra.mxu0 0
    %5231 = vmatprep.subr.bf16.mxu0 0
    %5232 = vmatpush2.bf16.msra.mxu0 0
    %5233 = vmatprep.subr.bf16.mxu0 0
    %5234 = vmatpush2.bf16.msra.mxu0 0
    %5235 = vmatprep.subr.bf16.mxu0 0
    %5236 = vmatpush2.bf16.msra.mxu0 0
    %5237 = vmatprep.mubr.bf16.mxu0 0
    %5238 = vmatmul.mubr.bf16.gmra.mxu0 %v5194
    %v5239 = vpop.f32.mrf.mxu0
    %v5240 = vadd.f32 0.0, %v5239
    %v5241 = vpop.f32.mrf.mxu0
    %v5242 = vadd.f32 0.0, %v5241
    %v5243 = vpop.f32.mrf.mxu0
    %v5244 = vadd.f32 0.0, %v5243
    %v5245 = vpop.f32.mrf.mxu0
    %v5246 = vadd.f32 0.0, %v5245
    %5247 = vmatprep.mubr.bf16.mxu0 0
    %5248 = vmatmul.mubr.bf16.gmra.mxu0 %v5197
    %v5249 = vpop.f32.mrf.mxu0
    %v5250 = vadd.f32 0.0, %v5249
    %v5251 = vpop.f32.mrf.mxu0
    %v5252 = vadd.f32 0.0, %v5251
    %v5253 = vpop.f32.mrf.mxu0
    %v5254 = vadd.f32 0.0, %v5253
    %v5255 = vpop.f32.mrf.mxu0
    %v5256 = vadd.f32 0.0, %v5255
    %5257 = vmatprep.mubr.bf16.mxu0 0
    %5258 = vmatmul.mubr.bf16.gmra.mxu0 %v5200
    %v5259 = vpop.f32.mrf.mxu0
    %v5260 = vadd.f32 0.0, %v5259
    %v5261 = vpop.f32.mrf.mxu0
    %v5262 = vadd.f32 0.0, %v5261
    %v5263 = vpop.f32.mrf.mxu0
    %v5264 = vadd.f32 0.0, %v5263
    %v5265 = vpop.f32.mrf.mxu0
    %v5266 = vadd.f32 0.0, %v5265
    %5267 = vmatprep.mubr.bf16.mxu0 0
    %5268 = vmatmul.mubr.bf16.gmra.mxu0 %v5203
    %v5269 = vpop.f32.mrf.mxu0
    %v5270 = vadd.f32 0.0, %v5269
    %v5271 = vpop.f32.mrf.mxu0
    %v5272 = vadd.f32 0.0, %v5271
    %v5273 = vpop.f32.mrf.mxu0
    %v5274 = vpop.f32.mrf.mxu0
    %5275 = vdwg.mxu0
    %v5276 = vpack.c.bf16 %v5244, %v5240
    %v5277 = vpack.c.bf16 %v5246, %v5242
    %v5278 = vpack.c.bf16 %v5254, %v5250
    %v5279 = vpack.c.bf16 %v5256, %v5252
    %v5280 = vpack.c.bf16 %v5264, %v5260
    %v5281 = vpack.c.bf16 %v5266, %v5262
    %v5282 = vpack.c.bf16 %v5270, %v5270
    %v5283 = vpack.c.bf16 %v5272, %v5272
    %s5284 = scalar_lea.vmem %s31, 640
    %v5285 = vld [vmem:[%s5284] sm:$0xf]
    %v5286 = vld [vmem:[%s5284 + $0x4] sm:$0xf]
    %v5287 = vld [vmem:[%s5284 + $0x8] sm:$0xf]
    %v5288 = vld [vmem:[%s5284 + $0xc] sm:$0xf]
    %v5289 = vld [vmem:[%s5284 + $0x10] sm:$0xf]
    %v5290 = vld [vmem:[%s5284 + $0x14] sm:$0xf]
    %v5291 = vld [vmem:[%s5284 + $0x18] sm:$0xf]
    %v5292 = vld [vmem:[%s5284 + $0x1c] sm:$0xf]
    %v5293 = vld [vmem:[%s5284 + $0x20] sm:$0xf]
    %v5294 = vld [vmem:[%s5284 + $0x24] sm:$0xf]
    %v5295 = vld [vmem:[%s5284 + $0x28] sm:$0xf]
    %v5296 = vld [vmem:[%s5284 + $0x2c] sm:$0xf]
    %v5297 = vld [vmem:[%s5284 + $0x30] sm:$0xf]
    %v5298 = vld [vmem:[%s5284 + $0x34] sm:$0xf]
    %v5299 = vld [vmem:[%s5284 + $0x38] sm:$0xf]
    %v5300 = vld [vmem:[%s5284 + $0x3c] sm:$0xf]
    %v5301 = vld [vmem:[%s5284 + $0x40] sm:$0xf]
    %v5302 = vld [vmem:[%s5284 + $0x44] sm:$0xf]
    %v5303 = vld [vmem:[%s5284 + $0x48] sm:$0xf]
    %v5304 = vld [vmem:[%s5284 + $0x4c] sm:$0xf]
    %v5305 = vld [vmem:[%s5284 + $0x50] sm:$0xf]
    %v5306 = vld [vmem:[%s5284 + $0x54] sm:$0xf]
    %v5307 = vld [vmem:[%s5284 + $0x58] sm:$0xf]
    %v5308 = vld [vmem:[%s5284 + $0x5c] sm:$0xf]
    %v5309 = vld [vmem:[%s5284 + $0x60] sm:$0xf]
    %v5310 = vld [vmem:[%s5284 + $0x64] sm:$0xf]
    %v5311 = vld [vmem:[%s5284 + $0x68] sm:$0xf]
    %v5312 = vld [vmem:[%s5284 + $0x6c] sm:$0xf]
    %v5313 = vld [vmem:[%s5284 + $0x70] sm:$0xf]
    %v5314 = vld [vmem:[%s5284 + $0x74] sm:$0xf]
    %v5315 = vld [vmem:[%s5284 + $0x78] sm:$0xf]
    %v5316 = vld [vmem:[%s5284 + $0x7c] sm:$0xf]
    %v5349 = vunpack.c.l.b16 %v5285
    %v5350 = vunpack.c.l.b16 %v5286
    %v5351 = vunpack.c.l.b16 %v5287
    %v5352 = vunpack.c.l.b16 %v5288
    %v5353 = vunpack.c.l.b16 %v5289
    %v5354 = vunpack.c.l.b16 %v5290
    %v5355 = vunpack.c.l.b16 %v5291
    %v5356 = vunpack.c.l.b16 %v5292
    %v5357 = vunpack.c.l.b16 %v5293
    %v5358 = vunpack.c.l.b16 %v5294
    %v5359 = vunpack.c.l.b16 %v5295
    %v5360 = vunpack.c.l.b16 %v5296
    %v5361 = vunpack.c.l.b16 %v5297
    %v5362 = vunpack.c.l.b16 %v5298
    %v5363 = vunpack.c.l.b16 %v5299
    %v5364 = vunpack.c.l.b16 %v5300
    %v5365 = vunpack.c.l.b16 %v5301
    %v5366 = vunpack.c.l.b16 %v5302
    %v5367 = vunpack.c.l.b16 %v5303
    %v5368 = vunpack.c.l.b16 %v5304
    %v5369 = vunpack.c.l.b16 %v5305
    %v5370 = vunpack.c.l.b16 %v5306
    %v5371 = vunpack.c.l.b16 %v5307
    %v5372 = vunpack.c.l.b16 %v5308
    %v5373 = vunpack.c.l.b16 %v5309
    %v5374 = vunpack.c.l.b16 %v5310
    %v5375 = vunpack.c.l.b16 %v5311
    %v5376 = vunpack.c.l.b16 %v5312
    %v5377 = vunpack.c.l.b16 %v5313
    %v5378 = vunpack.c.l.b16 %v5314
    %v5379 = vunpack.c.l.b16 %v5315
    %v5380 = vunpack.c.l.b16 %v5316
    %v5381 = vpack.c.b16 %v5350, %v5349
    %v5382 = vpack.c.b16 %v5352, %v5351
    %v5383 = vpack.c.b16 %v5354, %v5353
    %v5384 = vpack.c.b16 %v5356, %v5355
    %v5385 = vpack.c.b16 %v5358, %v5357
    %v5386 = vpack.c.b16 %v5360, %v5359
    %v5387 = vpack.c.b16 %v5362, %v5361
    %v5388 = vpack.c.b16 %v5364, %v5363
    %v5389 = vpack.c.b16 %v5366, %v5365
    %v5390 = vpack.c.b16 %v5368, %v5367
    %v5391 = vpack.c.b16 %v5370, %v5369
    %v5392 = vpack.c.b16 %v5372, %v5371
    %v5393 = vpack.c.b16 %v5374, %v5373
    %v5394 = vpack.c.b16 %v5376, %v5375
    %v5395 = vpack.c.b16 %v5378, %v5377
    %v5396 = vpack.c.b16 %v5380, %v5379
    %5413 = vmatprep.subr.bf16.mxu0 0
    %5414 = vmatpush1.bf16.msra.mxu0 %v5388
    %5415 = vmatprep.subr.bf16.mxu0 0
    %5416 = vmatpush1.bf16.msra.mxu0 %v5387
    %5417 = vmatprep.subr.bf16.mxu0 0
    %5418 = vmatpush1.bf16.msra.mxu0 %v5386
    %5419 = vmatprep.subr.bf16.mxu0 0
    %5420 = vmatpush1.bf16.msra.mxu0 %v5385
    %5421 = vmatprep.subr.bf16.mxu0 0
    %5422 = vmatpush1.bf16.msra.mxu0 %v5384
    %5423 = vmatprep.subr.bf16.mxu0 0
    %5424 = vmatpush1.bf16.msra.mxu0 %v5383
    %5425 = vmatprep.subr.bf16.mxu0 0
    %5426 = vmatpush1.bf16.msra.mxu0 %v5382
    %5427 = vmatprep.subr.bf16.mxu0 0
    %5428 = vmatpush1.bf16.msra.mxu0 %v5381
    %5429 = vmatprep.subr.bf16.mxu0 0
    %5430 = vmatpush2.bf16.msra.mxu0 %v5396
    %5431 = vmatprep.subr.bf16.mxu0 0
    %5432 = vmatpush2.bf16.msra.mxu0 %v5395
    %5433 = vmatprep.subr.bf16.mxu0 0
    %5434 = vmatpush2.bf16.msra.mxu0 %v5394
    %5435 = vmatprep.subr.bf16.mxu0 0
    %5436 = vmatpush2.bf16.msra.mxu0 %v5393
    %5437 = vmatprep.subr.bf16.mxu0 0
    %5438 = vmatpush2.bf16.msra.mxu0 %v5392
    %5439 = vmatprep.subr.bf16.mxu0 0
    %5440 = vmatpush2.bf16.msra.mxu0 %v5391
    %5441 = vmatprep.subr.bf16.mxu0 0
    %5442 = vmatpush2.bf16.msra.mxu0 %v5390
    %5443 = vmatprep.subr.bf16.mxu0 0
    %5444 = vmatpush2.bf16.msra.mxu0 %v5389
    %5445 = vmatprep.mubr.bf16.mxu0 %v5277
    %5446 = vmatmul.mubr.bf16.gmra.mxu0 %v5276
    %v5447 = vpop.f32.mrf.mxu0
    %v5448 = vadd.f32 0.0, %v5447
    %v5449 = vpop.f32.mrf.mxu0
    %v5450 = vpop.f32.mrf.mxu0
    %v5451 = vadd.f32 0.0, %v5450
    %v5452 = vpop.f32.mrf.mxu0
    %5453 = vmatprep.mubr.bf16.mxu0 %v5279
    %5454 = vmatmul.mubr.bf16.gmra.mxu0 %v5278
    %v5455 = vpop.f32.mrf.mxu0
    %v5456 = vadd.f32 0.0, %v5455
    %v5457 = vpop.f32.mrf.mxu0
    %v5458 = vpop.f32.mrf.mxu0
    %v5459 = vadd.f32 0.0, %v5458
    %v5460 = vpop.f32.mrf.mxu0
    %5461 = vmatprep.mubr.bf16.mxu0 %v5281
    %5462 = vmatmul.mubr.bf16.gmra.mxu0 %v5280
    %v5463 = vpop.f32.mrf.mxu0
    %v5464 = vadd.f32 0.0, %v5463
    %v5465 = vpop.f32.mrf.mxu0
    %v5466 = vpop.f32.mrf.mxu0
    %v5467 = vadd.f32 0.0, %v5466
    %v5468 = vpop.f32.mrf.mxu0
    %5469 = vmatprep.mubr.bf16.mxu0 %v5283
    %5470 = vmatmul.mubr.bf16.gmra.mxu0 %v5282
    %v5471 = vpop.f32.mrf.mxu0
    %v5472 = vadd.f32 0.0, %v5471
    %v5473 = vpop.f32.mrf.mxu0
    %v5474 = vpop.f32.mrf.mxu0
    %v5475 = vpop.f32.mrf.mxu0
    %5476 = vdwg.mxu0
    %v5477 = vadd.f32 %v5160, %v5448
    %v5478 = vadd.f32 %v5161, %v5451
    %v5479 = vadd.f32 %v5162, %v5456
    %v5480 = vadd.f32 %v5163, %v5459
    %v5481 = vadd.f32 %v5164, %v5464
    %v5482 = vadd.f32 %v5165, %v5467
    %v5483 = vadd.f32 %v5166, %v5472
    %s5484 = scalar_lea.vmem %s29, 168
    %v5485 = vld [vmem:[%s5484] sm:$0xf]
    %v5486 = vld [vmem:[%s5484 + $0x4] sm:$0xf]
    %v5487 = vld [vmem:[%s5484 + $0x8] sm:$0xf]
    %v5488 = vld [vmem:[%s5484 + $0xc] sm:$0xf]
    %v5489 = vld [vmem:[%s5484 + $0x10] sm:$0xf]
    %v5490 = vld [vmem:[%s5484 + $0x14] sm:$0xf]
    %v5491 = vld [vmem:[%s5484 + $0x18] sm:$0x3]
    %v5499 = vunpack.c.l.b16 %v5485
    %v5500 = vunpack.c.l.b16 %v5486
    %v5501 = vunpack.c.l.b16 %v5487
    %v5502 = vunpack.c.l.b16 %v5488
    %v5503 = vunpack.c.l.b16 %v5489
    %v5504 = vunpack.c.l.b16 %v5490
    %v5505 = vunpack.c.l.b16 %v5491
    %v5506 = vpack.c.b16 %v5500, %v5499
    %v5507 = vpack.c.b16 %v5502, %v5501
    %v5508 = vpack.c.b16 %v5504, %v5503
    %v5509 = vpack.c.b16 %v5505, %v5505
    %v5511 = vsel %vm461, %v5506, 0
    %v5514 = vsel %vm461, %v5507, 0
    %v5517 = vsel %vm461, %v5508, 0
    %v5520 = vsel %vm461, %v5509, 0
    %5522 = vmatprep.subr.bf16.mxu0 0
    %5523 = vmatpush1.bf16.msra.mxu0 0
    %5524 = vmatprep.subr.bf16.mxu0 0
    %5525 = vmatpush1.bf16.msra.mxu0 0
    %5526 = vmatprep.subr.bf16.mxu0 0
    %5527 = vmatpush1.bf16.msra.mxu0 0
    %5528 = vmatprep.subr.bf16.mxu0 0
    %5529 = vmatpush1.bf16.msra.mxu0 0
    %5530 = vmatprep.subr.bf16.mxu0 %v1304
    %5531 = vmatpush1.bf16.msra.mxu0 %v1303
    %5532 = vmatprep.subr.bf16.mxu0 %v1302
    %5533 = vmatpush1.bf16.msra.mxu0 %v1301
    %5534 = vmatprep.subr.bf16.mxu0 %v1300
    %5535 = vmatpush1.bf16.msra.mxu0 %v1299
    %5536 = vmatprep.subr.bf16.mxu0 %v1298
    %5537 = vmatpush1.bf16.msra.mxu0 %v1297
    %5538 = vmatprep.subr.bf16.mxu0 0
    %5539 = vmatpush2.bf16.msra.mxu0 0
    %5540 = vmatprep.subr.bf16.mxu0 0
    %5541 = vmatpush2.bf16.msra.mxu0 0
    %5542 = vmatprep.subr.bf16.mxu0 0
    %5543 = vmatpush2.bf16.msra.mxu0 0
    %5544 = vmatprep.subr.bf16.mxu0 0
    %5545 = vmatpush2.bf16.msra.mxu0 0
    %5546 = vmatprep.subr.bf16.mxu0 0
    %5547 = vmatpush2.bf16.msra.mxu0 0
    %5548 = vmatprep.subr.bf16.mxu0 0
    %5549 = vmatpush2.bf16.msra.mxu0 0
    %5550 = vmatprep.subr.bf16.mxu0 0
    %5551 = vmatpush2.bf16.msra.mxu0 0
    %5552 = vmatprep.subr.bf16.mxu0 0
    %5553 = vmatpush2.bf16.msra.mxu0 0
    %5554 = vmatprep.mubr.bf16.mxu0 0
    %5555 = vmatmul.mubr.bf16.gmra.mxu0 %v5511
    %v5556 = vpop.f32.mrf.mxu0
    %v5557 = vadd.f32 0.0, %v5556
    %v5558 = vpop.f32.mrf.mxu0
    %v5559 = vadd.f32 0.0, %v5558
    %v5560 = vpop.f32.mrf.mxu0
    %v5561 = vadd.f32 0.0, %v5560
    %v5562 = vpop.f32.mrf.mxu0
    %v5563 = vadd.f32 0.0, %v5562
    %5564 = vmatprep.mubr.bf16.mxu0 0
    %5565 = vmatmul.mubr.bf16.gmra.mxu0 %v5514
    %v5566 = vpop.f32.mrf.mxu0
    %v5567 = vadd.f32 0.0, %v5566
    %v5568 = vpop.f32.mrf.mxu0
    %v5569 = vadd.f32 0.0, %v5568
    %v5570 = vpop.f32.mrf.mxu0
    %v5571 = vadd.f32 0.0, %v5570
    %v5572 = vpop.f32.mrf.mxu0
    %v5573 = vadd.f32 0.0, %v5572
    %5574 = vmatprep.mubr.bf16.mxu0 0
    %5575 = vmatmul.mubr.bf16.gmra.mxu0 %v5517
    %v5576 = vpop.f32.mrf.mxu0
    %v5577 = vadd.f32 0.0, %v5576
    %v5578 = vpop.f32.mrf.mxu0
    %v5579 = vadd.f32 0.0, %v5578
    %v5580 = vpop.f32.mrf.mxu0
    %v5581 = vadd.f32 0.0, %v5580
    %v5582 = vpop.f32.mrf.mxu0
    %v5583 = vadd.f32 0.0, %v5582
    %5584 = vmatprep.mubr.bf16.mxu0 0
    %5585 = vmatmul.mubr.bf16.gmra.mxu0 %v5520
    %v5586 = vpop.f32.mrf.mxu0
    %v5587 = vadd.f32 0.0, %v5586
    %v5588 = vpop.f32.mrf.mxu0
    %v5589 = vadd.f32 0.0, %v5588
    %v5590 = vpop.f32.mrf.mxu0
    %v5591 = vpop.f32.mrf.mxu0
    %5592 = vdwg.mxu0
    %v5593 = vpack.c.bf16 %v5561, %v5557
    %v5594 = vpack.c.bf16 %v5563, %v5559
    %v5595 = vpack.c.bf16 %v5571, %v5567
    %v5596 = vpack.c.bf16 %v5573, %v5569
    %v5597 = vpack.c.bf16 %v5581, %v5577
    %v5598 = vpack.c.bf16 %v5583, %v5579
    %v5599 = vpack.c.bf16 %v5587, %v5587
    %v5600 = vpack.c.bf16 %v5589, %v5589
    %s5601 = scalar_lea.vmem %s31, 768
    %v5602 = vld [vmem:[%s5601] sm:$0xf]
    %v5603 = vld [vmem:[%s5601 + $0x4] sm:$0xf]
    %v5604 = vld [vmem:[%s5601 + $0x8] sm:$0xf]
    %v5605 = vld [vmem:[%s5601 + $0xc] sm:$0xf]
    %v5606 = vld [vmem:[%s5601 + $0x10] sm:$0xf]
    %v5607 = vld [vmem:[%s5601 + $0x14] sm:$0xf]
    %v5608 = vld [vmem:[%s5601 + $0x18] sm:$0xf]
    %v5609 = vld [vmem:[%s5601 + $0x1c] sm:$0xf]
    %v5610 = vld [vmem:[%s5601 + $0x20] sm:$0xf]
    %v5611 = vld [vmem:[%s5601 + $0x24] sm:$0xf]
    %v5612 = vld [vmem:[%s5601 + $0x28] sm:$0xf]
    %v5613 = vld [vmem:[%s5601 + $0x2c] sm:$0xf]
    %v5614 = vld [vmem:[%s5601 + $0x30] sm:$0xf]
    %v5615 = vld [vmem:[%s5601 + $0x34] sm:$0xf]
    %v5616 = vld [vmem:[%s5601 + $0x38] sm:$0xf]
    %v5617 = vld [vmem:[%s5601 + $0x3c] sm:$0xf]
    %v5618 = vld [vmem:[%s5601 + $0x40] sm:$0xf]
    %v5619 = vld [vmem:[%s5601 + $0x44] sm:$0xf]
    %v5620 = vld [vmem:[%s5601 + $0x48] sm:$0xf]
    %v5621 = vld [vmem:[%s5601 + $0x4c] sm:$0xf]
    %v5622 = vld [vmem:[%s5601 + $0x50] sm:$0xf]
    %v5623 = vld [vmem:[%s5601 + $0x54] sm:$0xf]
    %v5624 = vld [vmem:[%s5601 + $0x58] sm:$0xf]
    %v5625 = vld [vmem:[%s5601 + $0x5c] sm:$0xf]
    %v5626 = vld [vmem:[%s5601 + $0x60] sm:$0xf]
    %v5627 = vld [vmem:[%s5601 + $0x64] sm:$0xf]
    %v5628 = vld [vmem:[%s5601 + $0x68] sm:$0xf]
    %v5629 = vld [vmem:[%s5601 + $0x6c] sm:$0xf]
    %v5630 = vld [vmem:[%s5601 + $0x70] sm:$0xf]
    %v5631 = vld [vmem:[%s5601 + $0x74] sm:$0xf]
    %v5632 = vld [vmem:[%s5601 + $0x78] sm:$0xf]
    %v5633 = vld [vmem:[%s5601 + $0x7c] sm:$0xf]
    %v5666 = vunpack.c.l.b16 %v5602
    %v5667 = vunpack.c.l.b16 %v5603
    %v5668 = vunpack.c.l.b16 %v5604
    %v5669 = vunpack.c.l.b16 %v5605
    %v5670 = vunpack.c.l.b16 %v5606
    %v5671 = vunpack.c.l.b16 %v5607
    %v5672 = vunpack.c.l.b16 %v5608
    %v5673 = vunpack.c.l.b16 %v5609
    %v5674 = vunpack.c.l.b16 %v5610
    %v5675 = vunpack.c.l.b16 %v5611
    %v5676 = vunpack.c.l.b16 %v5612
    %v5677 = vunpack.c.l.b16 %v5613
    %v5678 = vunpack.c.l.b16 %v5614
    %v5679 = vunpack.c.l.b16 %v5615
    %v5680 = vunpack.c.l.b16 %v5616
    %v5681 = vunpack.c.l.b16 %v5617
    %v5682 = vunpack.c.l.b16 %v5618
    %v5683 = vunpack.c.l.b16 %v5619
    %v5684 = vunpack.c.l.b16 %v5620
    %v5685 = vunpack.c.l.b16 %v5621
    %v5686 = vunpack.c.l.b16 %v5622
    %v5687 = vunpack.c.l.b16 %v5623
    %v5688 = vunpack.c.l.b16 %v5624
    %v5689 = vunpack.c.l.b16 %v5625
    %v5690 = vunpack.c.l.b16 %v5626
    %v5691 = vunpack.c.l.b16 %v5627
    %v5692 = vunpack.c.l.b16 %v5628
    %v5693 = vunpack.c.l.b16 %v5629
    %v5694 = vunpack.c.l.b16 %v5630
    %v5695 = vunpack.c.l.b16 %v5631
    %v5696 = vunpack.c.l.b16 %v5632
    %v5697 = vunpack.c.l.b16 %v5633
    %v5698 = vpack.c.b16 %v5667, %v5666
    %v5699 = vpack.c.b16 %v5669, %v5668
    %v5700 = vpack.c.b16 %v5671, %v5670
    %v5701 = vpack.c.b16 %v5673, %v5672
    %v5702 = vpack.c.b16 %v5675, %v5674
    %v5703 = vpack.c.b16 %v5677, %v5676
    %v5704 = vpack.c.b16 %v5679, %v5678
    %v5705 = vpack.c.b16 %v5681, %v5680
    %v5706 = vpack.c.b16 %v5683, %v5682
    %v5707 = vpack.c.b16 %v5685, %v5684
    %v5708 = vpack.c.b16 %v5687, %v5686
    %v5709 = vpack.c.b16 %v5689, %v5688
    %v5710 = vpack.c.b16 %v5691, %v5690
    %v5711 = vpack.c.b16 %v5693, %v5692
    %v5712 = vpack.c.b16 %v5695, %v5694
    %v5713 = vpack.c.b16 %v5697, %v5696
    %5730 = vmatprep.subr.bf16.mxu0 0
    %5731 = vmatpush1.bf16.msra.mxu0 %v5705
    %5732 = vmatprep.subr.bf16.mxu0 0
    %5733 = vmatpush1.bf16.msra.mxu0 %v5704
    %5734 = vmatprep.subr.bf16.mxu0 0
    %5735 = vmatpush1.bf16.msra.mxu0 %v5703
    %5736 = vmatprep.subr.bf16.mxu0 0
    %5737 = vmatpush1.bf16.msra.mxu0 %v5702
    %5738 = vmatprep.subr.bf16.mxu0 0
    %5739 = vmatpush1.bf16.msra.mxu0 %v5701
    %5740 = vmatprep.subr.bf16.mxu0 0
    %5741 = vmatpush1.bf16.msra.mxu0 %v5700
    %5742 = vmatprep.subr.bf16.mxu0 0
    %5743 = vmatpush1.bf16.msra.mxu0 %v5699
    %5744 = vmatprep.subr.bf16.mxu0 0
    %5745 = vmatpush1.bf16.msra.mxu0 %v5698
    %5746 = vmatprep.subr.bf16.mxu0 0
    %5747 = vmatpush2.bf16.msra.mxu0 %v5713
    %5748 = vmatprep.subr.bf16.mxu0 0
    %5749 = vmatpush2.bf16.msra.mxu0 %v5712
    %5750 = vmatprep.subr.bf16.mxu0 0
    %5751 = vmatpush2.bf16.msra.mxu0 %v5711
    %5752 = vmatprep.subr.bf16.mxu0 0
    %5753 = vmatpush2.bf16.msra.mxu0 %v5710
    %5754 = vmatprep.subr.bf16.mxu0 0
    %5755 = vmatpush2.bf16.msra.mxu0 %v5709
    %5756 = vmatprep.subr.bf16.mxu0 0
    %5757 = vmatpush2.bf16.msra.mxu0 %v5708
    %5758 = vmatprep.subr.bf16.mxu0 0
    %5759 = vmatpush2.bf16.msra.mxu0 %v5707
    %5760 = vmatprep.subr.bf16.mxu0 0
    %5761 = vmatpush2.bf16.msra.mxu0 %v5706
    %5762 = vmatprep.mubr.bf16.mxu0 %v5594
    %5763 = vmatmul.mubr.bf16.gmra.mxu0 %v5593
    %v5764 = vpop.f32.mrf.mxu0
    %v5765 = vadd.f32 0.0, %v5764
    %v5766 = vpop.f32.mrf.mxu0
    %v5767 = vpop.f32.mrf.mxu0
    %v5768 = vadd.f32 0.0, %v5767
    %v5769 = vpop.f32.mrf.mxu0
    %5770 = vmatprep.mubr.bf16.mxu0 %v5596
    %5771 = vmatmul.mubr.bf16.gmra.mxu0 %v5595
    %v5772 = vpop.f32.mrf.mxu0
    %v5773 = vadd.f32 0.0, %v5772
    %v5774 = vpop.f32.mrf.mxu0
    %v5775 = vpop.f32.mrf.mxu0
    %v5776 = vadd.f32 0.0, %v5775
    %v5777 = vpop.f32.mrf.mxu0
    %5778 = vmatprep.mubr.bf16.mxu0 %v5598
    %5779 = vmatmul.mubr.bf16.gmra.mxu0 %v5597
    %v5780 = vpop.f32.mrf.mxu0
    %v5781 = vadd.f32 0.0, %v5780
    %v5782 = vpop.f32.mrf.mxu0
    %v5783 = vpop.f32.mrf.mxu0
    %v5784 = vadd.f32 0.0, %v5783
    %v5785 = vpop.f32.mrf.mxu0
    %5786 = vmatprep.mubr.bf16.mxu0 %v5600
    %5787 = vmatmul.mubr.bf16.gmra.mxu0 %v5599
    %v5788 = vpop.f32.mrf.mxu0
    %v5789 = vadd.f32 0.0, %v5788
    %v5790 = vpop.f32.mrf.mxu0
    %v5791 = vpop.f32.mrf.mxu0
    %v5792 = vpop.f32.mrf.mxu0
    %5793 = vdwg.mxu0
    %v5794 = vadd.f32 %v5477, %v5765
    %v5795 = vadd.f32 %v5478, %v5768
    %v5796 = vadd.f32 %v5479, %v5773
    %v5797 = vadd.f32 %v5480, %v5776
    %v5798 = vadd.f32 %v5481, %v5781
    %v5799 = vadd.f32 %v5482, %v5784
    %v5800 = vadd.f32 %v5483, %v5789
    %v5801 = vld [vmem:[#allocation12] sm:$0x1]
    %v5803 = vlaneseq
    %v5804 = vshrl.u32 %v5803, 7
    %v5805 = vsub.s32 0, %v5804
    %v5806 = vrot.slane %v5801, %v5805
    %v5808 = vadd.f32 %v5794, %v5806
    %v5809 = vadd.f32 %v5795, %v5806
    %v5810 = vadd.f32 %v5796, %v5806
    %v5811 = vadd.f32 %v5797, %v5806
    %v5812 = vadd.f32 %v5798, %v5806
    %v5813 = vadd.f32 %v5799, %v5806
    %v5814 = vadd.f32 %v5800, %v5806
    %v5815 = vmax.f32 %v5808, 0.0
    %v5816 = vmax.f32 %v5809, 0.0
    %v5817 = vmax.f32 %v5810, 0.0
    %v5818 = vmax.f32 %v5811, 0.0
    %v5819 = vmax.f32 %v5812, 0.0
    %v5820 = vmax.f32 %v5813, 0.0
    %v5821 = vmax.f32 %v5814, 0.0
    %v5822 = vpack.c.bf16 %v2305, %v2303
    %v5823 = vpack.c.bf16 %v2306, %v2304
    %v5824 = vpack.c.bf16 %v2309, %v2307
    %v5825 = vpack.c.bf16 %v2310, %v2308
    %v5826 = vld [vmem:[%s35] sm:$0xf]
    %v5827 = vld [vmem:[%s35 + $0x4] sm:$0xf]
    %v5828 = vld [vmem:[%s35 + $0x8] sm:$0x3]
    %v5832 = vunpack.c.l.b16 %v5826
    %v5833 = vunpack.c.l.b16 %v5827
    %v5834 = vunpack.c.l.b16 %v5828
    %v5835 = vpack.c.b16 %v5833, %v5832
    %v5836 = vpack.c.b16 %v5834, %v5834
    %v5838 = vsel %vm3002, %v5835, 0
    %v5841 = vsel %vm3002, %v5836, 0
    %5843 = vmatprep.subr.bf16.mxu0 0
    %5844 = vmatpush1.bf16.msra.mxu0 0
    %5845 = vmatprep.subr.bf16.mxu0 0
    %5846 = vmatpush1.bf16.msra.mxu0 0
    %5847 = vmatprep.subr.bf16.mxu0 0
    %5848 = vmatpush1.bf16.msra.mxu0 0
    %5849 = vmatprep.subr.bf16.mxu0 0
    %5850 = vmatpush1.bf16.msra.mxu0 0
    %5851 = vmatprep.subr.bf16.mxu0 0
    %5852 = vmatpush1.bf16.msra.mxu0 0
    %5853 = vmatprep.subr.bf16.mxu0 0
    %5854 = vmatpush1.bf16.msra.mxu0 0
    %5855 = vmatprep.subr.bf16.mxu0 %v5825
    %5856 = vmatpush1.bf16.msra.mxu0 %v5824
    %5857 = vmatprep.subr.bf16.mxu0 %v5823
    %5858 = vmatpush1.bf16.msra.mxu0 %v5822
    %5859 = vmatprep.subr.bf16.mxu0 0
    %5860 = vmatpush2.bf16.msra.mxu0 0
    %5861 = vmatprep.subr.bf16.mxu0 0
    %5862 = vmatpush2.bf16.msra.mxu0 0
    %5863 = vmatprep.subr.bf16.mxu0 0
    %5864 = vmatpush2.bf16.msra.mxu0 0
    %5865 = vmatprep.subr.bf16.mxu0 0
    %5866 = vmatpush2.bf16.msra.mxu0 0
    %5867 = vmatprep.subr.bf16.mxu0 0
    %5868 = vmatpush2.bf16.msra.mxu0 0
    %5869 = vmatprep.subr.bf16.mxu0 0
    %5870 = vmatpush2.bf16.msra.mxu0 0
    %5871 = vmatprep.subr.bf16.mxu0 0
    %5872 = vmatpush2.bf16.msra.mxu0 0
    %5873 = vmatprep.subr.bf16.mxu0 0
    %5874 = vmatpush2.bf16.msra.mxu0 0
    %5875 = vmatprep.mubr.bf16.mxu0 0
    %5876 = vmatmul.mubr.bf16.gmra.mxu0 %v5838
    %v5877 = vpop.f32.mrf.mxu0
    %v5878 = vadd.f32 0.0, %v5877
    %v5879 = vpop.f32.mrf.mxu0
    %v5880 = vadd.f32 0.0, %v5879
    %v5881 = vpop.f32.mrf.mxu0
    %v5882 = vadd.f32 0.0, %v5881
    %v5883 = vpop.f32.mrf.mxu0
    %v5884 = vadd.f32 0.0, %v5883
    %5885 = vmatprep.mubr.bf16.mxu0 0
    %5886 = vmatmul.mubr.bf16.gmra.mxu0 %v5841
    %v5887 = vpop.f32.mrf.mxu0
    %v5888 = vadd.f32 0.0, %v5887
    %v5889 = vpop.f32.mrf.mxu0
    %v5890 = vadd.f32 0.0, %v5889
    %v5891 = vpop.f32.mrf.mxu0
    %v5892 = vpop.f32.mrf.mxu0
    %5893 = vdwg.mxu0
    %v5894 = vpack.c.bf16 %v5882, %v5878
    %v5895 = vpack.c.bf16 %v5884, %v5880
    %v5896 = vpack.c.bf16 %v5888, %v5888
    %v5897 = vpack.c.bf16 %v5890, %v5890
    %v5898 = vld [vmem:[%s37] sm:$0xf]
    %v5899 = vld [vmem:[%s37 + $0x4] sm:$0xf]
    %v5900 = vld [vmem:[%s37 + $0x8] sm:$0xf]
    %v5901 = vld [vmem:[%s37 + $0xc] sm:$0xf]
    %v5902 = vld [vmem:[%s37 + $0x10] sm:$0xf]
    %v5903 = vld [vmem:[%s37 + $0x14] sm:$0xf]
    %v5904 = vld [vmem:[%s37 + $0x18] sm:$0xf]
    %v5905 = vld [vmem:[%s37 + $0x1c] sm:$0xf]
    %v5906 = vld [vmem:[%s37 + $0x20] sm:$0xf]
    %v5907 = vld [vmem:[%s37 + $0x24] sm:$0xf]
    %v5908 = vld [vmem:[%s37 + $0x28] sm:$0xf]
    %v5909 = vld [vmem:[%s37 + $0x2c] sm:$0xf]
    %v5910 = vld [vmem:[%s37 + $0x30] sm:$0xf]
    %v5911 = vld [vmem:[%s37 + $0x34] sm:$0xf]
    %v5912 = vld [vmem:[%s37 + $0x38] sm:$0xf]
    %v5913 = vld [vmem:[%s37 + $0x3c] sm:$0xf]
    %v5914 = vld [vmem:[%s37 + $0x40] sm:$0xf]
    %v5915 = vld [vmem:[%s37 + $0x44] sm:$0xf]
    %v5916 = vld [vmem:[%s37 + $0x48] sm:$0xf]
    %v5917 = vld [vmem:[%s37 + $0x4c] sm:$0xf]
    %v5918 = vld [vmem:[%s37 + $0x50] sm:$0xf]
    %v5919 = vld [vmem:[%s37 + $0x54] sm:$0xf]
    %v5920 = vld [vmem:[%s37 + $0x58] sm:$0xf]
    %v5921 = vld [vmem:[%s37 + $0x5c] sm:$0xf]
    %v5922 = vld [vmem:[%s37 + $0x60] sm:$0xf]
    %v5923 = vld [vmem:[%s37 + $0x64] sm:$0xf]
    %v5924 = vld [vmem:[%s37 + $0x68] sm:$0xf]
    %v5925 = vld [vmem:[%s37 + $0x6c] sm:$0xf]
    %v5926 = vld [vmem:[%s37 + $0x70] sm:$0xf]
    %v5927 = vld [vmem:[%s37 + $0x74] sm:$0xf]
    %v5928 = vld [vmem:[%s37 + $0x78] sm:$0xf]
    %v5929 = vld [vmem:[%s37 + $0x7c] sm:$0xf]
    %s5930 = scalar_lea.vmem %s35, 12
    %v5931 = vld [vmem:[%s5930] sm:$0xf]
    %v5932 = vld [vmem:[%s5930 + $0x4] sm:$0xf]
    %v5933 = vld [vmem:[%s5930 + $0x8] sm:$0x3]
    %v5937 = vunpack.c.l.b16 %v5931
    %v5938 = vunpack.c.l.b16 %v5932
    %v5939 = vunpack.c.l.b16 %v5933
    %v5940 = vpack.c.b16 %v5938, %v5937
    %v5941 = vpack.c.b16 %v5939, %v5939
    %v5943 = vsel %vm3002, %v5940, 0
    %v5946 = vsel %vm3002, %v5941, 0
    %5948 = vmatprep.subr.bf16.mxu0 0
    %5949 = vmatpush1.bf16.msra.mxu0 0
    %5950 = vmatprep.subr.bf16.mxu0 0
    %5951 = vmatpush1.bf16.msra.mxu0 0
    %5952 = vmatprep.subr.bf16.mxu0 0
    %5953 = vmatpush1.bf16.msra.mxu0 0
    %5954 = vmatprep.subr.bf16.mxu0 0
    %5955 = vmatpush1.bf16.msra.mxu0 0
    %5956 = vmatprep.subr.bf16.mxu0 0
    %5957 = vmatpush1.bf16.msra.mxu0 0
    %5958 = vmatprep.subr.bf16.mxu0 0
    %5959 = vmatpush1.bf16.msra.mxu0 0
    %5960 = vmatprep.subr.bf16.mxu0 %v5825
    %5961 = vmatpush1.bf16.msra.mxu0 %v5824
    %5962 = vmatprep.subr.bf16.mxu0 %v5823
    %5963 = vmatpush1.bf16.msra.mxu0 %v5822
    %5964 = vmatprep.subr.bf16.mxu0 0
    %5965 = vmatpush2.bf16.msra.mxu0 0
    %5966 = vmatprep.subr.bf16.mxu0 0
    %5967 = vmatpush2.bf16.msra.mxu0 0
    %5968 = vmatprep.subr.bf16.mxu0 0
    %5969 = vmatpush2.bf16.msra.mxu0 0
    %5970 = vmatprep.subr.bf16.mxu0 0
    %5971 = vmatpush2.bf16.msra.mxu0 0
    %5972 = vmatprep.subr.bf16.mxu0 0
    %5973 = vmatpush2.bf16.msra.mxu0 0
    %5974 = vmatprep.subr.bf16.mxu0 0
    %5975 = vmatpush2.bf16.msra.mxu0 0
    %5976 = vmatprep.subr.bf16.mxu0 0
    %5977 = vmatpush2.bf16.msra.mxu0 0
    %5978 = vmatprep.subr.bf16.mxu0 0
    %5979 = vmatpush2.bf16.msra.mxu0 0
    %5980 = vmatprep.mubr.bf16.mxu0 0
    %5981 = vmatmul.mubr.bf16.gmra.mxu0 %v5943
    %v5982 = vpop.f32.mrf.mxu0
    %v5983 = vadd.f32 0.0, %v5982
    %v5984 = vpop.f32.mrf.mxu0
    %v5985 = vadd.f32 0.0, %v5984
    %v5986 = vpop.f32.mrf.mxu0
    %v5987 = vadd.f32 0.0, %v5986
    %v5988 = vpop.f32.mrf.mxu0
    %v5989 = vadd.f32 0.0, %v5988
    %5990 = vmatprep.mubr.bf16.mxu0 0
    %5991 = vmatmul.mubr.bf16.gmra.mxu0 %v5946
    %v5992 = vpop.f32.mrf.mxu0
    %v5993 = vadd.f32 0.0, %v5992
    %v5994 = vpop.f32.mrf.mxu0
    %v5995 = vadd.f32 0.0, %v5994
    %v5996 = vpop.f32.mrf.mxu0
    %v5997 = vpop.f32.mrf.mxu0
    %5998 = vdwg.mxu0
    %v5999 = vpack.c.bf16 %v5987, %v5983
    %v6000 = vpack.c.bf16 %v5989, %v5985
    %v6001 = vpack.c.bf16 %v5993, %v5993
    %v6002 = vpack.c.bf16 %v5995, %v5995
    %s6003 = scalar_lea.vmem %s37, 128
    %v6004 = vld [vmem:[%s6003] sm:$0xf]
    %v6005 = vld [vmem:[%s6003 + $0x4] sm:$0xf]
    %v6006 = vld [vmem:[%s6003 + $0x8] sm:$0xf]
    %v6007 = vld [vmem:[%s6003 + $0xc] sm:$0xf]
    %v6008 = vld [vmem:[%s6003 + $0x10] sm:$0xf]
    %v6009 = vld [vmem:[%s6003 + $0x14] sm:$0xf]
    %v6010 = vld [vmem:[%s6003 + $0x18] sm:$0xf]
    %v6011 = vld [vmem:[%s6003 + $0x1c] sm:$0xf]
    %v6012 = vld [vmem:[%s6003 + $0x20] sm:$0xf]
    %v6013 = vld [vmem:[%s6003 + $0x24] sm:$0xf]
    %v6014 = vld [vmem:[%s6003 + $0x28] sm:$0xf]
    %v6015 = vld [vmem:[%s6003 + $0x2c] sm:$0xf]
    %v6016 = vld [vmem:[%s6003 + $0x30] sm:$0xf]
    %v6017 = vld [vmem:[%s6003 + $0x34] sm:$0xf]
    %v6018 = vld [vmem:[%s6003 + $0x38] sm:$0xf]
    %v6019 = vld [vmem:[%s6003 + $0x3c] sm:$0xf]
    %v6020 = vld [vmem:[%s6003 + $0x40] sm:$0xf]
    %v6021 = vld [vmem:[%s6003 + $0x44] sm:$0xf]
    %v6022 = vld [vmem:[%s6003 + $0x48] sm:$0xf]
    %v6023 = vld [vmem:[%s6003 + $0x4c] sm:$0xf]
    %v6024 = vld [vmem:[%s6003 + $0x50] sm:$0xf]
    %v6025 = vld [vmem:[%s6003 + $0x54] sm:$0xf]
    %v6026 = vld [vmem:[%s6003 + $0x58] sm:$0xf]
    %v6027 = vld [vmem:[%s6003 + $0x5c] sm:$0xf]
    %v6028 = vld [vmem:[%s6003 + $0x60] sm:$0xf]
    %v6029 = vld [vmem:[%s6003 + $0x64] sm:$0xf]
    %v6030 = vld [vmem:[%s6003 + $0x68] sm:$0xf]
    %v6031 = vld [vmem:[%s6003 + $0x6c] sm:$0xf]
    %v6032 = vld [vmem:[%s6003 + $0x70] sm:$0xf]
    %v6033 = vld [vmem:[%s6003 + $0x74] sm:$0xf]
    %v6034 = vld [vmem:[%s6003 + $0x78] sm:$0xf]
    %v6035 = vld [vmem:[%s6003 + $0x7c] sm:$0xf]
    %v6068 = vunpack.c.l.b16 %v6004
    %v6069 = vunpack.c.l.b16 %v6005
    %v6070 = vunpack.c.l.b16 %v6006
    %v6071 = vunpack.c.l.b16 %v6007
    %v6072 = vunpack.c.l.b16 %v6008
    %v6073 = vunpack.c.l.b16 %v6009
    %v6074 = vunpack.c.l.b16 %v6010
    %v6075 = vunpack.c.l.b16 %v6011
    %v6076 = vunpack.c.l.b16 %v6012
    %v6077 = vunpack.c.l.b16 %v6013
    %v6078 = vunpack.c.l.b16 %v6014
    %v6079 = vunpack.c.l.b16 %v6015
    %v6080 = vunpack.c.l.b16 %v6016
    %v6081 = vunpack.c.l.b16 %v6017
    %v6082 = vunpack.c.l.b16 %v6018
    %v6083 = vunpack.c.l.b16 %v6019
    %v6084 = vunpack.c.l.b16 %v6020
    %v6085 = vunpack.c.l.b16 %v6021
    %v6086 = vunpack.c.l.b16 %v6022
    %v6087 = vunpack.c.l.b16 %v6023
    %v6088 = vunpack.c.l.b16 %v6024
    %v6089 = vunpack.c.l.b16 %v6025
    %v6090 = vunpack.c.l.b16 %v6026
    %v6091 = vunpack.c.l.b16 %v6027
    %v6092 = vunpack.c.l.b16 %v6028
    %v6093 = vunpack.c.l.b16 %v6029
    %v6094 = vunpack.c.l.b16 %v6030
    %v6095 = vunpack.c.l.b16 %v6031
    %v6096 = vunpack.c.l.b16 %v6032
    %v6097 = vunpack.c.l.b16 %v6033
    %v6098 = vunpack.c.l.b16 %v6034
    %v6099 = vunpack.c.l.b16 %v6035
    %v6100 = vpack.c.b16 %v6069, %v6068
    %v6101 = vpack.c.b16 %v6071, %v6070
    %v6102 = vpack.c.b16 %v6073, %v6072
    %v6103 = vpack.c.b16 %v6075, %v6074
    %v6104 = vpack.c.b16 %v6077, %v6076
    %v6105 = vpack.c.b16 %v6079, %v6078
    %v6106 = vpack.c.b16 %v6081, %v6080
    %v6107 = vpack.c.b16 %v6083, %v6082
    %v6108 = vpack.c.b16 %v6085, %v6084
    %v6109 = vpack.c.b16 %v6087, %v6086
    %v6110 = vpack.c.b16 %v6089, %v6088
    %v6111 = vpack.c.b16 %v6091, %v6090
    %v6112 = vpack.c.b16 %v6093, %v6092
    %v6113 = vpack.c.b16 %v6095, %v6094
    %v6114 = vpack.c.b16 %v6097, %v6096
    %v6115 = vpack.c.b16 %v6099, %v6098
    %6132 = vmatprep.subr.bf16.mxu0 0
    %6133 = vmatpush1.bf16.msra.mxu0 %v6107
    %6134 = vmatprep.subr.bf16.mxu0 0
    %6135 = vmatpush1.bf16.msra.mxu0 %v6106
    %6136 = vmatprep.subr.bf16.mxu0 0
    %6137 = vmatpush1.bf16.msra.mxu0 %v6105
    %6138 = vmatprep.subr.bf16.mxu0 0
    %6139 = vmatpush1.bf16.msra.mxu0 %v6104
    %6140 = vmatprep.subr.bf16.mxu0 0
    %6141 = vmatpush1.bf16.msra.mxu0 %v6103
    %6142 = vmatprep.subr.bf16.mxu0 0
    %6143 = vmatpush1.bf16.msra.mxu0 %v6102
    %6144 = vmatprep.subr.bf16.mxu0 0
    %6145 = vmatpush1.bf16.msra.mxu0 %v6101
    %6146 = vmatprep.subr.bf16.mxu0 0
    %6147 = vmatpush1.bf16.msra.mxu0 %v6100
    %6148 = vmatprep.subr.bf16.mxu0 0
    %6149 = vmatpush2.bf16.msra.mxu0 %v6115
    %6150 = vmatprep.subr.bf16.mxu0 0
    %6151 = vmatpush2.bf16.msra.mxu0 %v6114
    %6152 = vmatprep.subr.bf16.mxu0 0
    %6153 = vmatpush2.bf16.msra.mxu0 %v6113
    %6154 = vmatprep.subr.bf16.mxu0 0
    %6155 = vmatpush2.bf16.msra.mxu0 %v6112
    %6156 = vmatprep.subr.bf16.mxu0 0
    %6157 = vmatpush2.bf16.msra.mxu0 %v6111
    %6158 = vmatprep.subr.bf16.mxu0 0
    %6159 = vmatpush2.bf16.msra.mxu0 %v6110
    %6160 = vmatprep.subr.bf16.mxu0 0
    %6161 = vmatpush2.bf16.msra.mxu0 %v6109
    %6162 = vmatprep.subr.bf16.mxu0 0
    %6163 = vmatpush2.bf16.msra.mxu0 %v6108
    %6164 = vmatprep.mubr.bf16.mxu0 %v6000
    %6165 = vmatmul.mubr.bf16.gmra.mxu0 %v5999
    %v6166 = vpop.f32.mrf.mxu0
    %v6167 = vadd.f32 0.0, %v6166
    %v6168 = vpop.f32.mrf.mxu0
    %v6169 = vpop.f32.mrf.mxu0
    %v6170 = vadd.f32 0.0, %v6169
    %v6171 = vpop.f32.mrf.mxu0
    %6172 = vmatprep.mubr.bf16.mxu0 %v6002
    %6173 = vmatmul.mubr.bf16.gmra.mxu0 %v6001
    %v6174 = vpop.f32.mrf.mxu0
    %v6175 = vadd.f32 0.0, %v6174
    %v6176 = vpop.f32.mrf.mxu0
    %v6177 = vpop.f32.mrf.mxu0
    %v6178 = vpop.f32.mrf.mxu0
    %6179 = vdwg.mxu0
    %v6212 = vunpack.c.l.b16 %v5898
    %v6213 = vunpack.c.l.b16 %v5899
    %v6214 = vunpack.c.l.b16 %v5900
    %v6215 = vunpack.c.l.b16 %v5901
    %v6216 = vunpack.c.l.b16 %v5902
    %v6217 = vunpack.c.l.b16 %v5903
    %v6218 = vunpack.c.l.b16 %v5904
    %v6219 = vunpack.c.l.b16 %v5905
    %v6220 = vunpack.c.l.b16 %v5906
    %v6221 = vunpack.c.l.b16 %v5907
    %v6222 = vunpack.c.l.b16 %v5908
    %v6223 = vunpack.c.l.b16 %v5909
    %v6224 = vunpack.c.l.b16 %v5910
    %v6225 = vunpack.c.l.b16 %v5911
    %v6226 = vunpack.c.l.b16 %v5912
    %v6227 = vunpack.c.l.b16 %v5913
    %v6228 = vunpack.c.l.b16 %v5914
    %v6229 = vunpack.c.l.b16 %v5915
    %v6230 = vunpack.c.l.b16 %v5916
    %v6231 = vunpack.c.l.b16 %v5917
    %v6232 = vunpack.c.l.b16 %v5918
    %v6233 = vunpack.c.l.b16 %v5919
    %v6234 = vunpack.c.l.b16 %v5920
    %v6235 = vunpack.c.l.b16 %v5921
    %v6236 = vunpack.c.l.b16 %v5922
    %v6237 = vunpack.c.l.b16 %v5923
    %v6238 = vunpack.c.l.b16 %v5924
    %v6239 = vunpack.c.l.b16 %v5925
    %v6240 = vunpack.c.l.b16 %v5926
    %v6241 = vunpack.c.l.b16 %v5927
    %v6242 = vunpack.c.l.b16 %v5928
    %v6243 = vunpack.c.l.b16 %v5929
    %v6244 = vpack.c.b16 %v6213, %v6212
    %v6245 = vpack.c.b16 %v6215, %v6214
    %v6246 = vpack.c.b16 %v6217, %v6216
    %v6247 = vpack.c.b16 %v6219, %v6218
    %v6248 = vpack.c.b16 %v6221, %v6220
    %v6249 = vpack.c.b16 %v6223, %v6222
    %v6250 = vpack.c.b16 %v6225, %v6224
    %v6251 = vpack.c.b16 %v6227, %v6226
    %v6252 = vpack.c.b16 %v6229, %v6228
    %v6253 = vpack.c.b16 %v6231, %v6230
    %v6254 = vpack.c.b16 %v6233, %v6232
    %v6255 = vpack.c.b16 %v6235, %v6234
    %v6256 = vpack.c.b16 %v6237, %v6236
    %v6257 = vpack.c.b16 %v6239, %v6238
    %v6258 = vpack.c.b16 %v6241, %v6240
    %v6259 = vpack.c.b16 %v6243, %v6242
    %6276 = vmatprep.subr.bf16.mxu0 0
    %6277 = vmatpush1.bf16.msra.mxu0 %v6251
    %6278 = vmatprep.subr.bf16.mxu0 0
    %6279 = vmatpush1.bf16.msra.mxu0 %v6250
    %6280 = vmatprep.subr.bf16.mxu0 0
    %6281 = vmatpush1.bf16.msra.mxu0 %v6249
    %6282 = vmatprep.subr.bf16.mxu0 0
    %6283 = vmatpush1.bf16.msra.mxu0 %v6248
    %6284 = vmatprep.subr.bf16.mxu0 0
    %6285 = vmatpush1.bf16.msra.mxu0 %v6247
    %6286 = vmatprep.subr.bf16.mxu0 0
    %6287 = vmatpush1.bf16.msra.mxu0 %v6246
    %6288 = vmatprep.subr.bf16.mxu0 0
    %6289 = vmatpush1.bf16.msra.mxu0 %v6245
    %6290 = vmatprep.subr.bf16.mxu0 0
    %6291 = vmatpush1.bf16.msra.mxu0 %v6244
    %6292 = vmatprep.subr.bf16.mxu0 0
    %6293 = vmatpush2.bf16.msra.mxu0 %v6259
    %6294 = vmatprep.subr.bf16.mxu0 0
    %6295 = vmatpush2.bf16.msra.mxu0 %v6258
    %6296 = vmatprep.subr.bf16.mxu0 0
    %6297 = vmatpush2.bf16.msra.mxu0 %v6257
    %6298 = vmatprep.subr.bf16.mxu0 0
    %6299 = vmatpush2.bf16.msra.mxu0 %v6256
    %6300 = vmatprep.subr.bf16.mxu0 0
    %6301 = vmatpush2.bf16.msra.mxu0 %v6255
    %6302 = vmatprep.subr.bf16.mxu0 0
    %6303 = vmatpush2.bf16.msra.mxu0 %v6254
    %6304 = vmatprep.subr.bf16.mxu0 0
    %6305 = vmatpush2.bf16.msra.mxu0 %v6253
    %6306 = vmatprep.subr.bf16.mxu0 0
    %6307 = vmatpush2.bf16.msra.mxu0 %v6252
    %6308 = vmatprep.mubr.bf16.mxu0 %v5895
    %6309 = vmatmul.mubr.bf16.gmra.mxu0 %v5894
    %v6310 = vpop.f32.mrf.mxu0
    %v6311 = vadd.f32 %v6167, %v6310
    %v6312 = vpop.f32.mrf.mxu0
    %v6313 = vpop.f32.mrf.mxu0
    %v6314 = vadd.f32 %v6170, %v6313
    %v6315 = vpop.f32.mrf.mxu0
    %6316 = vmatprep.mubr.bf16.mxu0 %v5897
    %6317 = vmatmul.mubr.bf16.gmra.mxu0 %v5896
    %v6318 = vpop.f32.mrf.mxu0
    %v6319 = vadd.f32 %v6175, %v6318
    %v6320 = vpop.f32.mrf.mxu0
    %v6321 = vpop.f32.mrf.mxu0
    %v6322 = vpop.f32.mrf.mxu0
    %6323 = vdwg.mxu0
    %s6324 = scalar_lea.vmem %s35, 24
    %v6325 = vld [vmem:[%s6324] sm:$0xf]
    %v6326 = vld [vmem:[%s6324 + $0x4] sm:$0xf]
    %v6327 = vld [vmem:[%s6324 + $0x8] sm:$0x3]
    %v6331 = vunpack.c.l.b16 %v6325
    %v6332 = vunpack.c.l.b16 %v6326
    %v6333 = vunpack.c.l.b16 %v6327
    %v6334 = vpack.c.b16 %v6332, %v6331
    %v6335 = vpack.c.b16 %v6333, %v6333
    %v6337 = vsel %vm3002, %v6334, 0
    %v6340 = vsel %vm3002, %v6335, 0
    %6342 = vmatprep.subr.bf16.mxu0 0
    %6343 = vmatpush1.bf16.msra.mxu0 0
    %6344 = vmatprep.subr.bf16.mxu0 0
    %6345 = vmatpush1.bf16.msra.mxu0 0
    %6346 = vmatprep.subr.bf16.mxu0 0
    %6347 = vmatpush1.bf16.msra.mxu0 0
    %6348 = vmatprep.subr.bf16.mxu0 0
    %6349 = vmatpush1.bf16.msra.mxu0 0
    %6350 = vmatprep.subr.bf16.mxu0 0
    %6351 = vmatpush1.bf16.msra.mxu0 0
    %6352 = vmatprep.subr.bf16.mxu0 0
    %6353 = vmatpush1.bf16.msra.mxu0 0
    %6354 = vmatprep.subr.bf16.mxu0 %v5825
    %6355 = vmatpush1.bf16.msra.mxu0 %v5824
    %6356 = vmatprep.subr.bf16.mxu0 %v5823
    %6357 = vmatpush1.bf16.msra.mxu0 %v5822
    %6358 = vmatprep.subr.bf16.mxu0 0
    %6359 = vmatpush2.bf16.msra.mxu0 0
    %6360 = vmatprep.subr.bf16.mxu0 0
    %6361 = vmatpush2.bf16.msra.mxu0 0
    %6362 = vmatprep.subr.bf16.mxu0 0
    %6363 = vmatpush2.bf16.msra.mxu0 0
    %6364 = vmatprep.subr.bf16.mxu0 0
    %6365 = vmatpush2.bf16.msra.mxu0 0
    %6366 = vmatprep.subr.bf16.mxu0 0
    %6367 = vmatpush2.bf16.msra.mxu0 0
    %6368 = vmatprep.subr.bf16.mxu0 0
    %6369 = vmatpush2.bf16.msra.mxu0 0
    %6370 = vmatprep.subr.bf16.mxu0 0
    %6371 = vmatpush2.bf16.msra.mxu0 0
    %6372 = vmatprep.subr.bf16.mxu0 0
    %6373 = vmatpush2.bf16.msra.mxu0 0
    %6374 = vmatprep.mubr.bf16.mxu0 0
    %6375 = vmatmul.mubr.bf16.gmra.mxu0 %v6337
    %v6376 = vpop.f32.mrf.mxu0
    %v6377 = vadd.f32 0.0, %v6376
    %v6378 = vpop.f32.mrf.mxu0
    %v6379 = vadd.f32 0.0, %v6378
    %v6380 = vpop.f32.mrf.mxu0
    %v6381 = vadd.f32 0.0, %v6380
    %v6382 = vpop.f32.mrf.mxu0
    %v6383 = vadd.f32 0.0, %v6382
    %6384 = vmatprep.mubr.bf16.mxu0 0
    %6385 = vmatmul.mubr.bf16.gmra.mxu0 %v6340
    %v6386 = vpop.f32.mrf.mxu0
    %v6387 = vadd.f32 0.0, %v6386
    %v6388 = vpop.f32.mrf.mxu0
    %v6389 = vadd.f32 0.0, %v6388
    %v6390 = vpop.f32.mrf.mxu0
    %v6391 = vpop.f32.mrf.mxu0
    %6392 = vdwg.mxu0
    %v6393 = vpack.c.bf16 %v6381, %v6377
    %v6394 = vpack.c.bf16 %v6383, %v6379
    %v6395 = vpack.c.bf16 %v6387, %v6387
    %v6396 = vpack.c.bf16 %v6389, %v6389
    %s6397 = scalar_lea.vmem %s37, 256
    %v6398 = vld [vmem:[%s6397] sm:$0xf]
    %v6399 = vld [vmem:[%s6397 + $0x4] sm:$0xf]
    %v6400 = vld [vmem:[%s6397 + $0x8] sm:$0xf]
    %v6401 = vld [vmem:[%s6397 + $0xc] sm:$0xf]
    %v6402 = vld [vmem:[%s6397 + $0x10] sm:$0xf]
    %v6403 = vld [vmem:[%s6397 + $0x14] sm:$0xf]
    %v6404 = vld [vmem:[%s6397 + $0x18] sm:$0xf]
    %v6405 = vld [vmem:[%s6397 + $0x1c] sm:$0xf]
    %v6406 = vld [vmem:[%s6397 + $0x20] sm:$0xf]
    %v6407 = vld [vmem:[%s6397 + $0x24] sm:$0xf]
    %v6408 = vld [vmem:[%s6397 + $0x28] sm:$0xf]
    %v6409 = vld [vmem:[%s6397 + $0x2c] sm:$0xf]
    %v6410 = vld [vmem:[%s6397 + $0x30] sm:$0xf]
    %v6411 = vld [vmem:[%s6397 + $0x34] sm:$0xf]
    %v6412 = vld [vmem:[%s6397 + $0x38] sm:$0xf]
    %v6413 = vld [vmem:[%s6397 + $0x3c] sm:$0xf]
    %v6414 = vld [vmem:[%s6397 + $0x40] sm:$0xf]
    %v6415 = vld [vmem:[%s6397 + $0x44] sm:$0xf]
    %v6416 = vld [vmem:[%s6397 + $0x48] sm:$0xf]
    %v6417 = vld [vmem:[%s6397 + $0x4c] sm:$0xf]
    %v6418 = vld [vmem:[%s6397 + $0x50] sm:$0xf]
    %v6419 = vld [vmem:[%s6397 + $0x54] sm:$0xf]
    %v6420 = vld [vmem:[%s6397 + $0x58] sm:$0xf]
    %v6421 = vld [vmem:[%s6397 + $0x5c] sm:$0xf]
    %v6422 = vld [vmem:[%s6397 + $0x60] sm:$0xf]
    %v6423 = vld [vmem:[%s6397 + $0x64] sm:$0xf]
    %v6424 = vld [vmem:[%s6397 + $0x68] sm:$0xf]
    %v6425 = vld [vmem:[%s6397 + $0x6c] sm:$0xf]
    %v6426 = vld [vmem:[%s6397 + $0x70] sm:$0xf]
    %v6427 = vld [vmem:[%s6397 + $0x74] sm:$0xf]
    %v6428 = vld [vmem:[%s6397 + $0x78] sm:$0xf]
    %v6429 = vld [vmem:[%s6397 + $0x7c] sm:$0xf]
    %v6462 = vunpack.c.l.b16 %v6398
    %v6463 = vunpack.c.l.b16 %v6399
    %v6464 = vunpack.c.l.b16 %v6400
    %v6465 = vunpack.c.l.b16 %v6401
    %v6466 = vunpack.c.l.b16 %v6402
    %v6467 = vunpack.c.l.b16 %v6403
    %v6468 = vunpack.c.l.b16 %v6404
    %v6469 = vunpack.c.l.b16 %v6405
    %v6470 = vunpack.c.l.b16 %v6406
    %v6471 = vunpack.c.l.b16 %v6407
    %v6472 = vunpack.c.l.b16 %v6408
    %v6473 = vunpack.c.l.b16 %v6409
    %v6474 = vunpack.c.l.b16 %v6410
    %v6475 = vunpack.c.l.b16 %v6411
    %v6476 = vunpack.c.l.b16 %v6412
    %v6477 = vunpack.c.l.b16 %v6413
    %v6478 = vunpack.c.l.b16 %v6414
    %v6479 = vunpack.c.l.b16 %v6415
    %v6480 = vunpack.c.l.b16 %v6416
    %v6481 = vunpack.c.l.b16 %v6417
    %v6482 = vunpack.c.l.b16 %v6418
    %v6483 = vunpack.c.l.b16 %v6419
    %v6484 = vunpack.c.l.b16 %v6420
    %v6485 = vunpack.c.l.b16 %v6421
    %v6486 = vunpack.c.l.b16 %v6422
    %v6487 = vunpack.c.l.b16 %v6423
    %v6488 = vunpack.c.l.b16 %v6424
    %v6489 = vunpack.c.l.b16 %v6425
    %v6490 = vunpack.c.l.b16 %v6426
    %v6491 = vunpack.c.l.b16 %v6427
    %v6492 = vunpack.c.l.b16 %v6428
    %v6493 = vunpack.c.l.b16 %v6429
    %v6494 = vpack.c.b16 %v6463, %v6462
    %v6495 = vpack.c.b16 %v6465, %v6464
    %v6496 = vpack.c.b16 %v6467, %v6466
    %v6497 = vpack.c.b16 %v6469, %v6468
    %v6498 = vpack.c.b16 %v6471, %v6470
    %v6499 = vpack.c.b16 %v6473, %v6472
    %v6500 = vpack.c.b16 %v6475, %v6474
    %v6501 = vpack.c.b16 %v6477, %v6476
    %v6502 = vpack.c.b16 %v6479, %v6478
    %v6503 = vpack.c.b16 %v6481, %v6480
    %v6504 = vpack.c.b16 %v6483, %v6482
    %v6505 = vpack.c.b16 %v6485, %v6484
    %v6506 = vpack.c.b16 %v6487, %v6486
    %v6507 = vpack.c.b16 %v6489, %v6488
    %v6508 = vpack.c.b16 %v6491, %v6490
    %v6509 = vpack.c.b16 %v6493, %v6492
    %6526 = vmatprep.subr.bf16.mxu0 0
    %6527 = vmatpush1.bf16.msra.mxu0 %v6501
    %6528 = vmatprep.subr.bf16.mxu0 0
    %6529 = vmatpush1.bf16.msra.mxu0 %v6500
    %6530 = vmatprep.subr.bf16.mxu0 0
    %6531 = vmatpush1.bf16.msra.mxu0 %v6499
    %6532 = vmatprep.subr.bf16.mxu0 0
    %6533 = vmatpush1.bf16.msra.mxu0 %v6498
    %6534 = vmatprep.subr.bf16.mxu0 0
    %6535 = vmatpush1.bf16.msra.mxu0 %v6497
    %6536 = vmatprep.subr.bf16.mxu0 0
    %6537 = vmatpush1.bf16.msra.mxu0 %v6496
    %6538 = vmatprep.subr.bf16.mxu0 0
    %6539 = vmatpush1.bf16.msra.mxu0 %v6495
    %6540 = vmatprep.subr.bf16.mxu0 0
    %6541 = vmatpush1.bf16.msra.mxu0 %v6494
    %6542 = vmatprep.subr.bf16.mxu0 0
    %6543 = vmatpush2.bf16.msra.mxu0 %v6509
    %6544 = vmatprep.subr.bf16.mxu0 0
    %6545 = vmatpush2.bf16.msra.mxu0 %v6508
    %6546 = vmatprep.subr.bf16.mxu0 0
    %6547 = vmatpush2.bf16.msra.mxu0 %v6507
    %6548 = vmatprep.subr.bf16.mxu0 0
    %6549 = vmatpush2.bf16.msra.mxu0 %v6506
    %6550 = vmatprep.subr.bf16.mxu0 0
    %6551 = vmatpush2.bf16.msra.mxu0 %v6505
    %6552 = vmatprep.subr.bf16.mxu0 0
    %6553 = vmatpush2.bf16.msra.mxu0 %v6504
    %6554 = vmatprep.subr.bf16.mxu0 0
    %6555 = vmatpush2.bf16.msra.mxu0 %v6503
    %6556 = vmatprep.subr.bf16.mxu0 0
    %6557 = vmatpush2.bf16.msra.mxu0 %v6502
    %6558 = vmatprep.mubr.bf16.mxu0 %v6394
    %6559 = vmatmul.mubr.bf16.gmra.mxu0 %v6393
    %v6560 = vpop.f32.mrf.mxu0
    %v6561 = vadd.f32 0.0, %v6560
    %v6562 = vpop.f32.mrf.mxu0
    %v6563 = vpop.f32.mrf.mxu0
    %v6564 = vadd.f32 0.0, %v6563
    %v6565 = vpop.f32.mrf.mxu0
    %6566 = vmatprep.mubr.bf16.mxu0 %v6396
    %6567 = vmatmul.mubr.bf16.gmra.mxu0 %v6395
    %v6568 = vpop.f32.mrf.mxu0
    %v6569 = vadd.f32 0.0, %v6568
    %v6570 = vpop.f32.mrf.mxu0
    %v6571 = vpop.f32.mrf.mxu0
    %v6572 = vpop.f32.mrf.mxu0
    %6573 = vdwg.mxu0
    %v6574 = vadd.f32 %v6311, %v6561
    %v6575 = vadd.f32 %v6314, %v6564
    %v6576 = vadd.f32 %v6319, %v6569
    %s6577 = scalar_lea.vmem %s35, 36
    %v6578 = vld [vmem:[%s6577] sm:$0xf]
    %v6579 = vld [vmem:[%s6577 + $0x4] sm:$0xf]
    %v6580 = vld [vmem:[%s6577 + $0x8] sm:$0x3]
    %v6584 = vunpack.c.l.b16 %v6578
    %v6585 = vunpack.c.l.b16 %v6579
    %v6586 = vunpack.c.l.b16 %v6580
    %v6587 = vpack.c.b16 %v6585, %v6584
    %v6588 = vpack.c.b16 %v6586, %v6586
    %v6590 = vsel %vm3002, %v6587, 0
    %v6593 = vsel %vm3002, %v6588, 0
    %6595 = vmatprep.subr.bf16.mxu0 0
    %6596 = vmatpush1.bf16.msra.mxu0 0
    %6597 = vmatprep.subr.bf16.mxu0 0
    %6598 = vmatpush1.bf16.msra.mxu0 0
    %6599 = vmatprep.subr.bf16.mxu0 0
    %6600 = vmatpush1.bf16.msra.mxu0 0
    %6601 = vmatprep.subr.bf16.mxu0 0
    %6602 = vmatpush1.bf16.msra.mxu0 0
    %6603 = vmatprep.subr.bf16.mxu0 0
    %6604 = vmatpush1.bf16.msra.mxu0 0
    %6605 = vmatprep.subr.bf16.mxu0 0
    %6606 = vmatpush1.bf16.msra.mxu0 0
    %6607 = vmatprep.subr.bf16.mxu0 %v5825
    %6608 = vmatpush1.bf16.msra.mxu0 %v5824
    %6609 = vmatprep.subr.bf16.mxu0 %v5823
    %6610 = vmatpush1.bf16.msra.mxu0 %v5822
    %6611 = vmatprep.subr.bf16.mxu0 0
    %6612 = vmatpush2.bf16.msra.mxu0 0
    %6613 = vmatprep.subr.bf16.mxu0 0
    %6614 = vmatpush2.bf16.msra.mxu0 0
    %6615 = vmatprep.subr.bf16.mxu0 0
    %6616 = vmatpush2.bf16.msra.mxu0 0
    %6617 = vmatprep.subr.bf16.mxu0 0
    %6618 = vmatpush2.bf16.msra.mxu0 0
    %6619 = vmatprep.subr.bf16.mxu0 0
    %6620 = vmatpush2.bf16.msra.mxu0 0
    %6621 = vmatprep.subr.bf16.mxu0 0
    %6622 = vmatpush2.bf16.msra.mxu0 0
    %6623 = vmatprep.subr.bf16.mxu0 0
    %6624 = vmatpush2.bf16.msra.mxu0 0
    %6625 = vmatprep.subr.bf16.mxu0 0
    %6626 = vmatpush2.bf16.msra.mxu0 0
    %6627 = vmatprep.mubr.bf16.mxu0 0
    %6628 = vmatmul.mubr.bf16.gmra.mxu0 %v6590
    %v6629 = vpop.f32.mrf.mxu0
    %v6630 = vadd.f32 0.0, %v6629
    %v6631 = vpop.f32.mrf.mxu0
    %v6632 = vadd.f32 0.0, %v6631
    %v6633 = vpop.f32.mrf.mxu0
    %v6634 = vadd.f32 0.0, %v6633
    %v6635 = vpop.f32.mrf.mxu0
    %v6636 = vadd.f32 0.0, %v6635
    %6637 = vmatprep.mubr.bf16.mxu0 0
    %6638 = vmatmul.mubr.bf16.gmra.mxu0 %v6593
    %v6639 = vpop.f32.mrf.mxu0
    %v6640 = vadd.f32 0.0, %v6639
    %v6641 = vpop.f32.mrf.mxu0
    %v6642 = vadd.f32 0.0, %v6641
    %v6643 = vpop.f32.mrf.mxu0
    %v6644 = vpop.f32.mrf.mxu0
    %6645 = vdwg.mxu0
    %v6646 = vpack.c.bf16 %v6634, %v6630
    %v6647 = vpack.c.bf16 %v6636, %v6632
    %v6648 = vpack.c.bf16 %v6640, %v6640
    %v6649 = vpack.c.bf16 %v6642, %v6642
    %s6650 = scalar_lea.vmem %s37, 384
    %v6651 = vld [vmem:[%s6650] sm:$0xf]
    %v6652 = vld [vmem:[%s6650 + $0x4] sm:$0xf]
    %v6653 = vld [vmem:[%s6650 + $0x8] sm:$0xf]
    %v6654 = vld [vmem:[%s6650 + $0xc] sm:$0xf]
    %v6655 = vld [vmem:[%s6650 + $0x10] sm:$0xf]
    %v6656 = vld [vmem:[%s6650 + $0x14] sm:$0xf]
    %v6657 = vld [vmem:[%s6650 + $0x18] sm:$0xf]
    %v6658 = vld [vmem:[%s6650 + $0x1c] sm:$0xf]
    %v6659 = vld [vmem:[%s6650 + $0x20] sm:$0xf]
    %v6660 = vld [vmem:[%s6650 + $0x24] sm:$0xf]
    %v6661 = vld [vmem:[%s6650 + $0x28] sm:$0xf]
    %v6662 = vld [vmem:[%s6650 + $0x2c] sm:$0xf]
    %v6663 = vld [vmem:[%s6650 + $0x30] sm:$0xf]
    %v6664 = vld [vmem:[%s6650 + $0x34] sm:$0xf]
    %v6665 = vld [vmem:[%s6650 + $0x38] sm:$0xf]
    %v6666 = vld [vmem:[%s6650 + $0x3c] sm:$0xf]
    %v6667 = vld [vmem:[%s6650 + $0x40] sm:$0xf]
    %v6668 = vld [vmem:[%s6650 + $0x44] sm:$0xf]
    %v6669 = vld [vmem:[%s6650 + $0x48] sm:$0xf]
    %v6670 = vld [vmem:[%s6650 + $0x4c] sm:$0xf]
    %v6671 = vld [vmem:[%s6650 + $0x50] sm:$0xf]
    %v6672 = vld [vmem:[%s6650 + $0x54] sm:$0xf]
    %v6673 = vld [vmem:[%s6650 + $0x58] sm:$0xf]
    %v6674 = vld [vmem:[%s6650 + $0x5c] sm:$0xf]
    %v6675 = vld [vmem:[%s6650 + $0x60] sm:$0xf]
    %v6676 = vld [vmem:[%s6650 + $0x64] sm:$0xf]
    %v6677 = vld [vmem:[%s6650 + $0x68] sm:$0xf]
    %v6678 = vld [vmem:[%s6650 + $0x6c] sm:$0xf]
    %v6679 = vld [vmem:[%s6650 + $0x70] sm:$0xf]
    %v6680 = vld [vmem:[%s6650 + $0x74] sm:$0xf]
    %v6681 = vld [vmem:[%s6650 + $0x78] sm:$0xf]
    %v6682 = vld [vmem:[%s6650 + $0x7c] sm:$0xf]
    %v6715 = vunpack.c.l.b16 %v6651
    %v6716 = vunpack.c.l.b16 %v6652
    %v6717 = vunpack.c.l.b16 %v6653
    %v6718 = vunpack.c.l.b16 %v6654
    %v6719 = vunpack.c.l.b16 %v6655
    %v6720 = vunpack.c.l.b16 %v6656
    %v6721 = vunpack.c.l.b16 %v6657
    %v6722 = vunpack.c.l.b16 %v6658
    %v6723 = vunpack.c.l.b16 %v6659
    %v6724 = vunpack.c.l.b16 %v6660
    %v6725 = vunpack.c.l.b16 %v6661
    %v6726 = vunpack.c.l.b16 %v6662
    %v6727 = vunpack.c.l.b16 %v6663
    %v6728 = vunpack.c.l.b16 %v6664
    %v6729 = vunpack.c.l.b16 %v6665
    %v6730 = vunpack.c.l.b16 %v6666
    %v6731 = vunpack.c.l.b16 %v6667
    %v6732 = vunpack.c.l.b16 %v6668
    %v6733 = vunpack.c.l.b16 %v6669
    %v6734 = vunpack.c.l.b16 %v6670
    %v6735 = vunpack.c.l.b16 %v6671
    %v6736 = vunpack.c.l.b16 %v6672
    %v6737 = vunpack.c.l.b16 %v6673
    %v6738 = vunpack.c.l.b16 %v6674
    %v6739 = vunpack.c.l.b16 %v6675
    %v6740 = vunpack.c.l.b16 %v6676
    %v6741 = vunpack.c.l.b16 %v6677
    %v6742 = vunpack.c.l.b16 %v6678
    %v6743 = vunpack.c.l.b16 %v6679
    %v6744 = vunpack.c.l.b16 %v6680
    %v6745 = vunpack.c.l.b16 %v6681
    %v6746 = vunpack.c.l.b16 %v6682
    %v6747 = vpack.c.b16 %v6716, %v6715
    %v6748 = vpack.c.b16 %v6718, %v6717
    %v6749 = vpack.c.b16 %v6720, %v6719
    %v6750 = vpack.c.b16 %v6722, %v6721
    %v6751 = vpack.c.b16 %v6724, %v6723
    %v6752 = vpack.c.b16 %v6726, %v6725
    %v6753 = vpack.c.b16 %v6728, %v6727
    %v6754 = vpack.c.b16 %v6730, %v6729
    %v6755 = vpack.c.b16 %v6732, %v6731
    %v6756 = vpack.c.b16 %v6734, %v6733
    %v6757 = vpack.c.b16 %v6736, %v6735
    %v6758 = vpack.c.b16 %v6738, %v6737
    %v6759 = vpack.c.b16 %v6740, %v6739
    %v6760 = vpack.c.b16 %v6742, %v6741
    %v6761 = vpack.c.b16 %v6744, %v6743
    %v6762 = vpack.c.b16 %v6746, %v6745
    %6779 = vmatprep.subr.bf16.mxu0 0
    %6780 = vmatpush1.bf16.msra.mxu0 %v6754
    %6781 = vmatprep.subr.bf16.mxu0 0
    %6782 = vmatpush1.bf16.msra.mxu0 %v6753
    %6783 = vmatprep.subr.bf16.mxu0 0
    %6784 = vmatpush1.bf16.msra.mxu0 %v6752
    %6785 = vmatprep.subr.bf16.mxu0 0
    %6786 = vmatpush1.bf16.msra.mxu0 %v6751
    %6787 = vmatprep.subr.bf16.mxu0 0
    %6788 = vmatpush1.bf16.msra.mxu0 %v6750
    %6789 = vmatprep.subr.bf16.mxu0 0
    %6790 = vmatpush1.bf16.msra.mxu0 %v6749
    %6791 = vmatprep.subr.bf16.mxu0 0
    %6792 = vmatpush1.bf16.msra.mxu0 %v6748
    %6793 = vmatprep.subr.bf16.mxu0 0
    %6794 = vmatpush1.bf16.msra.mxu0 %v6747
    %6795 = vmatprep.subr.bf16.mxu0 0
    %6796 = vmatpush2.bf16.msra.mxu0 %v6762
    %6797 = vmatprep.subr.bf16.mxu0 0
    %6798 = vmatpush2.bf16.msra.mxu0 %v6761
    %6799 = vmatprep.subr.bf16.mxu0 0
    %6800 = vmatpush2.bf16.msra.mxu0 %v6760
    %6801 = vmatprep.subr.bf16.mxu0 0
    %6802 = vmatpush2.bf16.msra.mxu0 %v6759
    %6803 = vmatprep.subr.bf16.mxu0 0
    %6804 = vmatpush2.bf16.msra.mxu0 %v6758
    %6805 = vmatprep.subr.bf16.mxu0 0
    %6806 = vmatpush2.bf16.msra.mxu0 %v6757
    %6807 = vmatprep.subr.bf16.mxu0 0
    %6808 = vmatpush2.bf16.msra.mxu0 %v6756
    %6809 = vmatprep.subr.bf16.mxu0 0
    %6810 = vmatpush2.bf16.msra.mxu0 %v6755
    %6811 = vmatprep.mubr.bf16.mxu0 %v6647
    %6812 = vmatmul.mubr.bf16.gmra.mxu0 %v6646
    %v6813 = vpop.f32.mrf.mxu0
    %v6814 = vadd.f32 0.0, %v6813
    %v6815 = vpop.f32.mrf.mxu0
    %v6816 = vpop.f32.mrf.mxu0
    %v6817 = vadd.f32 0.0, %v6816
    %v6818 = vpop.f32.mrf.mxu0
    %6819 = vmatprep.mubr.bf16.mxu0 %v6649
    %6820 = vmatmul.mubr.bf16.gmra.mxu0 %v6648
    %v6821 = vpop.f32.mrf.mxu0
    %v6822 = vadd.f32 0.0, %v6821
    %v6823 = vpop.f32.mrf.mxu0
    %v6824 = vpop.f32.mrf.mxu0
    %v6825 = vpop.f32.mrf.mxu0
    %6826 = vdwg.mxu0
    %v6827 = vadd.f32 %v6574, %v6814
    %v6828 = vadd.f32 %v6575, %v6817
    %v6829 = vadd.f32 %v6576, %v6822
    %s6830 = scalar_lea.vmem %s35, 48
    %v6831 = vld [vmem:[%s6830] sm:$0xf]
    %v6832 = vld [vmem:[%s6830 + $0x4] sm:$0xf]
    %v6833 = vld [vmem:[%s6830 + $0x8] sm:$0x3]
    %v6837 = vunpack.c.l.b16 %v6831
    %v6838 = vunpack.c.l.b16 %v6832
    %v6839 = vunpack.c.l.b16 %v6833
    %v6840 = vpack.c.b16 %v6838, %v6837
    %v6841 = vpack.c.b16 %v6839, %v6839
    %v6843 = vsel %vm3002, %v6840, 0
    %v6846 = vsel %vm3002, %v6841, 0
    %6848 = vmatprep.subr.bf16.mxu0 0
    %6849 = vmatpush1.bf16.msra.mxu0 0
    %6850 = vmatprep.subr.bf16.mxu0 0
    %6851 = vmatpush1.bf16.msra.mxu0 0
    %6852 = vmatprep.subr.bf16.mxu0 0
    %6853 = vmatpush1.bf16.msra.mxu0 0
    %6854 = vmatprep.subr.bf16.mxu0 0
    %6855 = vmatpush1.bf16.msra.mxu0 0
    %6856 = vmatprep.subr.bf16.mxu0 0
    %6857 = vmatpush1.bf16.msra.mxu0 0
    %6858 = vmatprep.subr.bf16.mxu0 0
    %6859 = vmatpush1.bf16.msra.mxu0 0
    %6860 = vmatprep.subr.bf16.mxu0 %v5825
    %6861 = vmatpush1.bf16.msra.mxu0 %v5824
    %6862 = vmatprep.subr.bf16.mxu0 %v5823
    %6863 = vmatpush1.bf16.msra.mxu0 %v5822
    %6864 = vmatprep.subr.bf16.mxu0 0
    %6865 = vmatpush2.bf16.msra.mxu0 0
    %6866 = vmatprep.subr.bf16.mxu0 0
    %6867 = vmatpush2.bf16.msra.mxu0 0
    %6868 = vmatprep.subr.bf16.mxu0 0
    %6869 = vmatpush2.bf16.msra.mxu0 0
    %6870 = vmatprep.subr.bf16.mxu0 0
    %6871 = vmatpush2.bf16.msra.mxu0 0
    %6872 = vmatprep.subr.bf16.mxu0 0
    %6873 = vmatpush2.bf16.msra.mxu0 0
    %6874 = vmatprep.subr.bf16.mxu0 0
    %6875 = vmatpush2.bf16.msra.mxu0 0
    %6876 = vmatprep.subr.bf16.mxu0 0
    %6877 = vmatpush2.bf16.msra.mxu0 0
    %6878 = vmatprep.subr.bf16.mxu0 0
    %6879 = vmatpush2.bf16.msra.mxu0 0
    %6880 = vmatprep.mubr.bf16.mxu0 0
    %6881 = vmatmul.mubr.bf16.gmra.mxu0 %v6843
    %v6882 = vpop.f32.mrf.mxu0
    %v6883 = vadd.f32 0.0, %v6882
    %v6884 = vpop.f32.mrf.mxu0
    %v6885 = vadd.f32 0.0, %v6884
    %v6886 = vpop.f32.mrf.mxu0
    %v6887 = vadd.f32 0.0, %v6886
    %v6888 = vpop.f32.mrf.mxu0
    %v6889 = vadd.f32 0.0, %v6888
    %6890 = vmatprep.mubr.bf16.mxu0 0
    %6891 = vmatmul.mubr.bf16.gmra.mxu0 %v6846
    %v6892 = vpop.f32.mrf.mxu0
    %v6893 = vadd.f32 0.0, %v6892
    %v6894 = vpop.f32.mrf.mxu0
    %v6895 = vadd.f32 0.0, %v6894
    %v6896 = vpop.f32.mrf.mxu0
    %v6897 = vpop.f32.mrf.mxu0
    %6898 = vdwg.mxu0
    %v6899 = vpack.c.bf16 %v6887, %v6883
    %v6900 = vpack.c.bf16 %v6889, %v6885
    %v6901 = vpack.c.bf16 %v6893, %v6893
    %v6902 = vpack.c.bf16 %v6895, %v6895
    %s6903 = scalar_lea.vmem %s37, 512
    %v6904 = vld [vmem:[%s6903] sm:$0xf]
    %v6905 = vld [vmem:[%s6903 + $0x4] sm:$0xf]
    %v6906 = vld [vmem:[%s6903 + $0x8] sm:$0xf]
    %v6907 = vld [vmem:[%s6903 + $0xc] sm:$0xf]
    %v6908 = vld [vmem:[%s6903 + $0x10] sm:$0xf]
    %v6909 = vld [vmem:[%s6903 + $0x14] sm:$0xf]
    %v6910 = vld [vmem:[%s6903 + $0x18] sm:$0xf]
    %v6911 = vld [vmem:[%s6903 + $0x1c] sm:$0xf]
    %v6912 = vld [vmem:[%s6903 + $0x20] sm:$0xf]
    %v6913 = vld [vmem:[%s6903 + $0x24] sm:$0xf]
    %v6914 = vld [vmem:[%s6903 + $0x28] sm:$0xf]
    %v6915 = vld [vmem:[%s6903 + $0x2c] sm:$0xf]
    %v6916 = vld [vmem:[%s6903 + $0x30] sm:$0xf]
    %v6917 = vld [vmem:[%s6903 + $0x34] sm:$0xf]
    %v6918 = vld [vmem:[%s6903 + $0x38] sm:$0xf]
    %v6919 = vld [vmem:[%s6903 + $0x3c] sm:$0xf]
    %v6920 = vld [vmem:[%s6903 + $0x40] sm:$0xf]
    %v6921 = vld [vmem:[%s6903 + $0x44] sm:$0xf]
    %v6922 = vld [vmem:[%s6903 + $0x48] sm:$0xf]
    %v6923 = vld [vmem:[%s6903 + $0x4c] sm:$0xf]
    %v6924 = vld [vmem:[%s6903 + $0x50] sm:$0xf]
    %v6925 = vld [vmem:[%s6903 + $0x54] sm:$0xf]
    %v6926 = vld [vmem:[%s6903 + $0x58] sm:$0xf]
    %v6927 = vld [vmem:[%s6903 + $0x5c] sm:$0xf]
    %v6928 = vld [vmem:[%s6903 + $0x60] sm:$0xf]
    %v6929 = vld [vmem:[%s6903 + $0x64] sm:$0xf]
    %v6930 = vld [vmem:[%s6903 + $0x68] sm:$0xf]
    %v6931 = vld [vmem:[%s6903 + $0x6c] sm:$0xf]
    %v6932 = vld [vmem:[%s6903 + $0x70] sm:$0xf]
    %v6933 = vld [vmem:[%s6903 + $0x74] sm:$0xf]
    %v6934 = vld [vmem:[%s6903 + $0x78] sm:$0xf]
    %v6935 = vld [vmem:[%s6903 + $0x7c] sm:$0xf]
    %v6968 = vunpack.c.l.b16 %v6904
    %v6969 = vunpack.c.l.b16 %v6905
    %v6970 = vunpack.c.l.b16 %v6906
    %v6971 = vunpack.c.l.b16 %v6907
    %v6972 = vunpack.c.l.b16 %v6908
    %v6973 = vunpack.c.l.b16 %v6909
    %v6974 = vunpack.c.l.b16 %v6910
    %v6975 = vunpack.c.l.b16 %v6911
    %v6976 = vunpack.c.l.b16 %v6912
    %v6977 = vunpack.c.l.b16 %v6913
    %v6978 = vunpack.c.l.b16 %v6914
    %v6979 = vunpack.c.l.b16 %v6915
    %v6980 = vunpack.c.l.b16 %v6916
    %v6981 = vunpack.c.l.b16 %v6917
    %v6982 = vunpack.c.l.b16 %v6918
    %v6983 = vunpack.c.l.b16 %v6919
    %v6984 = vunpack.c.l.b16 %v6920
    %v6985 = vunpack.c.l.b16 %v6921
    %v6986 = vunpack.c.l.b16 %v6922
    %v6987 = vunpack.c.l.b16 %v6923
    %v6988 = vunpack.c.l.b16 %v6924
    %v6989 = vunpack.c.l.b16 %v6925
    %v6990 = vunpack.c.l.b16 %v6926
    %v6991 = vunpack.c.l.b16 %v6927
    %v6992 = vunpack.c.l.b16 %v6928
    %v6993 = vunpack.c.l.b16 %v6929
    %v6994 = vunpack.c.l.b16 %v6930
    %v6995 = vunpack.c.l.b16 %v6931
    %v6996 = vunpack.c.l.b16 %v6932
    %v6997 = vunpack.c.l.b16 %v6933
    %v6998 = vunpack.c.l.b16 %v6934
    %v6999 = vunpack.c.l.b16 %v6935
    %v7000 = vpack.c.b16 %v6969, %v6968
    %v7001 = vpack.c.b16 %v6971, %v6970
    %v7002 = vpack.c.b16 %v6973, %v6972
    %v7003 = vpack.c.b16 %v6975, %v6974
    %v7004 = vpack.c.b16 %v6977, %v6976
    %v7005 = vpack.c.b16 %v6979, %v6978
    %v7006 = vpack.c.b16 %v6981, %v6980
    %v7007 = vpack.c.b16 %v6983, %v6982
    %v7008 = vpack.c.b16 %v6985, %v6984
    %v7009 = vpack.c.b16 %v6987, %v6986
    %v7010 = vpack.c.b16 %v6989, %v6988
    %v7011 = vpack.c.b16 %v6991, %v6990
    %v7012 = vpack.c.b16 %v6993, %v6992
    %v7013 = vpack.c.b16 %v6995, %v6994
    %v7014 = vpack.c.b16 %v6997, %v6996
    %v7015 = vpack.c.b16 %v6999, %v6998
    %7032 = vmatprep.subr.bf16.mxu0 0
    %7033 = vmatpush1.bf16.msra.mxu0 %v7007
    %7034 = vmatprep.subr.bf16.mxu0 0
    %7035 = vmatpush1.bf16.msra.mxu0 %v7006
    %7036 = vmatprep.subr.bf16.mxu0 0
    %7037 = vmatpush1.bf16.msra.mxu0 %v7005
    %7038 = vmatprep.subr.bf16.mxu0 0
    %7039 = vmatpush1.bf16.msra.mxu0 %v7004
    %7040 = vmatprep.subr.bf16.mxu0 0
    %7041 = vmatpush1.bf16.msra.mxu0 %v7003
    %7042 = vmatprep.subr.bf16.mxu0 0
    %7043 = vmatpush1.bf16.msra.mxu0 %v7002
    %7044 = vmatprep.subr.bf16.mxu0 0
    %7045 = vmatpush1.bf16.msra.mxu0 %v7001
    %7046 = vmatprep.subr.bf16.mxu0 0
    %7047 = vmatpush1.bf16.msra.mxu0 %v7000
    %7048 = vmatprep.subr.bf16.mxu0 0
    %7049 = vmatpush2.bf16.msra.mxu0 %v7015
    %7050 = vmatprep.subr.bf16.mxu0 0
    %7051 = vmatpush2.bf16.msra.mxu0 %v7014
    %7052 = vmatprep.subr.bf16.mxu0 0
    %7053 = vmatpush2.bf16.msra.mxu0 %v7013
    %7054 = vmatprep.subr.bf16.mxu0 0
    %7055 = vmatpush2.bf16.msra.mxu0 %v7012
    %7056 = vmatprep.subr.bf16.mxu0 0
    %7057 = vmatpush2.bf16.msra.mxu0 %v7011
    %7058 = vmatprep.subr.bf16.mxu0 0
    %7059 = vmatpush2.bf16.msra.mxu0 %v7010
    %7060 = vmatprep.subr.bf16.mxu0 0
    %7061 = vmatpush2.bf16.msra.mxu0 %v7009
    %7062 = vmatprep.subr.bf16.mxu0 0
    %7063 = vmatpush2.bf16.msra.mxu0 %v7008
    %7064 = vmatprep.mubr.bf16.mxu0 %v6900
    %7065 = vmatmul.mubr.bf16.gmra.mxu0 %v6899
    %v7066 = vpop.f32.mrf.mxu0
    %v7067 = vadd.f32 0.0, %v7066
    %v7068 = vpop.f32.mrf.mxu0
    %v7069 = vpop.f32.mrf.mxu0
    %v7070 = vadd.f32 0.0, %v7069
    %v7071 = vpop.f32.mrf.mxu0
    %7072 = vmatprep.mubr.bf16.mxu0 %v6902
    %7073 = vmatmul.mubr.bf16.gmra.mxu0 %v6901
    %v7074 = vpop.f32.mrf.mxu0
    %v7075 = vadd.f32 0.0, %v7074
    %v7076 = vpop.f32.mrf.mxu0
    %v7077 = vpop.f32.mrf.mxu0
    %v7078 = vpop.f32.mrf.mxu0
    %7079 = vdwg.mxu0
    %v7080 = vadd.f32 %v6827, %v7067
    %v7081 = vadd.f32 %v6828, %v7070
    %v7082 = vadd.f32 %v6829, %v7075
    %s7083 = scalar_lea.vmem %s35, 60
    %v7084 = vld [vmem:[%s7083] sm:$0xf]
    %v7085 = vld [vmem:[%s7083 + $0x4] sm:$0xf]
    %v7086 = vld [vmem:[%s7083 + $0x8] sm:$0x3]
    %v7090 = vunpack.c.l.b16 %v7084
    %v7091 = vunpack.c.l.b16 %v7085
    %v7092 = vunpack.c.l.b16 %v7086
    %v7093 = vpack.c.b16 %v7091, %v7090
    %v7094 = vpack.c.b16 %v7092, %v7092
    %v7096 = vsel %vm3002, %v7093, 0
    %v7099 = vsel %vm3002, %v7094, 0
    %7101 = vmatprep.subr.bf16.mxu0 0
    %7102 = vmatpush1.bf16.msra.mxu0 0
    %7103 = vmatprep.subr.bf16.mxu0 0
    %7104 = vmatpush1.bf16.msra.mxu0 0
    %7105 = vmatprep.subr.bf16.mxu0 0
    %7106 = vmatpush1.bf16.msra.mxu0 0
    %7107 = vmatprep.subr.bf16.mxu0 0
    %7108 = vmatpush1.bf16.msra.mxu0 0
    %7109 = vmatprep.subr.bf16.mxu0 0
    %7110 = vmatpush1.bf16.msra.mxu0 0
    %7111 = vmatprep.subr.bf16.mxu0 0
    %7112 = vmatpush1.bf16.msra.mxu0 0
    %7113 = vmatprep.subr.bf16.mxu0 %v5825
    %7114 = vmatpush1.bf16.msra.mxu0 %v5824
    %7115 = vmatprep.subr.bf16.mxu0 %v5823
    %7116 = vmatpush1.bf16.msra.mxu0 %v5822
    %7117 = vmatprep.subr.bf16.mxu0 0
    %7118 = vmatpush2.bf16.msra.mxu0 0
    %7119 = vmatprep.subr.bf16.mxu0 0
    %7120 = vmatpush2.bf16.msra.mxu0 0
    %7121 = vmatprep.subr.bf16.mxu0 0
    %7122 = vmatpush2.bf16.msra.mxu0 0
    %7123 = vmatprep.subr.bf16.mxu0 0
    %7124 = vmatpush2.bf16.msra.mxu0 0
    %7125 = vmatprep.subr.bf16.mxu0 0
    %7126 = vmatpush2.bf16.msra.mxu0 0
    %7127 = vmatprep.subr.bf16.mxu0 0
    %7128 = vmatpush2.bf16.msra.mxu0 0
    %7129 = vmatprep.subr.bf16.mxu0 0
    %7130 = vmatpush2.bf16.msra.mxu0 0
    %7131 = vmatprep.subr.bf16.mxu0 0
    %7132 = vmatpush2.bf16.msra.mxu0 0
    %7133 = vmatprep.mubr.bf16.mxu0 0
    %7134 = vmatmul.mubr.bf16.gmra.mxu0 %v7096
    %v7135 = vpop.f32.mrf.mxu0
    %v7136 = vadd.f32 0.0, %v7135
    %v7137 = vpop.f32.mrf.mxu0
    %v7138 = vadd.f32 0.0, %v7137
    %v7139 = vpop.f32.mrf.mxu0
    %v7140 = vadd.f32 0.0, %v7139
    %v7141 = vpop.f32.mrf.mxu0
    %v7142 = vadd.f32 0.0, %v7141
    %7143 = vmatprep.mubr.bf16.mxu0 0
    %7144 = vmatmul.mubr.bf16.gmra.mxu0 %v7099
    %v7145 = vpop.f32.mrf.mxu0
    %v7146 = vadd.f32 0.0, %v7145
    %v7147 = vpop.f32.mrf.mxu0
    %v7148 = vadd.f32 0.0, %v7147
    %v7149 = vpop.f32.mrf.mxu0
    %v7150 = vpop.f32.mrf.mxu0
    %7151 = vdwg.mxu0
    %v7152 = vpack.c.bf16 %v7140, %v7136
    %v7153 = vpack.c.bf16 %v7142, %v7138
    %v7154 = vpack.c.bf16 %v7146, %v7146
    %v7155 = vpack.c.bf16 %v7148, %v7148
    %s7156 = scalar_lea.vmem %s37, 640
    %v7157 = vld [vmem:[%s7156] sm:$0xf]
    %v7158 = vld [vmem:[%s7156 + $0x4] sm:$0xf]
    %v7159 = vld [vmem:[%s7156 + $0x8] sm:$0xf]
    %v7160 = vld [vmem:[%s7156 + $0xc] sm:$0xf]
    %v7161 = vld [vmem:[%s7156 + $0x10] sm:$0xf]
    %v7162 = vld [vmem:[%s7156 + $0x14] sm:$0xf]
    %v7163 = vld [vmem:[%s7156 + $0x18] sm:$0xf]
    %v7164 = vld [vmem:[%s7156 + $0x1c] sm:$0xf]
    %v7165 = vld [vmem:[%s7156 + $0x20] sm:$0xf]
    %v7166 = vld [vmem:[%s7156 + $0x24] sm:$0xf]
    %v7167 = vld [vmem:[%s7156 + $0x28] sm:$0xf]
    %v7168 = vld [vmem:[%s7156 + $0x2c] sm:$0xf]
    %v7169 = vld [vmem:[%s7156 + $0x30] sm:$0xf]
    %v7170 = vld [vmem:[%s7156 + $0x34] sm:$0xf]
    %v7171 = vld [vmem:[%s7156 + $0x38] sm:$0xf]
    %v7172 = vld [vmem:[%s7156 + $0x3c] sm:$0xf]
    %v7173 = vld [vmem:[%s7156 + $0x40] sm:$0xf]
    %v7174 = vld [vmem:[%s7156 + $0x44] sm:$0xf]
    %v7175 = vld [vmem:[%s7156 + $0x48] sm:$0xf]
    %v7176 = vld [vmem:[%s7156 + $0x4c] sm:$0xf]
    %v7177 = vld [vmem:[%s7156 + $0x50] sm:$0xf]
    %v7178 = vld [vmem:[%s7156 + $0x54] sm:$0xf]
    %v7179 = vld [vmem:[%s7156 + $0x58] sm:$0xf]
    %v7180 = vld [vmem:[%s7156 + $0x5c] sm:$0xf]
    %v7181 = vld [vmem:[%s7156 + $0x60] sm:$0xf]
    %v7182 = vld [vmem:[%s7156 + $0x64] sm:$0xf]
    %v7183 = vld [vmem:[%s7156 + $0x68] sm:$0xf]
    %v7184 = vld [vmem:[%s7156 + $0x6c] sm:$0xf]
    %v7185 = vld [vmem:[%s7156 + $0x70] sm:$0xf]
    %v7186 = vld [vmem:[%s7156 + $0x74] sm:$0xf]
    %v7187 = vld [vmem:[%s7156 + $0x78] sm:$0xf]
    %v7188 = vld [vmem:[%s7156 + $0x7c] sm:$0xf]
    %v7221 = vunpack.c.l.b16 %v7157
    %v7222 = vunpack.c.l.b16 %v7158
    %v7223 = vunpack.c.l.b16 %v7159
    %v7224 = vunpack.c.l.b16 %v7160
    %v7225 = vunpack.c.l.b16 %v7161
    %v7226 = vunpack.c.l.b16 %v7162
    %v7227 = vunpack.c.l.b16 %v7163
    %v7228 = vunpack.c.l.b16 %v7164
    %v7229 = vunpack.c.l.b16 %v7165
    %v7230 = vunpack.c.l.b16 %v7166
    %v7231 = vunpack.c.l.b16 %v7167
    %v7232 = vunpack.c.l.b16 %v7168
    %v7233 = vunpack.c.l.b16 %v7169
    %v7234 = vunpack.c.l.b16 %v7170
    %v7235 = vunpack.c.l.b16 %v7171
    %v7236 = vunpack.c.l.b16 %v7172
    %v7237 = vunpack.c.l.b16 %v7173
    %v7238 = vunpack.c.l.b16 %v7174
    %v7239 = vunpack.c.l.b16 %v7175
    %v7240 = vunpack.c.l.b16 %v7176
    %v7241 = vunpack.c.l.b16 %v7177
    %v7242 = vunpack.c.l.b16 %v7178
    %v7243 = vunpack.c.l.b16 %v7179
    %v7244 = vunpack.c.l.b16 %v7180
    %v7245 = vunpack.c.l.b16 %v7181
    %v7246 = vunpack.c.l.b16 %v7182
    %v7247 = vunpack.c.l.b16 %v7183
    %v7248 = vunpack.c.l.b16 %v7184
    %v7249 = vunpack.c.l.b16 %v7185
    %v7250 = vunpack.c.l.b16 %v7186
    %v7251 = vunpack.c.l.b16 %v7187
    %v7252 = vunpack.c.l.b16 %v7188
    %v7253 = vpack.c.b16 %v7222, %v7221
    %v7254 = vpack.c.b16 %v7224, %v7223
    %v7255 = vpack.c.b16 %v7226, %v7225
    %v7256 = vpack.c.b16 %v7228, %v7227
    %v7257 = vpack.c.b16 %v7230, %v7229
    %v7258 = vpack.c.b16 %v7232, %v7231
    %v7259 = vpack.c.b16 %v7234, %v7233
    %v7260 = vpack.c.b16 %v7236, %v7235
    %v7261 = vpack.c.b16 %v7238, %v7237
    %v7262 = vpack.c.b16 %v7240, %v7239
    %v7263 = vpack.c.b16 %v7242, %v7241
    %v7264 = vpack.c.b16 %v7244, %v7243
    %v7265 = vpack.c.b16 %v7246, %v7245
    %v7266 = vpack.c.b16 %v7248, %v7247
    %v7267 = vpack.c.b16 %v7250, %v7249
    %v7268 = vpack.c.b16 %v7252, %v7251
    %7285 = vmatprep.subr.bf16.mxu0 0
    %7286 = vmatpush1.bf16.msra.mxu0 %v7260
    %7287 = vmatprep.subr.bf16.mxu0 0
    %7288 = vmatpush1.bf16.msra.mxu0 %v7259
    %7289 = vmatprep.subr.bf16.mxu0 0
    %7290 = vmatpush1.bf16.msra.mxu0 %v7258
    %7291 = vmatprep.subr.bf16.mxu0 0
    %7292 = vmatpush1.bf16.msra.mxu0 %v7257
    %7293 = vmatprep.subr.bf16.mxu0 0
    %7294 = vmatpush1.bf16.msra.mxu0 %v7256
    %7295 = vmatprep.subr.bf16.mxu0 0
    %7296 = vmatpush1.bf16.msra.mxu0 %v7255
    %7297 = vmatprep.subr.bf16.mxu0 0
    %7298 = vmatpush1.bf16.msra.mxu0 %v7254
    %7299 = vmatprep.subr.bf16.mxu0 0
    %7300 = vmatpush1.bf16.msra.mxu0 %v7253
    %7301 = vmatprep.subr.bf16.mxu0 0
    %7302 = vmatpush2.bf16.msra.mxu0 %v7268
    %7303 = vmatprep.subr.bf16.mxu0 0
    %7304 = vmatpush2.bf16.msra.mxu0 %v7267
    %7305 = vmatprep.subr.bf16.mxu0 0
    %7306 = vmatpush2.bf16.msra.mxu0 %v7266
    %7307 = vmatprep.subr.bf16.mxu0 0
    %7308 = vmatpush2.bf16.msra.mxu0 %v7265
    %7309 = vmatprep.subr.bf16.mxu0 0
    %7310 = vmatpush2.bf16.msra.mxu0 %v7264
    %7311 = vmatprep.subr.bf16.mxu0 0
    %7312 = vmatpush2.bf16.msra.mxu0 %v7263
    %7313 = vmatprep.subr.bf16.mxu0 0
    %7314 = vmatpush2.bf16.msra.mxu0 %v7262
    %7315 = vmatprep.subr.bf16.mxu0 0
    %7316 = vmatpush2.bf16.msra.mxu0 %v7261
    %7317 = vmatprep.mubr.bf16.mxu0 %v7153
    %7318 = vmatmul.mubr.bf16.gmra.mxu0 %v7152
    %v7319 = vpop.f32.mrf.mxu0
    %v7320 = vadd.f32 0.0, %v7319
    %v7321 = vpop.f32.mrf.mxu0
    %v7322 = vpop.f32.mrf.mxu0
    %v7323 = vadd.f32 0.0, %v7322
    %v7324 = vpop.f32.mrf.mxu0
    %7325 = vmatprep.mubr.bf16.mxu0 %v7155
    %7326 = vmatmul.mubr.bf16.gmra.mxu0 %v7154
    %v7327 = vpop.f32.mrf.mxu0
    %v7328 = vadd.f32 0.0, %v7327
    %v7329 = vpop.f32.mrf.mxu0
    %v7330 = vpop.f32.mrf.mxu0
    %v7331 = vpop.f32.mrf.mxu0
    %7332 = vdwg.mxu0
    %v7333 = vadd.f32 %v7080, %v7320
    %v7334 = vadd.f32 %v7081, %v7323
    %v7335 = vadd.f32 %v7082, %v7328
    %s7336 = scalar_lea.vmem %s35, 72
    %v7337 = vld [vmem:[%s7336] sm:$0xf]
    %v7338 = vld [vmem:[%s7336 + $0x4] sm:$0xf]
    %v7339 = vld [vmem:[%s7336 + $0x8] sm:$0x3]
    %v7343 = vunpack.c.l.b16 %v7337
    %v7344 = vunpack.c.l.b16 %v7338
    %v7345 = vunpack.c.l.b16 %v7339
    %v7346 = vpack.c.b16 %v7344, %v7343
    %v7347 = vpack.c.b16 %v7345, %v7345
    %v7349 = vsel %vm3002, %v7346, 0
    %v7352 = vsel %vm3002, %v7347, 0
    %7354 = vmatprep.subr.bf16.mxu0 0
    %7355 = vmatpush1.bf16.msra.mxu0 0
    %7356 = vmatprep.subr.bf16.mxu0 0
    %7357 = vmatpush1.bf16.msra.mxu0 0
    %7358 = vmatprep.subr.bf16.mxu0 0
    %7359 = vmatpush1.bf16.msra.mxu0 0
    %7360 = vmatprep.subr.bf16.mxu0 0
    %7361 = vmatpush1.bf16.msra.mxu0 0
    %7362 = vmatprep.subr.bf16.mxu0 0
    %7363 = vmatpush1.bf16.msra.mxu0 0
    %7364 = vmatprep.subr.bf16.mxu0 0
    %7365 = vmatpush1.bf16.msra.mxu0 0
    %7366 = vmatprep.subr.bf16.mxu0 %v5825
    %7367 = vmatpush1.bf16.msra.mxu0 %v5824
    %7368 = vmatprep.subr.bf16.mxu0 %v5823
    %7369 = vmatpush1.bf16.msra.mxu0 %v5822
    %7370 = vmatprep.subr.bf16.mxu0 0
    %7371 = vmatpush2.bf16.msra.mxu0 0
    %7372 = vmatprep.subr.bf16.mxu0 0
    %7373 = vmatpush2.bf16.msra.mxu0 0
    %7374 = vmatprep.subr.bf16.mxu0 0
    %7375 = vmatpush2.bf16.msra.mxu0 0
    %7376 = vmatprep.subr.bf16.mxu0 0
    %7377 = vmatpush2.bf16.msra.mxu0 0
    %7378 = vmatprep.subr.bf16.mxu0 0
    %7379 = vmatpush2.bf16.msra.mxu0 0
    %7380 = vmatprep.subr.bf16.mxu0 0
    %7381 = vmatpush2.bf16.msra.mxu0 0
    %7382 = vmatprep.subr.bf16.mxu0 0
    %7383 = vmatpush2.bf16.msra.mxu0 0
    %7384 = vmatprep.subr.bf16.mxu0 0
    %7385 = vmatpush2.bf16.msra.mxu0 0
    %7386 = vmatprep.mubr.bf16.mxu0 0
    %7387 = vmatmul.mubr.bf16.gmra.mxu0 %v7349
    %v7388 = vpop.f32.mrf.mxu0
    %v7389 = vadd.f32 0.0, %v7388
    %v7390 = vpop.f32.mrf.mxu0
    %v7391 = vadd.f32 0.0, %v7390
    %v7392 = vpop.f32.mrf.mxu0
    %v7393 = vadd.f32 0.0, %v7392
    %v7394 = vpop.f32.mrf.mxu0
    %v7395 = vadd.f32 0.0, %v7394
    %7396 = vmatprep.mubr.bf16.mxu0 0
    %7397 = vmatmul.mubr.bf16.gmra.mxu0 %v7352
    %v7398 = vpop.f32.mrf.mxu0
    %v7399 = vadd.f32 0.0, %v7398
    %v7400 = vpop.f32.mrf.mxu0
    %v7401 = vadd.f32 0.0, %v7400
    %v7402 = vpop.f32.mrf.mxu0
    %v7403 = vpop.f32.mrf.mxu0
    %7404 = vdwg.mxu0
    %v7405 = vpack.c.bf16 %v7393, %v7389
    %v7406 = vpack.c.bf16 %v7395, %v7391
    %v7407 = vpack.c.bf16 %v7399, %v7399
    %v7408 = vpack.c.bf16 %v7401, %v7401
    %s7409 = scalar_lea.vmem %s37, 768
    %v7410 = vld [vmem:[%s7409] sm:$0xf]
    %v7411 = vld [vmem:[%s7409 + $0x4] sm:$0xf]
    %v7412 = vld [vmem:[%s7409 + $0x8] sm:$0xf]
    %v7413 = vld [vmem:[%s7409 + $0xc] sm:$0xf]
    %v7414 = vld [vmem:[%s7409 + $0x10] sm:$0xf]
    %v7415 = vld [vmem:[%s7409 + $0x14] sm:$0xf]
    %v7416 = vld [vmem:[%s7409 + $0x18] sm:$0xf]
    %v7417 = vld [vmem:[%s7409 + $0x1c] sm:$0xf]
    %v7418 = vld [vmem:[%s7409 + $0x20] sm:$0xf]
    %v7419 = vld [vmem:[%s7409 + $0x24] sm:$0xf]
    %v7420 = vld [vmem:[%s7409 + $0x28] sm:$0xf]
    %v7421 = vld [vmem:[%s7409 + $0x2c] sm:$0xf]
    %v7422 = vld [vmem:[%s7409 + $0x30] sm:$0xf]
    %v7423 = vld [vmem:[%s7409 + $0x34] sm:$0xf]
    %v7424 = vld [vmem:[%s7409 + $0x38] sm:$0xf]
    %v7425 = vld [vmem:[%s7409 + $0x3c] sm:$0xf]
    %v7426 = vld [vmem:[%s7409 + $0x40] sm:$0xf]
    %v7427 = vld [vmem:[%s7409 + $0x44] sm:$0xf]
    %v7428 = vld [vmem:[%s7409 + $0x48] sm:$0xf]
    %v7429 = vld [vmem:[%s7409 + $0x4c] sm:$0xf]
    %v7430 = vld [vmem:[%s7409 + $0x50] sm:$0xf]
    %v7431 = vld [vmem:[%s7409 + $0x54] sm:$0xf]
    %v7432 = vld [vmem:[%s7409 + $0x58] sm:$0xf]
    %v7433 = vld [vmem:[%s7409 + $0x5c] sm:$0xf]
    %v7434 = vld [vmem:[%s7409 + $0x60] sm:$0xf]
    %v7435 = vld [vmem:[%s7409 + $0x64] sm:$0xf]
    %v7436 = vld [vmem:[%s7409 + $0x68] sm:$0xf]
    %v7437 = vld [vmem:[%s7409 + $0x6c] sm:$0xf]
    %v7438 = vld [vmem:[%s7409 + $0x70] sm:$0xf]
    %v7439 = vld [vmem:[%s7409 + $0x74] sm:$0xf]
    %v7440 = vld [vmem:[%s7409 + $0x78] sm:$0xf]
    %v7441 = vld [vmem:[%s7409 + $0x7c] sm:$0xf]
    %v7474 = vunpack.c.l.b16 %v7410
    %v7475 = vunpack.c.l.b16 %v7411
    %v7476 = vunpack.c.l.b16 %v7412
    %v7477 = vunpack.c.l.b16 %v7413
    %v7478 = vunpack.c.l.b16 %v7414
    %v7479 = vunpack.c.l.b16 %v7415
    %v7480 = vunpack.c.l.b16 %v7416
    %v7481 = vunpack.c.l.b16 %v7417
    %v7482 = vunpack.c.l.b16 %v7418
    %v7483 = vunpack.c.l.b16 %v7419
    %v7484 = vunpack.c.l.b16 %v7420
    %v7485 = vunpack.c.l.b16 %v7421
    %v7486 = vunpack.c.l.b16 %v7422
    %v7487 = vunpack.c.l.b16 %v7423
    %v7488 = vunpack.c.l.b16 %v7424
    %v7489 = vunpack.c.l.b16 %v7425
    %v7490 = vunpack.c.l.b16 %v7426
    %v7491 = vunpack.c.l.b16 %v7427
    %v7492 = vunpack.c.l.b16 %v7428
    %v7493 = vunpack.c.l.b16 %v7429
    %v7494 = vunpack.c.l.b16 %v7430
    %v7495 = vunpack.c.l.b16 %v7431
    %v7496 = vunpack.c.l.b16 %v7432
    %v7497 = vunpack.c.l.b16 %v7433
    %v7498 = vunpack.c.l.b16 %v7434
    %v7499 = vunpack.c.l.b16 %v7435
    %v7500 = vunpack.c.l.b16 %v7436
    %v7501 = vunpack.c.l.b16 %v7437
    %v7502 = vunpack.c.l.b16 %v7438
    %v7503 = vunpack.c.l.b16 %v7439
    %v7504 = vunpack.c.l.b16 %v7440
    %v7505 = vunpack.c.l.b16 %v7441
    %v7506 = vpack.c.b16 %v7475, %v7474
    %v7507 = vpack.c.b16 %v7477, %v7476
    %v7508 = vpack.c.b16 %v7479, %v7478
    %v7509 = vpack.c.b16 %v7481, %v7480
    %v7510 = vpack.c.b16 %v7483, %v7482
    %v7511 = vpack.c.b16 %v7485, %v7484
    %v7512 = vpack.c.b16 %v7487, %v7486
    %v7513 = vpack.c.b16 %v7489, %v7488
    %v7514 = vpack.c.b16 %v7491, %v7490
    %v7515 = vpack.c.b16 %v7493, %v7492
    %v7516 = vpack.c.b16 %v7495, %v7494
    %v7517 = vpack.c.b16 %v7497, %v7496
    %v7518 = vpack.c.b16 %v7499, %v7498
    %v7519 = vpack.c.b16 %v7501, %v7500
    %v7520 = vpack.c.b16 %v7503, %v7502
    %v7521 = vpack.c.b16 %v7505, %v7504
    %7538 = vmatprep.subr.bf16.mxu0 0
    %7539 = vmatpush1.bf16.msra.mxu0 %v7513
    %7540 = vmatprep.subr.bf16.mxu0 0
    %7541 = vmatpush1.bf16.msra.mxu0 %v7512
    %7542 = vmatprep.subr.bf16.mxu0 0
    %7543 = vmatpush1.bf16.msra.mxu0 %v7511
    %7544 = vmatprep.subr.bf16.mxu0 0
    %7545 = vmatpush1.bf16.msra.mxu0 %v7510
    %7546 = vmatprep.subr.bf16.mxu0 0
    %7547 = vmatpush1.bf16.msra.mxu0 %v7509
    %7548 = vmatprep.subr.bf16.mxu0 0
    %7549 = vmatpush1.bf16.msra.mxu0 %v7508
    %7550 = vmatprep.subr.bf16.mxu0 0
    %7551 = vmatpush1.bf16.msra.mxu0 %v7507
    %7552 = vmatprep.subr.bf16.mxu0 0
    %7553 = vmatpush1.bf16.msra.mxu0 %v7506
    %7554 = vmatprep.subr.bf16.mxu0 0
    %7555 = vmatpush2.bf16.msra.mxu0 %v7521
    %7556 = vmatprep.subr.bf16.mxu0 0
    %7557 = vmatpush2.bf16.msra.mxu0 %v7520
    %7558 = vmatprep.subr.bf16.mxu0 0
    %7559 = vmatpush2.bf16.msra.mxu0 %v7519
    %7560 = vmatprep.subr.bf16.mxu0 0
    %7561 = vmatpush2.bf16.msra.mxu0 %v7518
    %7562 = vmatprep.subr.bf16.mxu0 0
    %7563 = vmatpush2.bf16.msra.mxu0 %v7517
    %7564 = vmatprep.subr.bf16.mxu0 0
    %7565 = vmatpush2.bf16.msra.mxu0 %v7516
    %7566 = vmatprep.subr.bf16.mxu0 0
    %7567 = vmatpush2.bf16.msra.mxu0 %v7515
    %7568 = vmatprep.subr.bf16.mxu0 0
    %7569 = vmatpush2.bf16.msra.mxu0 %v7514
    %7570 = vmatprep.mubr.bf16.mxu0 %v7406
    %7571 = vmatmul.mubr.bf16.gmra.mxu0 %v7405
    %v7572 = vpop.f32.mrf.mxu0
    %v7573 = vadd.f32 0.0, %v7572
    %v7574 = vpop.f32.mrf.mxu0
    %v7575 = vpop.f32.mrf.mxu0
    %v7576 = vadd.f32 0.0, %v7575
    %v7577 = vpop.f32.mrf.mxu0
    %7578 = vmatprep.mubr.bf16.mxu0 %v7408
    %7579 = vmatmul.mubr.bf16.gmra.mxu0 %v7407
    %v7580 = vpop.f32.mrf.mxu0
    %v7581 = vadd.f32 0.0, %v7580
    %v7582 = vpop.f32.mrf.mxu0
    %v7583 = vpop.f32.mrf.mxu0
    %v7584 = vpop.f32.mrf.mxu0
    %7585 = vdwg.mxu0
    %v7586 = vadd.f32 %v7333, %v7573
    %v7587 = vadd.f32 %v7334, %v7576
    %v7588 = vadd.f32 %v7335, %v7581
    %v7589 = vld [vmem:[%s39] sm:$0x1]
    %v7591 = vlaneseq
    %v7592 = vshrl.u32 %v7591, 7
    %v7593 = vsub.s32 0, %v7592
    %v7594 = vrot.slane %v7589, %v7593
    %v7596 = vadd.f32 %v7586, %v7594
    %v7597 = vadd.f32 %v7587, %v7594
    %v7598 = vadd.f32 %v7588, %v7594
    %v7599 = vmax.f32 %v7596, 0.0
    %v7600 = vmax.f32 %v7597, 0.0
    %v7601 = vmax.f32 %v7598, 0.0
    %v7602 = vpack.c.bf16 %v5816, %v5815
    %v7603 = vpack.c.bf16 %v5818, %v5817
    %v7604 = vpack.c.bf16 %v5820, %v5819
    %v7605 = vpack.c.bf16 %v5821, %v5821
    %v7606 = vld [vmem:[%s53] sm:$0xff]
    %v7607 = vld [vmem:[%s53 + $0x8] sm:$0xff]
    %v7608 = vld [vmem:[%s53 + $0x10] sm:$0xff]
    %v7609 = vld [vmem:[%s53 + $0x18] sm:$0xff]
    %v7610 = vld [vmem:[%s53 + $0x20] sm:$0xff]
    %v7611 = vld [vmem:[%s53 + $0x28] sm:$0xff]
    %v7612 = vld [vmem:[%s53 + $0x30] sm:$0x11]
    %v7613 = vld [vmem:[%s53 + $0x38] sm:$0x11]
    %v7622 = vunpack.c.l.b16 %v7606
    %v7623 = vunpack.c.h.b16 %v7606
    %v7624 = vunpack.c.l.b16 %v7607
    %v7625 = vunpack.c.h.b16 %v7607
    %v7626 = vunpack.c.l.b16 %v7608
    %v7627 = vunpack.c.h.b16 %v7608
    %v7628 = vunpack.c.l.b16 %v7609
    %v7629 = vunpack.c.h.b16 %v7609
    %v7630 = vunpack.c.l.b16 %v7610
    %v7631 = vunpack.c.h.b16 %v7610
    %v7632 = vunpack.c.l.b16 %v7611
    %v7633 = vunpack.c.h.b16 %v7611
    %v7634 = vunpack.c.l.b16 %v7612
    %v7635 = vunpack.c.h.b16 %v7612
    %v7636 = vunpack.c.l.b16 %v7613
    %v7637 = vunpack.c.h.b16 %v7613
    %v7638 = vpack.c.b16 %v7626, %v7622
    %v7639 = vpack.c.b16 %v7627, %v7623
    %v7640 = vpack.c.b16 %v7628, %v7624
    %v7641 = vpack.c.b16 %v7629, %v7625
    %v7642 = vpack.c.b16 %v7634, %v7630
    %v7643 = vpack.c.b16 %v7635, %v7631
    %v7644 = vpack.c.b16 %v7636, %v7632
    %v7645 = vpack.c.b16 %v7637, %v7633
    %vm7650 = vcmask 211968
    %v7652 = vsel %vm7650, %v7602, 0
    %v7655 = vsel %vm7650, %v7603, 0
    %v7658 = vsel %vm7650, %v7604, 0
    %v7661 = vsel %vm7650, %v7605, 0
    %vm7663 = vcmask 1044480
    %v7665 = vsel %vm7663, %v7642, 0
    %v7668 = vsel %vm7663, %v7643, 0
    %v7671 = vsel %vm7663, %v7644, 0
    %v7674 = vsel %vm7663, %v7645, 0
    %7676 = vmatprep.subr.bf16.mxu0 0
    %7677 = vmatpush1.bf16.msra.mxu0 0
    %7678 = vmatprep.subr.bf16.mxu0 0
    %7679 = vmatpush1.bf16.msra.mxu0 0
    %7680 = vmatprep.subr.bf16.mxu0 0
    %7681 = vmatpush1.bf16.msra.mxu0 0
    %7682 = vmatprep.subr.bf16.mxu0 0
    %7683 = vmatpush1.bf16.msra.mxu0 0
    %7684 = vmatprep.subr.bf16.mxu0 0
    %7685 = vmatpush1.bf16.msra.mxu0 0
    %7686 = vmatprep.subr.bf16.mxu0 0
    %7687 = vmatpush1.bf16.msra.mxu0 0
    %7688 = vmatprep.subr.bf16.mxu0 %v7668
    %7689 = vmatpush1.bf16.msra.mxu0 %v7665
    %7690 = vmatprep.subr.bf16.mxu0 %v7639
    %7691 = vmatpush1.bf16.msra.mxu0 %v7638
    %7692 = vmatprep.subr.bf16.mxu0 0
    %7693 = vmatpush2.bf16.msra.mxu0 0
    %7694 = vmatprep.subr.bf16.mxu0 0
    %7695 = vmatpush2.bf16.msra.mxu0 0
    %7696 = vmatprep.subr.bf16.mxu0 0
    %7697 = vmatpush2.bf16.msra.mxu0 0
    %7698 = vmatprep.subr.bf16.mxu0 0
    %7699 = vmatpush2.bf16.msra.mxu0 0
    %7700 = vmatprep.subr.bf16.mxu0 0
    %7701 = vmatpush2.bf16.msra.mxu0 0
    %7702 = vmatprep.subr.bf16.mxu0 0
    %7703 = vmatpush2.bf16.msra.mxu0 0
    %7704 = vmatprep.subr.bf16.mxu0 0
    %7705 = vmatpush2.bf16.msra.mxu0 0
    %7706 = vmatprep.subr.bf16.mxu0 0
    %7707 = vmatpush2.bf16.msra.mxu0 0
    %7708 = vmatprep.mubr.bf16.mxu0 0
    %7709 = vmatmul.mubr.bf16.gmra.mxu0 %v7652
    %v7710 = vpop.f32.mrf.mxu0
    %v7711 = vadd.f32 0.0, %v7710
    %v7712 = vpop.f32.mrf.mxu0
    %v7713 = vadd.f32 0.0, %v7712
    %v7714 = vpop.f32.mrf.mxu0
    %v7715 = vadd.f32 0.0, %v7714
    %v7716 = vpop.f32.mrf.mxu0
    %v7717 = vadd.f32 0.0, %v7716
    %7718 = vmatprep.mubr.bf16.mxu0 0
    %7719 = vmatmul.mubr.bf16.gmra.mxu0 %v7655
    %v7720 = vpop.f32.mrf.mxu0
    %v7721 = vadd.f32 0.0, %v7720
    %v7722 = vpop.f32.mrf.mxu0
    %v7723 = vadd.f32 0.0, %v7722
    %v7724 = vpop.f32.mrf.mxu0
    %v7725 = vadd.f32 0.0, %v7724
    %v7726 = vpop.f32.mrf.mxu0
    %v7727 = vadd.f32 0.0, %v7726
    %7728 = vmatprep.mubr.bf16.mxu0 0
    %7729 = vmatmul.mubr.bf16.gmra.mxu0 %v7658
    %v7730 = vpop.f32.mrf.mxu0
    %v7731 = vadd.f32 0.0, %v7730
    %v7732 = vpop.f32.mrf.mxu0
    %v7733 = vadd.f32 0.0, %v7732
    %v7734 = vpop.f32.mrf.mxu0
    %v7735 = vadd.f32 0.0, %v7734
    %v7736 = vpop.f32.mrf.mxu0
    %v7737 = vadd.f32 0.0, %v7736
    %7738 = vmatprep.mubr.bf16.mxu0 0
    %7739 = vmatmul.mubr.bf16.gmra.mxu0 %v7661
    %v7740 = vpop.f32.mrf.mxu0
    %v7741 = vadd.f32 0.0, %v7740
    %v7742 = vpop.f32.mrf.mxu0
    %v7743 = vadd.f32 0.0, %v7742
    %v7744 = vpop.f32.mrf.mxu0
    %v7745 = vpop.f32.mrf.mxu0
    %7746 = vdwg.mxu0
    %7747 = vmatprep.subr.bf16.mxu0 0
    %7748 = vmatpush1.bf16.msra.mxu0 0
    %7749 = vmatprep.subr.bf16.mxu0 0
    %7750 = vmatpush1.bf16.msra.mxu0 0
    %7751 = vmatprep.subr.bf16.mxu0 0
    %7752 = vmatpush1.bf16.msra.mxu0 0
    %7753 = vmatprep.subr.bf16.mxu0 0
    %7754 = vmatpush1.bf16.msra.mxu0 0
    %7755 = vmatprep.subr.bf16.mxu0 0
    %7756 = vmatpush1.bf16.msra.mxu0 0
    %7757 = vmatprep.subr.bf16.mxu0 0
    %7758 = vmatpush1.bf16.msra.mxu0 0
    %7759 = vmatprep.subr.bf16.mxu0 %v7674
    %7760 = vmatpush1.bf16.msra.mxu0 %v7671
    %7761 = vmatprep.subr.bf16.mxu0 %v7641
    %7762 = vmatpush1.bf16.msra.mxu0 %v7640
    %7763 = vmatprep.subr.bf16.mxu0 0
    %7764 = vmatpush2.bf16.msra.mxu0 0
    %7765 = vmatprep.subr.bf16.mxu0 0
    %7766 = vmatpush2.bf16.msra.mxu0 0
    %7767 = vmatprep.subr.bf16.mxu0 0
    %7768 = vmatpush2.bf16.msra.mxu0 0
    %7769 = vmatprep.subr.bf16.mxu0 0
    %7770 = vmatpush2.bf16.msra.mxu0 0
    %7771 = vmatprep.subr.bf16.mxu0 0
    %7772 = vmatpush2.bf16.msra.mxu0 0
    %7773 = vmatprep.subr.bf16.mxu0 0
    %7774 = vmatpush2.bf16.msra.mxu0 0
    %7775 = vmatprep.subr.bf16.mxu0 0
    %7776 = vmatpush2.bf16.msra.mxu0 0
    %7777 = vmatprep.subr.bf16.mxu0 0
    %7778 = vmatpush2.bf16.msra.mxu0 0
    %7779 = vmatprep.mubr.bf16.mxu0 0
    %7780 = vmatmul.mubr.bf16.gmra.mxu0 %v7652
    %v7781 = vpop.f32.mrf.mxu0
    %v7782 = vadd.f32 0.0, %v7781
    %v7783 = vpop.f32.mrf.mxu0
    %v7784 = vadd.f32 0.0, %v7783
    %v7785 = vpop.f32.mrf.mxu0
    %v7786 = vadd.f32 0.0, %v7785
    %v7787 = vpop.f32.mrf.mxu0
    %v7788 = vadd.f32 0.0, %v7787
    %7789 = vmatprep.mubr.bf16.mxu0 0
    %7790 = vmatmul.mubr.bf16.gmra.mxu0 %v7655
    %v7791 = vpop.f32.mrf.mxu0
    %v7792 = vadd.f32 0.0, %v7791
    %v7793 = vpop.f32.mrf.mxu0
    %v7794 = vadd.f32 0.0, %v7793
    %v7795 = vpop.f32.mrf.mxu0
    %v7796 = vadd.f32 0.0, %v7795
    %v7797 = vpop.f32.mrf.mxu0
    %v7798 = vadd.f32 0.0, %v7797
    %7799 = vmatprep.mubr.bf16.mxu0 0
    %7800 = vmatmul.mubr.bf16.gmra.mxu0 %v7658
    %v7801 = vpop.f32.mrf.mxu0
    %v7802 = vadd.f32 0.0, %v7801
    %v7803 = vpop.f32.mrf.mxu0
    %v7804 = vadd.f32 0.0, %v7803
    %v7805 = vpop.f32.mrf.mxu0
    %v7806 = vadd.f32 0.0, %v7805
    %v7807 = vpop.f32.mrf.mxu0
    %v7808 = vadd.f32 0.0, %v7807
    %7809 = vmatprep.mubr.bf16.mxu0 0
    %7810 = vmatmul.mubr.bf16.gmra.mxu0 %v7661
    %v7811 = vpop.f32.mrf.mxu0
    %v7812 = vadd.f32 0.0, %v7811
    %v7813 = vpop.f32.mrf.mxu0
    %v7814 = vadd.f32 0.0, %v7813
    %v7815 = vpop.f32.mrf.mxu0
    %v7816 = vpop.f32.mrf.mxu0
    %7817 = vdwg.mxu0
    %v7818 = vld [vmem:[%s55] sm:$0xff]
    %v7819 = vld [vmem:[%s55 + $0x8] sm:$0xff]
    %v7820 = vld [vmem:[%s55 + $0x10] sm:$0xff]
    %v7821 = vld [vmem:[%s55 + $0x18] sm:$0xff]
    %v7822 = vld [vmem:[%s55 + $0x20] sm:$0xff]
    %v7823 = vld [vmem:[%s55 + $0x28] sm:$0xff]
    %v7824 = vld [vmem:[%s55 + $0x30] sm:$0xff]
    %v7825 = vld [vmem:[%s55 + $0x38] sm:$0xff]
    %v7826 = vld [vmem:[%s55 + $0x40] sm:$0xff]
    %v7827 = vld [vmem:[%s55 + $0x48] sm:$0xff]
    %v7828 = vld [vmem:[%s55 + $0x50] sm:$0xff]
    %v7829 = vld [vmem:[%s55 + $0x58] sm:$0xff]
    %v7830 = vld [vmem:[%s55 + $0x60] sm:$0xff]
    %v7831 = vld [vmem:[%s55 + $0x68] sm:$0xff]
    %v7832 = vld [vmem:[%s55 + $0x70] sm:$0xff]
    %v7833 = vld [vmem:[%s55 + $0x78] sm:$0xff]
    %v7834 = vld [vmem:[%s55 + $0x80] sm:$0xff]
    %v7835 = vld [vmem:[%s55 + $0x88] sm:$0xff]
    %v7836 = vld [vmem:[%s55 + $0x90] sm:$0xff]
    %v7837 = vld [vmem:[%s55 + $0x98] sm:$0xff]
    %v7838 = vld [vmem:[%s55 + $0xa0] sm:$0xff]
    %v7839 = vld [vmem:[%s55 + $0xa8] sm:$0xff]
    %v7840 = vld [vmem:[%s55 + $0xb0] sm:$0xff]
    %v7841 = vld [vmem:[%s55 + $0xb8] sm:$0xff]
    %v7842 = vld [vmem:[%s55 + $0xc0] sm:$0xf]
    %v7843 = vld [vmem:[%s55 + $0xc8] sm:$0xf]
    %v7844 = vld [vmem:[%s55 + $0xd0] sm:$0xf]
    %v7845 = vld [vmem:[%s55 + $0xd8] sm:$0xf]
    %v7846 = vmul.f32 %v7711, %v7818
    %v7847 = vmul.f32 %v7713, %v7819
    %v7848 = vmul.f32 %v7782, %v7820
    %v7849 = vmul.f32 %v7784, %v7821
    %v7850 = vmul.f32 %v7715, %v7822
    %v7851 = vmul.f32 %v7717, %v7823
    %v7852 = vmul.f32 %v7786, %v7824
    %v7853 = vmul.f32 %v7788, %v7825
    %v7854 = vmul.f32 %v7721, %v7826
    %v7855 = vmul.f32 %v7723, %v7827
    %v7856 = vmul.f32 %v7792, %v7828
    %v7857 = vmul.f32 %v7794, %v7829
    %v7858 = vmul.f32 %v7725, %v7830
    %v7859 = vmul.f32 %v7727, %v7831
    %v7860 = vmul.f32 %v7796, %v7832
    %v7861 = vmul.f32 %v7798, %v7833
    %v7862 = vmul.f32 %v7731, %v7834
    %v7863 = vmul.f32 %v7733, %v7835
    %v7864 = vmul.f32 %v7802, %v7836
    %v7865 = vmul.f32 %v7804, %v7837
    %v7866 = vmul.f32 %v7735, %v7838
    %v7867 = vmul.f32 %v7737, %v7839
    %v7868 = vmul.f32 %v7806, %v7840
    %v7869 = vmul.f32 %v7808, %v7841
    %v7870 = vmul.f32 %v7741, %v7842
    %v7871 = vmul.f32 %v7743, %v7843
    %v7872 = vmul.f32 %v7812, %v7844
    %v7873 = vmul.f32 %v7814, %v7845
    %v7874 = vpack.c.bf16 %v7850, %v7846
    %v7875 = vpack.c.bf16 %v7851, %v7847
    %v7876 = vpack.c.bf16 %v7852, %v7848
    %v7877 = vpack.c.bf16 %v7853, %v7849
    %v7878 = vpack.c.bf16 %v7858, %v7854
    %v7879 = vpack.c.bf16 %v7859, %v7855
    %v7880 = vpack.c.bf16 %v7860, %v7856
    %v7881 = vpack.c.bf16 %v7861, %v7857
    %v7882 = vpack.c.bf16 %v7866, %v7862
    %v7883 = vpack.c.bf16 %v7867, %v7863
    %v7884 = vpack.c.bf16 %v7868, %v7864
    %v7885 = vpack.c.bf16 %v7869, %v7865
    %v7886 = vpack.c.bf16 %v7870, %v7870
    %v7887 = vpack.c.bf16 %v7871, %v7871
    %v7888 = vpack.c.bf16 %v7872, %v7872
    %v7889 = vpack.c.bf16 %v7873, %v7873
    %v7890 = vld [vmem:[%s59] sm:$0xf]
    %v7891 = vld [vmem:[%s59 + $0x4] sm:$0xf]
    %v7892 = vld [vmem:[%s59 + $0x8] sm:$0xf]
    %v7893 = vld [vmem:[%s59 + $0xc] sm:$0xf]
    %v7894 = vld [vmem:[%s59 + $0x10] sm:$0xf]
    %v7895 = vld [vmem:[%s59 + $0x14] sm:$0xf]
    %v7896 = vld [vmem:[%s59 + $0x18] sm:$0xf]
    %v7897 = vld [vmem:[%s59 + $0x1c] sm:$0xf]
    %v7898 = vld [vmem:[%s59 + $0x20] sm:$0xf]
    %v7899 = vld [vmem:[%s59 + $0x24] sm:$0xf]
    %v7900 = vld [vmem:[%s59 + $0x28] sm:$0xf]
    %v7901 = vld [vmem:[%s59 + $0x2c] sm:$0xf]
    %v7902 = vld [vmem:[%s59 + $0x30] sm:$0xf]
    %v7903 = vld [vmem:[%s59 + $0x34] sm:$0xf]
    %v7904 = vld [vmem:[%s59 + $0x38] sm:$0xf]
    %v7905 = vld [vmem:[%s59 + $0x3c] sm:$0xf]
    %v7906 = vld [vmem:[%s59 + $0x40] sm:$0xf]
    %v7907 = vld [vmem:[%s59 + $0x44] sm:$0xf]
    %v7908 = vld [vmem:[%s59 + $0x48] sm:$0xf]
    %v7909 = vld [vmem:[%s59 + $0x4c] sm:$0xf]
    %v7910 = vld [vmem:[%s59 + $0x50] sm:$0xf]
    %v7911 = vld [vmem:[%s59 + $0x54] sm:$0xf]
    %v7912 = vld [vmem:[%s59 + $0x58] sm:$0xf]
    %v7913 = vld [vmem:[%s59 + $0x5c] sm:$0xf]
    %v7914 = vld [vmem:[%s59 + $0x60] sm:$0xf]
    %v7915 = vld [vmem:[%s59 + $0x64] sm:$0xf]
    %v7916 = vld [vmem:[%s59 + $0x68] sm:$0xf]
    %v7917 = vld [vmem:[%s59 + $0x6c] sm:$0xf]
    %v7918 = vld [vmem:[%s59 + $0x70] sm:$0xf]
    %v7919 = vld [vmem:[%s59 + $0x74] sm:$0xf]
    %v7920 = vld [vmem:[%s59 + $0x78] sm:$0xf]
    %v7921 = vld [vmem:[%s59 + $0x7c] sm:$0xf]
    %v7922 = vld [vmem:[%s59 + $0x80] sm:$0xf]
    %v7923 = vld [vmem:[%s59 + $0x84] sm:$0xf]
    %v7924 = vld [vmem:[%s59 + $0x88] sm:$0xf]
    %v7925 = vld [vmem:[%s59 + $0x8c] sm:$0xf]
    %v7926 = vld [vmem:[%s59 + $0x90] sm:$0xf]
    %v7927 = vld [vmem:[%s59 + $0x94] sm:$0xf]
    %v7928 = vld [vmem:[%s59 + $0x98] sm:$0xf]
    %v7929 = vld [vmem:[%s59 + $0x9c] sm:$0xf]
    %v7930 = vld [vmem:[%s59 + $0xa0] sm:$0xf]
    %v7931 = vld [vmem:[%s59 + $0xa4] sm:$0xf]
    %v7932 = vld [vmem:[%s59 + $0xa8] sm:$0xf]
    %v7933 = vld [vmem:[%s59 + $0xac] sm:$0xf]
    %v7934 = vld [vmem:[%s59 + $0xb0] sm:$0xf]
    %v7935 = vld [vmem:[%s59 + $0xb4] sm:$0xf]
    %v7936 = vld [vmem:[%s59 + $0xb8] sm:$0xf]
    %v7937 = vld [vmem:[%s59 + $0xbc] sm:$0xf]
    %v7938 = vld [vmem:[%s59 + $0xc0] sm:$0xf]
    %v7939 = vld [vmem:[%s59 + $0xc4] sm:$0xf]
    %v7940 = vld [vmem:[%s59 + $0xc8] sm:$0xf]
    %v7941 = vld [vmem:[%s59 + $0xcc] sm:$0xf]
    %v7994 = vunpack.c.l.b16 %v7890
    %v7995 = vunpack.c.l.b16 %v7891
    %v7996 = vunpack.c.l.b16 %v7892
    %v7997 = vunpack.c.l.b16 %v7893
    %v7998 = vunpack.c.l.b16 %v7894
    %v7999 = vunpack.c.l.b16 %v7895
    %v8000 = vunpack.c.l.b16 %v7896
    %v8001 = vunpack.c.l.b16 %v7897
    %v8002 = vunpack.c.l.b16 %v7898
    %v8003 = vunpack.c.l.b16 %v7899
    %v8004 = vunpack.c.l.b16 %v7900
    %v8005 = vunpack.c.l.b16 %v7901
    %v8006 = vunpack.c.l.b16 %v7902
    %v8007 = vunpack.c.l.b16 %v7903
    %v8008 = vunpack.c.l.b16 %v7904
    %v8009 = vunpack.c.l.b16 %v7905
    %v8010 = vunpack.c.l.b16 %v7906
    %v8011 = vunpack.c.l.b16 %v7907
    %v8012 = vunpack.c.l.b16 %v7908
    %v8013 = vunpack.c.l.b16 %v7909
    %v8014 = vunpack.c.l.b16 %v7910
    %v8015 = vunpack.c.l.b16 %v7911
    %v8016 = vunpack.c.l.b16 %v7912
    %v8017 = vunpack.c.l.b16 %v7913
    %v8018 = vunpack.c.l.b16 %v7914
    %v8019 = vunpack.c.l.b16 %v7915
    %v8020 = vunpack.c.l.b16 %v7916
    %v8021 = vunpack.c.l.b16 %v7917
    %v8022 = vunpack.c.l.b16 %v7918
    %v8023 = vunpack.c.l.b16 %v7919
    %v8024 = vunpack.c.l.b16 %v7920
    %v8025 = vunpack.c.l.b16 %v7921
    %v8026 = vunpack.c.l.b16 %v7922
    %v8027 = vunpack.c.l.b16 %v7923
    %v8028 = vunpack.c.l.b16 %v7924
    %v8029 = vunpack.c.l.b16 %v7925
    %v8030 = vunpack.c.l.b16 %v7926
    %v8031 = vunpack.c.l.b16 %v7927
    %v8032 = vunpack.c.l.b16 %v7928
    %v8033 = vunpack.c.l.b16 %v7929
    %v8034 = vunpack.c.l.b16 %v7930
    %v8035 = vunpack.c.l.b16 %v7931
    %v8036 = vunpack.c.l.b16 %v7932
    %v8037 = vunpack.c.l.b16 %v7933
    %v8038 = vunpack.c.l.b16 %v7934
    %v8039 = vunpack.c.l.b16 %v7935
    %v8040 = vunpack.c.l.b16 %v7936
    %v8041 = vunpack.c.l.b16 %v7937
    %v8042 = vunpack.c.l.b16 %v7938
    %v8043 = vunpack.c.l.b16 %v7939
    %v8044 = vunpack.c.l.b16 %v7940
    %v8045 = vunpack.c.l.b16 %v7941
    %v8046 = vpack.c.b16 %v7995, %v7994
    %v8047 = vpack.c.b16 %v7997, %v7996
    %v8048 = vpack.c.b16 %v7999, %v7998
    %v8049 = vpack.c.b16 %v8001, %v8000
    %v8050 = vpack.c.b16 %v8003, %v8002
    %v8051 = vpack.c.b16 %v8005, %v8004
    %v8052 = vpack.c.b16 %v8007, %v8006
    %v8053 = vpack.c.b16 %v8009, %v8008
    %v8054 = vpack.c.b16 %v8011, %v8010
    %v8055 = vpack.c.b16 %v8013, %v8012
    %v8056 = vpack.c.b16 %v8015, %v8014
    %v8057 = vpack.c.b16 %v8017, %v8016
    %v8058 = vpack.c.b16 %v8019, %v8018
    %v8059 = vpack.c.b16 %v8021, %v8020
    %v8060 = vpack.c.b16 %v8023, %v8022
    %v8061 = vpack.c.b16 %v8025, %v8024
    %v8062 = vpack.c.b16 %v8027, %v8026
    %v8063 = vpack.c.b16 %v8029, %v8028
    %v8064 = vpack.c.b16 %v8031, %v8030
    %v8065 = vpack.c.b16 %v8033, %v8032
    %v8066 = vpack.c.b16 %v8035, %v8034
    %v8067 = vpack.c.b16 %v8037, %v8036
    %v8068 = vpack.c.b16 %v8039, %v8038
    %v8069 = vpack.c.b16 %v8041, %v8040
    %v8070 = vpack.c.b16 %v8043, %v8042
    %v8071 = vpack.c.b16 %v8045, %v8044
    %v8099 = vsel %vm3002, %v7877, 0
    %v8102 = vsel %vm3002, %v7881, 0
    %v8105 = vsel %vm3002, %v7885, 0
    %v8108 = vsel %vm3002, %v7889, 0
    %8110 = vmatprep.subr.bf16.mxu0 0
    %8111 = vmatpush1.bf16.msra.mxu0 %v8053
    %8112 = vmatprep.subr.bf16.mxu0 0
    %8113 = vmatpush1.bf16.msra.mxu0 %v8052
    %8114 = vmatprep.subr.bf16.mxu0 0
    %8115 = vmatpush1.bf16.msra.mxu0 %v8051
    %8116 = vmatprep.subr.bf16.mxu0 0
    %8117 = vmatpush1.bf16.msra.mxu0 %v8050
    %8118 = vmatprep.subr.bf16.mxu0 0
    %8119 = vmatpush1.bf16.msra.mxu0 %v8049
    %8120 = vmatprep.subr.bf16.mxu0 0
    %8121 = vmatpush1.bf16.msra.mxu0 %v8048
    %8122 = vmatprep.subr.bf16.mxu0 0
    %8123 = vmatpush1.bf16.msra.mxu0 %v8047
    %8124 = vmatprep.subr.bf16.mxu0 0
    %8125 = vmatpush1.bf16.msra.mxu0 %v8046
    %8126 = vmatprep.subr.bf16.mxu0 0
    %8127 = vmatpush2.bf16.msra.mxu0 %v8061
    %8128 = vmatprep.subr.bf16.mxu0 0
    %8129 = vmatpush2.bf16.msra.mxu0 %v8060
    %8130 = vmatprep.subr.bf16.mxu0 0
    %8131 = vmatpush2.bf16.msra.mxu0 %v8059
    %8132 = vmatprep.subr.bf16.mxu0 0
    %8133 = vmatpush2.bf16.msra.mxu0 %v8058
    %8134 = vmatprep.subr.bf16.mxu0 0
    %8135 = vmatpush2.bf16.msra.mxu0 %v8057
    %8136 = vmatprep.subr.bf16.mxu0 0
    %8137 = vmatpush2.bf16.msra.mxu0 %v8056
    %8138 = vmatprep.subr.bf16.mxu0 0
    %8139 = vmatpush2.bf16.msra.mxu0 %v8055
    %8140 = vmatprep.subr.bf16.mxu0 0
    %8141 = vmatpush2.bf16.msra.mxu0 %v8054
    %8142 = vmatprep.mubr.bf16.mxu0 %v7875
    %8143 = vmatmul.mubr.bf16.gmra.mxu0 %v7874
    %v8144 = vpop.f32.mrf.mxu0
    %v8145 = vadd.f32 0.0, %v8144
    %v8146 = vpop.f32.mrf.mxu0
    %v8147 = vpop.f32.mrf.mxu0
    %v8148 = vadd.f32 0.0, %v8147
    %v8149 = vpop.f32.mrf.mxu0
    %8150 = vmatprep.mubr.bf16.mxu0 %v7879
    %8151 = vmatmul.mubr.bf16.gmra.mxu0 %v7878
    %v8152 = vpop.f32.mrf.mxu0
    %v8153 = vadd.f32 0.0, %v8152
    %v8154 = vpop.f32.mrf.mxu0
    %v8155 = vpop.f32.mrf.mxu0
    %v8156 = vadd.f32 0.0, %v8155
    %v8157 = vpop.f32.mrf.mxu0
    %8158 = vmatprep.mubr.bf16.mxu0 %v7883
    %8159 = vmatmul.mubr.bf16.gmra.mxu0 %v7882
    %v8160 = vpop.f32.mrf.mxu0
    %v8161 = vadd.f32 0.0, %v8160
    %v8162 = vpop.f32.mrf.mxu0
    %v8163 = vpop.f32.mrf.mxu0
    %v8164 = vadd.f32 0.0, %v8163
    %v8165 = vpop.f32.mrf.mxu0
    %8166 = vmatprep.mubr.bf16.mxu0 %v7887
    %8167 = vmatmul.mubr.bf16.gmra.mxu0 %v7886
    %v8168 = vpop.f32.mrf.mxu0
    %v8169 = vadd.f32 0.0, %v8168
    %v8170 = vpop.f32.mrf.mxu0
    %v8171 = vpop.f32.mrf.mxu0
    %v8172 = vpop.f32.mrf.mxu0
    %8173 = vdwg.mxu0
    %8174 = vmatprep.subr.bf16.mxu0 0
    %8175 = vmatpush1.bf16.msra.mxu0 %v8069
    %8176 = vmatprep.subr.bf16.mxu0 0
    %8177 = vmatpush1.bf16.msra.mxu0 %v8068
    %8178 = vmatprep.subr.bf16.mxu0 0
    %8179 = vmatpush1.bf16.msra.mxu0 %v8067
    %8180 = vmatprep.subr.bf16.mxu0 0
    %8181 = vmatpush1.bf16.msra.mxu0 %v8066
    %8182 = vmatprep.subr.bf16.mxu0 0
    %8183 = vmatpush1.bf16.msra.mxu0 %v8065
    %8184 = vmatprep.subr.bf16.mxu0 0
    %8185 = vmatpush1.bf16.msra.mxu0 %v8064
    %8186 = vmatprep.subr.bf16.mxu0 0
    %8187 = vmatpush1.bf16.msra.mxu0 %v8063
    %8188 = vmatprep.subr.bf16.mxu0 0
    %8189 = vmatpush1.bf16.msra.mxu0 %v8062
    %8190 = vmatprep.subr.bf16.mxu0 0
    %8191 = vmatpush2.bf16.msra.mxu0 0
    %8192 = vmatprep.subr.bf16.mxu0 0
    %8193 = vmatpush2.bf16.msra.mxu0 0
    %8194 = vmatprep.subr.bf16.mxu0 0
    %8195 = vmatpush2.bf16.msra.mxu0 0
    %8196 = vmatprep.subr.bf16.mxu0 0
    %8197 = vmatpush2.bf16.msra.mxu0 0
    %8198 = vmatprep.subr.bf16.mxu0 0
    %8199 = vmatpush2.bf16.msra.mxu0 0
    %8200 = vmatprep.subr.bf16.mxu0 0
    %8201 = vmatpush2.bf16.msra.mxu0 0
    %8202 = vmatprep.subr.bf16.mxu0 0
    %8203 = vmatpush2.bf16.msra.mxu0 %v8071
    %8204 = vmatprep.subr.bf16.mxu0 0
    %8205 = vmatpush2.bf16.msra.mxu0 %v8070
    %8206 = vmatprep.mubr.bf16.mxu0 %v8099
    %8207 = vmatmul.mubr.bf16.gmra.mxu0 %v7876
    %v8208 = vpop.f32.mrf.mxu0
    %v8209 = vadd.f32 %v8145, %v8208
    %v8210 = vpop.f32.mrf.mxu0
    %v8211 = vpop.f32.mrf.mxu0
    %v8212 = vadd.f32 %v8148, %v8211
    %v8213 = vpop.f32.mrf.mxu0
    %8214 = vmatprep.mubr.bf16.mxu0 %v8102
    %8215 = vmatmul.mubr.bf16.gmra.mxu0 %v7880
    %v8216 = vpop.f32.mrf.mxu0
    %v8217 = vadd.f32 %v8153, %v8216
    %v8218 = vpop.f32.mrf.mxu0
    %v8219 = vpop.f32.mrf.mxu0
    %v8220 = vadd.f32 %v8156, %v8219
    %v8221 = vpop.f32.mrf.mxu0
    %8222 = vmatprep.mubr.bf16.mxu0 %v8105
    %8223 = vmatmul.mubr.bf16.gmra.mxu0 %v7884
    %v8224 = vpop.f32.mrf.mxu0
    %v8225 = vadd.f32 %v8161, %v8224
    %v8226 = vpop.f32.mrf.mxu0
    %v8227 = vpop.f32.mrf.mxu0
    %v8228 = vadd.f32 %v8164, %v8227
    %v8229 = vpop.f32.mrf.mxu0
    %8230 = vmatprep.mubr.bf16.mxu0 %v8108
    %8231 = vmatmul.mubr.bf16.gmra.mxu0 %v7888
    %v8232 = vpop.f32.mrf.mxu0
    %v8233 = vadd.f32 %v8169, %v8232
    %v8234 = vpop.f32.mrf.mxu0
    %v8235 = vpop.f32.mrf.mxu0
    %v8236 = vpop.f32.mrf.mxu0
    %8237 = vdwg.mxu0
    %v8238 = vld [vmem:[#allocation19] sm:$0x1]
    %v8239 = vpack.c.bf16 %v8212, %v8209
    %v8240 = vpack.c.bf16 %v8220, %v8217
    %v8241 = vpack.c.bf16 %v8228, %v8225
    %v8242 = vpack.c.bf16 %v8233, %v8233
    %v8243 = vpack.c.bf16 %v7600, %v7599
    %v8244 = vpack.c.bf16 %v7601, %v7601
    %v8245 = vld [vmem:[#allocation21] sm:$0xff]
    %v8246 = vld [vmem:[#allocation21 + $0x8] sm:$0xff]
    %v8247 = vld [vmem:[#allocation21 + $0x10] sm:$0x33]
    %v8251 = vunpack.c.l.b16 %v8245
    %v8252 = vunpack.c.h.b16 %v8245
    %v8253 = vunpack.c.l.b16 %v8246
    %v8254 = vunpack.c.h.b16 %v8246
    %v8255 = vunpack.c.l.b16 %v8247
    %v8256 = vunpack.c.h.b16 %v8247
    %v8257 = vpack.c.b16 %v8253, %v8251
    %v8258 = vpack.c.b16 %v8254, %v8252
    %v8259 = vpack.c.b16 %v8255, %v8255
    %v8260 = vpack.c.b16 %v8256, %v8256
    %vm8263 = vcmask 162816
    %v8265 = vsel %vm8263, %v8243, 0
    %v8268 = vsel %vm8263, %v8244, 0
    %vm8270 = vcmask 1041408
    %v8272 = vsel %vm8270, %v8259, 0
    %v8275 = vsel %vm8270, %v8260, 0
    %8277 = vmatprep.subr.bf16.mxu0 0
    %8278 = vmatpush1.bf16.msra.mxu0 0
    %8279 = vmatprep.subr.bf16.mxu0 0
    %8280 = vmatpush1.bf16.msra.mxu0 0
    %8281 = vmatprep.subr.bf16.mxu0 0
    %8282 = vmatpush1.bf16.msra.mxu0 0
    %8283 = vmatprep.subr.bf16.mxu0 0
    %8284 = vmatpush1.bf16.msra.mxu0 0
    %8285 = vmatprep.subr.bf16.mxu0 0
    %8286 = vmatpush1.bf16.msra.mxu0 0
    %8287 = vmatprep.subr.bf16.mxu0 0
    %8288 = vmatpush1.bf16.msra.mxu0 0
    %8289 = vmatprep.subr.bf16.mxu0 %v8275
    %8290 = vmatpush1.bf16.msra.mxu0 %v8272
    %8291 = vmatprep.subr.bf16.mxu0 %v8258
    %8292 = vmatpush1.bf16.msra.mxu0 %v8257
    %8293 = vmatprep.subr.bf16.mxu0 0
    %8294 = vmatpush2.bf16.msra.mxu0 0
    %8295 = vmatprep.subr.bf16.mxu0 0
    %8296 = vmatpush2.bf16.msra.mxu0 0
    %8297 = vmatprep.subr.bf16.mxu0 0
    %8298 = vmatpush2.bf16.msra.mxu0 0
    %8299 = vmatprep.subr.bf16.mxu0 0
    %8300 = vmatpush2.bf16.msra.mxu0 0
    %8301 = vmatprep.subr.bf16.mxu0 0
    %8302 = vmatpush2.bf16.msra.mxu0 0
    %8303 = vmatprep.subr.bf16.mxu0 0
    %8304 = vmatpush2.bf16.msra.mxu0 0
    %8305 = vmatprep.subr.bf16.mxu0 0
    %8306 = vmatpush2.bf16.msra.mxu0 0
    %8307 = vmatprep.subr.bf16.mxu0 0
    %8308 = vmatpush2.bf16.msra.mxu0 0
    %8309 = vmatprep.mubr.bf16.mxu0 0
    %8310 = vmatmul.mubr.bf16.gmra.mxu0 %v8265
    %v8311 = vpop.f32.mrf.mxu0
    %v8312 = vadd.f32 0.0, %v8311
    %v8313 = vpop.f32.mrf.mxu0
    %v8314 = vadd.f32 0.0, %v8313
    %v8315 = vpop.f32.mrf.mxu0
    %v8316 = vadd.f32 0.0, %v8315
    %v8317 = vpop.f32.mrf.mxu0
    %v8318 = vadd.f32 0.0, %v8317
    %8319 = vmatprep.mubr.bf16.mxu0 0
    %8320 = vmatmul.mubr.bf16.gmra.mxu0 %v8268
    %v8321 = vpop.f32.mrf.mxu0
    %v8322 = vadd.f32 0.0, %v8321
    %v8323 = vpop.f32.mrf.mxu0
    %v8324 = vadd.f32 0.0, %v8323
    %v8325 = vpop.f32.mrf.mxu0
    %v8326 = vpop.f32.mrf.mxu0
    %8327 = vdwg.mxu0
    %v8328 = vld [vmem:[#allocation22] sm:$0xff]
    %v8329 = vld [vmem:[#allocation22 + $0x8] sm:$0xff]
    %v8330 = vld [vmem:[#allocation22 + $0x10] sm:$0xff]
    %v8331 = vld [vmem:[#allocation22 + $0x18] sm:$0xff]
    %v8332 = vld [vmem:[#allocation22 + $0x20] sm:$0xf]
    %v8333 = vld [vmem:[#allocation22 + $0x28] sm:$0xf]
    %v8334 = vmul.f32 %v8312, %v8328
    %v8335 = vmul.f32 %v8314, %v8329
    %v8336 = vmul.f32 %v8316, %v8330
    %v8337 = vmul.f32 %v8318, %v8331
    %v8338 = vmul.f32 %v8322, %v8332
    %v8339 = vmul.f32 %v8324, %v8333
    %v8340 = vpack.c.bf16 %v8336, %v8334
    %v8341 = vpack.c.bf16 %v8337, %v8335
    %v8342 = vpack.c.bf16 %v8338, %v8338
    %v8343 = vpack.c.bf16 %v8339, %v8339
    %v8344 = vld [vmem:[%s67] sm:$0xf]
    %v8345 = vld [vmem:[%s67 + $0x4] sm:$0xf]
    %v8346 = vld [vmem:[%s67 + $0x8] sm:$0xf]
    %v8347 = vld [vmem:[%s67 + $0xc] sm:$0xf]
    %v8348 = vld [vmem:[%s67 + $0x10] sm:$0xf]
    %v8349 = vld [vmem:[%s67 + $0x14] sm:$0xf]
    %v8350 = vld [vmem:[%s67 + $0x18] sm:$0xf]
    %v8351 = vld [vmem:[%s67 + $0x1c] sm:$0xf]
    %v8352 = vld [vmem:[%s67 + $0x20] sm:$0xf]
    %v8353 = vld [vmem:[%s67 + $0x24] sm:$0xf]
    %v8354 = vld [vmem:[%s67 + $0x28] sm:$0xf]
    %v8355 = vld [vmem:[%s67 + $0x2c] sm:$0xf]
    %v8356 = vld [vmem:[%s67 + $0x30] sm:$0xf]
    %v8357 = vld [vmem:[%s67 + $0x34] sm:$0xf]
    %v8358 = vld [vmem:[%s67 + $0x38] sm:$0xf]
    %v8359 = vld [vmem:[%s67 + $0x3c] sm:$0xf]
    %v8360 = vld [vmem:[%s67 + $0x40] sm:$0xf]
    %v8361 = vld [vmem:[%s67 + $0x44] sm:$0xf]
    %v8362 = vld [vmem:[%s67 + $0x48] sm:$0xf]
    %v8363 = vld [vmem:[%s67 + $0x4c] sm:$0xf]
    %v8384 = vunpack.c.l.b16 %v8344
    %v8385 = vunpack.c.l.b16 %v8345
    %v8386 = vunpack.c.l.b16 %v8346
    %v8387 = vunpack.c.l.b16 %v8347
    %v8388 = vunpack.c.l.b16 %v8348
    %v8389 = vunpack.c.l.b16 %v8349
    %v8390 = vunpack.c.l.b16 %v8350
    %v8391 = vunpack.c.l.b16 %v8351
    %v8392 = vunpack.c.l.b16 %v8352
    %v8393 = vunpack.c.l.b16 %v8353
    %v8394 = vunpack.c.l.b16 %v8354
    %v8395 = vunpack.c.l.b16 %v8355
    %v8396 = vunpack.c.l.b16 %v8356
    %v8397 = vunpack.c.l.b16 %v8357
    %v8398 = vunpack.c.l.b16 %v8358
    %v8399 = vunpack.c.l.b16 %v8359
    %v8400 = vunpack.c.l.b16 %v8360
    %v8401 = vunpack.c.l.b16 %v8361
    %v8402 = vunpack.c.l.b16 %v8362
    %v8403 = vunpack.c.l.b16 %v8363
    %v8404 = vpack.c.b16 %v8385, %v8384
    %v8405 = vpack.c.b16 %v8387, %v8386
    %v8406 = vpack.c.b16 %v8389, %v8388
    %v8407 = vpack.c.b16 %v8391, %v8390
    %v8408 = vpack.c.b16 %v8393, %v8392
    %v8409 = vpack.c.b16 %v8395, %v8394
    %v8410 = vpack.c.b16 %v8397, %v8396
    %v8411 = vpack.c.b16 %v8399, %v8398
    %v8412 = vpack.c.b16 %v8401, %v8400
    %v8413 = vpack.c.b16 %v8403, %v8402
    %v8425 = vsel %vm3002, %v8341, 0
    %v8428 = vsel %vm3002, %v8343, 0
    %8430 = vmatprep.subr.bf16.mxu0 0
    %8431 = vmatpush1.bf16.msra.mxu0 %v8411
    %8432 = vmatprep.subr.bf16.mxu0 0
    %8433 = vmatpush1.bf16.msra.mxu0 %v8410
    %8434 = vmatprep.subr.bf16.mxu0 0
    %8435 = vmatpush1.bf16.msra.mxu0 %v8409
    %8436 = vmatprep.subr.bf16.mxu0 0
    %8437 = vmatpush1.bf16.msra.mxu0 %v8408
    %8438 = vmatprep.subr.bf16.mxu0 0
    %8439 = vmatpush1.bf16.msra.mxu0 %v8407
    %8440 = vmatprep.subr.bf16.mxu0 0
    %8441 = vmatpush1.bf16.msra.mxu0 %v8406
    %8442 = vmatprep.subr.bf16.mxu0 0
    %8443 = vmatpush1.bf16.msra.mxu0 %v8405
    %8444 = vmatprep.subr.bf16.mxu0 0
    %8445 = vmatpush1.bf16.msra.mxu0 %v8404
    %8446 = vmatprep.subr.bf16.mxu0 0
    %8447 = vmatpush2.bf16.msra.mxu0 0
    %8448 = vmatprep.subr.bf16.mxu0 0
    %8449 = vmatpush2.bf16.msra.mxu0 0
    %8450 = vmatprep.subr.bf16.mxu0 0
    %8451 = vmatpush2.bf16.msra.mxu0 0
    %8452 = vmatprep.subr.bf16.mxu0 0
    %8453 = vmatpush2.bf16.msra.mxu0 0
    %8454 = vmatprep.subr.bf16.mxu0 0
    %8455 = vmatpush2.bf16.msra.mxu0 0
    %8456 = vmatprep.subr.bf16.mxu0 0
    %8457 = vmatpush2.bf16.msra.mxu0 0
    %8458 = vmatprep.subr.bf16.mxu0 0
    %8459 = vmatpush2.bf16.msra.mxu0 %v8413
    %8460 = vmatprep.subr.bf16.mxu0 0
    %8461 = vmatpush2.bf16.msra.mxu0 %v8412
    %8462 = vmatprep.mubr.bf16.mxu0 %v8425
    %8463 = vmatmul.mubr.bf16.gmra.mxu0 %v8340
    %v8464 = vpop.f32.mrf.mxu0
    %v8465 = vadd.f32 0.0, %v8464
    %v8466 = vpop.f32.mrf.mxu0
    %v8467 = vpop.f32.mrf.mxu0
    %v8468 = vadd.f32 0.0, %v8467
    %v8469 = vpop.f32.mrf.mxu0
    %8470 = vmatprep.mubr.bf16.mxu0 %v8428
    %8471 = vmatmul.mubr.bf16.gmra.mxu0 %v8342
    %v8472 = vpop.f32.mrf.mxu0
    %v8473 = vadd.f32 0.0, %v8472
    %v8474 = vpop.f32.mrf.mxu0
    %v8475 = vpop.f32.mrf.mxu0
    %v8476 = vpop.f32.mrf.mxu0
    %8477 = vdwg.mxu0
    %v8478 = vld [vmem:[#allocation24] sm:$0x1]
    %v8479 = vpack.c.bf16 %v8468, %v8465
    %v8480 = vpack.c.bf16 %v8473, %v8473
    %v8482 = vsel %vm8263, %v8478, 0
    %v8485 = vsel %vm8270, %v8480, 0
    %8487 = vmatprep.subr.bf16.mxu0 0
    %8488 = vmatpush1.bf16.msra.mxu0 0
    %8489 = vmatprep.subr.bf16.mxu0 0
    %8490 = vmatpush1.bf16.msra.mxu0 0
    %8491 = vmatprep.subr.bf16.mxu0 0
    %8492 = vmatpush1.bf16.msra.mxu0 0
    %8493 = vmatprep.subr.bf16.mxu0 0
    %8494 = vmatpush1.bf16.msra.mxu0 0
    %8495 = vmatprep.subr.bf16.mxu0 0
    %8496 = vmatpush1.bf16.msra.mxu0 0
    %8497 = vmatprep.subr.bf16.mxu0 0
    %8498 = vmatpush1.bf16.msra.mxu0 0
    %8499 = vmatprep.subr.bf16.mxu0 0
    %8500 = vmatpush1.bf16.msra.mxu0 %v8485
    %8501 = vmatprep.subr.bf16.mxu0 0
    %8502 = vmatpush1.bf16.msra.mxu0 %v8479
    %8503 = vmatprep.subr.bf16.mxu0 0
    %8504 = vmatpush2.bf16.msra.mxu0 0
    %8505 = vmatprep.subr.bf16.mxu0 0
    %8506 = vmatpush2.bf16.msra.mxu0 0
    %8507 = vmatprep.subr.bf16.mxu0 0
    %8508 = vmatpush2.bf16.msra.mxu0 0
    %8509 = vmatprep.subr.bf16.mxu0 0
    %8510 = vmatpush2.bf16.msra.mxu0 0
    %8511 = vmatprep.subr.bf16.mxu0 0
    %8512 = vmatpush2.bf16.msra.mxu0 0
    %8513 = vmatprep.subr.bf16.mxu0 0
    %8514 = vmatpush2.bf16.msra.mxu0 0
    %8515 = vmatprep.subr.bf16.mxu0 0
    %8516 = vmatpush2.bf16.msra.mxu0 0
    %8517 = vmatprep.subr.bf16.mxu0 0
    %8518 = vmatpush2.bf16.msra.mxu0 0
    %8519 = vmatprep.mubr.bf16.mxu0 0
    %8520 = vmatmul.mubr.bf16.gmra.mxu0 %v8482
    %v8521 = vpop.f32.mrf.mxu0
    %v8522 = vadd.f32 0.0, %v8521
    %v8523 = vpop.f32.mrf.mxu0
    %v8524 = vpop.f32.mrf.mxu0
    %v8525 = vpop.f32.mrf.mxu0
    %8526 = vdwg.mxu0
    %vm8527 = vcmask 424960
    %v8529 = vsel %vm8527, %v8238, 0
    %v8532 = vsel %vm8270, %v8242, 0
    %8534 = vmatprep.subr.bf16.mxu0 0
    %8535 = vmatpush1.bf16.msra.mxu0 0
    %8536 = vmatprep.subr.bf16.mxu0 0
    %8537 = vmatpush1.bf16.msra.mxu0 0
    %8538 = vmatprep.subr.bf16.mxu0 0
    %8539 = vmatpush1.bf16.msra.mxu0 0
    %8540 = vmatprep.subr.bf16.mxu0 0
    %8541 = vmatpush1.bf16.msra.mxu0 0
    %8542 = vmatprep.subr.bf16.mxu0 0
    %8543 = vmatpush1.bf16.msra.mxu0 %v8532
    %8544 = vmatprep.subr.bf16.mxu0 0
    %8545 = vmatpush1.bf16.msra.mxu0 %v8241
    %8546 = vmatprep.subr.bf16.mxu0 0
    %8547 = vmatpush1.bf16.msra.mxu0 %v8240
    %8548 = vmatprep.subr.bf16.mxu0 0
    %8549 = vmatpush1.bf16.msra.mxu0 %v8239
    %8550 = vmatprep.subr.bf16.mxu0 0
    %8551 = vmatpush2.bf16.msra.mxu0 0
    %8552 = vmatprep.subr.bf16.mxu0 0
    %8553 = vmatpush2.bf16.msra.mxu0 0
    %8554 = vmatprep.subr.bf16.mxu0 0
    %8555 = vmatpush2.bf16.msra.mxu0 0
    %8556 = vmatprep.subr.bf16.mxu0 0
    %8557 = vmatpush2.bf16.msra.mxu0 0
    %8558 = vmatprep.subr.bf16.mxu0 0
    %8559 = vmatpush2.bf16.msra.mxu0 0
    %8560 = vmatprep.subr.bf16.mxu0 0
    %8561 = vmatpush2.bf16.msra.mxu0 0
    %8562 = vmatprep.subr.bf16.mxu0 0
    %8563 = vmatpush2.bf16.msra.mxu0 0
    %8564 = vmatprep.subr.bf16.mxu0 0
    %8565 = vmatpush2.bf16.msra.mxu0 0
    %8566 = vmatprep.mubr.bf16.mxu0 0
    %8567 = vmatmul.mubr.bf16.gmra.mxu0 %v8529
    %v8568 = vpop.f32.mrf.mxu0
    %v8569 = vadd.f32 %v8522, %v8568
    %v8570 = vpop.f32.mrf.mxu0
    %v8571 = vpop.f32.mrf.mxu0
    %v8572 = vpop.f32.mrf.mxu0
    %8573 = vdwg.mxu0
    %v8574 = vld [vmem:[#allocation25] sm:$0x1]
    %v8576 = vlaneseq
    %v8577 = vshrl.u32 %v8576, 7
    %v8578 = vsub.s32 0, %v8577
    %v8579 = vrot.slane %v8574, %v8578
    %v8581 = vadd.f32 %v8569, %v8579
    %v8582 = vmax.f32 %v8581, 0.0
    %v8583 = vpack.c.bf16 %v8582, %v8582
    %v8584 = vpack.c.bf16 %v3597, %v3596
    %v8585 = vld [vmem:[%s45] sm:$0xff]
    %v8586 = vld [vmem:[%s45 + $0x8] sm:$0xff]
    %v8587 = vld [vmem:[%s45 + $0x10] sm:$0xff]
    %v8588 = vld [vmem:[%s45 + $0x18] sm:$0xff]
    %v8589 = vld [vmem:[%s45 + $0x20] sm:$0xff]
    %v8590 = vld [vmem:[%s45 + $0x28] sm:$0xff]
    %v8591 = vld [vmem:[%s45 + $0x30] sm:$0xff]
    %v8592 = vld [vmem:[%s45 + $0x38] sm:$0xff]
    %v8593 = vld [vmem:[%s45 + $0x40] sm:$0xff]
    %v8594 = vld [vmem:[%s45 + $0x48] sm:$0xff]
    %v8595 = vld [vmem:[%s45 + $0x50] sm:$0xff]
    %v8596 = vld [vmem:[%s45 + $0x58] sm:$0xff]
    %v8609 = vunpack.c.l.b16 %v8585
    %v8610 = vunpack.c.h.b16 %v8585
    %v8611 = vunpack.c.l.b16 %v8586
    %v8612 = vunpack.c.h.b16 %v8586
    %v8613 = vunpack.c.l.b16 %v8587
    %v8614 = vunpack.c.h.b16 %v8587
    %v8615 = vunpack.c.l.b16 %v8588
    %v8616 = vunpack.c.h.b16 %v8588
    %v8617 = vunpack.c.l.b16 %v8589
    %v8618 = vunpack.c.h.b16 %v8589
    %v8619 = vunpack.c.l.b16 %v8590
    %v8620 = vunpack.c.h.b16 %v8590
    %v8621 = vunpack.c.l.b16 %v8591
    %v8622 = vunpack.c.h.b16 %v8591
    %v8623 = vunpack.c.l.b16 %v8592
    %v8624 = vunpack.c.h.b16 %v8592
    %v8625 = vunpack.c.l.b16 %v8593
    %v8626 = vunpack.c.h.b16 %v8593
    %v8627 = vunpack.c.l.b16 %v8594
    %v8628 = vunpack.c.h.b16 %v8594
    %v8629 = vunpack.c.l.b16 %v8595
    %v8630 = vunpack.c.h.b16 %v8595
    %v8631 = vunpack.c.l.b16 %v8596
    %v8632 = vunpack.c.h.b16 %v8596
    %v8633 = vpack.c.b16 %v8611, %v8609
    %v8634 = vpack.c.b16 %v8612, %v8610
    %v8635 = vpack.c.b16 %v8615, %v8613
    %v8636 = vpack.c.b16 %v8616, %v8614
    %v8637 = vpack.c.b16 %v8619, %v8617
    %v8638 = vpack.c.b16 %v8620, %v8618
    %v8639 = vpack.c.b16 %v8623, %v8621
    %v8640 = vpack.c.b16 %v8624, %v8622
    %v8641 = vpack.c.b16 %v8627, %v8625
    %v8642 = vpack.c.b16 %v8628, %v8626
    %v8643 = vpack.c.b16 %v8631, %v8629
    %v8644 = vpack.c.b16 %v8632, %v8630
    %v8658 = vsel %vm738, %v8584, 0
    %8660 = vmatprep.subr.bf16.mxu0 0
    %8661 = vmatpush1.bf16.msra.mxu0 0
    %8662 = vmatprep.subr.bf16.mxu0 0
    %8663 = vmatpush1.bf16.msra.mxu0 0
    %8664 = vmatprep.subr.bf16.mxu0 %v8644
    %8665 = vmatpush1.bf16.msra.mxu0 %v8643
    %8666 = vmatprep.subr.bf16.mxu0 %v8642
    %8667 = vmatpush1.bf16.msra.mxu0 %v8641
    %8668 = vmatprep.subr.bf16.mxu0 %v8640
    %8669 = vmatpush1.bf16.msra.mxu0 %v8639
    %8670 = vmatprep.subr.bf16.mxu0 %v8638
    %8671 = vmatpush1.bf16.msra.mxu0 %v8637
    %8672 = vmatprep.subr.bf16.mxu0 %v8636
    %8673 = vmatpush1.bf16.msra.mxu0 %v8635
    %8674 = vmatprep.subr.bf16.mxu0 %v8634
    %8675 = vmatpush1.bf16.msra.mxu0 %v8633
    %8676 = vmatprep.subr.bf16.mxu0 0
    %8677 = vmatpush2.bf16.msra.mxu0 0
    %8678 = vmatprep.subr.bf16.mxu0 0
    %8679 = vmatpush2.bf16.msra.mxu0 0
    %8680 = vmatprep.subr.bf16.mxu0 0
    %8681 = vmatpush2.bf16.msra.mxu0 0
    %8682 = vmatprep.subr.bf16.mxu0 0
    %8683 = vmatpush2.bf16.msra.mxu0 0
    %8684 = vmatprep.subr.bf16.mxu0 0
    %8685 = vmatpush2.bf16.msra.mxu0 0
    %8686 = vmatprep.subr.bf16.mxu0 0
    %8687 = vmatpush2.bf16.msra.mxu0 0
    %8688 = vmatprep.subr.bf16.mxu0 0
    %8689 = vmatpush2.bf16.msra.mxu0 0
    %8690 = vmatprep.subr.bf16.mxu0 0
    %8691 = vmatpush2.bf16.msra.mxu0 0
    %8692 = vmatprep.mubr.bf16.mxu0 0
    %8693 = vmatmul.mubr.bf16.gmra.mxu0 %v8658
    %v8694 = vpop.f32.mrf.mxu0
    %v8695 = vadd.f32 0.0, %v8694
    %v8696 = vpop.f32.mrf.mxu0
    %v8697 = vadd.f32 0.0, %v8696
    %v8698 = vpop.f32.mrf.mxu0
    %v8699 = vadd.f32 0.0, %v8698
    %v8700 = vpop.f32.mrf.mxu0
    %v8701 = vadd.f32 0.0, %v8700
    %8702 = vdwg.mxu0
    %v8703 = vld [vmem:[#allocation16] sm:$0xff]
    %v8704 = vld [vmem:[#allocation16 + $0x8] sm:$0xff]
    %v8705 = vld [vmem:[#allocation16 + $0x10] sm:$0xff]
    %v8706 = vld [vmem:[#allocation16 + $0x18] sm:$0xff]
    %v8707 = vmul.f32 %v8695, %v8703
    %v8708 = vmul.f32 %v8697, %v8704
    %v8709 = vmul.f32 %v8699, %v8705
    %v8710 = vmul.f32 %v8701, %v8706
    %v8711 = vpack.c.bf16 %v8709, %v8707
    %v8712 = vpack.c.bf16 %v8710, %v8708
    %v8713 = vld [vmem:[%s51] sm:$0xf]
    %v8714 = vld [vmem:[%s51 + $0x4] sm:$0xf]
    %v8715 = vld [vmem:[%s51 + $0x8] sm:$0xf]
    %v8716 = vld [vmem:[%s51 + $0xc] sm:$0xf]
    %v8717 = vld [vmem:[%s51 + $0x10] sm:$0xf]
    %v8718 = vld [vmem:[%s51 + $0x14] sm:$0xf]
    %v8719 = vld [vmem:[%s51 + $0x18] sm:$0xf]
    %v8720 = vld [vmem:[%s51 + $0x1c] sm:$0xf]
    %v8721 = vld [vmem:[%s51 + $0x20] sm:$0xf]
    %v8722 = vld [vmem:[%s51 + $0x24] sm:$0xf]
    %v8723 = vld [vmem:[%s51 + $0x28] sm:$0xf]
    %v8724 = vld [vmem:[%s51 + $0x2c] sm:$0xf]
    %v8725 = vld [vmem:[%s51 + $0x30] sm:$0xf]
    %v8726 = vld [vmem:[%s51 + $0x34] sm:$0xf]
    %v8727 = vld [vmem:[%s51 + $0x38] sm:$0xf]
    %v8728 = vld [vmem:[%s51 + $0x3c] sm:$0xf]
    %v8729 = vld [vmem:[%s51 + $0x40] sm:$0xf]
    %v8730 = vld [vmem:[%s51 + $0x44] sm:$0xf]
    %v8731 = vld [vmem:[%s51 + $0x48] sm:$0xf]
    %v8732 = vld [vmem:[%s51 + $0x4c] sm:$0xf]
    %v8733 = vld [vmem:[%s51 + $0x50] sm:$0xf]
    %v8734 = vld [vmem:[%s51 + $0x54] sm:$0xf]
    %v8735 = vld [vmem:[%s51 + $0x58] sm:$0xf]
    %v8736 = vld [vmem:[%s51 + $0x5c] sm:$0xf]
    %v8737 = vld [vmem:[%s51 + $0x60] sm:$0xf]
    %v8738 = vld [vmem:[%s51 + $0x64] sm:$0xf]
    %v8739 = vld [vmem:[%s51 + $0x68] sm:$0xf]
    %v8740 = vld [vmem:[%s51 + $0x6c] sm:$0xf]
    %v8741 = vld [vmem:[%s51 + $0x70] sm:$0xf]
    %v8742 = vld [vmem:[%s51 + $0x74] sm:$0xf]
    %v8743 = vld [vmem:[%s51 + $0x78] sm:$0xf]
    %v8744 = vld [vmem:[%s51 + $0x7c] sm:$0xf]
    %v8777 = vunpack.c.l.b16 %v8713
    %v8778 = vunpack.c.l.b16 %v8714
    %v8779 = vunpack.c.l.b16 %v8715
    %v8780 = vunpack.c.l.b16 %v8716
    %v8781 = vunpack.c.l.b16 %v8717
    %v8782 = vunpack.c.l.b16 %v8718
    %v8783 = vunpack.c.l.b16 %v8719
    %v8784 = vunpack.c.l.b16 %v8720
    %v8785 = vunpack.c.l.b16 %v8721
    %v8786 = vunpack.c.l.b16 %v8722
    %v8787 = vunpack.c.l.b16 %v8723
    %v8788 = vunpack.c.l.b16 %v8724
    %v8789 = vunpack.c.l.b16 %v8725
    %v8790 = vunpack.c.l.b16 %v8726
    %v8791 = vunpack.c.l.b16 %v8727
    %v8792 = vunpack.c.l.b16 %v8728
    %v8793 = vunpack.c.l.b16 %v8729
    %v8794 = vunpack.c.l.b16 %v8730
    %v8795 = vunpack.c.l.b16 %v8731
    %v8796 = vunpack.c.l.b16 %v8732
    %v8797 = vunpack.c.l.b16 %v8733
    %v8798 = vunpack.c.l.b16 %v8734
    %v8799 = vunpack.c.l.b16 %v8735
    %v8800 = vunpack.c.l.b16 %v8736
    %v8801 = vunpack.c.l.b16 %v8737
    %v8802 = vunpack.c.l.b16 %v8738
    %v8803 = vunpack.c.l.b16 %v8739
    %v8804 = vunpack.c.l.b16 %v8740
    %v8805 = vunpack.c.l.b16 %v8741
    %v8806 = vunpack.c.l.b16 %v8742
    %v8807 = vunpack.c.l.b16 %v8743
    %v8808 = vunpack.c.l.b16 %v8744
    %v8809 = vpack.c.b16 %v8778, %v8777
    %v8810 = vpack.c.b16 %v8780, %v8779
    %v8811 = vpack.c.b16 %v8782, %v8781
    %v8812 = vpack.c.b16 %v8784, %v8783
    %v8813 = vpack.c.b16 %v8786, %v8785
    %v8814 = vpack.c.b16 %v8788, %v8787
    %v8815 = vpack.c.b16 %v8790, %v8789
    %v8816 = vpack.c.b16 %v8792, %v8791
    %v8817 = vpack.c.b16 %v8794, %v8793
    %v8818 = vpack.c.b16 %v8796, %v8795
    %v8819 = vpack.c.b16 %v8798, %v8797
    %v8820 = vpack.c.b16 %v8800, %v8799
    %v8821 = vpack.c.b16 %v8802, %v8801
    %v8822 = vpack.c.b16 %v8804, %v8803
    %v8823 = vpack.c.b16 %v8806, %v8805
    %v8824 = vpack.c.b16 %v8808, %v8807
    %8841 = vmatprep.subr.bf16.mxu0 0
    %8842 = vmatpush1.bf16.msra.mxu0 %v8816
    %8843 = vmatprep.subr.bf16.mxu0 0
    %8844 = vmatpush1.bf16.msra.mxu0 %v8815
    %8845 = vmatprep.subr.bf16.mxu0 0
    %8846 = vmatpush1.bf16.msra.mxu0 %v8814
    %8847 = vmatprep.subr.bf16.mxu0 0
    %8848 = vmatpush1.bf16.msra.mxu0 %v8813
    %8849 = vmatprep.subr.bf16.mxu0 0
    %8850 = vmatpush1.bf16.msra.mxu0 %v8812
    %8851 = vmatprep.subr.bf16.mxu0 0
    %8852 = vmatpush1.bf16.msra.mxu0 %v8811
    %8853 = vmatprep.subr.bf16.mxu0 0
    %8854 = vmatpush1.bf16.msra.mxu0 %v8810
    %8855 = vmatprep.subr.bf16.mxu0 0
    %8856 = vmatpush1.bf16.msra.mxu0 %v8809
    %8857 = vmatprep.subr.bf16.mxu0 0
    %8858 = vmatpush2.bf16.msra.mxu0 %v8824
    %8859 = vmatprep.subr.bf16.mxu0 0
    %8860 = vmatpush2.bf16.msra.mxu0 %v8823
    %8861 = vmatprep.subr.bf16.mxu0 0
    %8862 = vmatpush2.bf16.msra.mxu0 %v8822
    %8863 = vmatprep.subr.bf16.mxu0 0
    %8864 = vmatpush2.bf16.msra.mxu0 %v8821
    %8865 = vmatprep.subr.bf16.mxu0 0
    %8866 = vmatpush2.bf16.msra.mxu0 %v8820
    %8867 = vmatprep.subr.bf16.mxu0 0
    %8868 = vmatpush2.bf16.msra.mxu0 %v8819
    %8869 = vmatprep.subr.bf16.mxu0 0
    %8870 = vmatpush2.bf16.msra.mxu0 %v8818
    %8871 = vmatprep.subr.bf16.mxu0 0
    %8872 = vmatpush2.bf16.msra.mxu0 %v8817
    %8873 = vmatprep.mubr.bf16.mxu0 %v8712
    %8874 = vmatmul.mubr.bf16.gmra.mxu0 %v8711
    %v8875 = vpop.f32.mrf.mxu0
    %v8876 = vadd.f32 0.0, %v8875
    %v8877 = vpop.f32.mrf.mxu0
    %v8878 = vpop.f32.mrf.mxu0
    %v8879 = vadd.f32 0.0, %v8878
    %v8880 = vpop.f32.mrf.mxu0
    %8881 = vdwg.mxu0
    %v8882 = vld [vmem:[#allocation18] sm:$0x1]
    %v8883 = vpack.c.bf16 %v8879, %v8876
    %v8884 = vld [vmem:[#allocation27] sm:$0xf]
    %v8885 = vld [vmem:[#allocation27 + $0x4] sm:$0xf]
    %v8888 = vunpack.c.l.b16 %v8884
    %v8889 = vunpack.c.l.b16 %v8885
    %v8890 = vpack.c.b16 %v8889, %v8888
    %vm8892 = vcmask 130048
    %v8894 = vsel %vm8892, %v8583, 0
    %8896 = vmatprep.subr.bf16.mxu0 0
    %8897 = vmatpush1.bf16.msra.mxu0 0
    %8898 = vmatprep.subr.bf16.mxu0 0
    %8899 = vmatpush1.bf16.msra.mxu0 0
    %8900 = vmatprep.subr.bf16.mxu0 0
    %8901 = vmatpush1.bf16.msra.mxu0 0
    %8902 = vmatprep.subr.bf16.mxu0 0
    %8903 = vmatpush1.bf16.msra.mxu0 0
    %8904 = vmatprep.subr.bf16.mxu0 0
    %8905 = vmatpush1.bf16.msra.mxu0 0
    %8906 = vmatprep.subr.bf16.mxu0 0
    %8907 = vmatpush1.bf16.msra.mxu0 0
    %8908 = vmatprep.subr.bf16.mxu0 0
    %8909 = vmatpush1.bf16.msra.mxu0 0
    %8910 = vmatprep.subr.bf16.mxu0 0
    %8911 = vmatpush1.bf16.msra.mxu0 %v8890
    %8912 = vmatprep.subr.bf16.mxu0 0
    %8913 = vmatpush2.bf16.msra.mxu0 0
    %8914 = vmatprep.subr.bf16.mxu0 0
    %8915 = vmatpush2.bf16.msra.mxu0 0
    %8916 = vmatprep.subr.bf16.mxu0 0
    %8917 = vmatpush2.bf16.msra.mxu0 0
    %8918 = vmatprep.subr.bf16.mxu0 0
    %8919 = vmatpush2.bf16.msra.mxu0 0
    %8920 = vmatprep.subr.bf16.mxu0 0
    %8921 = vmatpush2.bf16.msra.mxu0 0
    %8922 = vmatprep.subr.bf16.mxu0 0
    %8923 = vmatpush2.bf16.msra.mxu0 0
    %8924 = vmatprep.subr.bf16.mxu0 0
    %8925 = vmatpush2.bf16.msra.mxu0 0
    %8926 = vmatprep.subr.bf16.mxu0 0
    %8927 = vmatpush2.bf16.msra.mxu0 0
    %8928 = vmatprep.mubr.bf16.mxu0 0
    %8929 = vmatmul.mubr.bf16.gmra.mxu0 %v8894
    %v8930 = vpop.f32.mrf.mxu0
    %v8931 = vadd.f32 0.0, %v8930
    %v8932 = vpop.f32.mrf.mxu0
    %v8933 = vpop.f32.mrf.mxu0
    %v8934 = vpop.f32.mrf.mxu0
    %8935 = vdwg.mxu0
    %v8937 = vsel %vm8892, %v8882, 0
    %8939 = vmatprep.subr.bf16.mxu0 0
    %8940 = vmatpush1.bf16.msra.mxu0 0
    %8941 = vmatprep.subr.bf16.mxu0 0
    %8942 = vmatpush1.bf16.msra.mxu0 0
    %8943 = vmatprep.subr.bf16.mxu0 0
    %8944 = vmatpush1.bf16.msra.mxu0 0
    %8945 = vmatprep.subr.bf16.mxu0 0
    %8946 = vmatpush1.bf16.msra.mxu0 0
    %8947 = vmatprep.subr.bf16.mxu0 0
    %8948 = vmatpush1.bf16.msra.mxu0 0
    %8949 = vmatprep.subr.bf16.mxu0 0
    %8950 = vmatpush1.bf16.msra.mxu0 0
    %8951 = vmatprep.subr.bf16.mxu0 0
    %8952 = vmatpush1.bf16.msra.mxu0 0
    %8953 = vmatprep.subr.bf16.mxu0 0
    %8954 = vmatpush1.bf16.msra.mxu0 %v8883
    %8955 = vmatprep.subr.bf16.mxu0 0
    %8956 = vmatpush2.bf16.msra.mxu0 0
    %8957 = vmatprep.subr.bf16.mxu0 0
    %8958 = vmatpush2.bf16.msra.mxu0 0
    %8959 = vmatprep.subr.bf16.mxu0 0
    %8960 = vmatpush2.bf16.msra.mxu0 0
    %8961 = vmatprep.subr.bf16.mxu0 0
    %8962 = vmatpush2.bf16.msra.mxu0 0
    %8963 = vmatprep.subr.bf16.mxu0 0
    %8964 = vmatpush2.bf16.msra.mxu0 0
    %8965 = vmatprep.subr.bf16.mxu0 0
    %8966 = vmatpush2.bf16.msra.mxu0 0
    %8967 = vmatprep.subr.bf16.mxu0 0
    %8968 = vmatpush2.bf16.msra.mxu0 0
    %8969 = vmatprep.subr.bf16.mxu0 0
    %8970 = vmatpush2.bf16.msra.mxu0 0
    %8971 = vmatprep.mubr.bf16.mxu0 0
    %8972 = vmatmul.mubr.bf16.gmra.mxu0 %v8937
    %v8973 = vpop.f32.mrf.mxu0
    %v8974 = vadd.f32 %v8931, %v8973
    %v8975 = vpop.f32.mrf.mxu0
    %v8976 = vpop.f32.mrf.mxu0
    %v8977 = vpop.f32.mrf.mxu0
    %8978 = vdwg.mxu0
    %v8979 = vld [vmem:[#allocation28] sm:$0x1]
    %v8981 = vlaneseq
    %v8982 = vshrl.u32 %v8981, 7
    %v8983 = vsub.s32 0, %v8982
    %v8984 = vrot.slane %v8979, %v8983
    %v8986 = vadd.f32 %v8974, %v8984
    %v8987 = vmax.f32 %v8986, 0.0
    %v8988 = vpack.c.bf16 %v8987, %v8987
    %v8989 = vld [vmem:[#allocation30] sm:$0xf]
    %v8990 = vld [vmem:[#allocation30 + $0x4] sm:$0xf]
    %v8991 = vld [vmem:[#allocation30 + $0x8] sm:$0xf]
    %v8992 = vld [vmem:[#allocation30 + $0xc] sm:$0xf]
    %v8993 = vld [vmem:[#allocation31] sm:$0x1]
    %v8995 = vlaneseq
    %v8996 = vshrl.u32 %v8995, 7
    %v8997 = vsub.s32 0, %v8996
    %v8998 = vrot.slane %v8993, %v8997
    %v9004 = vunpack.c.l.b16 %v8989
    %v9005 = vunpack.c.l.b16 %v8990
    %v9006 = vunpack.c.l.b16 %v8991
    %v9007 = vunpack.c.l.b16 %v8992
    %v9008 = vpack.c.b16 %v9005, %v9004
    %v9009 = vpack.c.b16 %v9007, %v9006
    %v9013 = vsel %vm3002, %v8988, 0
    %9015 = vmatprep.subr.bf16.mxu0 0
    %9016 = vmatpush1.bf16.msra.mxu0 0
    %9017 = vmatprep.subr.bf16.mxu0 0
    %9018 = vmatpush1.bf16.msra.mxu0 0
    %9019 = vmatprep.subr.bf16.mxu0 0
    %9020 = vmatpush1.bf16.msra.mxu0 0
    %9021 = vmatprep.subr.bf16.mxu0 0
    %9022 = vmatpush1.bf16.msra.mxu0 0
    %9023 = vmatprep.subr.bf16.mxu0 0
    %9024 = vmatpush1.bf16.msra.mxu0 0
    %9025 = vmatprep.subr.bf16.mxu0 0
    %9026 = vmatpush1.bf16.msra.mxu0 0
    %9027 = vmatprep.subr.bf16.mxu0 0
    %9028 = vmatpush1.bf16.msra.mxu0 %v9009
    %9029 = vmatprep.subr.bf16.mxu0 0
    %9030 = vmatpush1.bf16.msra.mxu0 %v9008
    %9031 = vmatprep.subr.bf16.mxu0 0
    %9032 = vmatpush2.bf16.msra.mxu0 0
    %9033 = vmatprep.subr.bf16.mxu0 0
    %9034 = vmatpush2.bf16.msra.mxu0 0
    %9035 = vmatprep.subr.bf16.mxu0 0
    %9036 = vmatpush2.bf16.msra.mxu0 0
    %9037 = vmatprep.subr.bf16.mxu0 0
    %9038 = vmatpush2.bf16.msra.mxu0 0
    %9039 = vmatprep.subr.bf16.mxu0 0
    %9040 = vmatpush2.bf16.msra.mxu0 0
    %9041 = vmatprep.subr.bf16.mxu0 0
    %9042 = vmatpush2.bf16.msra.mxu0 0
    %9043 = vmatprep.subr.bf16.mxu0 0
    %9044 = vmatpush2.bf16.msra.mxu0 0
    %9045 = vmatprep.subr.bf16.mxu0 0
    %9046 = vmatpush2.bf16.msra.mxu0 0
    %9047 = vmatprep.mubr.bf16.mxu0 0
    %9048 = vmatmul.mubr.bf16.gmra.mxu0 %v9013
    %v9049 = vpop.f32.mrf.mxu0
    %v9050 = vadd.f32 %v8998, %v9049
    %v9051 = vpop.f32.mrf.mxu0
    %v9052 = vpop.f32.mrf.mxu0
    %v9053 = vpop.f32.mrf.mxu0
    %9054 = vdwg.mxu0
    %vm9055 = vcmask 517120
    %9056 = vst.msk [vmem:[%s87] sm:$0x3] %vm9055, %v9050
    %v9057 = vmul.f32 %v9050, 0.5
    %v9058 = vmul.f32 %v9057, 1.442695
    %v9059 = vpow.pop %v9058
    %v9060 = vld [vmem:[#allocation2] sm:$0x3]
    %9062 = vrot.lane.b32.xlu0 %v9060, 32
    %v9063 = vpop.permute.xlu0 %9062
    %v9065 = vmul.f32 %v9059, %v9063
    %9067 = vrot.lane.b32.xlu0 %v9065, 96
    %v9068 = vpop.permute.xlu0 %9067
    %v9070 = vadd.f32 %v9050, %v9068
    %v9071 = vpack.c.bf16 %v9070, %v9070
    %v9072 = vld [vmem:[%s79] sm:$0xff]
    %v9073 = vld [vmem:[%s79 + $0x8] sm:$0xff]
    %v9074 = vld [vmem:[%s79 + $0x10] sm:$0xff]
    %v9075 = vld [vmem:[%s79 + $0x18] sm:$0xff]
    %v9076 = vld [vmem:[%s79 + $0x20] sm:$0xff]
    %v9077 = vld [vmem:[%s79 + $0x28] sm:$0xff]
    %v9078 = vld [vmem:[%s79 + $0x30] sm:$0xff]
    %v9079 = vld [vmem:[%s79 + $0x38] sm:$0xff]
    %v9080 = vld [vmem:[%s79 + $0x40] sm:$0xff]
    %v9081 = vld [vmem:[%s79 + $0x48] sm:$0xff]
    %v9082 = vld [vmem:[%s79 + $0x50] sm:$0xff]
    %v9083 = vld [vmem:[%s79 + $0x58] sm:$0xff]
    %v9084 = vld [vmem:[%s79 + $0x60] sm:$0xff]
    %v9085 = vld [vmem:[%s79 + $0x68] sm:$0xff]
    %v9086 = vld [vmem:[%s79 + $0x70] sm:$0xff]
    %v9087 = vld [vmem:[%s79 + $0x78] sm:$0xff]
    %v9088 = vld [vmem:[%s79 + $0x80] sm:$0xff]
    %v9089 = vld [vmem:[%s79 + $0x88] sm:$0xff]
    %v9090 = vld [vmem:[%s79 + $0x90] sm:$0xff]
    %v9091 = vld [vmem:[%s79 + $0x98] sm:$0xff]
    %v9092 = vld [vmem:[%s79 + $0xa0] sm:$0xff]
    %v9093 = vld [vmem:[%s79 + $0xa8] sm:$0xff]
    %v9094 = vld [vmem:[%s79 + $0xb0] sm:$0xff]
    %v9095 = vld [vmem:[%s79 + $0xb8] sm:$0xff]
    %v9096 = vld [vmem:[%s79 + $0xc0] sm:$0xff]
    %v9097 = vld [vmem:[%s79 + $0xc8] sm:$0xff]
    %v9098 = vld [vmem:[%s79 + $0xd0] sm:$0xff]
    %v9099 = vld [vmem:[%s79 + $0xd8] sm:$0xff]
    %v9100 = vld [vmem:[%s79 + $0xe0] sm:$0xff]
    %v9101 = vld [vmem:[%s79 + $0xe8] sm:$0xff]
    %v9102 = vld [vmem:[%s79 + $0xf0] sm:$0xff]
    %v9103 = vld [vmem:[%s79 + $0xf8] sm:$0xff]
    %v9104 = vld [vmem:[%s79 + $0x100] sm:$0xff]
    %v9105 = vld [vmem:[%s79 + $0x108] sm:$0xff]
    %v9106 = vld [vmem:[%s79 + $0x110] sm:$0xff]
    %v9107 = vld [vmem:[%s79 + $0x118] sm:$0xff]
    %v9108 = vld [vmem:[%s79 + $0x120] sm:$0xff]
    %v9109 = vld [vmem:[%s79 + $0x128] sm:$0xff]
    %v9110 = vld [vmem:[%s79 + $0x130] sm:$0xff]
    %v9111 = vld [vmem:[%s79 + $0x138] sm:$0xff]
    %v9112 = vld [vmem:[%s79 + $0x140] sm:$0xff]
    %v9113 = vld [vmem:[%s79 + $0x148] sm:$0xff]
    %v9114 = vld [vmem:[%s79 + $0x150] sm:$0xff]
    %v9115 = vld [vmem:[%s79 + $0x158] sm:$0xff]
    %v9116 = vld [vmem:[%s79 + $0x160] sm:$0xff]
    %v9117 = vld [vmem:[%s79 + $0x168] sm:$0xff]
    %v9118 = vld [vmem:[%s79 + $0x170] sm:$0xff]
    %v9119 = vld [vmem:[%s79 + $0x178] sm:$0xff]
    %v9120 = vld [vmem:[%s81] sm:$0xff]
    %v9121 = vld [vmem:[%s81 + $0x8] sm:$0xff]
    %v9122 = vld [vmem:[%s81 + $0x10] sm:$0xff]
    %v9123 = vld [vmem:[%s81 + $0x18] sm:$0xff]
    %v9124 = vld [vmem:[%s81 + $0x20] sm:$0xff]
    %v9125 = vld [vmem:[%s81 + $0x28] sm:$0xff]
    %v9126 = vld [vmem:[%s81 + $0x30] sm:$0xff]
    %v9127 = vld [vmem:[%s81 + $0x38] sm:$0xff]
    %v9128 = vld [vmem:[%s81 + $0x40] sm:$0xff]
    %v9129 = vld [vmem:[%s81 + $0x48] sm:$0xff]
    %v9130 = vld [vmem:[%s81 + $0x50] sm:$0xff]
    %v9131 = vld [vmem:[%s81 + $0x58] sm:$0xff]
    %v9132 = vld [vmem:[%s81 + $0x60] sm:$0xff]
    %v9133 = vld [vmem:[%s81 + $0x68] sm:$0xff]
    %v9134 = vld [vmem:[%s81 + $0x70] sm:$0xff]
    %v9135 = vld [vmem:[%s81 + $0x78] sm:$0xff]
    %v9136 = vld [vmem:[%s81 + $0x80] sm:$0xff]
    %v9137 = vld [vmem:[%s81 + $0x88] sm:$0xff]
    %v9138 = vld [vmem:[%s81 + $0x90] sm:$0xff]
    %v9139 = vld [vmem:[%s81 + $0x98] sm:$0xff]
    %v9140 = vld [vmem:[%s81 + $0xa0] sm:$0xff]
    %v9141 = vld [vmem:[%s81 + $0xa8] sm:$0xff]
    %v9142 = vld [vmem:[%s81 + $0xb0] sm:$0xff]
    %v9143 = vld [vmem:[%s81 + $0xb8] sm:$0xff]
    %v9168 = vunpack.c.l.b16 %v9120
    %v9169 = vunpack.c.h.b16 %v9120
    %v9170 = vunpack.c.l.b16 %v9121
    %v9171 = vunpack.c.h.b16 %v9121
    %v9172 = vunpack.c.l.b16 %v9122
    %v9173 = vunpack.c.h.b16 %v9122
    %v9174 = vunpack.c.l.b16 %v9123
    %v9175 = vunpack.c.h.b16 %v9123
    %v9176 = vunpack.c.l.b16 %v9124
    %v9177 = vunpack.c.h.b16 %v9124
    %v9178 = vunpack.c.l.b16 %v9125
    %v9179 = vunpack.c.h.b16 %v9125
    %v9180 = vunpack.c.l.b16 %v9126
    %v9181 = vunpack.c.h.b16 %v9126
    %v9182 = vunpack.c.l.b16 %v9127
    %v9183 = vunpack.c.h.b16 %v9127
    %v9184 = vunpack.c.l.b16 %v9128
    %v9185 = vunpack.c.h.b16 %v9128
    %v9186 = vunpack.c.l.b16 %v9129
    %v9187 = vunpack.c.h.b16 %v9129
    %v9188 = vunpack.c.l.b16 %v9130
    %v9189 = vunpack.c.h.b16 %v9130
    %v9190 = vunpack.c.l.b16 %v9131
    %v9191 = vunpack.c.h.b16 %v9131
    %v9192 = vunpack.c.l.b16 %v9132
    %v9193 = vunpack.c.h.b16 %v9132
    %v9194 = vunpack.c.l.b16 %v9133
    %v9195 = vunpack.c.h.b16 %v9133
    %v9196 = vunpack.c.l.b16 %v9134
    %v9197 = vunpack.c.h.b16 %v9134
    %v9198 = vunpack.c.l.b16 %v9135
    %v9199 = vunpack.c.h.b16 %v9135
    %v9200 = vunpack.c.l.b16 %v9136
    %v9201 = vunpack.c.h.b16 %v9136
    %v9202 = vunpack.c.l.b16 %v9137
    %v9203 = vunpack.c.h.b16 %v9137
    %v9204 = vunpack.c.l.b16 %v9138
    %v9205 = vunpack.c.h.b16 %v9138
    %v9206 = vunpack.c.l.b16 %v9139
    %v9207 = vunpack.c.h.b16 %v9139
    %v9208 = vunpack.c.l.b16 %v9140
    %v9209 = vunpack.c.h.b16 %v9140
    %v9210 = vunpack.c.l.b16 %v9141
    %v9211 = vunpack.c.h.b16 %v9141
    %v9212 = vunpack.c.l.b16 %v9142
    %v9213 = vunpack.c.h.b16 %v9142
    %v9214 = vunpack.c.l.b16 %v9143
    %v9215 = vunpack.c.h.b16 %v9143
    %v9216 = vpack.c.b16 %v9192, %v9168
    %v9217 = vpack.c.b16 %v9193, %v9169
    %v9218 = vpack.c.b16 %v9194, %v9170
    %v9219 = vpack.c.b16 %v9195, %v9171
    %v9220 = vpack.c.b16 %v9196, %v9172
    %v9221 = vpack.c.b16 %v9197, %v9173
    %v9222 = vpack.c.b16 %v9198, %v9174
    %v9223 = vpack.c.b16 %v9199, %v9175
    %v9224 = vpack.c.b16 %v9200, %v9176
    %v9225 = vpack.c.b16 %v9201, %v9177
    %v9226 = vpack.c.b16 %v9202, %v9178
    %v9227 = vpack.c.b16 %v9203, %v9179
    %v9228 = vpack.c.b16 %v9204, %v9180
    %v9229 = vpack.c.b16 %v9205, %v9181
    %v9230 = vpack.c.b16 %v9206, %v9182
    %v9231 = vpack.c.b16 %v9207, %v9183
    %v9232 = vpack.c.b16 %v9208, %v9184
    %v9233 = vpack.c.b16 %v9209, %v9185
    %v9234 = vpack.c.b16 %v9210, %v9186
    %v9235 = vpack.c.b16 %v9211, %v9187
    %v9236 = vpack.c.b16 %v9212, %v9188
    %v9237 = vpack.c.b16 %v9213, %v9189
    %v9238 = vpack.c.b16 %v9214, %v9190
    %v9239 = vpack.c.b16 %v9215, %v9191
    %9264 = vmatprep.subr.bf16.mxu0 0
    %9265 = vmatpush1.bf16.msra.mxu0 0
    %9266 = vmatprep.subr.bf16.mxu0 0
    %9267 = vmatpush1.bf16.msra.mxu0 0
    %9268 = vmatprep.subr.bf16.mxu0 0
    %9269 = vmatpush1.bf16.msra.mxu0 0
    %9270 = vmatprep.subr.bf16.mxu0 0
    %9271 = vmatpush1.bf16.msra.mxu0 0
    %9272 = vmatprep.subr.bf16.mxu0 0
    %9273 = vmatpush1.bf16.msra.mxu0 0
    %9274 = vmatprep.subr.bf16.mxu0 0
    %9275 = vmatpush1.bf16.msra.mxu0 0
    %9276 = vmatprep.subr.bf16.mxu0 0
    %9277 = vmatpush1.bf16.msra.mxu0 0
    %9278 = vmatprep.subr.bf16.mxu0 %v9217
    %9279 = vmatpush1.bf16.msra.mxu0 %v9216
    %9280 = vmatprep.subr.bf16.mxu0 0
    %9281 = vmatpush2.bf16.msra.mxu0 0
    %9282 = vmatprep.subr.bf16.mxu0 0
    %9283 = vmatpush2.bf16.msra.mxu0 0
    %9284 = vmatprep.subr.bf16.mxu0 0
    %9285 = vmatpush2.bf16.msra.mxu0 0
    %9286 = vmatprep.subr.bf16.mxu0 0
    %9287 = vmatpush2.bf16.msra.mxu0 0
    %9288 = vmatprep.subr.bf16.mxu0 0
    %9289 = vmatpush2.bf16.msra.mxu0 0
    %9290 = vmatprep.subr.bf16.mxu0 0
    %9291 = vmatpush2.bf16.msra.mxu0 0
    %9292 = vmatprep.subr.bf16.mxu0 0
    %9293 = vmatpush2.bf16.msra.mxu0 0
    %9294 = vmatprep.subr.bf16.mxu0 0
    %9295 = vmatpush2.bf16.msra.mxu0 0
    %9296 = vmatprep.mubr.bf16.mxu0 0
    %9297 = vmatmul.mubr.bf16.gmra.mxu0 %v8894
    %v9298 = vpop.f32.mrf.mxu0
    %v9299 = vadd.f32 0.0, %v9298
    %v9300 = vpop.f32.mrf.mxu0
    %v9301 = vadd.f32 0.0, %v9300
    %v9302 = vpop.f32.mrf.mxu0
    %v9303 = vpop.f32.mrf.mxu0
    %9304 = vdwg.mxu0
    %9305 = vmatprep.subr.bf16.mxu0 0
    %9306 = vmatpush1.bf16.msra.mxu0 0
    %9307 = vmatprep.subr.bf16.mxu0 0
    %9308 = vmatpush1.bf16.msra.mxu0 0
    %9309 = vmatprep.subr.bf16.mxu0 0
    %9310 = vmatpush1.bf16.msra.mxu0 0
    %9311 = vmatprep.subr.bf16.mxu0 0
    %9312 = vmatpush1.bf16.msra.mxu0 0
    %9313 = vmatprep.subr.bf16.mxu0 0
    %9314 = vmatpush1.bf16.msra.mxu0 0
    %9315 = vmatprep.subr.bf16.mxu0 0
    %9316 = vmatpush1.bf16.msra.mxu0 0
    %9317 = vmatprep.subr.bf16.mxu0 0
    %9318 = vmatpush1.bf16.msra.mxu0 0
    %9319 = vmatprep.subr.bf16.mxu0 %v9219
    %9320 = vmatpush1.bf16.msra.mxu0 %v9218
    %9321 = vmatprep.subr.bf16.mxu0 0
    %9322 = vmatpush2.bf16.msra.mxu0 0
    %9323 = vmatprep.subr.bf16.mxu0 0
    %9324 = vmatpush2.bf16.msra.mxu0 0
    %9325 = vmatprep.subr.bf16.mxu0 0
    %9326 = vmatpush2.bf16.msra.mxu0 0
    %9327 = vmatprep.subr.bf16.mxu0 0
    %9328 = vmatpush2.bf16.msra.mxu0 0
    %9329 = vmatprep.subr.bf16.mxu0 0
    %9330 = vmatpush2.bf16.msra.mxu0 0
    %9331 = vmatprep.subr.bf16.mxu0 0
    %9332 = vmatpush2.bf16.msra.mxu0 0
    %9333 = vmatprep.subr.bf16.mxu0 0
    %9334 = vmatpush2.bf16.msra.mxu0 0
    %9335 = vmatprep.subr.bf16.mxu0 0
    %9336 = vmatpush2.bf16.msra.mxu0 0
    %9337 = vmatprep.mubr.bf16.mxu0 0
    %9338 = vmatmul.mubr.bf16.gmra.mxu0 %v8894
    %v9339 = vpop.f32.mrf.mxu0
    %v9340 = vadd.f32 0.0, %v9339
    %v9341 = vpop.f32.mrf.mxu0
    %v9342 = vadd.f32 0.0, %v9341
    %v9343 = vpop.f32.mrf.mxu0
    %v9344 = vpop.f32.mrf.mxu0
    %9345 = vdwg.mxu0
    %9346 = vmatprep.subr.bf16.mxu0 0
    %9347 = vmatpush1.bf16.msra.mxu0 0
    %9348 = vmatprep.subr.bf16.mxu0 0
    %9349 = vmatpush1.bf16.msra.mxu0 0
    %9350 = vmatprep.subr.bf16.mxu0 0
    %9351 = vmatpush1.bf16.msra.mxu0 0
    %9352 = vmatprep.subr.bf16.mxu0 0
    %9353 = vmatpush1.bf16.msra.mxu0 0
    %9354 = vmatprep.subr.bf16.mxu0 0
    %9355 = vmatpush1.bf16.msra.mxu0 0
    %9356 = vmatprep.subr.bf16.mxu0 0
    %9357 = vmatpush1.bf16.msra.mxu0 0
    %9358 = vmatprep.subr.bf16.mxu0 0
    %9359 = vmatpush1.bf16.msra.mxu0 0
    %9360 = vmatprep.subr.bf16.mxu0 %v9221
    %9361 = vmatpush1.bf16.msra.mxu0 %v9220
    %9362 = vmatprep.subr.bf16.mxu0 0
    %9363 = vmatpush2.bf16.msra.mxu0 0
    %9364 = vmatprep.subr.bf16.mxu0 0
    %9365 = vmatpush2.bf16.msra.mxu0 0
    %9366 = vmatprep.subr.bf16.mxu0 0
    %9367 = vmatpush2.bf16.msra.mxu0 0
    %9368 = vmatprep.subr.bf16.mxu0 0
    %9369 = vmatpush2.bf16.msra.mxu0 0
    %9370 = vmatprep.subr.bf16.mxu0 0
    %9371 = vmatpush2.bf16.msra.mxu0 0
    %9372 = vmatprep.subr.bf16.mxu0 0
    %9373 = vmatpush2.bf16.msra.mxu0 0
    %9374 = vmatprep.subr.bf16.mxu0 0
    %9375 = vmatpush2.bf16.msra.mxu0 0
    %9376 = vmatprep.subr.bf16.mxu0 0
    %9377 = vmatpush2.bf16.msra.mxu0 0
    %9378 = vmatprep.mubr.bf16.mxu0 0
    %9379 = vmatmul.mubr.bf16.gmra.mxu0 %v8894
    %v9380 = vpop.f32.mrf.mxu0
    %v9381 = vadd.f32 0.0, %v9380
    %v9382 = vpop.f32.mrf.mxu0
    %v9383 = vadd.f32 0.0, %v9382
    %v9384 = vpop.f32.mrf.mxu0
    %v9385 = vpop.f32.mrf.mxu0
    %9386 = vdwg.mxu0
    %9387 = vmatprep.subr.bf16.mxu0 0
    %9388 = vmatpush1.bf16.msra.mxu0 0
    %9389 = vmatprep.subr.bf16.mxu0 0
    %9390 = vmatpush1.bf16.msra.mxu0 0
    %9391 = vmatprep.subr.bf16.mxu0 0
    %9392 = vmatpush1.bf16.msra.mxu0 0
    %9393 = vmatprep.subr.bf16.mxu0 0
    %9394 = vmatpush1.bf16.msra.mxu0 0
    %9395 = vmatprep.subr.bf16.mxu0 0
    %9396 = vmatpush1.bf16.msra.mxu0 0
    %9397 = vmatprep.subr.bf16.mxu0 0
    %9398 = vmatpush1.bf16.msra.mxu0 0
    %9399 = vmatprep.subr.bf16.mxu0 0
    %9400 = vmatpush1.bf16.msra.mxu0 0
    %9401 = vmatprep.subr.bf16.mxu0 %v9223
    %9402 = vmatpush1.bf16.msra.mxu0 %v9222
    %9403 = vmatprep.subr.bf16.mxu0 0
    %9404 = vmatpush2.bf16.msra.mxu0 0
    %9405 = vmatprep.subr.bf16.mxu0 0
    %9406 = vmatpush2.bf16.msra.mxu0 0
    %9407 = vmatprep.subr.bf16.mxu0 0
    %9408 = vmatpush2.bf16.msra.mxu0 0
    %9409 = vmatprep.subr.bf16.mxu0 0
    %9410 = vmatpush2.bf16.msra.mxu0 0
    %9411 = vmatprep.subr.bf16.mxu0 0
    %9412 = vmatpush2.bf16.msra.mxu0 0
    %9413 = vmatprep.subr.bf16.mxu0 0
    %9414 = vmatpush2.bf16.msra.mxu0 0
    %9415 = vmatprep.subr.bf16.mxu0 0
    %9416 = vmatpush2.bf16.msra.mxu0 0
    %9417 = vmatprep.subr.bf16.mxu0 0
    %9418 = vmatpush2.bf16.msra.mxu0 0
    %9419 = vmatprep.mubr.bf16.mxu0 0
    %9420 = vmatmul.mubr.bf16.gmra.mxu0 %v8894
    %v9421 = vpop.f32.mrf.mxu0
    %v9422 = vadd.f32 0.0, %v9421
    %v9423 = vpop.f32.mrf.mxu0
    %v9424 = vadd.f32 0.0, %v9423
    %v9425 = vpop.f32.mrf.mxu0
    %v9426 = vpop.f32.mrf.mxu0
    %9427 = vdwg.mxu0
    %9428 = vmatprep.subr.bf16.mxu0 0
    %9429 = vmatpush1.bf16.msra.mxu0 0
    %9430 = vmatprep.subr.bf16.mxu0 0
    %9431 = vmatpush1.bf16.msra.mxu0 0
    %9432 = vmatprep.subr.bf16.mxu0 0
    %9433 = vmatpush1.bf16.msra.mxu0 0
    %9434 = vmatprep.subr.bf16.mxu0 0
    %9435 = vmatpush1.bf16.msra.mxu0 0
    %9436 = vmatprep.subr.bf16.mxu0 0
    %9437 = vmatpush1.bf16.msra.mxu0 0
    %9438 = vmatprep.subr.bf16.mxu0 0
    %9439 = vmatpush1.bf16.msra.mxu0 0
    %9440 = vmatprep.subr.bf16.mxu0 0
    %9441 = vmatpush1.bf16.msra.mxu0 0
    %9442 = vmatprep.subr.bf16.mxu0 %v9225
    %9443 = vmatpush1.bf16.msra.mxu0 %v9224
    %9444 = vmatprep.subr.bf16.mxu0 0
    %9445 = vmatpush2.bf16.msra.mxu0 0
    %9446 = vmatprep.subr.bf16.mxu0 0
    %9447 = vmatpush2.bf16.msra.mxu0 0
    %9448 = vmatprep.subr.bf16.mxu0 0
    %9449 = vmatpush2.bf16.msra.mxu0 0
    %9450 = vmatprep.subr.bf16.mxu0 0
    %9451 = vmatpush2.bf16.msra.mxu0 0
    %9452 = vmatprep.subr.bf16.mxu0 0
    %9453 = vmatpush2.bf16.msra.mxu0 0
    %9454 = vmatprep.subr.bf16.mxu0 0
    %9455 = vmatpush2.bf16.msra.mxu0 0
    %9456 = vmatprep.subr.bf16.mxu0 0
    %9457 = vmatpush2.bf16.msra.mxu0 0
    %9458 = vmatprep.subr.bf16.mxu0 0
    %9459 = vmatpush2.bf16.msra.mxu0 0
    %9460 = vmatprep.mubr.bf16.mxu0 0
    %9461 = vmatmul.mubr.bf16.gmra.mxu0 %v8894
    %v9462 = vpop.f32.mrf.mxu0
    %v9463 = vadd.f32 0.0, %v9462
    %v9464 = vpop.f32.mrf.mxu0
    %v9465 = vadd.f32 0.0, %v9464
    %v9466 = vpop.f32.mrf.mxu0
    %v9467 = vpop.f32.mrf.mxu0
    %9468 = vdwg.mxu0
    %9469 = vmatprep.subr.bf16.mxu0 0
    %9470 = vmatpush1.bf16.msra.mxu0 0
    %9471 = vmatprep.subr.bf16.mxu0 0
    %9472 = vmatpush1.bf16.msra.mxu0 0
    %9473 = vmatprep.subr.bf16.mxu0 0
    %9474 = vmatpush1.bf16.msra.mxu0 0
    %9475 = vmatprep.subr.bf16.mxu0 0
    %9476 = vmatpush1.bf16.msra.mxu0 0
    %9477 = vmatprep.subr.bf16.mxu0 0
    %9478 = vmatpush1.bf16.msra.mxu0 0
    %9479 = vmatprep.subr.bf16.mxu0 0
    %9480 = vmatpush1.bf16.msra.mxu0 0
    %9481 = vmatprep.subr.bf16.mxu0 0
    %9482 = vmatpush1.bf16.msra.mxu0 0
    %9483 = vmatprep.subr.bf16.mxu0 %v9227
    %9484 = vmatpush1.bf16.msra.mxu0 %v9226
    %9485 = vmatprep.subr.bf16.mxu0 0
    %9486 = vmatpush2.bf16.msra.mxu0 0
    %9487 = vmatprep.subr.bf16.mxu0 0
    %9488 = vmatpush2.bf16.msra.mxu0 0
    %9489 = vmatprep.subr.bf16.mxu0 0
    %9490 = vmatpush2.bf16.msra.mxu0 0
    %9491 = vmatprep.subr.bf16.mxu0 0
    %9492 = vmatpush2.bf16.msra.mxu0 0
    %9493 = vmatprep.subr.bf16.mxu0 0
    %9494 = vmatpush2.bf16.msra.mxu0 0
    %9495 = vmatprep.subr.bf16.mxu0 0
    %9496 = vmatpush2.bf16.msra.mxu0 0
    %9497 = vmatprep.subr.bf16.mxu0 0
    %9498 = vmatpush2.bf16.msra.mxu0 0
    %9499 = vmatprep.subr.bf16.mxu0 0
    %9500 = vmatpush2.bf16.msra.mxu0 0
    %9501 = vmatprep.mubr.bf16.mxu0 0
    %9502 = vmatmul.mubr.bf16.gmra.mxu0 %v8894
    %v9503 = vpop.f32.mrf.mxu0
    %v9504 = vadd.f32 0.0, %v9503
    %v9505 = vpop.f32.mrf.mxu0
    %v9506 = vadd.f32 0.0, %v9505
    %v9507 = vpop.f32.mrf.mxu0
    %v9508 = vpop.f32.mrf.mxu0
    %9509 = vdwg.mxu0
    %9510 = vmatprep.subr.bf16.mxu0 0
    %9511 = vmatpush1.bf16.msra.mxu0 0
    %9512 = vmatprep.subr.bf16.mxu0 0
    %9513 = vmatpush1.bf16.msra.mxu0 0
    %9514 = vmatprep.subr.bf16.mxu0 0
    %9515 = vmatpush1.bf16.msra.mxu0 0
    %9516 = vmatprep.subr.bf16.mxu0 0
    %9517 = vmatpush1.bf16.msra.mxu0 0
    %9518 = vmatprep.subr.bf16.mxu0 0
    %9519 = vmatpush1.bf16.msra.mxu0 0
    %9520 = vmatprep.subr.bf16.mxu0 0
    %9521 = vmatpush1.bf16.msra.mxu0 0
    %9522 = vmatprep.subr.bf16.mxu0 0
    %9523 = vmatpush1.bf16.msra.mxu0 0
    %9524 = vmatprep.subr.bf16.mxu0 %v9229
    %9525 = vmatpush1.bf16.msra.mxu0 %v9228
    %9526 = vmatprep.subr.bf16.mxu0 0
    %9527 = vmatpush2.bf16.msra.mxu0 0
    %9528 = vmatprep.subr.bf16.mxu0 0
    %9529 = vmatpush2.bf16.msra.mxu0 0
    %9530 = vmatprep.subr.bf16.mxu0 0
    %9531 = vmatpush2.bf16.msra.mxu0 0
    %9532 = vmatprep.subr.bf16.mxu0 0
    %9533 = vmatpush2.bf16.msra.mxu0 0
    %9534 = vmatprep.subr.bf16.mxu0 0
    %9535 = vmatpush2.bf16.msra.mxu0 0
    %9536 = vmatprep.subr.bf16.mxu0 0
    %9537 = vmatpush2.bf16.msra.mxu0 0
    %9538 = vmatprep.subr.bf16.mxu0 0
    %9539 = vmatpush2.bf16.msra.mxu0 0
    %9540 = vmatprep.subr.bf16.mxu0 0
    %9541 = vmatpush2.bf16.msra.mxu0 0
    %9542 = vmatprep.mubr.bf16.mxu0 0
    %9543 = vmatmul.mubr.bf16.gmra.mxu0 %v8894
    %v9544 = vpop.f32.mrf.mxu0
    %v9545 = vadd.f32 0.0, %v9544
    %v9546 = vpop.f32.mrf.mxu0
    %v9547 = vadd.f32 0.0, %v9546
    %v9548 = vpop.f32.mrf.mxu0
    %v9549 = vpop.f32.mrf.mxu0
    %9550 = vdwg.mxu0
    %9551 = vmatprep.subr.bf16.mxu0 0
    %9552 = vmatpush1.bf16.msra.mxu0 0
    %9553 = vmatprep.subr.bf16.mxu0 0
    %9554 = vmatpush1.bf16.msra.mxu0 0
    %9555 = vmatprep.subr.bf16.mxu0 0
    %9556 = vmatpush1.bf16.msra.mxu0 0
    %9557 = vmatprep.subr.bf16.mxu0 0
    %9558 = vmatpush1.bf16.msra.mxu0 0
    %9559 = vmatprep.subr.bf16.mxu0 0
    %9560 = vmatpush1.bf16.msra.mxu0 0
    %9561 = vmatprep.subr.bf16.mxu0 0
    %9562 = vmatpush1.bf16.msra.mxu0 0
    %9563 = vmatprep.subr.bf16.mxu0 0
    %9564 = vmatpush1.bf16.msra.mxu0 0
    %9565 = vmatprep.subr.bf16.mxu0 %v9231
    %9566 = vmatpush1.bf16.msra.mxu0 %v9230
    %9567 = vmatprep.subr.bf16.mxu0 0
    %9568 = vmatpush2.bf16.msra.mxu0 0
    %9569 = vmatprep.subr.bf16.mxu0 0
    %9570 = vmatpush2.bf16.msra.mxu0 0
    %9571 = vmatprep.subr.bf16.mxu0 0
    %9572 = vmatpush2.bf16.msra.mxu0 0
    %9573 = vmatprep.subr.bf16.mxu0 0
    %9574 = vmatpush2.bf16.msra.mxu0 0
    %9575 = vmatprep.subr.bf16.mxu0 0
    %9576 = vmatpush2.bf16.msra.mxu0 0
    %9577 = vmatprep.subr.bf16.mxu0 0
    %9578 = vmatpush2.bf16.msra.mxu0 0
    %9579 = vmatprep.subr.bf16.mxu0 0
    %9580 = vmatpush2.bf16.msra.mxu0 0
    %9581 = vmatprep.subr.bf16.mxu0 0
    %9582 = vmatpush2.bf16.msra.mxu0 0
    %9583 = vmatprep.mubr.bf16.mxu0 0
    %9584 = vmatmul.mubr.bf16.gmra.mxu0 %v8894
    %v9585 = vpop.f32.mrf.mxu0
    %v9586 = vadd.f32 0.0, %v9585
    %v9587 = vpop.f32.mrf.mxu0
    %v9588 = vadd.f32 0.0, %v9587
    %v9589 = vpop.f32.mrf.mxu0
    %v9590 = vpop.f32.mrf.mxu0
    %9591 = vdwg.mxu0
    %9592 = vmatprep.subr.bf16.mxu0 0
    %9593 = vmatpush1.bf16.msra.mxu0 0
    %9594 = vmatprep.subr.bf16.mxu0 0
    %9595 = vmatpush1.bf16.msra.mxu0 0
    %9596 = vmatprep.subr.bf16.mxu0 0
    %9597 = vmatpush1.bf16.msra.mxu0 0
    %9598 = vmatprep.subr.bf16.mxu0 0
    %9599 = vmatpush1.bf16.msra.mxu0 0
    %9600 = vmatprep.subr.bf16.mxu0 0
    %9601 = vmatpush1.bf16.msra.mxu0 0
    %9602 = vmatprep.subr.bf16.mxu0 0
    %9603 = vmatpush1.bf16.msra.mxu0 0
    %9604 = vmatprep.subr.bf16.mxu0 0
    %9605 = vmatpush1.bf16.msra.mxu0 0
    %9606 = vmatprep.subr.bf16.mxu0 %v9233
    %9607 = vmatpush1.bf16.msra.mxu0 %v9232
    %9608 = vmatprep.subr.bf16.mxu0 0
    %9609 = vmatpush2.bf16.msra.mxu0 0
    %9610 = vmatprep.subr.bf16.mxu0 0
    %9611 = vmatpush2.bf16.msra.mxu0 0
    %9612 = vmatprep.subr.bf16.mxu0 0
    %9613 = vmatpush2.bf16.msra.mxu0 0
    %9614 = vmatprep.subr.bf16.mxu0 0
    %9615 = vmatpush2.bf16.msra.mxu0 0
    %9616 = vmatprep.subr.bf16.mxu0 0
    %9617 = vmatpush2.bf16.msra.mxu0 0
    %9618 = vmatprep.subr.bf16.mxu0 0
    %9619 = vmatpush2.bf16.msra.mxu0 0
    %9620 = vmatprep.subr.bf16.mxu0 0
    %9621 = vmatpush2.bf16.msra.mxu0 0
    %9622 = vmatprep.subr.bf16.mxu0 0
    %9623 = vmatpush2.bf16.msra.mxu0 0
    %9624 = vmatprep.mubr.bf16.mxu0 0
    %9625 = vmatmul.mubr.bf16.gmra.mxu0 %v8894
    %v9626 = vpop.f32.mrf.mxu0
    %v9627 = vadd.f32 0.0, %v9626
    %v9628 = vpop.f32.mrf.mxu0
    %v9629 = vadd.f32 0.0, %v9628
    %v9630 = vpop.f32.mrf.mxu0
    %v9631 = vpop.f32.mrf.mxu0
    %9632 = vdwg.mxu0
    %9633 = vmatprep.subr.bf16.mxu0 0
    %9634 = vmatpush1.bf16.msra.mxu0 0
    %9635 = vmatprep.subr.bf16.mxu0 0
    %9636 = vmatpush1.bf16.msra.mxu0 0
    %9637 = vmatprep.subr.bf16.mxu0 0
    %9638 = vmatpush1.bf16.msra.mxu0 0
    %9639 = vmatprep.subr.bf16.mxu0 0
    %9640 = vmatpush1.bf16.msra.mxu0 0
    %9641 = vmatprep.subr.bf16.mxu0 0
    %9642 = vmatpush1.bf16.msra.mxu0 0
    %9643 = vmatprep.subr.bf16.mxu0 0
    %9644 = vmatpush1.bf16.msra.mxu0 0
    %9645 = vmatprep.subr.bf16.mxu0 0
    %9646 = vmatpush1.bf16.msra.mxu0 0
    %9647 = vmatprep.subr.bf16.mxu0 %v9235
    %9648 = vmatpush1.bf16.msra.mxu0 %v9234
    %9649 = vmatprep.subr.bf16.mxu0 0
    %9650 = vmatpush2.bf16.msra.mxu0 0
    %9651 = vmatprep.subr.bf16.mxu0 0
    %9652 = vmatpush2.bf16.msra.mxu0 0
    %9653 = vmatprep.subr.bf16.mxu0 0
    %9654 = vmatpush2.bf16.msra.mxu0 0
    %9655 = vmatprep.subr.bf16.mxu0 0
    %9656 = vmatpush2.bf16.msra.mxu0 0
    %9657 = vmatprep.subr.bf16.mxu0 0
    %9658 = vmatpush2.bf16.msra.mxu0 0
    %9659 = vmatprep.subr.bf16.mxu0 0
    %9660 = vmatpush2.bf16.msra.mxu0 0
    %9661 = vmatprep.subr.bf16.mxu0 0
    %9662 = vmatpush2.bf16.msra.mxu0 0
    %9663 = vmatprep.subr.bf16.mxu0 0
    %9664 = vmatpush2.bf16.msra.mxu0 0
    %9665 = vmatprep.mubr.bf16.mxu0 0
    %9666 = vmatmul.mubr.bf16.gmra.mxu0 %v8894
    %v9667 = vpop.f32.mrf.mxu0
    %v9668 = vadd.f32 0.0, %v9667
    %v9669 = vpop.f32.mrf.mxu0
    %v9670 = vadd.f32 0.0, %v9669
    %v9671 = vpop.f32.mrf.mxu0
    %v9672 = vpop.f32.mrf.mxu0
    %9673 = vdwg.mxu0
    %9674 = vmatprep.subr.bf16.mxu0 0
    %9675 = vmatpush1.bf16.msra.mxu0 0
    %9676 = vmatprep.subr.bf16.mxu0 0
    %9677 = vmatpush1.bf16.msra.mxu0 0
    %9678 = vmatprep.subr.bf16.mxu0 0
    %9679 = vmatpush1.bf16.msra.mxu0 0
    %9680 = vmatprep.subr.bf16.mxu0 0
    %9681 = vmatpush1.bf16.msra.mxu0 0
    %9682 = vmatprep.subr.bf16.mxu0 0
    %9683 = vmatpush1.bf16.msra.mxu0 0
    %9684 = vmatprep.subr.bf16.mxu0 0
    %9685 = vmatpush1.bf16.msra.mxu0 0
    %9686 = vmatprep.subr.bf16.mxu0 0
    %9687 = vmatpush1.bf16.msra.mxu0 0
    %9688 = vmatprep.subr.bf16.mxu0 %v9237
    %9689 = vmatpush1.bf16.msra.mxu0 %v9236
    %9690 = vmatprep.subr.bf16.mxu0 0
    %9691 = vmatpush2.bf16.msra.mxu0 0
    %9692 = vmatprep.subr.bf16.mxu0 0
    %9693 = vmatpush2.bf16.msra.mxu0 0
    %9694 = vmatprep.subr.bf16.mxu0 0
    %9695 = vmatpush2.bf16.msra.mxu0 0
    %9696 = vmatprep.subr.bf16.mxu0 0
    %9697 = vmatpush2.bf16.msra.mxu0 0
    %9698 = vmatprep.subr.bf16.mxu0 0
    %9699 = vmatpush2.bf16.msra.mxu0 0
    %9700 = vmatprep.subr.bf16.mxu0 0
    %9701 = vmatpush2.bf16.msra.mxu0 0
    %9702 = vmatprep.subr.bf16.mxu0 0
    %9703 = vmatpush2.bf16.msra.mxu0 0
    %9704 = vmatprep.subr.bf16.mxu0 0
    %9705 = vmatpush2.bf16.msra.mxu0 0
    %9706 = vmatprep.mubr.bf16.mxu0 0
    %9707 = vmatmul.mubr.bf16.gmra.mxu0 %v8894
    %v9708 = vpop.f32.mrf.mxu0
    %v9709 = vadd.f32 0.0, %v9708
    %v9710 = vpop.f32.mrf.mxu0
    %v9711 = vadd.f32 0.0, %v9710
    %v9712 = vpop.f32.mrf.mxu0
    %v9713 = vpop.f32.mrf.mxu0
    %9714 = vdwg.mxu0
    %9715 = vmatprep.subr.bf16.mxu0 0
    %9716 = vmatpush1.bf16.msra.mxu0 0
    %9717 = vmatprep.subr.bf16.mxu0 0
    %9718 = vmatpush1.bf16.msra.mxu0 0
    %9719 = vmatprep.subr.bf16.mxu0 0
    %9720 = vmatpush1.bf16.msra.mxu0 0
    %9721 = vmatprep.subr.bf16.mxu0 0
    %9722 = vmatpush1.bf16.msra.mxu0 0
    %9723 = vmatprep.subr.bf16.mxu0 0
    %9724 = vmatpush1.bf16.msra.mxu0 0
    %9725 = vmatprep.subr.bf16.mxu0 0
    %9726 = vmatpush1.bf16.msra.mxu0 0
    %9727 = vmatprep.subr.bf16.mxu0 0
    %9728 = vmatpush1.bf16.msra.mxu0 0
    %9729 = vmatprep.subr.bf16.mxu0 %v9239
    %9730 = vmatpush1.bf16.msra.mxu0 %v9238
    %9731 = vmatprep.subr.bf16.mxu0 0
    %9732 = vmatpush2.bf16.msra.mxu0 0
    %9733 = vmatprep.subr.bf16.mxu0 0
    %9734 = vmatpush2.bf16.msra.mxu0 0
    %9735 = vmatprep.subr.bf16.mxu0 0
    %9736 = vmatpush2.bf16.msra.mxu0 0
    %9737 = vmatprep.subr.bf16.mxu0 0
    %9738 = vmatpush2.bf16.msra.mxu0 0
    %9739 = vmatprep.subr.bf16.mxu0 0
    %9740 = vmatpush2.bf16.msra.mxu0 0
    %9741 = vmatprep.subr.bf16.mxu0 0
    %9742 = vmatpush2.bf16.msra.mxu0 0
    %9743 = vmatprep.subr.bf16.mxu0 0
    %9744 = vmatpush2.bf16.msra.mxu0 0
    %9745 = vmatprep.subr.bf16.mxu0 0
    %9746 = vmatpush2.bf16.msra.mxu0 0
    %9747 = vmatprep.mubr.bf16.mxu0 0
    %9748 = vmatmul.mubr.bf16.gmra.mxu0 %v8894
    %v9749 = vpop.f32.mrf.mxu0
    %v9750 = vadd.f32 0.0, %v9749
    %v9751 = vpop.f32.mrf.mxu0
    %v9752 = vadd.f32 0.0, %v9751
    %v9753 = vpop.f32.mrf.mxu0
    %v9754 = vpop.f32.mrf.mxu0
    %9755 = vdwg.mxu0
    %v9804 = vunpack.c.l.b16 %v9072
    %v9805 = vunpack.c.h.b16 %v9072
    %v9806 = vunpack.c.l.b16 %v9073
    %v9807 = vunpack.c.h.b16 %v9073
    %v9808 = vunpack.c.l.b16 %v9074
    %v9809 = vunpack.c.h.b16 %v9074
    %v9810 = vunpack.c.l.b16 %v9075
    %v9811 = vunpack.c.h.b16 %v9075
    %v9812 = vunpack.c.l.b16 %v9076
    %v9813 = vunpack.c.h.b16 %v9076
    %v9814 = vunpack.c.l.b16 %v9077
    %v9815 = vunpack.c.h.b16 %v9077
    %v9816 = vunpack.c.l.b16 %v9078
    %v9817 = vunpack.c.h.b16 %v9078
    %v9818 = vunpack.c.l.b16 %v9079
    %v9819 = vunpack.c.h.b16 %v9079
    %v9820 = vunpack.c.l.b16 %v9080
    %v9821 = vunpack.c.h.b16 %v9080
    %v9822 = vunpack.c.l.b16 %v9081
    %v9823 = vunpack.c.h.b16 %v9081
    %v9824 = vunpack.c.l.b16 %v9082
    %v9825 = vunpack.c.h.b16 %v9082
    %v9826 = vunpack.c.l.b16 %v9083
    %v9827 = vunpack.c.h.b16 %v9083
    %v9828 = vunpack.c.l.b16 %v9084
    %v9829 = vunpack.c.h.b16 %v9084
    %v9830 = vunpack.c.l.b16 %v9085
    %v9831 = vunpack.c.h.b16 %v9085
    %v9832 = vunpack.c.l.b16 %v9086
    %v9833 = vunpack.c.h.b16 %v9086
    %v9834 = vunpack.c.l.b16 %v9087
    %v9835 = vunpack.c.h.b16 %v9087
    %v9836 = vunpack.c.l.b16 %v9088
    %v9837 = vunpack.c.h.b16 %v9088
    %v9838 = vunpack.c.l.b16 %v9089
    %v9839 = vunpack.c.h.b16 %v9089
    %v9840 = vunpack.c.l.b16 %v9090
    %v9841 = vunpack.c.h.b16 %v9090
    %v9842 = vunpack.c.l.b16 %v9091
    %v9843 = vunpack.c.h.b16 %v9091
    %v9844 = vunpack.c.l.b16 %v9092
    %v9845 = vunpack.c.h.b16 %v9092
    %v9846 = vunpack.c.l.b16 %v9093
    %v9847 = vunpack.c.h.b16 %v9093
    %v9848 = vunpack.c.l.b16 %v9094
    %v9849 = vunpack.c.h.b16 %v9094
    %v9850 = vunpack.c.l.b16 %v9095
    %v9851 = vunpack.c.h.b16 %v9095
    %v9852 = vunpack.c.l.b16 %v9096
    %v9853 = vunpack.c.h.b16 %v9096
    %v9854 = vunpack.c.l.b16 %v9097
    %v9855 = vunpack.c.h.b16 %v9097
    %v9856 = vunpack.c.l.b16 %v9098
    %v9857 = vunpack.c.h.b16 %v9098
    %v9858 = vunpack.c.l.b16 %v9099
    %v9859 = vunpack.c.h.b16 %v9099
    %v9860 = vunpack.c.l.b16 %v9100
    %v9861 = vunpack.c.h.b16 %v9100
    %v9862 = vunpack.c.l.b16 %v9101
    %v9863 = vunpack.c.h.b16 %v9101
    %v9864 = vunpack.c.l.b16 %v9102
    %v9865 = vunpack.c.h.b16 %v9102
    %v9866 = vunpack.c.l.b16 %v9103
    %v9867 = vunpack.c.h.b16 %v9103
    %v9868 = vunpack.c.l.b16 %v9104
    %v9869 = vunpack.c.h.b16 %v9104
    %v9870 = vunpack.c.l.b16 %v9105
    %v9871 = vunpack.c.h.b16 %v9105
    %v9872 = vunpack.c.l.b16 %v9106
    %v9873 = vunpack.c.h.b16 %v9106
    %v9874 = vunpack.c.l.b16 %v9107
    %v9875 = vunpack.c.h.b16 %v9107
    %v9876 = vunpack.c.l.b16 %v9108
    %v9877 = vunpack.c.h.b16 %v9108
    %v9878 = vunpack.c.l.b16 %v9109
    %v9879 = vunpack.c.h.b16 %v9109
    %v9880 = vunpack.c.l.b16 %v9110
    %v9881 = vunpack.c.h.b16 %v9110
    %v9882 = vunpack.c.l.b16 %v9111
    %v9883 = vunpack.c.h.b16 %v9111
    %v9884 = vunpack.c.l.b16 %v9112
    %v9885 = vunpack.c.h.b16 %v9112
    %v9886 = vunpack.c.l.b16 %v9113
    %v9887 = vunpack.c.h.b16 %v9113
    %v9888 = vunpack.c.l.b16 %v9114
    %v9889 = vunpack.c.h.b16 %v9114
    %v9890 = vunpack.c.l.b16 %v9115
    %v9891 = vunpack.c.h.b16 %v9115
    %v9892 = vunpack.c.l.b16 %v9116
    %v9893 = vunpack.c.h.b16 %v9116
    %v9894 = vunpack.c.l.b16 %v9117
    %v9895 = vunpack.c.h.b16 %v9117
    %v9896 = vunpack.c.l.b16 %v9118
    %v9897 = vunpack.c.h.b16 %v9118
    %v9898 = vunpack.c.l.b16 %v9119
    %v9899 = vunpack.c.h.b16 %v9119
    %v9900 = vpack.c.b16 %v9828, %v9804
    %v9901 = vpack.c.b16 %v9829, %v9805
    %v9902 = vpack.c.b16 %v9830, %v9806
    %v9903 = vpack.c.b16 %v9831, %v9807
    %v9904 = vpack.c.b16 %v9832, %v9808
    %v9905 = vpack.c.b16 %v9833, %v9809
    %v9906 = vpack.c.b16 %v9834, %v9810
    %v9907 = vpack.c.b16 %v9835, %v9811
    %v9908 = vpack.c.b16 %v9836, %v9812
    %v9909 = vpack.c.b16 %v9837, %v9813
    %v9910 = vpack.c.b16 %v9838, %v9814
    %v9911 = vpack.c.b16 %v9839, %v9815
    %v9912 = vpack.c.b16 %v9840, %v9816
    %v9913 = vpack.c.b16 %v9841, %v9817
    %v9914 = vpack.c.b16 %v9842, %v9818
    %v9915 = vpack.c.b16 %v9843, %v9819
    %v9916 = vpack.c.b16 %v9844, %v9820
    %v9917 = vpack.c.b16 %v9845, %v9821
    %v9918 = vpack.c.b16 %v9846, %v9822
    %v9919 = vpack.c.b16 %v9847, %v9823
    %v9920 = vpack.c.b16 %v9848, %v9824
    %v9921 = vpack.c.b16 %v9849, %v9825
    %v9922 = vpack.c.b16 %v9850, %v9826
    %v9923 = vpack.c.b16 %v9851, %v9827
    %v9924 = vpack.c.b16 %v9876, %v9852
    %v9925 = vpack.c.b16 %v9877, %v9853
    %v9926 = vpack.c.b16 %v9878, %v9854
    %v9927 = vpack.c.b16 %v9879, %v9855
    %v9928 = vpack.c.b16 %v9880, %v9856
    %v9929 = vpack.c.b16 %v9881, %v9857
    %v9930 = vpack.c.b16 %v9882, %v9858
    %v9931 = vpack.c.b16 %v9883, %v9859
    %v9932 = vpack.c.b16 %v9884, %v9860
    %v9933 = vpack.c.b16 %v9885, %v9861
    %v9934 = vpack.c.b16 %v9886, %v9862
    %v9935 = vpack.c.b16 %v9887, %v9863
    %v9936 = vpack.c.b16 %v9888, %v9864
    %v9937 = vpack.c.b16 %v9889, %v9865
    %v9938 = vpack.c.b16 %v9890, %v9866
    %v9939 = vpack.c.b16 %v9891, %v9867
    %v9940 = vpack.c.b16 %v9892, %v9868
    %v9941 = vpack.c.b16 %v9893, %v9869
    %v9942 = vpack.c.b16 %v9894, %v9870
    %v9943 = vpack.c.b16 %v9895, %v9871
    %v9944 = vpack.c.b16 %v9896, %v9872
    %v9945 = vpack.c.b16 %v9897, %v9873
    %v9946 = vpack.c.b16 %v9898, %v9874
    %v9947 = vpack.c.b16 %v9899, %v9875
    %v9997 = vsel %vm3002, %v9071, 0
    %9999 = vmatprep.subr.bf16.mxu0 0
    %10000 = vmatpush1.bf16.msra.mxu0 0
    %10001 = vmatprep.subr.bf16.mxu0 0
    %10002 = vmatpush1.bf16.msra.mxu0 0
    %10003 = vmatprep.subr.bf16.mxu0 0
    %10004 = vmatpush1.bf16.msra.mxu0 0
    %10005 = vmatprep.subr.bf16.mxu0 0
    %10006 = vmatpush1.bf16.msra.mxu0 0
    %10007 = vmatprep.subr.bf16.mxu0 0
    %10008 = vmatpush1.bf16.msra.mxu0 0
    %10009 = vmatprep.subr.bf16.mxu0 0
    %10010 = vmatpush1.bf16.msra.mxu0 0
    %10011 = vmatprep.subr.bf16.mxu0 %v9925
    %10012 = vmatpush1.bf16.msra.mxu0 %v9924
    %10013 = vmatprep.subr.bf16.mxu0 %v9901
    %10014 = vmatpush1.bf16.msra.mxu0 %v9900
    %10015 = vmatprep.subr.bf16.mxu0 0
    %10016 = vmatpush2.bf16.msra.mxu0 0
    %10017 = vmatprep.subr.bf16.mxu0 0
    %10018 = vmatpush2.bf16.msra.mxu0 0
    %10019 = vmatprep.subr.bf16.mxu0 0
    %10020 = vmatpush2.bf16.msra.mxu0 0
    %10021 = vmatprep.subr.bf16.mxu0 0
    %10022 = vmatpush2.bf16.msra.mxu0 0
    %10023 = vmatprep.subr.bf16.mxu0 0
    %10024 = vmatpush2.bf16.msra.mxu0 0
    %10025 = vmatprep.subr.bf16.mxu0 0
    %10026 = vmatpush2.bf16.msra.mxu0 0
    %10027 = vmatprep.subr.bf16.mxu0 0
    %10028 = vmatpush2.bf16.msra.mxu0 0
    %10029 = vmatprep.subr.bf16.mxu0 0
    %10030 = vmatpush2.bf16.msra.mxu0 0
    %10031 = vmatprep.mubr.bf16.mxu0 0
    %10032 = vmatmul.mubr.bf16.gmra.mxu0 %v9997
    %v10033 = vpop.f32.mrf.mxu0
    %v10034 = vadd.f32 %v9299, %v10033
    %v10035 = vpop.f32.mrf.mxu0
    %v10036 = vadd.f32 %v9301, %v10035
    %v10037 = vpop.f32.mrf.mxu0
    %v10038 = vpop.f32.mrf.mxu0
    %10039 = vdwg.mxu0
    %10040 = vmatprep.subr.bf16.mxu0 0
    %10041 = vmatpush1.bf16.msra.mxu0 0
    %10042 = vmatprep.subr.bf16.mxu0 0
    %10043 = vmatpush1.bf16.msra.mxu0 0
    %10044 = vmatprep.subr.bf16.mxu0 0
    %10045 = vmatpush1.bf16.msra.mxu0 0
    %10046 = vmatprep.subr.bf16.mxu0 0
    %10047 = vmatpush1.bf16.msra.mxu0 0
    %10048 = vmatprep.subr.bf16.mxu0 0
    %10049 = vmatpush1.bf16.msra.mxu0 0
    %10050 = vmatprep.subr.bf16.mxu0 0
    %10051 = vmatpush1.bf16.msra.mxu0 0
    %10052 = vmatprep.subr.bf16.mxu0 %v9927
    %10053 = vmatpush1.bf16.msra.mxu0 %v9926
    %10054 = vmatprep.subr.bf16.mxu0 %v9903
    %10055 = vmatpush1.bf16.msra.mxu0 %v9902
    %10056 = vmatprep.subr.bf16.mxu0 0
    %10057 = vmatpush2.bf16.msra.mxu0 0
    %10058 = vmatprep.subr.bf16.mxu0 0
    %10059 = vmatpush2.bf16.msra.mxu0 0
    %10060 = vmatprep.subr.bf16.mxu0 0
    %10061 = vmatpush2.bf16.msra.mxu0 0
    %10062 = vmatprep.subr.bf16.mxu0 0
    %10063 = vmatpush2.bf16.msra.mxu0 0
    %10064 = vmatprep.subr.bf16.mxu0 0
    %10065 = vmatpush2.bf16.msra.mxu0 0
    %10066 = vmatprep.subr.bf16.mxu0 0
    %10067 = vmatpush2.bf16.msra.mxu0 0
    %10068 = vmatprep.subr.bf16.mxu0 0
    %10069 = vmatpush2.bf16.msra.mxu0 0
    %10070 = vmatprep.subr.bf16.mxu0 0
    %10071 = vmatpush2.bf16.msra.mxu0 0
    %10072 = vmatprep.mubr.bf16.mxu0 0
    %10073 = vmatmul.mubr.bf16.gmra.mxu0 %v9997
    %v10074 = vpop.f32.mrf.mxu0
    %v10075 = vadd.f32 %v9340, %v10074
    %v10076 = vpop.f32.mrf.mxu0
    %v10077 = vadd.f32 %v9342, %v10076
    %v10078 = vpop.f32.mrf.mxu0
    %v10079 = vpop.f32.mrf.mxu0
    %10080 = vdwg.mxu0
    %10081 = vmatprep.subr.bf16.mxu0 0
    %10082 = vmatpush1.bf16.msra.mxu0 0
    %10083 = vmatprep.subr.bf16.mxu0 0
    %10084 = vmatpush1.bf16.msra.mxu0 0
    %10085 = vmatprep.subr.bf16.mxu0 0
    %10086 = vmatpush1.bf16.msra.mxu0 0
    %10087 = vmatprep.subr.bf16.mxu0 0
    %10088 = vmatpush1.bf16.msra.mxu0 0
    %10089 = vmatprep.subr.bf16.mxu0 0
    %10090 = vmatpush1.bf16.msra.mxu0 0
    %10091 = vmatprep.subr.bf16.mxu0 0
    %10092 = vmatpush1.bf16.msra.mxu0 0
    %10093 = vmatprep.subr.bf16.mxu0 %v9929
    %10094 = vmatpush1.bf16.msra.mxu0 %v9928
    %10095 = vmatprep.subr.bf16.mxu0 %v9905
    %10096 = vmatpush1.bf16.msra.mxu0 %v9904
    %10097 = vmatprep.subr.bf16.mxu0 0
    %10098 = vmatpush2.bf16.msra.mxu0 0
    %10099 = vmatprep.subr.bf16.mxu0 0
    %10100 = vmatpush2.bf16.msra.mxu0 0
    %10101 = vmatprep.subr.bf16.mxu0 0
    %10102 = vmatpush2.bf16.msra.mxu0 0
    %10103 = vmatprep.subr.bf16.mxu0 0
    %10104 = vmatpush2.bf16.msra.mxu0 0
    %10105 = vmatprep.subr.bf16.mxu0 0
    %10106 = vmatpush2.bf16.msra.mxu0 0
    %10107 = vmatprep.subr.bf16.mxu0 0
    %10108 = vmatpush2.bf16.msra.mxu0 0
    %10109 = vmatprep.subr.bf16.mxu0 0
    %10110 = vmatpush2.bf16.msra.mxu0 0
    %10111 = vmatprep.subr.bf16.mxu0 0
    %10112 = vmatpush2.bf16.msra.mxu0 0
    %10113 = vmatprep.mubr.bf16.mxu0 0
    %10114 = vmatmul.mubr.bf16.gmra.mxu0 %v9997
    %v10115 = vpop.f32.mrf.mxu0
    %v10116 = vadd.f32 %v9381, %v10115
    %v10117 = vpop.f32.mrf.mxu0
    %v10118 = vadd.f32 %v9383, %v10117
    %v10119 = vpop.f32.mrf.mxu0
    %v10120 = vpop.f32.mrf.mxu0
    %10121 = vdwg.mxu0
    %10122 = vmatprep.subr.bf16.mxu0 0
    %10123 = vmatpush1.bf16.msra.mxu0 0
    %10124 = vmatprep.subr.bf16.mxu0 0
    %10125 = vmatpush1.bf16.msra.mxu0 0
    %10126 = vmatprep.subr.bf16.mxu0 0
    %10127 = vmatpush1.bf16.msra.mxu0 0
    %10128 = vmatprep.subr.bf16.mxu0 0
    %10129 = vmatpush1.bf16.msra.mxu0 0
    %10130 = vmatprep.subr.bf16.mxu0 0
    %10131 = vmatpush1.bf16.msra.mxu0 0
    %10132 = vmatprep.subr.bf16.mxu0 0
    %10133 = vmatpush1.bf16.msra.mxu0 0
    %10134 = vmatprep.subr.bf16.mxu0 %v9931
    %10135 = vmatpush1.bf16.msra.mxu0 %v9930
    %10136 = vmatprep.subr.bf16.mxu0 %v9907
    %10137 = vmatpush1.bf16.msra.mxu0 %v9906
    %10138 = vmatprep.subr.bf16.mxu0 0
    %10139 = vmatpush2.bf16.msra.mxu0 0
    %10140 = vmatprep.subr.bf16.mxu0 0
    %10141 = vmatpush2.bf16.msra.mxu0 0
    %10142 = vmatprep.subr.bf16.mxu0 0
    %10143 = vmatpush2.bf16.msra.mxu0 0
    %10144 = vmatprep.subr.bf16.mxu0 0
    %10145 = vmatpush2.bf16.msra.mxu0 0
    %10146 = vmatprep.subr.bf16.mxu0 0
    %10147 = vmatpush2.bf16.msra.mxu0 0
    %10148 = vmatprep.subr.bf16.mxu0 0
    %10149 = vmatpush2.bf16.msra.mxu0 0
    %10150 = vmatprep.subr.bf16.mxu0 0
    %10151 = vmatpush2.bf16.msra.mxu0 0
    %10152 = vmatprep.subr.bf16.mxu0 0
    %10153 = vmatpush2.bf16.msra.mxu0 0
    %10154 = vmatprep.mubr.bf16.mxu0 0
    %10155 = vmatmul.mubr.bf16.gmra.mxu0 %v9997
    %v10156 = vpop.f32.mrf.mxu0
    %v10157 = vadd.f32 %v9422, %v10156
    %v10158 = vpop.f32.mrf.mxu0
    %v10159 = vadd.f32 %v9424, %v10158
    %v10160 = vpop.f32.mrf.mxu0
    %v10161 = vpop.f32.mrf.mxu0
    %10162 = vdwg.mxu0
    %10163 = vmatprep.subr.bf16.mxu0 0
    %10164 = vmatpush1.bf16.msra.mxu0 0
    %10165 = vmatprep.subr.bf16.mxu0 0
    %10166 = vmatpush1.bf16.msra.mxu0 0
    %10167 = vmatprep.subr.bf16.mxu0 0
    %10168 = vmatpush1.bf16.msra.mxu0 0
    %10169 = vmatprep.subr.bf16.mxu0 0
    %10170 = vmatpush1.bf16.msra.mxu0 0
    %10171 = vmatprep.subr.bf16.mxu0 0
    %10172 = vmatpush1.bf16.msra.mxu0 0
    %10173 = vmatprep.subr.bf16.mxu0 0
    %10174 = vmatpush1.bf16.msra.mxu0 0
    %10175 = vmatprep.subr.bf16.mxu0 %v9933
    %10176 = vmatpush1.bf16.msra.mxu0 %v9932
    %10177 = vmatprep.subr.bf16.mxu0 %v9909
    %10178 = vmatpush1.bf16.msra.mxu0 %v9908
    %10179 = vmatprep.subr.bf16.mxu0 0
    %10180 = vmatpush2.bf16.msra.mxu0 0
    %10181 = vmatprep.subr.bf16.mxu0 0
    %10182 = vmatpush2.bf16.msra.mxu0 0
    %10183 = vmatprep.subr.bf16.mxu0 0
    %10184 = vmatpush2.bf16.msra.mxu0 0
    %10185 = vmatprep.subr.bf16.mxu0 0
    %10186 = vmatpush2.bf16.msra.mxu0 0
    %10187 = vmatprep.subr.bf16.mxu0 0
    %10188 = vmatpush2.bf16.msra.mxu0 0
    %10189 = vmatprep.subr.bf16.mxu0 0
    %10190 = vmatpush2.bf16.msra.mxu0 0
    %10191 = vmatprep.subr.bf16.mxu0 0
    %10192 = vmatpush2.bf16.msra.mxu0 0
    %10193 = vmatprep.subr.bf16.mxu0 0
    %10194 = vmatpush2.bf16.msra.mxu0 0
    %10195 = vmatprep.mubr.bf16.mxu0 0
    %10196 = vmatmul.mubr.bf16.gmra.mxu0 %v9997
    %v10197 = vpop.f32.mrf.mxu0
    %v10198 = vadd.f32 %v9463, %v10197
    %v10199 = vpop.f32.mrf.mxu0
    %v10200 = vadd.f32 %v9465, %v10199
    %v10201 = vpop.f32.mrf.mxu0
    %v10202 = vpop.f32.mrf.mxu0
    %10203 = vdwg.mxu0
    %10204 = vmatprep.subr.bf16.mxu0 0
    %10205 = vmatpush1.bf16.msra.mxu0 0
    %10206 = vmatprep.subr.bf16.mxu0 0
    %10207 = vmatpush1.bf16.msra.mxu0 0
    %10208 = vmatprep.subr.bf16.mxu0 0
    %10209 = vmatpush1.bf16.msra.mxu0 0
    %10210 = vmatprep.subr.bf16.mxu0 0
    %10211 = vmatpush1.bf16.msra.mxu0 0
    %10212 = vmatprep.subr.bf16.mxu0 0
    %10213 = vmatpush1.bf16.msra.mxu0 0
    %10214 = vmatprep.subr.bf16.mxu0 0
    %10215 = vmatpush1.bf16.msra.mxu0 0
    %10216 = vmatprep.subr.bf16.mxu0 %v9935
    %10217 = vmatpush1.bf16.msra.mxu0 %v9934
    %10218 = vmatprep.subr.bf16.mxu0 %v9911
    %10219 = vmatpush1.bf16.msra.mxu0 %v9910
    %10220 = vmatprep.subr.bf16.mxu0 0
    %10221 = vmatpush2.bf16.msra.mxu0 0
    %10222 = vmatprep.subr.bf16.mxu0 0
    %10223 = vmatpush2.bf16.msra.mxu0 0
    %10224 = vmatprep.subr.bf16.mxu0 0
    %10225 = vmatpush2.bf16.msra.mxu0 0
    %10226 = vmatprep.subr.bf16.mxu0 0
    %10227 = vmatpush2.bf16.msra.mxu0 0
    %10228 = vmatprep.subr.bf16.mxu0 0
    %10229 = vmatpush2.bf16.msra.mxu0 0
    %10230 = vmatprep.subr.bf16.mxu0 0
    %10231 = vmatpush2.bf16.msra.mxu0 0
    %10232 = vmatprep.subr.bf16.mxu0 0
    %10233 = vmatpush2.bf16.msra.mxu0 0
    %10234 = vmatprep.subr.bf16.mxu0 0
    %10235 = vmatpush2.bf16.msra.mxu0 0
    %10236 = vmatprep.mubr.bf16.mxu0 0
    %10237 = vmatmul.mubr.bf16.gmra.mxu0 %v9997
    %v10238 = vpop.f32.mrf.mxu0
    %v10239 = vadd.f32 %v9504, %v10238
    %v10240 = vpop.f32.mrf.mxu0
    %v10241 = vadd.f32 %v9506, %v10240
    %v10242 = vpop.f32.mrf.mxu0
    %v10243 = vpop.f32.mrf.mxu0
    %10244 = vdwg.mxu0
    %10245 = vmatprep.subr.bf16.mxu0 0
    %10246 = vmatpush1.bf16.msra.mxu0 0
    %10247 = vmatprep.subr.bf16.mxu0 0
    %10248 = vmatpush1.bf16.msra.mxu0 0
    %10249 = vmatprep.subr.bf16.mxu0 0
    %10250 = vmatpush1.bf16.msra.mxu0 0
    %10251 = vmatprep.subr.bf16.mxu0 0
    %10252 = vmatpush1.bf16.msra.mxu0 0
    %10253 = vmatprep.subr.bf16.mxu0 0
    %10254 = vmatpush1.bf16.msra.mxu0 0
    %10255 = vmatprep.subr.bf16.mxu0 0
    %10256 = vmatpush1.bf16.msra.mxu0 0
    %10257 = vmatprep.subr.bf16.mxu0 %v9937
    %10258 = vmatpush1.bf16.msra.mxu0 %v9936
    %10259 = vmatprep.subr.bf16.mxu0 %v9913
    %10260 = vmatpush1.bf16.msra.mxu0 %v9912
    %10261 = vmatprep.subr.bf16.mxu0 0
    %10262 = vmatpush2.bf16.msra.mxu0 0
    %10263 = vmatprep.subr.bf16.mxu0 0
    %10264 = vmatpush2.bf16.msra.mxu0 0
    %10265 = vmatprep.subr.bf16.mxu0 0
    %10266 = vmatpush2.bf16.msra.mxu0 0
    %10267 = vmatprep.subr.bf16.mxu0 0
    %10268 = vmatpush2.bf16.msra.mxu0 0
    %10269 = vmatprep.subr.bf16.mxu0 0
    %10270 = vmatpush2.bf16.msra.mxu0 0
    %10271 = vmatprep.subr.bf16.mxu0 0
    %10272 = vmatpush2.bf16.msra.mxu0 0
    %10273 = vmatprep.subr.bf16.mxu0 0
    %10274 = vmatpush2.bf16.msra.mxu0 0
    %10275 = vmatprep.subr.bf16.mxu0 0
    %10276 = vmatpush2.bf16.msra.mxu0 0
    %10277 = vmatprep.mubr.bf16.mxu0 0
    %10278 = vmatmul.mubr.bf16.gmra.mxu0 %v9997
    %v10279 = vpop.f32.mrf.mxu0
    %v10280 = vadd.f32 %v9545, %v10279
    %v10281 = vpop.f32.mrf.mxu0
    %v10282 = vadd.f32 %v9547, %v10281
    %v10283 = vpop.f32.mrf.mxu0
    %v10284 = vpop.f32.mrf.mxu0
    %10285 = vdwg.mxu0
    %10286 = vmatprep.subr.bf16.mxu0 0
    %10287 = vmatpush1.bf16.msra.mxu0 0
    %10288 = vmatprep.subr.bf16.mxu0 0
    %10289 = vmatpush1.bf16.msra.mxu0 0
    %10290 = vmatprep.subr.bf16.mxu0 0
    %10291 = vmatpush1.bf16.msra.mxu0 0
    %10292 = vmatprep.subr.bf16.mxu0 0
    %10293 = vmatpush1.bf16.msra.mxu0 0
    %10294 = vmatprep.subr.bf16.mxu0 0
    %10295 = vmatpush1.bf16.msra.mxu0 0
    %10296 = vmatprep.subr.bf16.mxu0 0
    %10297 = vmatpush1.bf16.msra.mxu0 0
    %10298 = vmatprep.subr.bf16.mxu0 %v9939
    %10299 = vmatpush1.bf16.msra.mxu0 %v9938
    %10300 = vmatprep.subr.bf16.mxu0 %v9915
    %10301 = vmatpush1.bf16.msra.mxu0 %v9914
    %10302 = vmatprep.subr.bf16.mxu0 0
    %10303 = vmatpush2.bf16.msra.mxu0 0
    %10304 = vmatprep.subr.bf16.mxu0 0
    %10305 = vmatpush2.bf16.msra.mxu0 0
    %10306 = vmatprep.subr.bf16.mxu0 0
    %10307 = vmatpush2.bf16.msra.mxu0 0
    %10308 = vmatprep.subr.bf16.mxu0 0
    %10309 = vmatpush2.bf16.msra.mxu0 0
    %10310 = vmatprep.subr.bf16.mxu0 0
    %10311 = vmatpush2.bf16.msra.mxu0 0
    %10312 = vmatprep.subr.bf16.mxu0 0
    %10313 = vmatpush2.bf16.msra.mxu0 0
    %10314 = vmatprep.subr.bf16.mxu0 0
    %10315 = vmatpush2.bf16.msra.mxu0 0
    %10316 = vmatprep.subr.bf16.mxu0 0
    %10317 = vmatpush2.bf16.msra.mxu0 0
    %10318 = vmatprep.mubr.bf16.mxu0 0
    %10319 = vmatmul.mubr.bf16.gmra.mxu0 %v9997
    %v10320 = vpop.f32.mrf.mxu0
    %v10321 = vadd.f32 %v9586, %v10320
    %v10322 = vpop.f32.mrf.mxu0
    %v10323 = vadd.f32 %v9588, %v10322
    %v10324 = vpop.f32.mrf.mxu0
    %v10325 = vpop.f32.mrf.mxu0
    %10326 = vdwg.mxu0
    %10327 = vmatprep.subr.bf16.mxu0 0
    %10328 = vmatpush1.bf16.msra.mxu0 0
    %10329 = vmatprep.subr.bf16.mxu0 0
    %10330 = vmatpush1.bf16.msra.mxu0 0
    %10331 = vmatprep.subr.bf16.mxu0 0
    %10332 = vmatpush1.bf16.msra.mxu0 0
    %10333 = vmatprep.subr.bf16.mxu0 0
    %10334 = vmatpush1.bf16.msra.mxu0 0
    %10335 = vmatprep.subr.bf16.mxu0 0
    %10336 = vmatpush1.bf16.msra.mxu0 0
    %10337 = vmatprep.subr.bf16.mxu0 0
    %10338 = vmatpush1.bf16.msra.mxu0 0
    %10339 = vmatprep.subr.bf16.mxu0 %v9941
    %10340 = vmatpush1.bf16.msra.mxu0 %v9940
    %10341 = vmatprep.subr.bf16.mxu0 %v9917
    %10342 = vmatpush1.bf16.msra.mxu0 %v9916
    %10343 = vmatprep.subr.bf16.mxu0 0
    %10344 = vmatpush2.bf16.msra.mxu0 0
    %10345 = vmatprep.subr.bf16.mxu0 0
    %10346 = vmatpush2.bf16.msra.mxu0 0
    %10347 = vmatprep.subr.bf16.mxu0 0
    %10348 = vmatpush2.bf16.msra.mxu0 0
    %10349 = vmatprep.subr.bf16.mxu0 0
    %10350 = vmatpush2.bf16.msra.mxu0 0
    %10351 = vmatprep.subr.bf16.mxu0 0
    %10352 = vmatpush2.bf16.msra.mxu0 0
    %10353 = vmatprep.subr.bf16.mxu0 0
    %10354 = vmatpush2.bf16.msra.mxu0 0
    %10355 = vmatprep.subr.bf16.mxu0 0
    %10356 = vmatpush2.bf16.msra.mxu0 0
    %10357 = vmatprep.subr.bf16.mxu0 0
    %10358 = vmatpush2.bf16.msra.mxu0 0
    %10359 = vmatprep.mubr.bf16.mxu0 0
    %10360 = vmatmul.mubr.bf16.gmra.mxu0 %v9997
    %v10361 = vpop.f32.mrf.mxu0
    %v10362 = vadd.f32 %v9627, %v10361
    %v10363 = vpop.f32.mrf.mxu0
    %v10364 = vadd.f32 %v9629, %v10363
    %v10365 = vpop.f32.mrf.mxu0
    %v10366 = vpop.f32.mrf.mxu0
    %10367 = vdwg.mxu0
    %10368 = vmatprep.subr.bf16.mxu0 0
    %10369 = vmatpush1.bf16.msra.mxu0 0
    %10370 = vmatprep.subr.bf16.mxu0 0
    %10371 = vmatpush1.bf16.msra.mxu0 0
    %10372 = vmatprep.subr.bf16.mxu0 0
    %10373 = vmatpush1.bf16.msra.mxu0 0
    %10374 = vmatprep.subr.bf16.mxu0 0
    %10375 = vmatpush1.bf16.msra.mxu0 0
    %10376 = vmatprep.subr.bf16.mxu0 0
    %10377 = vmatpush1.bf16.msra.mxu0 0
    %10378 = vmatprep.subr.bf16.mxu0 0
    %10379 = vmatpush1.bf16.msra.mxu0 0
    %10380 = vmatprep.subr.bf16.mxu0 %v9943
    %10381 = vmatpush1.bf16.msra.mxu0 %v9942
    %10382 = vmatprep.subr.bf16.mxu0 %v9919
    %10383 = vmatpush1.bf16.msra.mxu0 %v9918
    %10384 = vmatprep.subr.bf16.mxu0 0
    %10385 = vmatpush2.bf16.msra.mxu0 0
    %10386 = vmatprep.subr.bf16.mxu0 0
    %10387 = vmatpush2.bf16.msra.mxu0 0
    %10388 = vmatprep.subr.bf16.mxu0 0
    %10389 = vmatpush2.bf16.msra.mxu0 0
    %10390 = vmatprep.subr.bf16.mxu0 0
    %10391 = vmatpush2.bf16.msra.mxu0 0
    %10392 = vmatprep.subr.bf16.mxu0 0
    %10393 = vmatpush2.bf16.msra.mxu0 0
    %10394 = vmatprep.subr.bf16.mxu0 0
    %10395 = vmatpush2.bf16.msra.mxu0 0
    %10396 = vmatprep.subr.bf16.mxu0 0
    %10397 = vmatpush2.bf16.msra.mxu0 0
    %10398 = vmatprep.subr.bf16.mxu0 0
    %10399 = vmatpush2.bf16.msra.mxu0 0
    %10400 = vmatprep.mubr.bf16.mxu0 0
    %10401 = vmatmul.mubr.bf16.gmra.mxu0 %v9997
    %v10402 = vpop.f32.mrf.mxu0
    %v10403 = vadd.f32 %v9668, %v10402
    %v10404 = vpop.f32.mrf.mxu0
    %v10405 = vadd.f32 %v9670, %v10404
    %v10406 = vpop.f32.mrf.mxu0
    %v10407 = vpop.f32.mrf.mxu0
    %10408 = vdwg.mxu0
    %10409 = vmatprep.subr.bf16.mxu0 0
    %10410 = vmatpush1.bf16.msra.mxu0 0
    %10411 = vmatprep.subr.bf16.mxu0 0
    %10412 = vmatpush1.bf16.msra.mxu0 0
    %10413 = vmatprep.subr.bf16.mxu0 0
    %10414 = vmatpush1.bf16.msra.mxu0 0
    %10415 = vmatprep.subr.bf16.mxu0 0
    %10416 = vmatpush1.bf16.msra.mxu0 0
    %10417 = vmatprep.subr.bf16.mxu0 0
    %10418 = vmatpush1.bf16.msra.mxu0 0
    %10419 = vmatprep.subr.bf16.mxu0 0
    %10420 = vmatpush1.bf16.msra.mxu0 0
    %10421 = vmatprep.subr.bf16.mxu0 %v9945
    %10422 = vmatpush1.bf16.msra.mxu0 %v9944
    %10423 = vmatprep.subr.bf16.mxu0 %v9921
    %10424 = vmatpush1.bf16.msra.mxu0 %v9920
    %10425 = vmatprep.subr.bf16.mxu0 0
    %10426 = vmatpush2.bf16.msra.mxu0 0
    %10427 = vmatprep.subr.bf16.mxu0 0
    %10428 = vmatpush2.bf16.msra.mxu0 0
    %10429 = vmatprep.subr.bf16.mxu0 0
    %10430 = vmatpush2.bf16.msra.mxu0 0
    %10431 = vmatprep.subr.bf16.mxu0 0
    %10432 = vmatpush2.bf16.msra.mxu0 0
    %10433 = vmatprep.subr.bf16.mxu0 0
    %10434 = vmatpush2.bf16.msra.mxu0 0
    %10435 = vmatprep.subr.bf16.mxu0 0
    %10436 = vmatpush2.bf16.msra.mxu0 0
    %10437 = vmatprep.subr.bf16.mxu0 0
    %10438 = vmatpush2.bf16.msra.mxu0 0
    %10439 = vmatprep.subr.bf16.mxu0 0
    %10440 = vmatpush2.bf16.msra.mxu0 0
    %10441 = vmatprep.mubr.bf16.mxu0 0
    %10442 = vmatmul.mubr.bf16.gmra.mxu0 %v9997
    %v10443 = vpop.f32.mrf.mxu0
    %v10444 = vadd.f32 %v9709, %v10443
    %v10445 = vpop.f32.mrf.mxu0
    %v10446 = vadd.f32 %v9711, %v10445
    %v10447 = vpop.f32.mrf.mxu0
    %v10448 = vpop.f32.mrf.mxu0
    %10449 = vdwg.mxu0
    %10450 = vmatprep.subr.bf16.mxu0 0
    %10451 = vmatpush1.bf16.msra.mxu0 0
    %10452 = vmatprep.subr.bf16.mxu0 0
    %10453 = vmatpush1.bf16.msra.mxu0 0
    %10454 = vmatprep.subr.bf16.mxu0 0
    %10455 = vmatpush1.bf16.msra.mxu0 0
    %10456 = vmatprep.subr.bf16.mxu0 0
    %10457 = vmatpush1.bf16.msra.mxu0 0
    %10458 = vmatprep.subr.bf16.mxu0 0
    %10459 = vmatpush1.bf16.msra.mxu0 0
    %10460 = vmatprep.subr.bf16.mxu0 0
    %10461 = vmatpush1.bf16.msra.mxu0 0
    %10462 = vmatprep.subr.bf16.mxu0 %v9947
    %10463 = vmatpush1.bf16.msra.mxu0 %v9946
    %10464 = vmatprep.subr.bf16.mxu0 %v9923
    %10465 = vmatpush1.bf16.msra.mxu0 %v9922
    %10466 = vmatprep.subr.bf16.mxu0 0
    %10467 = vmatpush2.bf16.msra.mxu0 0
    %10468 = vmatprep.subr.bf16.mxu0 0
    %10469 = vmatpush2.bf16.msra.mxu0 0
    %10470 = vmatprep.subr.bf16.mxu0 0
    %10471 = vmatpush2.bf16.msra.mxu0 0
    %10472 = vmatprep.subr.bf16.mxu0 0
    %10473 = vmatpush2.bf16.msra.mxu0 0
    %10474 = vmatprep.subr.bf16.mxu0 0
    %10475 = vmatpush2.bf16.msra.mxu0 0
    %10476 = vmatprep.subr.bf16.mxu0 0
    %10477 = vmatpush2.bf16.msra.mxu0 0
    %10478 = vmatprep.subr.bf16.mxu0 0
    %10479 = vmatpush2.bf16.msra.mxu0 0
    %10480 = vmatprep.subr.bf16.mxu0 0
    %10481 = vmatpush2.bf16.msra.mxu0 0
    %10482 = vmatprep.mubr.bf16.mxu0 0
    %10483 = vmatmul.mubr.bf16.gmra.mxu0 %v9997
    %v10484 = vpop.f32.mrf.mxu0
    %v10485 = vadd.f32 %v9750, %v10484
    %v10486 = vpop.f32.mrf.mxu0
    %v10487 = vadd.f32 %v9752, %v10486
    %v10488 = vpop.f32.mrf.mxu0
    %v10489 = vpop.f32.mrf.mxu0
    %10490 = vdwg.mxu0
    %v10491 = vld [vmem:[%s83] sm:$0xff]
    %v10492 = vld [vmem:[%s83 + $0x8] sm:$0xff]
    %v10493 = vld [vmem:[%s83 + $0x10] sm:$0xff]
    %v10497 = vlaneseq
    %v10498 = vshrl.u32 %v10497, 7
    %v10499 = vsub.s32 0, %v10498
    %v10500 = vrot.slane %v10491, %v10499
    %v10501 = vlaneseq
    %v10502 = vshrl.u32 %v10501, 7
    %v10503 = vsub.s32 1, %v10502
    %v10504 = vrot.slane %v10491, %v10503
    %v10505 = vlaneseq
    %v10506 = vshrl.u32 %v10505, 7
    %v10507 = vsub.s32 2, %v10506
    %v10508 = vrot.slane %v10491, %v10507
    %v10509 = vlaneseq
    %v10510 = vshrl.u32 %v10509, 7
    %v10511 = vsub.s32 3, %v10510
    %v10512 = vrot.slane %v10491, %v10511
    %v10513 = vlaneseq
    %v10514 = vshrl.u32 %v10513, 7
    %v10515 = vsub.s32 4, %v10514
    %v10516 = vrot.slane %v10491, %v10515
    %v10517 = vlaneseq
    %v10518 = vshrl.u32 %v10517, 7
    %v10519 = vsub.s32 5, %v10518
    %v10520 = vrot.slane %v10491, %v10519
    %v10521 = vlaneseq
    %v10522 = vshrl.u32 %v10521, 7
    %v10523 = vsub.s32 6, %v10522
    %v10524 = vrot.slane %v10491, %v10523
    %v10525 = vlaneseq
    %v10526 = vshrl.u32 %v10525, 7
    %v10527 = vsub.s32 7, %v10526
    %v10528 = vrot.slane %v10491, %v10527
    %v10529 = vlaneseq
    %v10530 = vshrl.u32 %v10529, 7
    %v10531 = vsub.s32 0, %v10530
    %v10532 = vrot.slane %v10492, %v10531
    %v10533 = vlaneseq
    %v10534 = vshrl.u32 %v10533, 7
    %v10535 = vsub.s32 1, %v10534
    %v10536 = vrot.slane %v10492, %v10535
    %v10537 = vlaneseq
    %v10538 = vshrl.u32 %v10537, 7
    %v10539 = vsub.s32 2, %v10538
    %v10540 = vrot.slane %v10492, %v10539
    %v10541 = vlaneseq
    %v10542 = vshrl.u32 %v10541, 7
    %v10543 = vsub.s32 3, %v10542
    %v10544 = vrot.slane %v10492, %v10543
    %v10545 = vlaneseq
    %v10546 = vshrl.u32 %v10545, 7
    %v10547 = vsub.s32 4, %v10546
    %v10548 = vrot.slane %v10492, %v10547
    %v10549 = vlaneseq
    %v10550 = vshrl.u32 %v10549, 7
    %v10551 = vsub.s32 5, %v10550
    %v10552 = vrot.slane %v10492, %v10551
    %v10553 = vlaneseq
    %v10554 = vshrl.u32 %v10553, 7
    %v10555 = vsub.s32 6, %v10554
    %v10556 = vrot.slane %v10492, %v10555
    %v10557 = vlaneseq
    %v10558 = vshrl.u32 %v10557, 7
    %v10559 = vsub.s32 7, %v10558
    %v10560 = vrot.slane %v10492, %v10559
    %v10561 = vlaneseq
    %v10562 = vshrl.u32 %v10561, 7
    %v10563 = vsub.s32 0, %v10562
    %v10564 = vrot.slane %v10493, %v10563
    %v10565 = vlaneseq
    %v10566 = vshrl.u32 %v10565, 7
    %v10567 = vsub.s32 1, %v10566
    %v10568 = vrot.slane %v10493, %v10567
    %v10569 = vlaneseq
    %v10570 = vshrl.u32 %v10569, 7
    %v10571 = vsub.s32 2, %v10570
    %v10572 = vrot.slane %v10493, %v10571
    %v10573 = vlaneseq
    %v10574 = vshrl.u32 %v10573, 7
    %v10575 = vsub.s32 3, %v10574
    %v10576 = vrot.slane %v10493, %v10575
    %v10577 = vlaneseq
    %v10578 = vshrl.u32 %v10577, 7
    %v10579 = vsub.s32 4, %v10578
    %v10580 = vrot.slane %v10493, %v10579
    %v10581 = vlaneseq
    %v10582 = vshrl.u32 %v10581, 7
    %v10583 = vsub.s32 5, %v10582
    %v10584 = vrot.slane %v10493, %v10583
    %v10585 = vlaneseq
    %v10586 = vshrl.u32 %v10585, 7
    %v10587 = vsub.s32 6, %v10586
    %v10588 = vrot.slane %v10493, %v10587
    %v10589 = vlaneseq
    %v10590 = vshrl.u32 %v10589, 7
    %v10591 = vsub.s32 7, %v10590
    %v10592 = vrot.slane %v10493, %v10591
    %v10617 = vadd.f32 %v10034, %v10500
    %v10618 = vadd.f32 %v10036, %v10504
    %v10619 = vadd.f32 %v10075, %v10508
    %v10620 = vadd.f32 %v10077, %v10512
    %v10621 = vadd.f32 %v10116, %v10516
    %v10622 = vadd.f32 %v10118, %v10520
    %v10623 = vadd.f32 %v10157, %v10524
    %v10624 = vadd.f32 %v10159, %v10528
    %v10625 = vadd.f32 %v10198, %v10532
    %v10626 = vadd.f32 %v10200, %v10536
    %v10627 = vadd.f32 %v10239, %v10540
    %v10628 = vadd.f32 %v10241, %v10544
    %v10629 = vadd.f32 %v10280, %v10548
    %v10630 = vadd.f32 %v10282, %v10552
    %v10631 = vadd.f32 %v10321, %v10556
    %v10632 = vadd.f32 %v10323, %v10560
    %v10633 = vadd.f32 %v10362, %v10564
    %v10634 = vadd.f32 %v10364, %v10568
    %v10635 = vadd.f32 %v10403, %v10572
    %v10636 = vadd.f32 %v10405, %v10576
    %v10637 = vadd.f32 %v10444, %v10580
    %v10638 = vadd.f32 %v10446, %v10584
    %v10639 = vadd.f32 %v10485, %v10588
    %v10640 = vadd.f32 %v10487, %v10592
    %v10641 = vxor.u32 %v10617, 2147483648
    %v10642 = vxor.u32 %v10618, 2147483648
    %v10643 = vxor.u32 %v10619, 2147483648
    %v10644 = vxor.u32 %v10620, 2147483648
    %v10645 = vxor.u32 %v10621, 2147483648
    %v10646 = vxor.u32 %v10622, 2147483648
    %v10647 = vxor.u32 %v10623, 2147483648
    %v10648 = vxor.u32 %v10624, 2147483648
    %v10649 = vxor.u32 %v10625, 2147483648
    %v10650 = vxor.u32 %v10626, 2147483648
    %v10651 = vxor.u32 %v10627, 2147483648
    %v10652 = vxor.u32 %v10628, 2147483648
    %v10653 = vxor.u32 %v10629, 2147483648
    %v10654 = vxor.u32 %v10630, 2147483648
    %v10655 = vxor.u32 %v10631, 2147483648
    %v10656 = vxor.u32 %v10632, 2147483648
    %v10657 = vxor.u32 %v10633, 2147483648
    %v10658 = vxor.u32 %v10634, 2147483648
    %v10659 = vxor.u32 %v10635, 2147483648
    %v10660 = vxor.u32 %v10636, 2147483648
    %v10661 = vxor.u32 %v10637, 2147483648
    %v10662 = vxor.u32 %v10638, 2147483648
    %v10663 = vxor.u32 %v10639, 2147483648
    %v10664 = vxor.u32 %v10640, 2147483648
    %v10665 = vmul.f32 %v10641, 1.442695
    %v10666 = vpow.pop %v10665
    %v10667 = vmul.f32 %v10642, 1.442695
    %v10668 = vpow.pop %v10667
    %v10669 = vmul.f32 %v10643, 1.442695
    %v10670 = vpow.pop %v10669
    %v10671 = vmul.f32 %v10644, 1.442695
    %v10672 = vpow.pop %v10671
    %v10673 = vmul.f32 %v10645, 1.442695
    %v10674 = vpow.pop %v10673
    %v10675 = vmul.f32 %v10646, 1.442695
    %v10676 = vpow.pop %v10675
    %v10677 = vmul.f32 %v10647, 1.442695
    %v10678 = vpow.pop %v10677
    %v10679 = vmul.f32 %v10648, 1.442695
    %v10680 = vpow.pop %v10679
    %v10681 = vmul.f32 %v10649, 1.442695
    %v10682 = vpow.pop %v10681
    %v10683 = vmul.f32 %v10650, 1.442695
    %v10684 = vpow.pop %v10683
    %v10685 = vmul.f32 %v10651, 1.442695
    %v10686 = vpow.pop %v10685
    %v10687 = vmul.f32 %v10652, 1.442695
    %v10688 = vpow.pop %v10687
    %v10689 = vmul.f32 %v10653, 1.442695
    %v10690 = vpow.pop %v10689
    %v10691 = vmul.f32 %v10654, 1.442695
    %v10692 = vpow.pop %v10691
    %v10693 = vmul.f32 %v10655, 1.442695
    %v10694 = vpow.pop %v10693
    %v10695 = vmul.f32 %v10656, 1.442695
    %v10696 = vpow.pop %v10695
    %v10697 = vmul.f32 %v10657, 1.442695
    %v10698 = vpow.pop %v10697
    %v10699 = vmul.f32 %v10658, 1.442695
    %v10700 = vpow.pop %v10699
    %v10701 = vmul.f32 %v10659, 1.442695
    %v10702 = vpow.pop %v10701
    %v10703 = vmul.f32 %v10660, 1.442695
    %v10704 = vpow.pop %v10703
    %v10705 = vmul.f32 %v10661, 1.442695
    %v10706 = vpow.pop %v10705
    %v10707 = vmul.f32 %v10662, 1.442695
    %v10708 = vpow.pop %v10707
    %v10709 = vmul.f32 %v10663, 1.442695
    %v10710 = vpow.pop %v10709
    %v10711 = vmul.f32 %v10664, 1.442695
    %v10712 = vpow.pop %v10711
    %v10713 = vadd.f32 %v10666, 1.0
    %v10714 = vadd.f32 %v10668, 1.0
    %v10715 = vadd.f32 %v10670, 1.0
    %v10716 = vadd.f32 %v10672, 1.0
    %v10717 = vadd.f32 %v10674, 1.0
    %v10718 = vadd.f32 %v10676, 1.0
    %v10719 = vadd.f32 %v10678, 1.0
    %v10720 = vadd.f32 %v10680, 1.0
    %v10721 = vadd.f32 %v10682, 1.0
    %v10722 = vadd.f32 %v10684, 1.0
    %v10723 = vadd.f32 %v10686, 1.0
    %v10724 = vadd.f32 %v10688, 1.0
    %v10725 = vadd.f32 %v10690, 1.0
    %v10726 = vadd.f32 %v10692, 1.0
    %v10727 = vadd.f32 %v10694, 1.0
    %v10728 = vadd.f32 %v10696, 1.0
    %v10729 = vadd.f32 %v10698, 1.0
    %v10730 = vadd.f32 %v10700, 1.0
    %v10731 = vadd.f32 %v10702, 1.0
    %v10732 = vadd.f32 %v10704, 1.0
    %v10733 = vadd.f32 %v10706, 1.0
    %v10734 = vadd.f32 %v10708, 1.0
    %v10735 = vadd.f32 %v10710, 1.0
    %v10736 = vadd.f32 %v10712, 1.0
    %v10737 = vrcp.pop %v10713
    %v10738 = vmul.f32 1.0, %v10737
    %v10739 = vrcp.pop %v10714
    %v10740 = vmul.f32 1.0, %v10739
    %v10741 = vrcp.pop %v10715
    %v10742 = vmul.f32 1.0, %v10741
    %v10743 = vrcp.pop %v10716
    %v10744 = vmul.f32 1.0, %v10743
    %v10745 = vrcp.pop %v10717
    %v10746 = vmul.f32 1.0, %v10745
    %v10747 = vrcp.pop %v10718
    %v10748 = vmul.f32 1.0, %v10747
    %v10749 = vrcp.pop %v10719
    %v10750 = vmul.f32 1.0, %v10749
    %v10751 = vrcp.pop %v10720
    %v10752 = vmul.f32 1.0, %v10751
    %v10753 = vrcp.pop %v10721
    %v10754 = vmul.f32 1.0, %v10753
    %v10755 = vrcp.pop %v10722
    %v10756 = vmul.f32 1.0, %v10755
    %v10757 = vrcp.pop %v10723
    %v10758 = vmul.f32 1.0, %v10757
    %v10759 = vrcp.pop %v10724
    %v10760 = vmul.f32 1.0, %v10759
    %v10761 = vrcp.pop %v10725
    %v10762 = vmul.f32 1.0, %v10761
    %v10763 = vrcp.pop %v10726
    %v10764 = vmul.f32 1.0, %v10763
    %v10765 = vrcp.pop %v10727
    %v10766 = vmul.f32 1.0, %v10765
    %v10767 = vrcp.pop %v10728
    %v10768 = vmul.f32 1.0, %v10767
    %v10769 = vrcp.pop %v10729
    %v10770 = vmul.f32 1.0, %v10769
    %v10771 = vrcp.pop %v10730
    %v10772 = vmul.f32 1.0, %v10771
    %v10773 = vrcp.pop %v10731
    %v10774 = vmul.f32 1.0, %v10773
    %v10775 = vrcp.pop %v10732
    %v10776 = vmul.f32 1.0, %v10775
    %v10777 = vrcp.pop %v10733
    %v10778 = vmul.f32 1.0, %v10777
    %v10779 = vrcp.pop %v10734
    %v10780 = vmul.f32 1.0, %v10779
    %v10781 = vrcp.pop %v10735
    %v10782 = vmul.f32 1.0, %v10781
    %v10783 = vrcp.pop %v10736
    %v10784 = vmul.f32 1.0, %v10783
    %v10809 = vcombine.low %v10738, %v10740
    %v10810 = vcombine.low %v10742, %v10744
    %v10812 = vunpack.c.l.s4 1983009808
    %v10813 = vunpack.c.0.s8 %v10812
    %v10814 = vlaneseq
    %v10815 = vshrl.u32 %v10814, 7
    %v10816 = vsub.s32 %v10813, %v10815
    %v10817 = vrot.slane %v10809, %v10816
    %v10819 = vunpack.c.l.s4 1983009808
    %v10820 = vunpack.c.0.s8 %v10819
    %v10821 = vlaneseq
    %v10822 = vshrl.u32 %v10821, 7
    %v10823 = vsub.s32 %v10820, %v10822
    %v10824 = vrot.slane %v10810, %v10823
    %v10825 = vcombine.low %v10817, %v10824
    %v10826 = vcombine.low %v10746, %v10748
    %v10827 = vcombine.low %v10750, %v10752
    %v10829 = vunpack.c.l.s4 1983009808
    %v10830 = vunpack.c.0.s8 %v10829
    %v10831 = vlaneseq
    %v10832 = vshrl.u32 %v10831, 7
    %v10833 = vsub.s32 %v10830, %v10832
    %v10834 = vrot.slane %v10826, %v10833
    %v10836 = vunpack.c.l.s4 1983009808
    %v10837 = vunpack.c.0.s8 %v10836
    %v10838 = vlaneseq
    %v10839 = vshrl.u32 %v10838, 7
    %v10840 = vsub.s32 %v10837, %v10839
    %v10841 = vrot.slane %v10827, %v10840
    %v10842 = vcombine.low %v10834, %v10841
    %v10843 = vcombine.low %v10754, %v10756
    %v10844 = vcombine.low %v10758, %v10760
    %v10846 = vunpack.c.l.s4 1983009808
    %v10847 = vunpack.c.0.s8 %v10846
    %v10848 = vlaneseq
    %v10849 = vshrl.u32 %v10848, 7
    %v10850 = vsub.s32 %v10847, %v10849
    %v10851 = vrot.slane %v10843, %v10850
    %v10853 = vunpack.c.l.s4 1983009808
    %v10854 = vunpack.c.0.s8 %v10853
    %v10855 = vlaneseq
    %v10856 = vshrl.u32 %v10855, 7
    %v10857 = vsub.s32 %v10854, %v10856
    %v10858 = vrot.slane %v10844, %v10857
    %v10859 = vcombine.low %v10851, %v10858
    %v10860 = vcombine.low %v10762, %v10764
    %v10861 = vcombine.low %v10766, %v10768
    %v10863 = vunpack.c.l.s4 1983009808
    %v10864 = vunpack.c.0.s8 %v10863
    %v10865 = vlaneseq
    %v10866 = vshrl.u32 %v10865, 7
    %v10867 = vsub.s32 %v10864, %v10866
    %v10868 = vrot.slane %v10860, %v10867
    %v10870 = vunpack.c.l.s4 1983009808
    %v10871 = vunpack.c.0.s8 %v10870
    %v10872 = vlaneseq
    %v10873 = vshrl.u32 %v10872, 7
    %v10874 = vsub.s32 %v10871, %v10873
    %v10875 = vrot.slane %v10861, %v10874
    %v10876 = vcombine.low %v10868, %v10875
    %v10877 = vcombine.low %v10770, %v10772
    %v10878 = vcombine.low %v10774, %v10776
    %v10880 = vunpack.c.l.s4 1983009808
    %v10881 = vunpack.c.0.s8 %v10880
    %v10882 = vlaneseq
    %v10883 = vshrl.u32 %v10882, 7
    %v10884 = vsub.s32 %v10881, %v10883
    %v10885 = vrot.slane %v10877, %v10884
    %v10887 = vunpack.c.l.s4 1983009808
    %v10888 = vunpack.c.0.s8 %v10887
    %v10889 = vlaneseq
    %v10890 = vshrl.u32 %v10889, 7
    %v10891 = vsub.s32 %v10888, %v10890
    %v10892 = vrot.slane %v10878, %v10891
    %v10893 = vcombine.low %v10885, %v10892
    %v10894 = vcombine.low %v10778, %v10780
    %v10895 = vcombine.low %v10782, %v10784
    %v10897 = vunpack.c.l.s4 1983009808
    %v10898 = vunpack.c.0.s8 %v10897
    %v10899 = vlaneseq
    %v10900 = vshrl.u32 %v10899, 7
    %v10901 = vsub.s32 %v10898, %v10900
    %v10902 = vrot.slane %v10894, %v10901
    %v10904 = vunpack.c.l.s4 1983009808
    %v10905 = vunpack.c.0.s8 %v10904
    %v10906 = vlaneseq
    %v10907 = vshrl.u32 %v10906, 7
    %v10908 = vsub.s32 %v10905, %v10907
    %v10909 = vrot.slane %v10895, %v10908
    %v10910 = vcombine.low %v10902, %v10909
    %10917 = vst [vmem:[%s85] sm:$0xff] %v10825
    %10918 = vst [vmem:[%s85 + $0x8] sm:$0xff] %v10842
    %10919 = vst [vmem:[%s85 + $0x10] sm:$0xff] %v10859
    %10920 = vst [vmem:[%s85 + $0x18] sm:$0xff] %v10876
    %10921 = vst [vmem:[%s85 + $0x20] sm:$0xff] %v10893
    %10922 = vst [vmem:[%s85 + $0x28] sm:$0xff] %v10910
    // Predicated region
    $region250: #{carso_forward.1} parent=1 // pred_check
      _
    $region251: #{carso_forward.1} parent=1 // pred_check_branch
      %10924 = sbr.rel (0) target = $region253
    $region252: #{carso_forward.1} parent=1 // pred_region
      _
    $region253: #{carso_forward.1} parent=1 // pred_fallthru
      _
    // Predicated region
    $region254: #{carso_forward.1} parent=1 // pred_check
      _
    $region255: #{carso_forward.1} parent=1 // pred_check_branch
      %10926 = sbr.rel (0) target = $region257
    $region256: #{carso_forward.1} parent=1 // pred_region
      _
    $region257: #{carso_forward.1} parent=1 // pred_fallthru
      _
    // Predicated region
    $region258: #{carso_forward.1} parent=1 // pred_check
      _
    $region259: #{carso_forward.1} parent=1 // pred_check_branch
      %10928 = sbr.rel (0) target = $region261
    $region260: #{carso_forward.1} parent=1 // pred_region
      _
    $region261: #{carso_forward.1} parent=1 // pred_fallthru
      _
    // Predicated region
    $region262: #{carso_forward.1} parent=1 // pred_check
      _
    $region263: #{carso_forward.1} parent=1 // pred_check_branch
      %10930 = sbr.rel (0) target = $region265
    $region264: #{carso_forward.1} parent=1 // pred_region
      _
    $region265: #{carso_forward.1} parent=1 // pred_fallthru
      _
    %10931 = vsyncpa [#allocation3], 1
    %10932 = vsyncpa [#allocation5], 1
    %10933 = vsyncpa [#allocation8], 1
    %10934 = vsyncpa [#allocation11], 1
    %10935 = vsyncpa [#allocation14], 1
    %10936 = vsyncpa [#allocation17], 1
    %10937 = vsyncpa [#allocation20], 1
    %10938 = vsyncpa [#allocation23], 1
    %10939 = vsyncpa [#allocation26], 1
    %10940 = vsyncpa [#allocation29], 1
    %10941 = vsyncpa [#allocation32], 1

</llo_original>
